<compile_context>
chip_gen: v7x
topology: tpu7x:2x2x1
jax: 0.10.0
libtpu: 0.0.40
codegen_flags: <defaults>
</compile_context>

<pallas_src>
import numpy as np

import jax
import jax.numpy as jnp
from jax.experimental import pallas as pl
from jax.experimental.pallas import tpu as pltpu

BN_EPS = 1e-5

# (conv, bn_main, bn_gate, stride, padding) for the three gated layers.
_GATED_LAYERS = (
    ("upconv1", "upconv1_bn", "upconv1_gated_bn", (9, 1), (0, 2)),
    ("upconv2", "upconv2_bn", "upconv2_gated_bn", (2, 2), (1, 3)),
    ("upconv3", "upconv3_bn", "upconv3_gated_bn", (2, 2), (1, 3)),
)
_FINAL_LAYER = ("upconv4", (1, 1), (1, 4))


# ---------------- parameter-side packing (host numpy, runs ONCE) ----------------

def _convT_operators(w, N, H, W, stride, padding):
    """Factor ConvTranspose2d into   out = sum_kh A[kh] @ x2d @ G[kh]
    with x2d[(n,h), (ci,w)] and out[(n,oh), (co,ow)].

    No stride/kernel divisibility restrictions (unlike the old phase split)."""
    Cin, Cout, KH, KW = w.shape
    sh, sw = stride
    ph, pw = padding
    OH = (H - 1) * sh - 2 * ph + KH
    OW = (W - 1) * sw - 2 * pw + KW

    # G[kh][(ci,iw),(co,ow)] = W[ci,co,kh,kw]  with  kw = ow + pw - iw*sw.
    G = np.zeros((KH, Cin * W, Cout * OW), np.float32)
    for kh in range(KH):
        for iw in range(W):
            for ow in range(OW):
                kw = ow + pw - iw * sw
                if 0 <= kw < KW:
                    G[kh, iw::W, ow::OW] = w[:, :, kh, kw]

    # A[kh][(n,oh),(m,ih)] = [n==m and oh == ih*sh - ph + kh]  (already transposed).
    A = np.zeros((KH, N * OH, N * H), np.float32)
    for kh in range(KH):
        for ih in range(H):
            oh = ih * sh - ph + kh
            if 0 <= oh < OH:
                for n in range(N):
                    A[kh, n * OH + oh, n * H + ih] = 1.0
    return G, A, OH, OW, Cout


def _pack_decoder(params, N, H, W):
    """Build every kernel operand on the host.  Returns (operand list, meta)."""
    g_ops, a_ops, m_ops, bn_rows = [], [], [], []
    layer_meta = []
    h, w_sp = H, W
    for conv_name, bn_m, bn_g, stride, padding in _GATED_LAYERS:
        wt, _bias = params[conv_name]   # conv bias cancels exactly in train-mode BN
        G, AT, OH, OW, Cout = _convT_operators(np.asarray(wt, np.float32),
                                               N, h, w_sp, stride, padding)
        cols = Cout * OW
        # within-channel column-sum / broadcast indicator
        M = np.kron(np.eye(Cout, dtype=np.float32),
                    np.ones((OW, OW), np.float32))
        gm, bm = (np.asarray(v, np.float32) for v in params[bn_m])
        gg, bg = (np.asarray(v, np.float32) for v in params[bn_g])
        bn_rows.append(np.stack([np.repeat(gm, OW), np.repeat(bm, OW),
                                 np.repeat(gg, OW), np.repeat(bg, OW)], axis=0))
        g_ops.append(G)
        a_ops.append(AT)
        m_ops.append(M)
        layer_meta.append(dict(KH=G.shape[0], rows=N * OH, cols=cols,
                               count=N * OH * OW))
        h, w_sp = OH, OW

    conv_name, stride, padding = _FINAL_LAYER
    wt, bias4 = params[conv_name]
    G4, A4, OH4, OW4, Cout4 = _convT_operators(np.asarray(wt, np.float32),
                                               N, h, w_sp, stride, padding)
    cols4 = Cout4 * OW4
    g_ops.append(G4)
    a_ops.append(A4)
    final_meta = dict(KH=G4.shape[0], rows=N * OH4, cols=cols4,
                      N=N, OH=OH4, OW=OW4, Cout=Cout4)

    # Merged side operand: rows 4l..4l+3 = per-column (gamma, beta, gamma_g,
    # beta_g) of gated layer l; row 12 = per-column final conv bias.
    side_w = max([b.shape[1] for b in bn_rows] + [cols4])
    side = np.zeros((16, side_w), np.float32)
    for i, bn in enumerate(bn_rows):
        side[4 * i:4 * i + 4, :bn.shape[1]] = bn
    side[12, :cols4] = np.repeat(np.asarray(bias4, np.float32), OW4)

    ops = g_ops + a_ops + m_ops + [side]
    meta = dict(layers=layer_meta, final=final_meta)
    return ops, meta


# ------------------------------ fused Pallas kernel ------------------------------

def _make_decoder_kernel(meta):
    layers = meta["layers"]
    fin = meta["final"]

    def kernel(x_ref, g1, g2, g3, g4, a1, a2, a3, a4, m1, m2, m3, side, o_ref):

        def conv_t(x, g_ref, a_ref, lm):
            # out = sum_kh A[kh] @ (x @ G[kh])   -- static unrolled loop, all MXU.
            y = jnp.zeros((lm["rows"], lm["cols"]), jnp.float32)
            for kh in range(lm["KH"]):
                v = jnp.dot(x, g_ref[kh], preferred_element_type=jnp.float32)
                y = y + jnp.dot(a_ref[kh], v, preferred_element_type=jnp.float32)
            return y

        def gated_bn(y, m_ref, row0, lm):
            # training-mode BatchNorm2d (batch stats, biased variance), centered
            # two-pass; per-channel sums/broadcasts via the indicator matmul.
            cols = lm["cols"]
            inv_cnt = 1.0 / float(lm["count"])
            gm = side[row0 + 0:row0 + 1, :cols]
            bm = side[row0 + 1:row0 + 2, :cols]
            gg = side[row0 + 2:row0 + 3, :cols]
            bg = side[row0 + 3:row0 + 4, :cols]
            m_mat = m_ref[...]
            rs = jnp.sum(y, axis=0, keepdims=True)
            mean = jnp.dot(rs, m_mat, preferred_element_type=jnp.float32) * inv_cnt
            c = y - mean
            ss = jnp.sum(c * c, axis=0, keepdims=True)
            var = jnp.dot(ss, m_mat, preferred_element_type=jnp.float32) * inv_cnt
            yn = c * jax.lax.rsqrt(var + BN_EPS)
            return (yn * gm + bm) * jax.nn.sigmoid(yn * gg + bg)

        x = x_ref[...]
        x = gated_bn(conv_t(x, g1, a1, layers[0]), m1, 0, layers[0])
        x = gated_bn(conv_t(x, g2, a2, layers[1]), m2, 4, layers[1])
        x = gated_bn(conv_t(x, g3, a3, layers[2]), m3, 8, layers[2])
        y = conv_t(x, g4, a4, fin)
        o_ref[...] = y + side[12:13, :fin["cols"]]

    return kernel


def _full_spec(shape):
    nd = len(shape)
    return pl.BlockSpec(tuple(int(s) for s in shape),
                        lambda i, _n=nd: (0,) * _n)


def build_decoder_forward(params, z_shape):
    """Pack params once (host), build the single fused pallas_call, return a
    jitted forward(z, label) -> (mu, logvar) in NCHW."""
    N, Cin, H, W = (int(s) for s in z_shape)
    host_ops, meta = _pack_decoder(params, N, H, W)
    dev_ops = [jnp.asarray(o) for o in host_ops]
    fin = meta["final"]

    x_shape = (N * H, Cin * W)
    out_shape = (fin["rows"], fin["cols"])

    decode = pl.pallas_call(
        _make_decoder_kernel(meta),
        out_shape=jax.ShapeDtypeStruct(out_shape, jnp.float32),
        grid=(1,),
        in_specs=[_full_spec(x_shape)] + [_full_spec(o.shape) for o in host_ops],
        out_specs=_full_spec(out_shape),
        compiler_params=pltpu.CompilerParams(
            dimension_semantics=("arbitrary",)),
    )

    @jax.jit
    def forward(z_nchw, label):
        del label                                    # unused, same as PyTorch forward()
        x2d = jnp.transpose(z_nchw, (0, 2, 1, 3)).reshape(N * H, Cin * W)
        y = decode(x2d, *dev_ops)                    # (N*OH, Cout*OW)
        y = y.reshape(N, fin["OH"], fin["Cout"], fin["OW"])
        y = jnp.transpose(y, (0, 2, 1, 3))           # NCHW
        return y[:, 0:1], y[:, 1:2]                  # mu, logvar

    return forward


# ------------------------------ pure-JAX reference ------------------------------

def _conv_transpose_ref(x_nhwc, w_t, b, stride, padding):
    _, _, KH, KW = w_t.shape
    rhs = jnp.transpose(w_t[:, :, ::-1, ::-1], (2, 3, 0, 1))       # (KH, KW, Cin, Cout)
    ph_, pw_ = padding
    out = jax.lax.conv_general_dilated(
        x_nhwc, rhs, window_strides=(1, 1),
        padding=((KH - 1 - ph_, KH - 1 - ph_), (KW - 1 - pw_, KW - 1 - pw_)),
        lhs_dilation=stride,
        dimension_numbers=("NHWC", "HWIO", "NHWC"),
        precision=jax.lax.Precision.HIGHEST)
    return out + b


def _batchnorm_train_ref(y, gamma, beta):
    mean = jnp.mean(y, axis=(0, 1, 2))
    var = jnp.mean(jnp.square(y - mean), axis=(0, 1, 2))           # biased variance
    return (y - mean) * jax.lax.rsqrt(var + BN_EPS) * gamma + beta


def decoder_forward_ref(params, z_nchw, label):
    del label
    x = jnp.transpose(z_nchw, (0, 2, 3, 1))
    for name, bn_m, bn_g, stride, padding in _GATED_LAYERS:
        w_t, b = params[name]
        y = _conv_transpose_ref(x, w_t, b, stride, padding)
        g_m, b_m = params[bn_m]
        g_g, b_g = params[bn_g]
        x = _batchnorm_train_ref(y, g_m, b_m) * jax.nn.sigmoid(
            _batchnorm_train_ref(y, g_g, b_g))
    name, stride, padding = _FINAL_LAYER
    w_t, b = params[name]
    h8 = _conv_transpose_ref(x, w_t, b, stride, padding)           # (N, OH, OW, 2)
    mu = jnp.transpose(h8[..., 0:1], (0, 3, 1, 2))
    logvar = jnp.transpose(h8[..., 1:2], (0, 3, 1, 2))
    return mu, logvar


# --------------------------------- parameters ---------------------------------

def init_params(key):
    def conv_t(k, cin, cout, kh, kw):
        k1, k2 = jax.random.split(k)
        w = 0.1 * jax.random.normal(k1, (cin, cout, kh, kw), jnp.float32)
        b = 0.1 * jax.random.normal(k2, (cout,), jnp.float32)
        return w, b

    def bn(k, c):
        k1, k2 = jax.random.split(k)
        g = 1.0 + 0.1 * jax.random.normal(k1, (c,), jnp.float32)
        b = 0.1 * jax.random.normal(k2, (c,), jnp.float32)
        return g, b

    ks = jax.random.split(key, 10)
    return {
        "upconv1": conv_t(ks[0], 8, 10, 9, 5),
        "upconv1_bn": bn(ks[1], 10),
        "upconv1_gated_bn": bn(ks[2], 10),
        "upconv2": conv_t(ks[3], 10, 10, 4, 8),
        "upconv2_bn": bn(ks[4], 10),
        "upconv2_gated_bn": bn(ks[5], 10),
        "upconv3": conv_t(ks[6], 10, 5, 4, 8),
        "upconv3_bn": bn(ks[7], 5),
        "upconv3_gated_bn": bn(ks[8], 5),
        "upconv4": conv_t(ks[9], 5, 2, 3, 9),
        # upconv{1,2,3}_gated conv weights omitted: unused by forward()
    }


# ------------------------------------ main ------------------------------------

if __name__ == "__main__":
    key = jax.random.PRNGKey(0)
    k_params, k_z, k_label = jax.random.split(key, 3)

    params = init_params(k_params)
    z = jax.random.normal(k_z, (2, 8, 2, 8), jnp.float32)          # NCHW, 8 channels
    label = jax.random.normal(k_label, (2, 4), jnp.float32)        # unused by forward

    fwd = build_decoder_forward(params, z.shape)                   # packs params once
    mu, logvar = fwd(z, label)
    jax.block_until_ready((mu, logvar))

    # shape checks: (H,W)=(2,8) -> conv1 (18,8) -> conv2 (36,16) -> conv3 (72,32)
    assert mu.shape == (2, 1, 72, 32), mu.shape
    assert logvar.shape == (2, 1, 72, 32), logvar.shape
    assert bool(jnp.all(jnp.isfinite(mu))) and bool(jnp.all(jnp.isfinite(logvar)))

    # numerics check vs an independent pure-JAX reference (tolerance covers MXU
    # f32 pass configuration; BN stats themselves are centered / cancellation-free)
    mu_ref, logvar_ref = jax.jit(decoder_forward_ref)(params, z, label)
    err = max(float(jnp.max(jnp.abs(mu - mu_ref))),
              float(jnp.max(jnp.abs(logvar - logvar_ref))))
    assert err < 3e-2, f"mismatch vs reference: max abs err {err}"

    print("KERNEL_OK")
</pallas_src>

<mosaic_0001>
module attributes {stable_mosaic.version = 11 : i64} {
  func.func @kernel(%arg0: i32, %arg1: memref<4x64xf32, #tpu.memory_space<vmem>>, %arg2: memref<9x64x80xf32, #tpu.memory_space<vmem>>, %arg3: memref<4x80x160xf32, #tpu.memory_space<vmem>>, %arg4: memref<4x160x160xf32, #tpu.memory_space<vmem>>, %arg5: memref<3x160x64xf32, #tpu.memory_space<vmem>>, %arg6: memref<9x36x4xf32, #tpu.memory_space<vmem>>, %arg7: memref<4x72x36xf32, #tpu.memory_space<vmem>>, %arg8: memref<4x144x72xf32, #tpu.memory_space<vmem>>, %arg9: memref<3x144x144xf32, #tpu.memory_space<vmem>>, %arg10: memref<80x80xf32, #tpu.memory_space<vmem>>, %arg11: memref<160x160xf32, #tpu.memory_space<vmem>>, %arg12: memref<160x160xf32, #tpu.memory_space<vmem>>, %arg13: memref<16x160xf32, #tpu.memory_space<vmem>>, %arg14: memref<144x64xf32, #tpu.memory_space<vmem>>) attributes {dimension_semantics = [#tpu.dimension_semantics<arbitrary>], iteration_bounds = array<i64: 1>, scalar_prefetch = 0 : i64, scratch_operands = 0 : i64, tpu.core_type = #tpu.core_type<tc>, window_params = [{pipeline_mode = #tpu.pipeline_mode<synchronous>, transform_indices = @transform_0, window_bounds = array<i64: 4, 64>}, {pipeline_mode = #tpu.pipeline_mode<synchronous>, transform_indices = @transform_1, window_bounds = array<i64: 9, 64, 80>}, {pipeline_mode = #tpu.pipeline_mode<synchronous>, transform_indices = @transform_2, window_bounds = array<i64: 4, 80, 160>}, {pipeline_mode = #tpu.pipeline_mode<synchronous>, transform_indices = @transform_3, window_bounds = array<i64: 4, 160, 160>}, {pipeline_mode = #tpu.pipeline_mode<synchronous>, transform_indices = @transform_4, window_bounds = array<i64: 3, 160, 64>}, {pipeline_mode = #tpu.pipeline_mode<synchronous>, transform_indices = @transform_5, window_bounds = array<i64: 9, 36, 4>}, {pipeline_mode = #tpu.pipeline_mode<synchronous>, transform_indices = @transform_6, window_bounds = array<i64: 4, 72, 36>}, {pipeline_mode = #tpu.pipeline_mode<synchronous>, transform_indices = @transform_7, window_bounds = array<i64: 4, 144, 72>}, {pipeline_mode = #tpu.pipeline_mode<synchronous>, transform_indices = @transform_8, window_bounds = array<i64: 3, 144, 144>}, {pipeline_mode = #tpu.pipeline_mode<synchronous>, transform_indices = @transform_9, window_bounds = array<i64: 80, 80>}, {pipeline_mode = #tpu.pipeline_mode<synchronous>, transform_indices = @transform_10, window_bounds = array<i64: 160, 160>}, {pipeline_mode = #tpu.pipeline_mode<synchronous>, transform_indices = @transform_11, window_bounds = array<i64: 160, 160>}, {pipeline_mode = #tpu.pipeline_mode<synchronous>, transform_indices = @transform_12, window_bounds = array<i64: 16, 160>}, {pipeline_mode = #tpu.pipeline_mode<synchronous>, transform_indices = @transform_13, window_bounds = array<i64: 144, 64>}]} {
    %c0 = arith.constant 0 : index
    %c0_0 = arith.constant 0 : index
    %0 = vector.load %arg1[%c0, %c0_0] : memref<4x64xf32, #tpu.memory_space<vmem>>, vector<4x64xf32>
    %cst = arith.constant 0.000000e+00 : f32
    %1 = vector.broadcast %cst : f32 to vector<36x80xf32>
    %c0_1 = arith.constant 0 : index
    %c0_2 = arith.constant 0 : index
    %c0_3 = arith.constant 0 : index
    %2 = vector.load %arg2[%c0_1, %c0_2, %c0_3] : memref<9x64x80xf32, #tpu.memory_space<vmem>>, vector<1x64x80xf32>
    %3 = vector.shape_cast %2 : vector<1x64x80xf32> to vector<64x80xf32>
    %cst_4 = arith.constant dense<0.000000e+00> : vector<4x80xf32>
    %4 = tpu.matmul %0, %3, %cst_4 {dimension_numbers = #tpu.dot_dimension_numbers<[1], [0], [0], [1], [0, 0, 1, 1], [], []>} : vector<4x64xf32>, vector<64x80xf32>, vector<4x80xf32> -> vector<4x80xf32>
    %c0_5 = arith.constant 0 : index
    %c0_6 = arith.constant 0 : index
    %c0_7 = arith.constant 0 : index
    %5 = vector.load %arg6[%c0_5, %c0_6, %c0_7] : memref<9x36x4xf32, #tpu.memory_space<vmem>>, vector<1x36x4xf32>
    %6 = vector.shape_cast %5 : vector<1x36x4xf32> to vector<36x4xf32>
    %cst_8 = arith.constant dense<0.000000e+00> : vector<36x80xf32>
    %7 = tpu.matmul %6, %4, %cst_8 {dimension_numbers = #tpu.dot_dimension_numbers<[1], [0], [0], [1], [0, 0, 1, 1], [], []>} : vector<36x4xf32>, vector<4x80xf32>, vector<36x80xf32> -> vector<36x80xf32>
    %8 = arith.addf %1, %7 : vector<36x80xf32>
    %c1 = arith.constant 1 : index
    %c0_9 = arith.constant 0 : index
    %c0_10 = arith.constant 0 : index
    %9 = vector.load %arg2[%c1, %c0_9, %c0_10] : memref<9x64x80xf32, #tpu.memory_space<vmem>>, vector<1x64x80xf32>
    %10 = vector.shape_cast %9 : vector<1x64x80xf32> to vector<64x80xf32>
    %cst_11 = arith.constant dense<0.000000e+00> : vector<4x80xf32>
    %11 = tpu.matmul %0, %10, %cst_11 {dimension_numbers = #tpu.dot_dimension_numbers<[1], [0], [0], [1], [0, 0, 1, 1], [], []>} : vector<4x64xf32>, vector<64x80xf32>, vector<4x80xf32> -> vector<4x80xf32>
    %c1_12 = arith.constant 1 : index
    %c0_13 = arith.constant 0 : index
    %c0_14 = arith.constant 0 : index
    %12 = vector.load %arg6[%c1_12, %c0_13, %c0_14] : memref<9x36x4xf32, #tpu.memory_space<vmem>>, vector<1x36x4xf32>
    %13 = vector.shape_cast %12 : vector<1x36x4xf32> to vector<36x4xf32>
    %cst_15 = arith.constant dense<0.000000e+00> : vector<36x80xf32>
    %14 = tpu.matmul %13, %11, %cst_15 {dimension_numbers = #tpu.dot_dimension_numbers<[1], [0], [0], [1], [0, 0, 1, 1], [], []>} : vector<36x4xf32>, vector<4x80xf32>, vector<36x80xf32> -> vector<36x80xf32>
    %15 = arith.addf %8, %14 : vector<36x80xf32>
    %c2 = arith.constant 2 : index
    %c0_16 = arith.constant 0 : index
    %c0_17 = arith.constant 0 : index
    %16 = vector.load %arg2[%c2, %c0_16, %c0_17] : memref<9x64x80xf32, #tpu.memory_space<vmem>>, vector<1x64x80xf32>
    %17 = vector.shape_cast %16 : vector<1x64x80xf32> to vector<64x80xf32>
    %cst_18 = arith.constant dense<0.000000e+00> : vector<4x80xf32>
    %18 = tpu.matmul %0, %17, %cst_18 {dimension_numbers = #tpu.dot_dimension_numbers<[1], [0], [0], [1], [0, 0, 1, 1], [], []>} : vector<4x64xf32>, vector<64x80xf32>, vector<4x80xf32> -> vector<4x80xf32>
    %c2_19 = arith.constant 2 : index
    %c0_20 = arith.constant 0 : index
    %c0_21 = arith.constant 0 : index
    %19 = vector.load %arg6[%c2_19, %c0_20, %c0_21] : memref<9x36x4xf32, #tpu.memory_space<vmem>>, vector<1x36x4xf32>
    %20 = vector.shape_cast %19 : vector<1x36x4xf32> to vector<36x4xf32>
    %cst_22 = arith.constant dense<0.000000e+00> : vector<36x80xf32>
    %21 = tpu.matmul %20, %18, %cst_22 {dimension_numbers = #tpu.dot_dimension_numbers<[1], [0], [0], [1], [0, 0, 1, 1], [], []>} : vector<36x4xf32>, vector<4x80xf32>, vector<36x80xf32> -> vector<36x80xf32>
    %22 = arith.addf %15, %21 : vector<36x80xf32>
    %c3 = arith.constant 3 : index
    %c0_23 = arith.constant 0 : index
    %c0_24 = arith.constant 0 : index
    %23 = vector.load %arg2[%c3, %c0_23, %c0_24] : memref<9x64x80xf32, #tpu.memory_space<vmem>>, vector<1x64x80xf32>
    %24 = vector.shape_cast %23 : vector<1x64x80xf32> to vector<64x80xf32>
    %cst_25 = arith.constant dense<0.000000e+00> : vector<4x80xf32>
    %25 = tpu.matmul %0, %24, %cst_25 {dimension_numbers = #tpu.dot_dimension_numbers<[1], [0], [0], [1], [0, 0, 1, 1], [], []>} : vector<4x64xf32>, vector<64x80xf32>, vector<4x80xf32> -> vector<4x80xf32>
    %c3_26 = arith.constant 3 : index
    %c0_27 = arith.constant 0 : index
    %c0_28 = arith.constant 0 : index
    %26 = vector.load %arg6[%c3_26, %c0_27, %c0_28] : memref<9x36x4xf32, #tpu.memory_space<vmem>>, vector<1x36x4xf32>
    %27 = vector.shape_cast %26 : vector<1x36x4xf32> to vector<36x4xf32>
    %cst_29 = arith.constant dense<0.000000e+00> : vector<36x80xf32>
    %28 = tpu.matmul %27, %25, %cst_29 {dimension_numbers = #tpu.dot_dimension_numbers<[1], [0], [0], [1], [0, 0, 1, 1], [], []>} : vector<36x4xf32>, vector<4x80xf32>, vector<36x80xf32> -> vector<36x80xf32>
    %29 = arith.addf %22, %28 : vector<36x80xf32>
    %c4 = arith.constant 4 : index
    %c0_30 = arith.constant 0 : index
    %c0_31 = arith.constant 0 : index
    %30 = vector.load %arg2[%c4, %c0_30, %c0_31] : memref<9x64x80xf32, #tpu.memory_space<vmem>>, vector<1x64x80xf32>
    %31 = vector.shape_cast %30 : vector<1x64x80xf32> to vector<64x80xf32>
    %cst_32 = arith.constant dense<0.000000e+00> : vector<4x80xf32>
    %32 = tpu.matmul %0, %31, %cst_32 {dimension_numbers = #tpu.dot_dimension_numbers<[1], [0], [0], [1], [0, 0, 1, 1], [], []>} : vector<4x64xf32>, vector<64x80xf32>, vector<4x80xf32> -> vector<4x80xf32>
    %c4_33 = arith.constant 4 : index
    %c0_34 = arith.constant 0 : index
    %c0_35 = arith.constant 0 : index
    %33 = vector.load %arg6[%c4_33, %c0_34, %c0_35] : memref<9x36x4xf32, #tpu.memory_space<vmem>>, vector<1x36x4xf32>
    %34 = vector.shape_cast %33 : vector<1x36x4xf32> to vector<36x4xf32>
    %cst_36 = arith.constant dense<0.000000e+00> : vector<36x80xf32>
    %35 = tpu.matmul %34, %32, %cst_36 {dimension_numbers = #tpu.dot_dimension_numbers<[1], [0], [0], [1], [0, 0, 1, 1], [], []>} : vector<36x4xf32>, vector<4x80xf32>, vector<36x80xf32> -> vector<36x80xf32>
    %36 = arith.addf %29, %35 : vector<36x80xf32>
    %c5 = arith.constant 5 : index
    %c0_37 = arith.constant 0 : index
    %c0_38 = arith.constant 0 : index
    %37 = vector.load %arg2[%c5, %c0_37, %c0_38] : memref<9x64x80xf32, #tpu.memory_space<vmem>>, vector<1x64x80xf32>
    %38 = vector.shape_cast %37 : vector<1x64x80xf32> to vector<64x80xf32>
    %cst_39 = arith.constant dense<0.000000e+00> : vector<4x80xf32>
    %39 = tpu.matmul %0, %38, %cst_39 {dimension_numbers = #tpu.dot_dimension_numbers<[1], [0], [0], [1], [0, 0, 1, 1], [], []>} : vector<4x64xf32>, vector<64x80xf32>, vector<4x80xf32> -> vector<4x80xf32>
    %c5_40 = arith.constant 5 : index
    %c0_41 = arith.constant 0 : index
    %c0_42 = arith.constant 0 : index
    %40 = vector.load %arg6[%c5_40, %c0_41, %c0_42] : memref<9x36x4xf32, #tpu.memory_space<vmem>>, vector<1x36x4xf32>
    %41 = vector.shape_cast %40 : vector<1x36x4xf32> to vector<36x4xf32>
    %cst_43 = arith.constant dense<0.000000e+00> : vector<36x80xf32>
    %42 = tpu.matmul %41, %39, %cst_43 {dimension_numbers = #tpu.dot_dimension_numbers<[1], [0], [0], [1], [0, 0, 1, 1], [], []>} : vector<36x4xf32>, vector<4x80xf32>, vector<36x80xf32> -> vector<36x80xf32>
    %43 = arith.addf %36, %42 : vector<36x80xf32>
    %c6 = arith.constant 6 : index
    %c0_44 = arith.constant 0 : index
    %c0_45 = arith.constant 0 : index
    %44 = vector.load %arg2[%c6, %c0_44, %c0_45] : memref<9x64x80xf32, #tpu.memory_space<vmem>>, vector<1x64x80xf32>
    %45 = vector.shape_cast %44 : vector<1x64x80xf32> to vector<64x80xf32>
    %cst_46 = arith.constant dense<0.000000e+00> : vector<4x80xf32>
    %46 = tpu.matmul %0, %45, %cst_46 {dimension_numbers = #tpu.dot_dimension_numbers<[1], [0], [0], [1], [0, 0, 1, 1], [], []>} : vector<4x64xf32>, vector<64x80xf32>, vector<4x80xf32> -> vector<4x80xf32>
    %c6_47 = arith.constant 6 : index
    %c0_48 = arith.constant 0 : index
    %c0_49 = arith.constant 0 : index
    %47 = vector.load %arg6[%c6_47, %c0_48, %c0_49] : memref<9x36x4xf32, #tpu.memory_space<vmem>>, vector<1x36x4xf32>
    %48 = vector.shape_cast %47 : vector<1x36x4xf32> to vector<36x4xf32>
    %cst_50 = arith.constant dense<0.000000e+00> : vector<36x80xf32>
    %49 = tpu.matmul %48, %46, %cst_50 {dimension_numbers = #tpu.dot_dimension_numbers<[1], [0], [0], [1], [0, 0, 1, 1], [], []>} : vector<36x4xf32>, vector<4x80xf32>, vector<36x80xf32> -> vector<36x80xf32>
    %50 = arith.addf %43, %49 : vector<36x80xf32>
    %c7 = arith.constant 7 : index
    %c0_51 = arith.constant 0 : index
    %c0_52 = arith.constant 0 : index
    %51 = vector.load %arg2[%c7, %c0_51, %c0_52] : memref<9x64x80xf32, #tpu.memory_space<vmem>>, vector<1x64x80xf32>
    %52 = vector.shape_cast %51 : vector<1x64x80xf32> to vector<64x80xf32>
    %cst_53 = arith.constant dense<0.000000e+00> : vector<4x80xf32>
    %53 = tpu.matmul %0, %52, %cst_53 {dimension_numbers = #tpu.dot_dimension_numbers<[1], [0], [0], [1], [0, 0, 1, 1], [], []>} : vector<4x64xf32>, vector<64x80xf32>, vector<4x80xf32> -> vector<4x80xf32>
    %c7_54 = arith.constant 7 : index
    %c0_55 = arith.constant 0 : index
    %c0_56 = arith.constant 0 : index
    %54 = vector.load %arg6[%c7_54, %c0_55, %c0_56] : memref<9x36x4xf32, #tpu.memory_space<vmem>>, vector<1x36x4xf32>
    %55 = vector.shape_cast %54 : vector<1x36x4xf32> to vector<36x4xf32>
    %cst_57 = arith.constant dense<0.000000e+00> : vector<36x80xf32>
    %56 = tpu.matmul %55, %53, %cst_57 {dimension_numbers = #tpu.dot_dimension_numbers<[1], [0], [0], [1], [0, 0, 1, 1], [], []>} : vector<36x4xf32>, vector<4x80xf32>, vector<36x80xf32> -> vector<36x80xf32>
    %57 = arith.addf %50, %56 : vector<36x80xf32>
    %c8 = arith.constant 8 : index
    %c0_58 = arith.constant 0 : index
    %c0_59 = arith.constant 0 : index
    %58 = vector.load %arg2[%c8, %c0_58, %c0_59] : memref<9x64x80xf32, #tpu.memory_space<vmem>>, vector<1x64x80xf32>
    %59 = vector.shape_cast %58 : vector<1x64x80xf32> to vector<64x80xf32>
    %cst_60 = arith.constant dense<0.000000e+00> : vector<4x80xf32>
    %60 = tpu.matmul %0, %59, %cst_60 {dimension_numbers = #tpu.dot_dimension_numbers<[1], [0], [0], [1], [0, 0, 1, 1], [], []>} : vector<4x64xf32>, vector<64x80xf32>, vector<4x80xf32> -> vector<4x80xf32>
    %c8_61 = arith.constant 8 : index
    %c0_62 = arith.constant 0 : index
    %c0_63 = arith.constant 0 : index
    %61 = vector.load %arg6[%c8_61, %c0_62, %c0_63] : memref<9x36x4xf32, #tpu.memory_space<vmem>>, vector<1x36x4xf32>
    %62 = vector.shape_cast %61 : vector<1x36x4xf32> to vector<36x4xf32>
    %cst_64 = arith.constant dense<0.000000e+00> : vector<36x80xf32>
    %63 = tpu.matmul %62, %60, %cst_64 {dimension_numbers = #tpu.dot_dimension_numbers<[1], [0], [0], [1], [0, 0, 1, 1], [], []>} : vector<36x4xf32>, vector<4x80xf32>, vector<36x80xf32> -> vector<36x80xf32>
    %64 = arith.addf %57, %63 : vector<36x80xf32>
    %c0_65 = arith.constant 0 : index
    %c0_66 = arith.constant 0 : index
    %65 = vector.load %arg13[%c0_65, %c0_66] : memref<16x160xf32, #tpu.memory_space<vmem>>, vector<1x80xf32>
    %c1_67 = arith.constant 1 : index
    %c0_68 = arith.constant 0 : index
    %66 = vector.load %arg13[%c1_67, %c0_68] : memref<16x160xf32, #tpu.memory_space<vmem>>, vector<1x80xf32>
    %c2_69 = arith.constant 2 : index
    %c0_70 = arith.constant 0 : index
    %67 = vector.load %arg13[%c2_69, %c0_70] : memref<16x160xf32, #tpu.memory_space<vmem>>, vector<1x80xf32>
    %c3_71 = arith.constant 3 : index
    %c0_72 = arith.constant 0 : index
    %68 = vector.load %arg13[%c3_71, %c0_72] : memref<16x160xf32, #tpu.memory_space<vmem>>, vector<1x80xf32>
    %c0_73 = arith.constant 0 : index
    %c0_74 = arith.constant 0 : index
    %69 = vector.load %arg10[%c0_73, %c0_74] : memref<80x80xf32, #tpu.memory_space<vmem>>, vector<80x80xf32>
    %cst_75 = arith.constant dense<0.000000e+00> : vector<80xf32>
    %70 = vector.multi_reduction <add>, %64, %cst_75 [0] : vector<36x80xf32> to vector<80xf32>
    %71 = vector.shape_cast %70 : vector<80xf32> to vector<1x80xf32>
    %cst_76 = arith.constant dense<0.000000e+00> : vector<1x80xf32>
    %72 = tpu.matmul %71, %69, %cst_76 {dimension_numbers = #tpu.dot_dimension_numbers<[1], [0], [0], [1], [0, 0, 1, 1], [], []>} : vector<1x80xf32>, vector<80x80xf32>, vector<1x80xf32> -> vector<1x80xf32>
    %cst_77 = arith.constant 0.00347222225 : f32
    %73 = vector.broadcast %cst_77 : f32 to vector<1x80xf32>
    %74 = arith.mulf %72, %73 : vector<1x80xf32>
    %75 = vector.broadcast %74 : vector<1x80xf32> to vector<36x80xf32>
    %76 = arith.subf %64, %75 : vector<36x80xf32>
    %77 = arith.mulf %76, %76 : vector<36x80xf32>
    %cst_78 = arith.constant dense<0.000000e+00> : vector<80xf32>
    %78 = vector.multi_reduction <add>, %77, %cst_78 [0] : vector<36x80xf32> to vector<80xf32>
    %79 = vector.shape_cast %78 : vector<80xf32> to vector<1x80xf32>
    %cst_79 = arith.constant dense<0.000000e+00> : vector<1x80xf32>
    %80 = tpu.matmul %79, %69, %cst_79 {dimension_numbers = #tpu.dot_dimension_numbers<[1], [0], [0], [1], [0, 0, 1, 1], [], []>} : vector<1x80xf32>, vector<80x80xf32>, vector<1x80xf32> -> vector<1x80xf32>
    %cst_80 = arith.constant 0.00347222225 : f32
    %81 = vector.broadcast %cst_80 : f32 to vector<1x80xf32>
    %82 = arith.mulf %80, %81 : vector<1x80xf32>
    %cst_81 = arith.constant 9.99999974E-6 : f32
    %83 = vector.broadcast %cst_81 : f32 to vector<1x80xf32>
    %84 = arith.addf %82, %83 : vector<1x80xf32>
    %85 = math.rsqrt %84 : vector<1x80xf32>
    %86 = vector.broadcast %85 : vector<1x80xf32> to vector<36x80xf32>
    %87 = arith.mulf %76, %86 : vector<36x80xf32>
    %88 = vector.broadcast %65 : vector<1x80xf32> to vector<36x80xf32>
    %89 = arith.mulf %87, %88 : vector<36x80xf32>
    %90 = vector.broadcast %66 : vector<1x80xf32> to vector<36x80xf32>
    %91 = arith.addf %89, %90 : vector<36x80xf32>
    %92 = vector.broadcast %67 : vector<1x80xf32> to vector<36x80xf32>
    %93 = arith.mulf %87, %92 : vector<36x80xf32>
    %94 = vector.broadcast %68 : vector<1x80xf32> to vector<36x80xf32>
    %95 = arith.addf %93, %94 : vector<36x80xf32>
    %96 = arith.negf %95 : vector<36x80xf32>
    %97 = math.exp %96 : vector<36x80xf32>
    %cst_82 = arith.constant 1.000000e+00 : f32
    %98 = vector.broadcast %cst_82 : f32 to vector<36x80xf32>
    %99 = arith.addf %98, %97 : vector<36x80xf32>
    %100 = arith.divf %98, %99 : vector<36x80xf32>
    %101 = arith.mulf %91, %100 : vector<36x80xf32>
    %cst_83 = arith.constant 0.000000e+00 : f32
    %102 = vector.broadcast %cst_83 : f32 to vector<72x160xf32>
    %c0_84 = arith.constant 0 : index
    %c0_85 = arith.constant 0 : index
    %c0_86 = arith.constant 0 : index
    %103 = vector.load %arg3[%c0_84, %c0_85, %c0_86] : memref<4x80x160xf32, #tpu.memory_space<vmem>>, vector<1x80x160xf32>
    %104 = vector.shape_cast %103 : vector<1x80x160xf32> to vector<80x160xf32>
    %cst_87 = arith.constant dense<0.000000e+00> : vector<36x160xf32>
    %105 = tpu.matmul %101, %104, %cst_87 {dimension_numbers = #tpu.dot_dimension_numbers<[1], [0], [0], [1], [0, 0, 1, 1], [], []>} : vector<36x80xf32>, vector<80x160xf32>, vector<36x160xf32> -> vector<36x160xf32>
    %c0_88 = arith.constant 0 : index
    %c0_89 = arith.constant 0 : index
    %c0_90 = arith.constant 0 : index
    %106 = vector.load %arg7[%c0_88, %c0_89, %c0_90] : memref<4x72x36xf32, #tpu.memory_space<vmem>>, vector<1x72x36xf32>
    %107 = vector.shape_cast %106 : vector<1x72x36xf32> to vector<72x36xf32>
    %cst_91 = arith.constant dense<0.000000e+00> : vector<72x160xf32>
    %108 = tpu.matmul %107, %105, %cst_91 {dimension_numbers = #tpu.dot_dimension_numbers<[1], [0], [0], [1], [0, 0, 1, 1], [], []>} : vector<72x36xf32>, vector<36x160xf32>, vector<72x160xf32> -> vector<72x160xf32>
    %109 = arith.addf %102, %108 : vector<72x160xf32>
    %c1_92 = arith.constant 1 : index
    %c0_93 = arith.constant 0 : index
    %c0_94 = arith.constant 0 : index
    %110 = vector.load %arg3[%c1_92, %c0_93, %c0_94] : memref<4x80x160xf32, #tpu.memory_space<vmem>>, vector<1x80x160xf32>
    %111 = vector.shape_cast %110 : vector<1x80x160xf32> to vector<80x160xf32>
    %cst_95 = arith.constant dense<0.000000e+00> : vector<36x160xf32>
    %112 = tpu.matmul %101, %111, %cst_95 {dimension_numbers = #tpu.dot_dimension_numbers<[1], [0], [0], [1], [0, 0, 1, 1], [], []>} : vector<36x80xf32>, vector<80x160xf32>, vector<36x160xf32> -> vector<36x160xf32>
    %c1_96 = arith.constant 1 : index
    %c0_97 = arith.constant 0 : index
    %c0_98 = arith.constant 0 : index
    %113 = vector.load %arg7[%c1_96, %c0_97, %c0_98] : memref<4x72x36xf32, #tpu.memory_space<vmem>>, vector<1x72x36xf32>
    %114 = vector.shape_cast %113 : vector<1x72x36xf32> to vector<72x36xf32>
    %cst_99 = arith.constant dense<0.000000e+00> : vector<72x160xf32>
    %115 = tpu.matmul %114, %112, %cst_99 {dimension_numbers = #tpu.dot_dimension_numbers<[1], [0], [0], [1], [0, 0, 1, 1], [], []>} : vector<72x36xf32>, vector<36x160xf32>, vector<72x160xf32> -> vector<72x160xf32>
    %116 = arith.addf %109, %115 : vector<72x160xf32>
    %c2_100 = arith.constant 2 : index
    %c0_101 = arith.constant 0 : index
    %c0_102 = arith.constant 0 : index
    %117 = vector.load %arg3[%c2_100, %c0_101, %c0_102] : memref<4x80x160xf32, #tpu.memory_space<vmem>>, vector<1x80x160xf32>
    %118 = vector.shape_cast %117 : vector<1x80x160xf32> to vector<80x160xf32>
    %cst_103 = arith.constant dense<0.000000e+00> : vector<36x160xf32>
    %119 = tpu.matmul %101, %118, %cst_103 {dimension_numbers = #tpu.dot_dimension_numbers<[1], [0], [0], [1], [0, 0, 1, 1], [], []>} : vector<36x80xf32>, vector<80x160xf32>, vector<36x160xf32> -> vector<36x160xf32>
    %c2_104 = arith.constant 2 : index
    %c0_105 = arith.constant 0 : index
    %c0_106 = arith.constant 0 : index
    %120 = vector.load %arg7[%c2_104, %c0_105, %c0_106] : memref<4x72x36xf32, #tpu.memory_space<vmem>>, vector<1x72x36xf32>
    %121 = vector.shape_cast %120 : vector<1x72x36xf32> to vector<72x36xf32>
    %cst_107 = arith.constant dense<0.000000e+00> : vector<72x160xf32>
    %122 = tpu.matmul %121, %119, %cst_107 {dimension_numbers = #tpu.dot_dimension_numbers<[1], [0], [0], [1], [0, 0, 1, 1], [], []>} : vector<72x36xf32>, vector<36x160xf32>, vector<72x160xf32> -> vector<72x160xf32>
    %123 = arith.addf %116, %122 : vector<72x160xf32>
    %c3_108 = arith.constant 3 : index
    %c0_109 = arith.constant 0 : index
    %c0_110 = arith.constant 0 : index
    %124 = vector.load %arg3[%c3_108, %c0_109, %c0_110] : memref<4x80x160xf32, #tpu.memory_space<vmem>>, vector<1x80x160xf32>
    %125 = vector.shape_cast %124 : vector<1x80x160xf32> to vector<80x160xf32>
    %cst_111 = arith.constant dense<0.000000e+00> : vector<36x160xf32>
    %126 = tpu.matmul %101, %125, %cst_111 {dimension_numbers = #tpu.dot_dimension_numbers<[1], [0], [0], [1], [0, 0, 1, 1], [], []>} : vector<36x80xf32>, vector<80x160xf32>, vector<36x160xf32> -> vector<36x160xf32>
    %c3_112 = arith.constant 3 : index
    %c0_113 = arith.constant 0 : index
    %c0_114 = arith.constant 0 : index
    %127 = vector.load %arg7[%c3_112, %c0_113, %c0_114] : memref<4x72x36xf32, #tpu.memory_space<vmem>>, vector<1x72x36xf32>
    %128 = vector.shape_cast %127 : vector<1x72x36xf32> to vector<72x36xf32>
    %cst_115 = arith.constant dense<0.000000e+00> : vector<72x160xf32>
    %129 = tpu.matmul %128, %126, %cst_115 {dimension_numbers = #tpu.dot_dimension_numbers<[1], [0], [0], [1], [0, 0, 1, 1], [], []>} : vector<72x36xf32>, vector<36x160xf32>, vector<72x160xf32> -> vector<72x160xf32>
    %130 = arith.addf %123, %129 : vector<72x160xf32>
    %c4_116 = arith.constant 4 : index
    %c0_117 = arith.constant 0 : index
    %131 = vector.load %arg13[%c4_116, %c0_117] : memref<16x160xf32, #tpu.memory_space<vmem>>, vector<1x160xf32>
    %c5_118 = arith.constant 5 : index
    %c0_119 = arith.constant 0 : index
    %132 = vector.load %arg13[%c5_118, %c0_119] : memref<16x160xf32, #tpu.memory_space<vmem>>, vector<1x160xf32>
    %c6_120 = arith.constant 6 : index
    %c0_121 = arith.constant 0 : index
    %133 = vector.load %arg13[%c6_120, %c0_121] : memref<16x160xf32, #tpu.memory_space<vmem>>, vector<1x160xf32>
    %c7_122 = arith.constant 7 : index
    %c0_123 = arith.constant 0 : index
    %134 = vector.load %arg13[%c7_122, %c0_123] : memref<16x160xf32, #tpu.memory_space<vmem>>, vector<1x160xf32>
    %c0_124 = arith.constant 0 : index
    %c0_125 = arith.constant 0 : index
    %135 = vector.load %arg11[%c0_124, %c0_125] : memref<160x160xf32, #tpu.memory_space<vmem>>, vector<160x160xf32>
    %cst_126 = arith.constant dense<0.000000e+00> : vector<160xf32>
    %136 = vector.multi_reduction <add>, %130, %cst_126 [0] : vector<72x160xf32> to vector<160xf32>
    %137 = vector.shape_cast %136 : vector<160xf32> to vector<1x160xf32>
    %cst_127 = arith.constant dense<0.000000e+00> : vector<1x160xf32>
    %138 = tpu.matmul %137, %135, %cst_127 {dimension_numbers = #tpu.dot_dimension_numbers<[1], [0], [0], [1], [0, 0, 1, 1], [], []>} : vector<1x160xf32>, vector<160x160xf32>, vector<1x160xf32> -> vector<1x160xf32>
    %cst_128 = arith.constant 8.68055562E-4 : f32
    %139 = vector.broadcast %cst_128 : f32 to vector<1x160xf32>
    %140 = arith.mulf %138, %139 : vector<1x160xf32>
    %141 = vector.broadcast %140 : vector<1x160xf32> to vector<72x160xf32>
    %142 = arith.subf %130, %141 : vector<72x160xf32>
    %143 = arith.mulf %142, %142 : vector<72x160xf32>
    %cst_129 = arith.constant dense<0.000000e+00> : vector<160xf32>
    %144 = vector.multi_reduction <add>, %143, %cst_129 [0] : vector<72x160xf32> to vector<160xf32>
    %145 = vector.shape_cast %144 : vector<160xf32> to vector<1x160xf32>
    %cst_130 = arith.constant dense<0.000000e+00> : vector<1x160xf32>
    %146 = tpu.matmul %145, %135, %cst_130 {dimension_numbers = #tpu.dot_dimension_numbers<[1], [0], [0], [1], [0, 0, 1, 1], [], []>} : vector<1x160xf32>, vector<160x160xf32>, vector<1x160xf32> -> vector<1x160xf32>
    %cst_131 = arith.constant 8.68055562E-4 : f32
    %147 = vector.broadcast %cst_131 : f32 to vector<1x160xf32>
    %148 = arith.mulf %146, %147 : vector<1x160xf32>
    %cst_132 = arith.constant 9.99999974E-6 : f32
    %149 = vector.broadcast %cst_132 : f32 to vector<1x160xf32>
    %150 = arith.addf %148, %149 : vector<1x160xf32>
    %151 = math.rsqrt %150 : vector<1x160xf32>
    %152 = vector.broadcast %151 : vector<1x160xf32> to vector<72x160xf32>
    %153 = arith.mulf %142, %152 : vector<72x160xf32>
    %154 = vector.broadcast %131 : vector<1x160xf32> to vector<72x160xf32>
    %155 = arith.mulf %153, %154 : vector<72x160xf32>
    %156 = vector.broadcast %132 : vector<1x160xf32> to vector<72x160xf32>
    %157 = arith.addf %155, %156 : vector<72x160xf32>
    %158 = vector.broadcast %133 : vector<1x160xf32> to vector<72x160xf32>
    %159 = arith.mulf %153, %158 : vector<72x160xf32>
    %160 = vector.broadcast %134 : vector<1x160xf32> to vector<72x160xf32>
    %161 = arith.addf %159, %160 : vector<72x160xf32>
    %162 = arith.negf %161 : vector<72x160xf32>
    %163 = math.exp %162 : vector<72x160xf32>
    %cst_133 = arith.constant 1.000000e+00 : f32
    %164 = vector.broadcast %cst_133 : f32 to vector<72x160xf32>
    %165 = arith.addf %164, %163 : vector<72x160xf32>
    %166 = arith.divf %164, %165 : vector<72x160xf32>
    %167 = arith.mulf %157, %166 : vector<72x160xf32>
    %cst_134 = arith.constant 0.000000e+00 : f32
    %168 = vector.broadcast %cst_134 : f32 to vector<144x160xf32>
    %c0_135 = arith.constant 0 : index
    %c0_136 = arith.constant 0 : index
    %c0_137 = arith.constant 0 : index
    %169 = vector.load %arg4[%c0_135, %c0_136, %c0_137] : memref<4x160x160xf32, #tpu.memory_space<vmem>>, vector<1x160x160xf32>
    %170 = vector.shape_cast %169 : vector<1x160x160xf32> to vector<160x160xf32>
    %cst_138 = arith.constant dense<0.000000e+00> : vector<72x160xf32>
    %171 = tpu.matmul %167, %170, %cst_138 {dimension_numbers = #tpu.dot_dimension_numbers<[1], [0], [0], [1], [0, 0, 1, 1], [], []>} : vector<72x160xf32>, vector<160x160xf32>, vector<72x160xf32> -> vector<72x160xf32>
    %c0_139 = arith.constant 0 : index
    %c0_140 = arith.constant 0 : index
    %c0_141 = arith.constant 0 : index
    %172 = vector.load %arg8[%c0_139, %c0_140, %c0_141] : memref<4x144x72xf32, #tpu.memory_space<vmem>>, vector<1x144x72xf32>
    %173 = vector.shape_cast %172 : vector<1x144x72xf32> to vector<144x72xf32>
    %cst_142 = arith.constant dense<0.000000e+00> : vector<144x160xf32>
    %174 = tpu.matmul %173, %171, %cst_142 {dimension_numbers = #tpu.dot_dimension_numbers<[1], [0], [0], [1], [0, 0, 1, 1], [], []>} : vector<144x72xf32>, vector<72x160xf32>, vector<144x160xf32> -> vector<144x160xf32>
    %175 = arith.addf %168, %174 : vector<144x160xf32>
    %c1_143 = arith.constant 1 : index
    %c0_144 = arith.constant 0 : index
    %c0_145 = arith.constant 0 : index
    %176 = vector.load %arg4[%c1_143, %c0_144, %c0_145] : memref<4x160x160xf32, #tpu.memory_space<vmem>>, vector<1x160x160xf32>
    %177 = vector.shape_cast %176 : vector<1x160x160xf32> to vector<160x160xf32>
    %cst_146 = arith.constant dense<0.000000e+00> : vector<72x160xf32>
    %178 = tpu.matmul %167, %177, %cst_146 {dimension_numbers = #tpu.dot_dimension_numbers<[1], [0], [0], [1], [0, 0, 1, 1], [], []>} : vector<72x160xf32>, vector<160x160xf32>, vector<72x160xf32> -> vector<72x160xf32>
    %c1_147 = arith.constant 1 : index
    %c0_148 = arith.constant 0 : index
    %c0_149 = arith.constant 0 : index
    %179 = vector.load %arg8[%c1_147, %c0_148, %c0_149] : memref<4x144x72xf32, #tpu.memory_space<vmem>>, vector<1x144x72xf32>
    %180 = vector.shape_cast %179 : vector<1x144x72xf32> to vector<144x72xf32>
    %cst_150 = arith.constant dense<0.000000e+00> : vector<144x160xf32>
    %181 = tpu.matmul %180, %178, %cst_150 {dimension_numbers = #tpu.dot_dimension_numbers<[1], [0], [0], [1], [0, 0, 1, 1], [], []>} : vector<144x72xf32>, vector<72x160xf32>, vector<144x160xf32> -> vector<144x160xf32>
    %182 = arith.addf %175, %181 : vector<144x160xf32>
    %c2_151 = arith.constant 2 : index
    %c0_152 = arith.constant 0 : index
    %c0_153 = arith.constant 0 : index
    %183 = vector.load %arg4[%c2_151, %c0_152, %c0_153] : memref<4x160x160xf32, #tpu.memory_space<vmem>>, vector<1x160x160xf32>
    %184 = vector.shape_cast %183 : vector<1x160x160xf32> to vector<160x160xf32>
    %cst_154 = arith.constant dense<0.000000e+00> : vector<72x160xf32>
    %185 = tpu.matmul %167, %184, %cst_154 {dimension_numbers = #tpu.dot_dimension_numbers<[1], [0], [0], [1], [0, 0, 1, 1], [], []>} : vector<72x160xf32>, vector<160x160xf32>, vector<72x160xf32> -> vector<72x160xf32>
    %c2_155 = arith.constant 2 : index
    %c0_156 = arith.constant 0 : index
    %c0_157 = arith.constant 0 : index
    %186 = vector.load %arg8[%c2_155, %c0_156, %c0_157] : memref<4x144x72xf32, #tpu.memory_space<vmem>>, vector<1x144x72xf32>
    %187 = vector.shape_cast %186 : vector<1x144x72xf32> to vector<144x72xf32>
    %cst_158 = arith.constant dense<0.000000e+00> : vector<144x160xf32>
    %188 = tpu.matmul %187, %185, %cst_158 {dimension_numbers = #tpu.dot_dimension_numbers<[1], [0], [0], [1], [0, 0, 1, 1], [], []>} : vector<144x72xf32>, vector<72x160xf32>, vector<144x160xf32> -> vector<144x160xf32>
    %189 = arith.addf %182, %188 : vector<144x160xf32>
    %c3_159 = arith.constant 3 : index
    %c0_160 = arith.constant 0 : index
    %c0_161 = arith.constant 0 : index
    %190 = vector.load %arg4[%c3_159, %c0_160, %c0_161] : memref<4x160x160xf32, #tpu.memory_space<vmem>>, vector<1x160x160xf32>
    %191 = vector.shape_cast %190 : vector<1x160x160xf32> to vector<160x160xf32>
    %cst_162 = arith.constant dense<0.000000e+00> : vector<72x160xf32>
    %192 = tpu.matmul %167, %191, %cst_162 {dimension_numbers = #tpu.dot_dimension_numbers<[1], [0], [0], [1], [0, 0, 1, 1], [], []>} : vector<72x160xf32>, vector<160x160xf32>, vector<72x160xf32> -> vector<72x160xf32>
    %c3_163 = arith.constant 3 : index
    %c0_164 = arith.constant 0 : index
    %c0_165 = arith.constant 0 : index
    %193 = vector.load %arg8[%c3_163, %c0_164, %c0_165] : memref<4x144x72xf32, #tpu.memory_space<vmem>>, vector<1x144x72xf32>
    %194 = vector.shape_cast %193 : vector<1x144x72xf32> to vector<144x72xf32>
    %cst_166 = arith.constant dense<0.000000e+00> : vector<144x160xf32>
    %195 = tpu.matmul %194, %192, %cst_166 {dimension_numbers = #tpu.dot_dimension_numbers<[1], [0], [0], [1], [0, 0, 1, 1], [], []>} : vector<144x72xf32>, vector<72x160xf32>, vector<144x160xf32> -> vector<144x160xf32>
    %196 = arith.addf %189, %195 : vector<144x160xf32>
    %c8_167 = arith.constant 8 : index
    %c0_168 = arith.constant 0 : index
    %197 = vector.load %arg13[%c8_167, %c0_168] : memref<16x160xf32, #tpu.memory_space<vmem>>, vector<1x160xf32>
    %c9 = arith.constant 9 : index
    %c0_169 = arith.constant 0 : index
    %198 = vector.load %arg13[%c9, %c0_169] : memref<16x160xf32, #tpu.memory_space<vmem>>, vector<1x160xf32>
    %c10 = arith.constant 10 : index
    %c0_170 = arith.constant 0 : index
    %199 = vector.load %arg13[%c10, %c0_170] : memref<16x160xf32, #tpu.memory_space<vmem>>, vector<1x160xf32>
    %c11 = arith.constant 11 : index
    %c0_171 = arith.constant 0 : index
    %200 = vector.load %arg13[%c11, %c0_171] : memref<16x160xf32, #tpu.memory_space<vmem>>, vector<1x160xf32>
    %c0_172 = arith.constant 0 : index
    %c0_173 = arith.constant 0 : index
    %201 = vector.load %arg12[%c0_172, %c0_173] : memref<160x160xf32, #tpu.memory_space<vmem>>, vector<160x160xf32>
    %cst_174 = arith.constant dense<0.000000e+00> : vector<160xf32>
    %202 = vector.multi_reduction <add>, %196, %cst_174 [0] : vector<144x160xf32> to vector<160xf32>
    %203 = vector.shape_cast %202 : vector<160xf32> to vector<1x160xf32>
    %cst_175 = arith.constant dense<0.000000e+00> : vector<1x160xf32>
    %204 = tpu.matmul %203, %201, %cst_175 {dimension_numbers = #tpu.dot_dimension_numbers<[1], [0], [0], [1], [0, 0, 1, 1], [], []>} : vector<1x160xf32>, vector<160x160xf32>, vector<1x160xf32> -> vector<1x160xf32>
    %cst_176 = arith.constant 2.17013891E-4 : f32
    %205 = vector.broadcast %cst_176 : f32 to vector<1x160xf32>
    %206 = arith.mulf %204, %205 : vector<1x160xf32>
    %207 = vector.broadcast %206 : vector<1x160xf32> to vector<144x160xf32>
    %208 = arith.subf %196, %207 : vector<144x160xf32>
    %209 = arith.mulf %208, %208 : vector<144x160xf32>
    %cst_177 = arith.constant dense<0.000000e+00> : vector<160xf32>
    %210 = vector.multi_reduction <add>, %209, %cst_177 [0] : vector<144x160xf32> to vector<160xf32>
    %211 = vector.shape_cast %210 : vector<160xf32> to vector<1x160xf32>
    %cst_178 = arith.constant dense<0.000000e+00> : vector<1x160xf32>
    %212 = tpu.matmul %211, %201, %cst_178 {dimension_numbers = #tpu.dot_dimension_numbers<[1], [0], [0], [1], [0, 0, 1, 1], [], []>} : vector<1x160xf32>, vector<160x160xf32>, vector<1x160xf32> -> vector<1x160xf32>
    %cst_179 = arith.constant 2.17013891E-4 : f32
    %213 = vector.broadcast %cst_179 : f32 to vector<1x160xf32>
    %214 = arith.mulf %212, %213 : vector<1x160xf32>
    %cst_180 = arith.constant 9.99999974E-6 : f32
    %215 = vector.broadcast %cst_180 : f32 to vector<1x160xf32>
    %216 = arith.addf %214, %215 : vector<1x160xf32>
    %217 = math.rsqrt %216 : vector<1x160xf32>
    %218 = vector.broadcast %217 : vector<1x160xf32> to vector<144x160xf32>
    %219 = arith.mulf %208, %218 : vector<144x160xf32>
    %220 = vector.broadcast %197 : vector<1x160xf32> to vector<144x160xf32>
    %221 = arith.mulf %219, %220 : vector<144x160xf32>
    %222 = vector.broadcast %198 : vector<1x160xf32> to vector<144x160xf32>
    %223 = arith.addf %221, %222 : vector<144x160xf32>
    %224 = vector.broadcast %199 : vector<1x160xf32> to vector<144x160xf32>
    %225 = arith.mulf %219, %224 : vector<144x160xf32>
    %226 = vector.broadcast %200 : vector<1x160xf32> to vector<144x160xf32>
    %227 = arith.addf %225, %226 : vector<144x160xf32>
    %228 = arith.negf %227 : vector<144x160xf32>
    %229 = math.exp %228 : vector<144x160xf32>
    %cst_181 = arith.constant 1.000000e+00 : f32
    %230 = vector.broadcast %cst_181 : f32 to vector<144x160xf32>
    %231 = arith.addf %230, %229 : vector<144x160xf32>
    %232 = arith.divf %230, %231 : vector<144x160xf32>
    %233 = arith.mulf %223, %232 : vector<144x160xf32>
    %cst_182 = arith.constant 0.000000e+00 : f32
    %234 = vector.broadcast %cst_182 : f32 to vector<144x64xf32>
    %c0_183 = arith.constant 0 : index
    %c0_184 = arith.constant 0 : index
    %c0_185 = arith.constant 0 : index
    %235 = vector.load %arg5[%c0_183, %c0_184, %c0_185] : memref<3x160x64xf32, #tpu.memory_space<vmem>>, vector<1x160x64xf32>
    %236 = vector.shape_cast %235 : vector<1x160x64xf32> to vector<160x64xf32>
    %cst_186 = arith.constant dense<0.000000e+00> : vector<144x64xf32>
    %237 = tpu.matmul %233, %236, %cst_186 {dimension_numbers = #tpu.dot_dimension_numbers<[1], [0], [0], [1], [0, 0, 1, 1], [], []>} : vector<144x160xf32>, vector<160x64xf32>, vector<144x64xf32> -> vector<144x64xf32>
    %c0_187 = arith.constant 0 : index
    %c0_188 = arith.constant 0 : index
    %c0_189 = arith.constant 0 : index
    %238 = vector.load %arg9[%c0_187, %c0_188, %c0_189] : memref<3x144x144xf32, #tpu.memory_space<vmem>>, vector<1x144x144xf32>
    %239 = vector.shape_cast %238 : vector<1x144x144xf32> to vector<144x144xf32>
    %cst_190 = arith.constant dense<0.000000e+00> : vector<144x64xf32>
    %240 = tpu.matmul %239, %237, %cst_190 {dimension_numbers = #tpu.dot_dimension_numbers<[1], [0], [0], [1], [0, 0, 1, 1], [], []>} : vector<144x144xf32>, vector<144x64xf32>, vector<144x64xf32> -> vector<144x64xf32>
    %241 = arith.addf %234, %240 : vector<144x64xf32>
    %c1_191 = arith.constant 1 : index
    %c0_192 = arith.constant 0 : index
    %c0_193 = arith.constant 0 : index
    %242 = vector.load %arg5[%c1_191, %c0_192, %c0_193] : memref<3x160x64xf32, #tpu.memory_space<vmem>>, vector<1x160x64xf32>
    %243 = vector.shape_cast %242 : vector<1x160x64xf32> to vector<160x64xf32>
    %cst_194 = arith.constant dense<0.000000e+00> : vector<144x64xf32>
    %244 = tpu.matmul %233, %243, %cst_194 {dimension_numbers = #tpu.dot_dimension_numbers<[1], [0], [0], [1], [0, 0, 1, 1], [], []>} : vector<144x160xf32>, vector<160x64xf32>, vector<144x64xf32> -> vector<144x64xf32>
    %c1_195 = arith.constant 1 : index
    %c0_196 = arith.constant 0 : index
    %c0_197 = arith.constant 0 : index
    %245 = vector.load %arg9[%c1_195, %c0_196, %c0_197] : memref<3x144x144xf32, #tpu.memory_space<vmem>>, vector<1x144x144xf32>
    %246 = vector.shape_cast %245 : vector<1x144x144xf32> to vector<144x144xf32>
    %cst_198 = arith.constant dense<0.000000e+00> : vector<144x64xf32>
    %247 = tpu.matmul %246, %244, %cst_198 {dimension_numbers = #tpu.dot_dimension_numbers<[1], [0], [0], [1], [0, 0, 1, 1], [], []>} : vector<144x144xf32>, vector<144x64xf32>, vector<144x64xf32> -> vector<144x64xf32>
    %248 = arith.addf %241, %247 : vector<144x64xf32>
    %c2_199 = arith.constant 2 : index
    %c0_200 = arith.constant 0 : index
    %c0_201 = arith.constant 0 : index
    %249 = vector.load %arg5[%c2_199, %c0_200, %c0_201] : memref<3x160x64xf32, #tpu.memory_space<vmem>>, vector<1x160x64xf32>
    %250 = vector.shape_cast %249 : vector<1x160x64xf32> to vector<160x64xf32>
    %cst_202 = arith.constant dense<0.000000e+00> : vector<144x64xf32>
    %251 = tpu.matmul %233, %250, %cst_202 {dimension_numbers = #tpu.dot_dimension_numbers<[1], [0], [0], [1], [0, 0, 1, 1], [], []>} : vector<144x160xf32>, vector<160x64xf32>, vector<144x64xf32> -> vector<144x64xf32>
    %c2_203 = arith.constant 2 : index
    %c0_204 = arith.constant 0 : index
    %c0_205 = arith.constant 0 : index
    %252 = vector.load %arg9[%c2_203, %c0_204, %c0_205] : memref<3x144x144xf32, #tpu.memory_space<vmem>>, vector<1x144x144xf32>
    %253 = vector.shape_cast %252 : vector<1x144x144xf32> to vector<144x144xf32>
    %cst_206 = arith.constant dense<0.000000e+00> : vector<144x64xf32>
    %254 = tpu.matmul %253, %251, %cst_206 {dimension_numbers = #tpu.dot_dimension_numbers<[1], [0], [0], [1], [0, 0, 1, 1], [], []>} : vector<144x144xf32>, vector<144x64xf32>, vector<144x64xf32> -> vector<144x64xf32>
    %255 = arith.addf %248, %254 : vector<144x64xf32>
    %c12 = arith.constant 12 : index
    %c0_207 = arith.constant 0 : index
    %256 = vector.load %arg13[%c12, %c0_207] : memref<16x160xf32, #tpu.memory_space<vmem>>, vector<1x64xf32>
    %257 = vector.broadcast %256 : vector<1x64xf32> to vector<144x64xf32>
    %258 = arith.addf %255, %257 : vector<144x64xf32>
    %c0_208 = arith.constant 0 : index
    %c0_209 = arith.constant 0 : index
    %259 = vector.load %arg14[%c0_208, %c0_209] : memref<144x64xf32, #tpu.memory_space<vmem>>, vector<144x64xf32>
    tpu.vector_store %arg14[%c0_208, %c0_209], %258 {strides = array<i32>} : memref<144x64xf32, #tpu.memory_space<vmem>>, vector<144x64xf32>,
    return
  }
  func.func @transform_0(%arg0: i32) -> (i32, i32) {
    %c0_i32 = arith.constant 0 : i32
    %c0_i32_0 = arith.constant 0 : i32
    %c0_i32_1 = arith.constant 0 : i32
    return %c0_i32, %c0_i32_0 : i32, i32
  }
  func.func @transform_1(%arg0: i32) -> (i32, i32, i32) {
    %c0_i32 = arith.constant 0 : i32
    %c0_i32_0 = arith.constant 0 : i32
    %c0_i32_1 = arith.constant 0 : i32
    %c0_i32_2 = arith.constant 0 : i32
    return %c0_i32, %c0_i32_0, %c0_i32_1 : i32, i32, i32
  }
  func.func @transform_2(%arg0: i32) -> (i32, i32, i32) {
    %c0_i32 = arith.constant 0 : i32
    %c0_i32_0 = arith.constant 0 : i32
    %c0_i32_1 = arith.constant 0 : i32
    %c0_i32_2 = arith.constant 0 : i32
    return %c0_i32, %c0_i32_0, %c0_i32_1 : i32, i32, i32
  }
  func.func @transform_3(%arg0: i32) -> (i32, i32, i32) {
    %c0_i32 = arith.constant 0 : i32
    %c0_i32_0 = arith.constant 0 : i32
    %c0_i32_1 = arith.constant 0 : i32
    %c0_i32_2 = arith.constant 0 : i32
    return %c0_i32, %c0_i32_0, %c0_i32_1 : i32, i32, i32
  }
  func.func @transform_4(%arg0: i32) -> (i32, i32, i32) {
    %c0_i32 = arith.constant 0 : i32
    %c0_i32_0 = arith.constant 0 : i32
    %c0_i32_1 = arith.constant 0 : i32
    %c0_i32_2 = arith.constant 0 : i32
    return %c0_i32, %c0_i32_0, %c0_i32_1 : i32, i32, i32
  }
  func.func @transform_5(%arg0: i32) -> (i32, i32, i32) {
    %c0_i32 = arith.constant 0 : i32
    %c0_i32_0 = arith.constant 0 : i32
    %c0_i32_1 = arith.constant 0 : i32
    %c0_i32_2 = arith.constant 0 : i32
    return %c0_i32, %c0_i32_0, %c0_i32_1 : i32, i32, i32
  }
  func.func @transform_6(%arg0: i32) -> (i32, i32, i32) {
    %c0_i32 = arith.constant 0 : i32
    %c0_i32_0 = arith.constant 0 : i32
    %c0_i32_1 = arith.constant 0 : i32
    %c0_i32_2 = arith.constant 0 : i32
    return %c0_i32, %c0_i32_0, %c0_i32_1 : i32, i32, i32
  }
  func.func @transform_7(%arg0: i32) -> (i32, i32, i32) {
    %c0_i32 = arith.constant 0 : i32
    %c0_i32_0 = arith.constant 0 : i32
    %c0_i32_1 = arith.constant 0 : i32
    %c0_i32_2 = arith.constant 0 : i32
    return %c0_i32, %c0_i32_0, %c0_i32_1 : i32, i32, i32
  }
  func.func @transform_8(%arg0: i32) -> (i32, i32, i32) {
    %c0_i32 = arith.constant 0 : i32
    %c0_i32_0 = arith.constant 0 : i32
    %c0_i32_1 = arith.constant 0 : i32
    %c0_i32_2 = arith.constant 0 : i32
    return %c0_i32, %c0_i32_0, %c0_i32_1 : i32, i32, i32
  }
  func.func @transform_9(%arg0: i32) -> (i32, i32) {
    %c0_i32 = arith.constant 0 : i32
    %c0_i32_0 = arith.constant 0 : i32
    %c0_i32_1 = arith.constant 0 : i32
    return %c0_i32, %c0_i32_0 : i32, i32
  }
  func.func @transform_10(%arg0: i32) -> (i32, i32) {
    %c0_i32 = arith.constant 0 : i32
    %c0_i32_0 = arith.constant 0 : i32
    %c0_i32_1 = arith.constant 0 : i32
    return %c0_i32, %c0_i32_0 : i32, i32
  }
  func.func @transform_11(%arg0: i32) -> (i32, i32) {
    %c0_i32 = arith.constant 0 : i32
    %c0_i32_0 = arith.constant 0 : i32
    %c0_i32_1 = arith.constant 0 : i32
    return %c0_i32, %c0_i32_0 : i32, i32
  }
  func.func @transform_12(%arg0: i32) -> (i32, i32) {
    %c0_i32 = arith.constant 0 : i32
    %c0_i32_0 = arith.constant 0 : i32
    %c0_i32_1 = arith.constant 0 : i32
    return %c0_i32, %c0_i32_0 : i32, i32
  }
  func.func @transform_13(%arg0: i32) -> (i32, i32) {
    %c0_i32 = arith.constant 0 : i32
    %c0_i32_0 = arith.constant 0 : i32
    %c0_i32_1 = arith.constant 0 : i32
    return %c0_i32, %c0_i32_0 : i32, i32
  }
}

</mosaic_0001>

<llo_original>
// kernel: forward.1
$region0: #{forward.1}
  #allocation0 [shape = 'u32[]', space=smem, size = 0x4, offset = 0x4, fixed_abs, tag = 'smem constant byte address 0x4 - core index']
  #allocation1 [shape = 'u32[144,128]{1,0:T(1,128)}', space=vmem, size = 0x12000, scoped, tag = 'internal scratch']
  %s0 = inlined_call_operand.vmem [shape: f32[4,64], index: 0, kind: input, shape index: {}]
  %s1 = inlined_call_operand.hbm [shape: f32[9,64,80], index: 1, kind: input, shape index: {}]
  %s2 = inlined_call_operand.hbm [shape: f32[4,80,160], index: 2, kind: input, shape index: {}]
  %s3 = inlined_call_operand.hbm [shape: f32[4,160,160], index: 3, kind: input, shape index: {}]
  %s4 = inlined_call_operand.hbm [shape: f32[3,160,64], index: 4, kind: input, shape index: {}]
  %s5 = inlined_call_operand.hbm [shape: f32[9,36,4], index: 5, kind: input, shape index: {}]
  %s6 = inlined_call_operand.hbm [shape: f32[4,72,36], index: 6, kind: input, shape index: {}]
  %s7 = inlined_call_operand.hbm [shape: f32[4,144,72], index: 7, kind: input, shape index: {}]
  %s8 = inlined_call_operand.hbm [shape: f32[3,144,144], index: 8, kind: input, shape index: {}]
  %s9 = inlined_call_operand.vmem [shape: f32[80,80], index: 9, kind: input, shape index: {}]
  %s10 = inlined_call_operand.hbm [shape: f32[160,160], index: 10, kind: input, shape index: {}]
  %s11 = inlined_call_operand.hbm [shape: f32[160,160], index: 11, kind: input, shape index: {}]
  %s12 = inlined_call_operand.vmem [shape: f32[16,160], index: 12, kind: input, shape index: {}]
  %s13 = inlined_call_operand.vmem [shape: f32[144,64], index: 13, kind: output, shape index: {}]
  %s14 = sld [smem:[#allocation0]]
  $region102: #{forward.1} parent=0
    _
  %s16 = ssub.s32 1, %s14
  %s17 = scalar_select 0, %s16, %s14
  $region1: #{forward.1} parent=0
    #allocation2 [shape = 'u8[294912]{0}', space=vmem, size = 0x48000, scoped, tag = 'input window, operand 1, single buffered']
    #allocation3 [shape = 's32[1]{0}', space=sflag, size = 0x4, scoped, tag = 'scoped memory for forward.1']
    #allocation4 [shape = 'u8[327680]{0}', space=vmem, size = 0x50000, scoped, tag = 'input window, operand 2, single buffered']
    #allocation5 [shape = 's32[1]{0}', space=sflag, size = 0x4, scoped, tag = 'scoped memory for forward.1']
    #allocation6 [shape = 'u8[655360]{0}', space=vmem, size = 0xa0000, scoped, tag = 'input window, operand 3, single buffered']
    #allocation7 [shape = 'u8[245760]{0}', space=vmem, size = 0x3c000, scoped, tag = 'input window, operand 4, single buffered']
    #allocation8 [shape = 's32[1]{0}', space=sflag, size = 0x4, scoped, tag = 'scoped memory for forward.1']
    #allocation9 [shape = 'u8[184320]{0}', space=vmem, size = 0x2d000, scoped, tag = 'input window, operand 5, single buffered']
    #allocation10 [shape = 'u8[147456]{0}', space=vmem, size = 0x24000, scoped, tag = 'input window, operand 6, single buffered']
    #allocation11 [shape = 's32[1]{0}', space=sflag, size = 0x4, scoped, tag = 'scoped memory for forward.1']
    #allocation12 [shape = 'u8[294912]{0}', space=vmem, size = 0x48000, scoped, tag = 'input window, operand 7, single buffered']
    #allocation13 [shape = 'u8[442368]{0}', space=vmem, size = 0x6c000, scoped, tag = 'input window, operand 8, single buffered']
    #allocation14 [shape = 's32[1]{0}', space=sflag, size = 0x4, scoped, tag = 'scoped memory for forward.1']
    #allocation15 [shape = 'u8[163840]{0}', space=vmem, size = 0x28000, scoped, tag = 'input window, operand 10, single buffered']
    #allocation16 [shape = 'u8[163840]{0}', space=vmem, size = 0x28000, scoped, tag = 'input window, operand 11, single buffered']
    #allocation17 [shape = 's32[1]{0}', space=sflag, size = 0x4, scoped, tag = 'scoped memory for forward.1']
    %18 = vsyncpa [#allocation3], 0
    %19 = vsyncpa [#allocation5], 0
    %20 = vsyncpa [#allocation8], 0
    %21 = vsyncpa [#allocation11], 0
    %22 = vsyncpa [#allocation14], 0
    %23 = vsyncpa [#allocation17], 0
    // Predicated region
    $region2: #{forward.1} parent=1 // pred_check
      _
    $region3: #{forward.1} parent=1 // pred_check_branch
      %25 = sbr.rel (0) target = $region5
    $region4: #{forward.1} parent=1 // pred_region
      _
    $region5: #{forward.1} parent=1 // pred_fallthru
      _
    // Predicated region
    $region6: #{forward.1} parent=1 // pred_check
      _
    $region7: #{forward.1} parent=1 // pred_check_branch
      %27 = sbr.rel (0) target = $region9
    $region8: #{forward.1} parent=1 // pred_region
      %s29 = ssub.s32 9216, 9216
      %30 = vsyncadd [#allocation3], %s29
      %s31 = sshll.u32 [#allocation2], 4
      %s32 = int_to_ptr.vmem [resolvable:$true] %s31
      %37 = dma.hbm_to_vmem [thread:$0]  %s1, 9216, %s32, [#allocation3], 128, 128, 8
    $region9: #{forward.1} parent=1 // pred_fallthru
      _
    // Predicated region
    $region10: #{forward.1} parent=1 // pred_check
      _
    $region11: #{forward.1} parent=1 // pred_check_branch
      %39 = sbr.rel (0) target = $region13
    $region12: #{forward.1} parent=1 // pred_region
      %s41 = ssub.s32 10240, 10240
      %42 = vsyncadd [#allocation5], %s41
      %s43 = sshll.u32 [#allocation4], 4
      %s44 = int_to_ptr.vmem [resolvable:$true] %s43
      %49 = dma.hbm_to_vmem [thread:$0]  %s2, 10240, %s44, [#allocation5], 256, 256, 16
    $region13: #{forward.1} parent=1 // pred_fallthru
      _
    // Predicated region
    $region14: #{forward.1} parent=1 // pred_check
      _
    $region15: #{forward.1} parent=1 // pred_check_branch
      %51 = sbr.rel (0) target = $region17
    $region16: #{forward.1} parent=1 // pred_region
      %s53 = ssub.s32 20480, 20480
      %54 = vsyncadd [#allocation5], %s53
      %s55 = sshll.u32 [#allocation6], 4
      %s56 = int_to_ptr.vmem [resolvable:$true] %s55
      %61 = dma.hbm_to_vmem [thread:$0]  %s3, 20480, %s56, [#allocation5], 256, 256, 16
    $region17: #{forward.1} parent=1 // pred_fallthru
      _
    // Predicated region
    $region18: #{forward.1} parent=1 // pred_check
      _
    $region19: #{forward.1} parent=1 // pred_check_branch
      %63 = sbr.rel (0) target = $region21
    $region20: #{forward.1} parent=1 // pred_region
      %s65 = ssub.s32 7680, 7680
      %66 = vsyncadd [#allocation8], %s65
      %s67 = sshll.u32 [#allocation7], 4
      %s68 = int_to_ptr.vmem [resolvable:$true] %s67
      %73 = dma.hbm_to_vmem [thread:$0]  %s4, 7680, %s68, [#allocation8], 128, 128, 8
    $region21: #{forward.1} parent=1 // pred_fallthru
      _
    // Predicated region
    $region22: #{forward.1} parent=1 // pred_check
      _
    $region23: #{forward.1} parent=1 // pred_check_branch
      %75 = sbr.rel (0) target = $region25
    $region24: #{forward.1} parent=1 // pred_region
      %s77 = ssub.s32 5760, 5760
      %78 = vsyncadd [#allocation8], %s77
      %s79 = sshll.u32 [#allocation9], 4
      %s80 = int_to_ptr.vmem [resolvable:$true] %s79
      %85 = dma.hbm_to_vmem [thread:$0]  %s5, 5760, %s80, [#allocation8], 128, 128, 8
    $region25: #{forward.1} parent=1 // pred_fallthru
      _
    // Predicated region
    $region26: #{forward.1} parent=1 // pred_check
      _
    $region27: #{forward.1} parent=1 // pred_check_branch
      %87 = sbr.rel (0) target = $region29
    $region28: #{forward.1} parent=1 // pred_region
      %s89 = ssub.s32 4608, 4608
      %90 = vsyncadd [#allocation11], %s89
      %s91 = sshll.u32 [#allocation10], 4
      %s92 = int_to_ptr.vmem [resolvable:$true] %s91
      %97 = dma.hbm_to_vmem [thread:$0]  %s6, 4608, %s92, [#allocation11], 128, 128, 8
    $region29: #{forward.1} parent=1 // pred_fallthru
      _
    // Predicated region
    $region30: #{forward.1} parent=1 // pred_check
      _
    $region31: #{forward.1} parent=1 // pred_check_branch
      %99 = sbr.rel (0) target = $region33
    $region32: #{forward.1} parent=1 // pred_region
      %s101 = ssub.s32 9216, 9216
      %102 = vsyncadd [#allocation11], %s101
      %s103 = sshll.u32 [#allocation12], 4
      %s104 = int_to_ptr.vmem [resolvable:$true] %s103
      %109 = dma.hbm_to_vmem [thread:$0]  %s7, 9216, %s104, [#allocation11], 128, 128, 8
    $region33: #{forward.1} parent=1 // pred_fallthru
      _
    // Predicated region
    $region34: #{forward.1} parent=1 // pred_check
      _
    $region35: #{forward.1} parent=1 // pred_check_branch
      %111 = sbr.rel (0) target = $region37
    $region36: #{forward.1} parent=1 // pred_region
      %s113 = ssub.s32 13824, 13824
      %114 = vsyncadd [#allocation14], %s113
      %s115 = sshll.u32 [#allocation13], 4
      %s116 = int_to_ptr.vmem [resolvable:$true] %s115
      %121 = dma.hbm_to_vmem [thread:$0]  %s8, 13824, %s116, [#allocation14], 256, 256, 16
    $region37: #{forward.1} parent=1 // pred_fallthru
      _
    // Predicated region
    $region38: #{forward.1} parent=1 // pred_check
      _
    $region39: #{forward.1} parent=1 // pred_check_branch
      %123 = sbr.rel (0) target = $region41
    $region40: #{forward.1} parent=1 // pred_region
      _
    $region41: #{forward.1} parent=1 // pred_fallthru
      _
    // Predicated region
    $region42: #{forward.1} parent=1 // pred_check
      _
    $region43: #{forward.1} parent=1 // pred_check_branch
      %125 = sbr.rel (0) target = $region45
    $region44: #{forward.1} parent=1 // pred_region
      %s127 = ssub.s32 5120, 5120
      %128 = vsyncadd [#allocation14], %s127
      %s129 = sshll.u32 [#allocation15], 4
      %s130 = int_to_ptr.vmem [resolvable:$true] %s129
      %135 = dma.hbm_to_vmem [thread:$0]  %s10, 5120, %s130, [#allocation14], 256, 256, 16
    $region45: #{forward.1} parent=1 // pred_fallthru
      _
    // Predicated region
    $region46: #{forward.1} parent=1 // pred_check
      _
    $region47: #{forward.1} parent=1 // pred_check_branch
      %137 = sbr.rel (0) target = $region49
    $region48: #{forward.1} parent=1 // pred_region
      %s139 = ssub.s32 5120, 5120
      %140 = vsyncadd [#allocation17], %s139
      %s141 = sshll.u32 [#allocation16], 4
      %s142 = int_to_ptr.vmem [resolvable:$true] %s141
      %147 = dma.hbm_to_vmem [thread:$0]  %s11, 5120, %s142, [#allocation17], 256, 256, 16
    $region49: #{forward.1} parent=1 // pred_fallthru
      _
    // Predicated region
    $region50: #{forward.1} parent=1 // pred_check
      _
    $region51: #{forward.1} parent=1 // pred_check_branch
      %149 = sbr.rel (0) target = $region53
    $region52: #{forward.1} parent=1 // pred_region
      _
    $region53: #{forward.1} parent=1 // pred_fallthru
      _
    // Predicated region
    $region54: #{forward.1} parent=1 // pred_check
      _
    $region55: #{forward.1} parent=1 // pred_check_branch
      %151 = sbr.rel (0) target = $region57
    $region56: #{forward.1} parent=1 // pred_region
      %152 = dma.done [#allocation3], 9216
    $region57: #{forward.1} parent=1 // pred_fallthru
      _
    // Predicated region
    $region58: #{forward.1} parent=1 // pred_check
      _
    $region59: #{forward.1} parent=1 // pred_check_branch
      %154 = sbr.rel (0) target = $region61
    $region60: #{forward.1} parent=1 // pred_region
      %155 = dma.done [#allocation5], 10240
    $region61: #{forward.1} parent=1 // pred_fallthru
      _
    // Predicated region
    $region62: #{forward.1} parent=1 // pred_check
      _
    $region63: #{forward.1} parent=1 // pred_check_branch
      %157 = sbr.rel (0) target = $region65
    $region64: #{forward.1} parent=1 // pred_region
      %158 = dma.done [#allocation5], 20480
    $region65: #{forward.1} parent=1 // pred_fallthru
      _
    // Predicated region
    $region66: #{forward.1} parent=1 // pred_check
      _
    $region67: #{forward.1} parent=1 // pred_check_branch
      %160 = sbr.rel (0) target = $region69
    $region68: #{forward.1} parent=1 // pred_region
      %161 = dma.done [#allocation8], 7680
    $region69: #{forward.1} parent=1 // pred_fallthru
      _
    // Predicated region
    $region70: #{forward.1} parent=1 // pred_check
      _
    $region71: #{forward.1} parent=1 // pred_check_branch
      %163 = sbr.rel (0) target = $region73
    $region72: #{forward.1} parent=1 // pred_region
      %164 = dma.done [#allocation8], 5760
    $region73: #{forward.1} parent=1 // pred_fallthru
      _
    // Predicated region
    $region74: #{forward.1} parent=1 // pred_check
      _
    $region75: #{forward.1} parent=1 // pred_check_branch
      %166 = sbr.rel (0) target = $region77
    $region76: #{forward.1} parent=1 // pred_region
      %167 = dma.done [#allocation11], 4608
    $region77: #{forward.1} parent=1 // pred_fallthru
      _
    // Predicated region
    $region78: #{forward.1} parent=1 // pred_check
      _
    $region79: #{forward.1} parent=1 // pred_check_branch
      %169 = sbr.rel (0) target = $region81
    $region80: #{forward.1} parent=1 // pred_region
      %170 = dma.done [#allocation11], 9216
    $region81: #{forward.1} parent=1 // pred_fallthru
      _
    // Predicated region
    $region82: #{forward.1} parent=1 // pred_check
      _
    $region83: #{forward.1} parent=1 // pred_check_branch
      %172 = sbr.rel (0) target = $region85
    $region84: #{forward.1} parent=1 // pred_region
      %173 = dma.done [#allocation14], 13824
    $region85: #{forward.1} parent=1 // pred_fallthru
      _
    // Predicated region
    $region86: #{forward.1} parent=1 // pred_check
      _
    $region87: #{forward.1} parent=1 // pred_check_branch
      %175 = sbr.rel (0) target = $region89
    $region88: #{forward.1} parent=1 // pred_region
      %176 = dma.done [#allocation14], 5120
    $region89: #{forward.1} parent=1 // pred_fallthru
      _
    // Predicated region
    $region90: #{forward.1} parent=1 // pred_check
      _
    $region91: #{forward.1} parent=1 // pred_check_branch
      %178 = sbr.rel (0) target = $region93
    $region92: #{forward.1} parent=1 // pred_region
      %179 = dma.done [#allocation17], 5120
    $region93: #{forward.1} parent=1 // pred_fallthru
      _
    %v180 = vld [vmem:[%s0] sm:$0xf]
    %v181 = vld [vmem:[#allocation2] sm:$0xff]
    %v182 = vld [vmem:[#allocation2 + $0x8] sm:$0xff]
    %v183 = vld [vmem:[#allocation2 + $0x10] sm:$0xff]
    %v184 = vld [vmem:[#allocation2 + $0x18] sm:$0xff]
    %v185 = vld [vmem:[#allocation2 + $0x20] sm:$0xff]
    %v186 = vld [vmem:[#allocation2 + $0x28] sm:$0xff]
    %v187 = vld [vmem:[#allocation2 + $0x30] sm:$0xff]
    %v188 = vld [vmem:[#allocation2 + $0x38] sm:$0xff]
    %vm189 = vcmask 523264
    %v191 = vsel %vm189, %v180, 0
    %193 = vmatprep.subr.mxu0 0.0
    %194 = vmatpush1.msra.mxu0 %v181
    %195 = vmatprep.subr.mxu0 0.0
    %196 = vmatpush1.msra.mxu0 %v182
    %197 = vmatprep.subr.mxu0 0.0
    %198 = vmatpush1.msra.mxu0 %v183
    %199 = vmatprep.subr.mxu0 0.0
    %200 = vmatpush1.msra.mxu0 %v184
    %201 = vmatprep.subr.mxu0 0.0
    %202 = vmatpush1.msra.mxu0 %v185
    %203 = vmatprep.subr.mxu0 0.0
    %204 = vmatpush1.msra.mxu0 %v186
    %205 = vmatprep.subr.mxu0 0.0
    %206 = vmatpush1.msra.mxu0 %v187
    %207 = vmatprep.subr.mxu0 0.0
    %208 = vmatpush1.msra.mxu0 %v188
    %209 = vmatprep.subr.mxu0 0.0
    %210 = vmatpush1.msra.mxu0 0.0
    %211 = vmatprep.subr.mxu0 0.0
    %212 = vmatpush1.msra.mxu0 0.0
    %213 = vmatprep.subr.mxu0 0.0
    %214 = vmatpush1.msra.mxu0 0.0
    %215 = vmatprep.subr.mxu0 0.0
    %216 = vmatpush1.msra.mxu0 0.0
    %217 = vmatprep.subr.mxu0 0.0
    %218 = vmatpush1.msra.mxu0 0.0
    %219 = vmatprep.subr.mxu0 0.0
    %220 = vmatpush1.msra.mxu0 0.0
    %221 = vmatprep.subr.mxu0 0.0
    %222 = vmatpush1.msra.mxu0 0.0
    %223 = vmatprep.subr.mxu0 0.0
    %224 = vmatpush1.msra.mxu0 0.0
    %225 = vmatprep.subr.mxu0 0.0
    %226 = vmatpush1.msra.mxu0 0.0
    %227 = vmatprep.subr.mxu0 0.0
    %228 = vmatpush1.msra.mxu0 0.0
    %229 = vmatprep.subr.mxu0 0.0
    %230 = vmatpush1.msra.mxu0 0.0
    %231 = vmatprep.subr.mxu0 0.0
    %232 = vmatpush1.msra.mxu0 0.0
    %233 = vmatprep.subr.mxu0 0.0
    %234 = vmatpush1.msra.mxu0 0.0
    %235 = vmatprep.subr.mxu0 0.0
    %236 = vmatpush1.msra.mxu0 0.0
    %237 = vmatprep.subr.mxu0 0.0
    %238 = vmatpush1.msra.mxu0 0.0
    %239 = vmatprep.subr.mxu0 0.0
    %240 = vmatpush1.msra.mxu0 0.0
    %241 = vmatprep.subr.mxu0 0.0
    %242 = vmatpush1.msra.mxu0 0.0
    %243 = vmatprep.subr.mxu0 0.0
    %244 = vmatpush1.msra.mxu0 0.0
    %245 = vmatprep.subr.mxu0 0.0
    %246 = vmatpush1.msra.mxu0 0.0
    %247 = vmatprep.subr.mxu0 0.0
    %248 = vmatpush1.msra.mxu0 0.0
    %249 = vmatprep.subr.mxu0 0.0
    %250 = vmatpush1.msra.mxu0 0.0
    %251 = vmatprep.subr.mxu0 0.0
    %252 = vmatpush1.msra.mxu0 0.0
    %253 = vmatprep.subr.mxu0 0.0
    %254 = vmatpush1.msra.mxu0 0.0
    %255 = vmatprep.subr.mxu0 0.0
    %256 = vmatpush1.msra.mxu0 0.0
    %257 = vmatprep.mubr.f32.mxu0 0.0
    %258 = vmatmul.mubr.f32.gmra.mrb[0].mxu0 %v191
    %v259 = vpop.f32.mrb[0].mxu0
    %v260 = vadd.f32 0.0, %v259
    %v261 = vpop.f32.mrb[0].mxu0
    %262 = vdwg.mxu0
    %v263 = vld [vmem:[#allocation9] sm:$0xff]
    %v264 = vld [vmem:[#allocation9 + $0x8] sm:$0xff]
    %v265 = vld [vmem:[#allocation9 + $0x10] sm:$0xff]
    %v266 = vld [vmem:[#allocation9 + $0x18] sm:$0xff]
    %v267 = vld [vmem:[#allocation9 + $0x20] sm:$0xf]
    %s268 = scalar_lea.vmem [#allocation2], 64
    %v269 = vld [vmem:[%s268] sm:$0xff]
    %v270 = vld [vmem:[%s268 + $0x8] sm:$0xff]
    %v271 = vld [vmem:[%s268 + $0x10] sm:$0xff]
    %v272 = vld [vmem:[%s268 + $0x18] sm:$0xff]
    %v273 = vld [vmem:[%s268 + $0x20] sm:$0xff]
    %v274 = vld [vmem:[%s268 + $0x28] sm:$0xff]
    %v275 = vld [vmem:[%s268 + $0x30] sm:$0xff]
    %v276 = vld [vmem:[%s268 + $0x38] sm:$0xff]
    %277 = vmatprep.subr.mxu0 0.0
    %278 = vmatpush1.msra.mxu0 %v269
    %279 = vmatprep.subr.mxu0 0.0
    %280 = vmatpush1.msra.mxu0 %v270
    %281 = vmatprep.subr.mxu0 0.0
    %282 = vmatpush1.msra.mxu0 %v271
    %283 = vmatprep.subr.mxu0 0.0
    %284 = vmatpush1.msra.mxu0 %v272
    %285 = vmatprep.subr.mxu0 0.0
    %286 = vmatpush1.msra.mxu0 %v273
    %287 = vmatprep.subr.mxu0 0.0
    %288 = vmatpush1.msra.mxu0 %v274
    %289 = vmatprep.subr.mxu0 0.0
    %290 = vmatpush1.msra.mxu0 %v275
    %291 = vmatprep.subr.mxu0 0.0
    %292 = vmatpush1.msra.mxu0 %v276
    %293 = vmatprep.subr.mxu0 0.0
    %294 = vmatpush1.msra.mxu0 0.0
    %295 = vmatprep.subr.mxu0 0.0
    %296 = vmatpush1.msra.mxu0 0.0
    %297 = vmatprep.subr.mxu0 0.0
    %298 = vmatpush1.msra.mxu0 0.0
    %299 = vmatprep.subr.mxu0 0.0
    %300 = vmatpush1.msra.mxu0 0.0
    %301 = vmatprep.subr.mxu0 0.0
    %302 = vmatpush1.msra.mxu0 0.0
    %303 = vmatprep.subr.mxu0 0.0
    %304 = vmatpush1.msra.mxu0 0.0
    %305 = vmatprep.subr.mxu0 0.0
    %306 = vmatpush1.msra.mxu0 0.0
    %307 = vmatprep.subr.mxu0 0.0
    %308 = vmatpush1.msra.mxu0 0.0
    %309 = vmatprep.subr.mxu0 0.0
    %310 = vmatpush1.msra.mxu0 0.0
    %311 = vmatprep.subr.mxu0 0.0
    %312 = vmatpush1.msra.mxu0 0.0
    %313 = vmatprep.subr.mxu0 0.0
    %314 = vmatpush1.msra.mxu0 0.0
    %315 = vmatprep.subr.mxu0 0.0
    %316 = vmatpush1.msra.mxu0 0.0
    %317 = vmatprep.subr.mxu0 0.0
    %318 = vmatpush1.msra.mxu0 0.0
    %319 = vmatprep.subr.mxu0 0.0
    %320 = vmatpush1.msra.mxu0 0.0
    %321 = vmatprep.subr.mxu0 0.0
    %322 = vmatpush1.msra.mxu0 0.0
    %323 = vmatprep.subr.mxu0 0.0
    %324 = vmatpush1.msra.mxu0 0.0
    %325 = vmatprep.subr.mxu0 0.0
    %326 = vmatpush1.msra.mxu0 0.0
    %327 = vmatprep.subr.mxu0 0.0
    %328 = vmatpush1.msra.mxu0 0.0
    %329 = vmatprep.subr.mxu0 0.0
    %330 = vmatpush1.msra.mxu0 0.0
    %331 = vmatprep.subr.mxu0 0.0
    %332 = vmatpush1.msra.mxu0 0.0
    %333 = vmatprep.subr.mxu0 0.0
    %334 = vmatpush1.msra.mxu0 0.0
    %335 = vmatprep.subr.mxu0 0.0
    %336 = vmatpush1.msra.mxu0 0.0
    %337 = vmatprep.subr.mxu0 0.0
    %338 = vmatpush1.msra.mxu0 0.0
    %339 = vmatprep.subr.mxu0 0.0
    %340 = vmatpush1.msra.mxu0 0.0
    %341 = vmatprep.mubr.f32.mxu0 0.0
    %342 = vmatmul.mubr.f32.gmra.mrb[0].mxu0 %v191
    %v343 = vpop.f32.mrb[0].mxu0
    %v344 = vadd.f32 0.0, %v343
    %v345 = vpop.f32.mrb[0].mxu0
    %346 = vdwg.mxu0
    %s347 = scalar_lea.vmem [#allocation9], 40
    %v348 = vld [vmem:[%s347] sm:$0xff]
    %v349 = vld [vmem:[%s347 + $0x8] sm:$0xff]
    %v350 = vld [vmem:[%s347 + $0x10] sm:$0xff]
    %v351 = vld [vmem:[%s347 + $0x18] sm:$0xff]
    %v352 = vld [vmem:[%s347 + $0x20] sm:$0xf]
    %vm353 = vcmask 31744
    %v355 = vsel %vm353, %v348, 0
    %v358 = vsel %vm353, %v349, 0
    %v361 = vsel %vm353, %v350, 0
    %v364 = vsel %vm353, %v351, 0
    %v367 = vsel %vm353, %v352, 0
    %vm369 = vcmask 1043456
    %v371 = vsel %vm369, %v344, 0
    %373 = vmatprep.subr.mxu0 0.0
    %374 = vmatpush1.msra.mxu0 %v371
    %375 = vmatprep.subr.mxu0 0.0
    %376 = vmatpush1.msra.mxu0 0.0
    %377 = vmatprep.subr.mxu0 0.0
    %378 = vmatpush1.msra.mxu0 0.0
    %379 = vmatprep.subr.mxu0 0.0
    %380 = vmatpush1.msra.mxu0 0.0
    %381 = vmatprep.subr.mxu0 0.0
    %382 = vmatpush1.msra.mxu0 0.0
    %383 = vmatprep.subr.mxu0 0.0
    %384 = vmatpush1.msra.mxu0 0.0
    %385 = vmatprep.subr.mxu0 0.0
    %386 = vmatpush1.msra.mxu0 0.0
    %387 = vmatprep.subr.mxu0 0.0
    %388 = vmatpush1.msra.mxu0 0.0
    %389 = vmatprep.subr.mxu0 0.0
    %390 = vmatpush1.msra.mxu0 0.0
    %391 = vmatprep.subr.mxu0 0.0
    %392 = vmatpush1.msra.mxu0 0.0
    %393 = vmatprep.subr.mxu0 0.0
    %394 = vmatpush1.msra.mxu0 0.0
    %395 = vmatprep.subr.mxu0 0.0
    %396 = vmatpush1.msra.mxu0 0.0
    %397 = vmatprep.subr.mxu0 0.0
    %398 = vmatpush1.msra.mxu0 0.0
    %399 = vmatprep.subr.mxu0 0.0
    %400 = vmatpush1.msra.mxu0 0.0
    %401 = vmatprep.subr.mxu0 0.0
    %402 = vmatpush1.msra.mxu0 0.0
    %403 = vmatprep.subr.mxu0 0.0
    %404 = vmatpush1.msra.mxu0 0.0
    %405 = vmatprep.subr.mxu0 0.0
    %406 = vmatpush1.msra.mxu0 0.0
    %407 = vmatprep.subr.mxu0 0.0
    %408 = vmatpush1.msra.mxu0 0.0
    %409 = vmatprep.subr.mxu0 0.0
    %410 = vmatpush1.msra.mxu0 0.0
    %411 = vmatprep.subr.mxu0 0.0
    %412 = vmatpush1.msra.mxu0 0.0
    %413 = vmatprep.subr.mxu0 0.0
    %414 = vmatpush1.msra.mxu0 0.0
    %415 = vmatprep.subr.mxu0 0.0
    %416 = vmatpush1.msra.mxu0 0.0
    %417 = vmatprep.subr.mxu0 0.0
    %418 = vmatpush1.msra.mxu0 0.0
    %419 = vmatprep.subr.mxu0 0.0
    %420 = vmatpush1.msra.mxu0 0.0
    %421 = vmatprep.subr.mxu0 0.0
    %422 = vmatpush1.msra.mxu0 0.0
    %423 = vmatprep.subr.mxu0 0.0
    %424 = vmatpush1.msra.mxu0 0.0
    %425 = vmatprep.subr.mxu0 0.0
    %426 = vmatpush1.msra.mxu0 0.0
    %427 = vmatprep.subr.mxu0 0.0
    %428 = vmatpush1.msra.mxu0 0.0
    %429 = vmatprep.subr.mxu0 0.0
    %430 = vmatpush1.msra.mxu0 0.0
    %431 = vmatprep.subr.mxu0 0.0
    %432 = vmatpush1.msra.mxu0 0.0
    %433 = vmatprep.subr.mxu0 0.0
    %434 = vmatpush1.msra.mxu0 0.0
    %435 = vmatprep.subr.mxu0 0.0
    %436 = vmatpush1.msra.mxu0 0.0
    %437 = vmatprep.mubr.f32.mxu0 0.0
    %438 = vmatmul.mubr.f32.gmra.mrb[0].mxu0 %v355
    %v439 = vpop.f32.mrb[0].mxu0
    %v440 = vadd.f32 0.0, %v439
    %v441 = vpop.f32.mrb[0].mxu0
    %442 = vmatprep.mubr.f32.mxu0 0.0
    %443 = vmatmul.mubr.f32.gmra.mrb[0].mxu0 %v358
    %v444 = vpop.f32.mrb[0].mxu0
    %v445 = vadd.f32 0.0, %v444
    %v446 = vpop.f32.mrb[0].mxu0
    %447 = vmatprep.mubr.f32.mxu0 0.0
    %448 = vmatmul.mubr.f32.gmra.mrb[0].mxu0 %v361
    %v449 = vpop.f32.mrb[0].mxu0
    %v450 = vadd.f32 0.0, %v449
    %v451 = vpop.f32.mrb[0].mxu0
    %452 = vmatprep.mubr.f32.mxu0 0.0
    %453 = vmatmul.mubr.f32.gmra.mrb[0].mxu0 %v364
    %v454 = vpop.f32.mrb[0].mxu0
    %v455 = vadd.f32 0.0, %v454
    %v456 = vpop.f32.mrb[0].mxu0
    %457 = vmatprep.mubr.f32.mxu0 0.0
    %458 = vmatmul.mubr.f32.gmra.mrb[0].mxu0 %v367
    %v459 = vpop.f32.mrb[0].mxu0
    %v460 = vadd.f32 0.0, %v459
    %v461 = vpop.f32.mrb[0].mxu0
    %462 = vdwg.mxu0
    %v464 = vsel %vm353, %v263, 0
    %v467 = vsel %vm353, %v264, 0
    %v470 = vsel %vm353, %v265, 0
    %v473 = vsel %vm353, %v266, 0
    %v476 = vsel %vm353, %v267, 0
    %v479 = vsel %vm369, %v260, 0
    %481 = vmatprep.subr.mxu0 0.0
    %482 = vmatpush1.msra.mxu0 %v479
    %483 = vmatprep.subr.mxu0 0.0
    %484 = vmatpush1.msra.mxu0 0.0
    %485 = vmatprep.subr.mxu0 0.0
    %486 = vmatpush1.msra.mxu0 0.0
    %487 = vmatprep.subr.mxu0 0.0
    %488 = vmatpush1.msra.mxu0 0.0
    %489 = vmatprep.subr.mxu0 0.0
    %490 = vmatpush1.msra.mxu0 0.0
    %491 = vmatprep.subr.mxu0 0.0
    %492 = vmatpush1.msra.mxu0 0.0
    %493 = vmatprep.subr.mxu0 0.0
    %494 = vmatpush1.msra.mxu0 0.0
    %495 = vmatprep.subr.mxu0 0.0
    %496 = vmatpush1.msra.mxu0 0.0
    %497 = vmatprep.subr.mxu0 0.0
    %498 = vmatpush1.msra.mxu0 0.0
    %499 = vmatprep.subr.mxu0 0.0
    %500 = vmatpush1.msra.mxu0 0.0
    %501 = vmatprep.subr.mxu0 0.0
    %502 = vmatpush1.msra.mxu0 0.0
    %503 = vmatprep.subr.mxu0 0.0
    %504 = vmatpush1.msra.mxu0 0.0
    %505 = vmatprep.subr.mxu0 0.0
    %506 = vmatpush1.msra.mxu0 0.0
    %507 = vmatprep.subr.mxu0 0.0
    %508 = vmatpush1.msra.mxu0 0.0
    %509 = vmatprep.subr.mxu0 0.0
    %510 = vmatpush1.msra.mxu0 0.0
    %511 = vmatprep.subr.mxu0 0.0
    %512 = vmatpush1.msra.mxu0 0.0
    %513 = vmatprep.subr.mxu0 0.0
    %514 = vmatpush1.msra.mxu0 0.0
    %515 = vmatprep.subr.mxu0 0.0
    %516 = vmatpush1.msra.mxu0 0.0
    %517 = vmatprep.subr.mxu0 0.0
    %518 = vmatpush1.msra.mxu0 0.0
    %519 = vmatprep.subr.mxu0 0.0
    %520 = vmatpush1.msra.mxu0 0.0
    %521 = vmatprep.subr.mxu0 0.0
    %522 = vmatpush1.msra.mxu0 0.0
    %523 = vmatprep.subr.mxu0 0.0
    %524 = vmatpush1.msra.mxu0 0.0
    %525 = vmatprep.subr.mxu0 0.0
    %526 = vmatpush1.msra.mxu0 0.0
    %527 = vmatprep.subr.mxu0 0.0
    %528 = vmatpush1.msra.mxu0 0.0
    %529 = vmatprep.subr.mxu0 0.0
    %530 = vmatpush1.msra.mxu0 0.0
    %531 = vmatprep.subr.mxu0 0.0
    %532 = vmatpush1.msra.mxu0 0.0
    %533 = vmatprep.subr.mxu0 0.0
    %534 = vmatpush1.msra.mxu0 0.0
    %535 = vmatprep.subr.mxu0 0.0
    %536 = vmatpush1.msra.mxu0 0.0
    %537 = vmatprep.subr.mxu0 0.0
    %538 = vmatpush1.msra.mxu0 0.0
    %539 = vmatprep.subr.mxu0 0.0
    %540 = vmatpush1.msra.mxu0 0.0
    %541 = vmatprep.subr.mxu0 0.0
    %542 = vmatpush1.msra.mxu0 0.0
    %543 = vmatprep.subr.mxu0 0.0
    %544 = vmatpush1.msra.mxu0 0.0
    %545 = vmatprep.mubr.f32.mxu0 0.0
    %546 = vmatmul.mubr.f32.gmra.mrb[0].mxu0 %v464
    %v547 = vpop.f32.mrb[0].mxu0
    %v548 = vadd.f32 %v440, %v547
    %v549 = vpop.f32.mrb[0].mxu0
    %550 = vmatprep.mubr.f32.mxu0 0.0
    %551 = vmatmul.mubr.f32.gmra.mrb[0].mxu0 %v467
    %v552 = vpop.f32.mrb[0].mxu0
    %v553 = vadd.f32 %v445, %v552
    %v554 = vpop.f32.mrb[0].mxu0
    %555 = vmatprep.mubr.f32.mxu0 0.0
    %556 = vmatmul.mubr.f32.gmra.mrb[0].mxu0 %v470
    %v557 = vpop.f32.mrb[0].mxu0
    %v558 = vadd.f32 %v450, %v557
    %v559 = vpop.f32.mrb[0].mxu0
    %560 = vmatprep.mubr.f32.mxu0 0.0
    %561 = vmatmul.mubr.f32.gmra.mrb[0].mxu0 %v473
    %v562 = vpop.f32.mrb[0].mxu0
    %v563 = vadd.f32 %v455, %v562
    %v564 = vpop.f32.mrb[0].mxu0
    %565 = vmatprep.mubr.f32.mxu0 0.0
    %566 = vmatmul.mubr.f32.gmra.mrb[0].mxu0 %v476
    %v567 = vpop.f32.mrb[0].mxu0
    %v568 = vadd.f32 %v460, %v567
    %v569 = vpop.f32.mrb[0].mxu0
    %570 = vdwg.mxu0
    %s571 = scalar_lea.vmem [#allocation2], 128
    %v572 = vld [vmem:[%s571] sm:$0xff]
    %v573 = vld [vmem:[%s571 + $0x8] sm:$0xff]
    %v574 = vld [vmem:[%s571 + $0x10] sm:$0xff]
    %v575 = vld [vmem:[%s571 + $0x18] sm:$0xff]
    %v576 = vld [vmem:[%s571 + $0x20] sm:$0xff]
    %v577 = vld [vmem:[%s571 + $0x28] sm:$0xff]
    %v578 = vld [vmem:[%s571 + $0x30] sm:$0xff]
    %v579 = vld [vmem:[%s571 + $0x38] sm:$0xff]
    %580 = vmatprep.subr.mxu0 0.0
    %581 = vmatpush1.msra.mxu0 %v572
    %582 = vmatprep.subr.mxu0 0.0
    %583 = vmatpush1.msra.mxu0 %v573
    %584 = vmatprep.subr.mxu0 0.0
    %585 = vmatpush1.msra.mxu0 %v574
    %586 = vmatprep.subr.mxu0 0.0
    %587 = vmatpush1.msra.mxu0 %v575
    %588 = vmatprep.subr.mxu0 0.0
    %589 = vmatpush1.msra.mxu0 %v576
    %590 = vmatprep.subr.mxu0 0.0
    %591 = vmatpush1.msra.mxu0 %v577
    %592 = vmatprep.subr.mxu0 0.0
    %593 = vmatpush1.msra.mxu0 %v578
    %594 = vmatprep.subr.mxu0 0.0
    %595 = vmatpush1.msra.mxu0 %v579
    %596 = vmatprep.subr.mxu0 0.0
    %597 = vmatpush1.msra.mxu0 0.0
    %598 = vmatprep.subr.mxu0 0.0
    %599 = vmatpush1.msra.mxu0 0.0
    %600 = vmatprep.subr.mxu0 0.0
    %601 = vmatpush1.msra.mxu0 0.0
    %602 = vmatprep.subr.mxu0 0.0
    %603 = vmatpush1.msra.mxu0 0.0
    %604 = vmatprep.subr.mxu0 0.0
    %605 = vmatpush1.msra.mxu0 0.0
    %606 = vmatprep.subr.mxu0 0.0
    %607 = vmatpush1.msra.mxu0 0.0
    %608 = vmatprep.subr.mxu0 0.0
    %609 = vmatpush1.msra.mxu0 0.0
    %610 = vmatprep.subr.mxu0 0.0
    %611 = vmatpush1.msra.mxu0 0.0
    %612 = vmatprep.subr.mxu0 0.0
    %613 = vmatpush1.msra.mxu0 0.0
    %614 = vmatprep.subr.mxu0 0.0
    %615 = vmatpush1.msra.mxu0 0.0
    %616 = vmatprep.subr.mxu0 0.0
    %617 = vmatpush1.msra.mxu0 0.0
    %618 = vmatprep.subr.mxu0 0.0
    %619 = vmatpush1.msra.mxu0 0.0
    %620 = vmatprep.subr.mxu0 0.0
    %621 = vmatpush1.msra.mxu0 0.0
    %622 = vmatprep.subr.mxu0 0.0
    %623 = vmatpush1.msra.mxu0 0.0
    %624 = vmatprep.subr.mxu0 0.0
    %625 = vmatpush1.msra.mxu0 0.0
    %626 = vmatprep.subr.mxu0 0.0
    %627 = vmatpush1.msra.mxu0 0.0
    %628 = vmatprep.subr.mxu0 0.0
    %629 = vmatpush1.msra.mxu0 0.0
    %630 = vmatprep.subr.mxu0 0.0
    %631 = vmatpush1.msra.mxu0 0.0
    %632 = vmatprep.subr.mxu0 0.0
    %633 = vmatpush1.msra.mxu0 0.0
    %634 = vmatprep.subr.mxu0 0.0
    %635 = vmatpush1.msra.mxu0 0.0
    %636 = vmatprep.subr.mxu0 0.0
    %637 = vmatpush1.msra.mxu0 0.0
    %638 = vmatprep.subr.mxu0 0.0
    %639 = vmatpush1.msra.mxu0 0.0
    %640 = vmatprep.subr.mxu0 0.0
    %641 = vmatpush1.msra.mxu0 0.0
    %642 = vmatprep.subr.mxu0 0.0
    %643 = vmatpush1.msra.mxu0 0.0
    %644 = vmatprep.mubr.f32.mxu0 0.0
    %645 = vmatmul.mubr.f32.gmra.mrb[0].mxu0 %v191
    %v646 = vpop.f32.mrb[0].mxu0
    %v647 = vadd.f32 0.0, %v646
    %v648 = vpop.f32.mrb[0].mxu0
    %649 = vdwg.mxu0
    %s650 = scalar_lea.vmem [#allocation9], 80
    %v651 = vld [vmem:[%s650] sm:$0xff]
    %v652 = vld [vmem:[%s650 + $0x8] sm:$0xff]
    %v653 = vld [vmem:[%s650 + $0x10] sm:$0xff]
    %v654 = vld [vmem:[%s650 + $0x18] sm:$0xff]
    %v655 = vld [vmem:[%s650 + $0x20] sm:$0xf]
    %v657 = vsel %vm353, %v651, 0
    %v660 = vsel %vm353, %v652, 0
    %v663 = vsel %vm353, %v653, 0
    %v666 = vsel %vm353, %v654, 0
    %v669 = vsel %vm353, %v655, 0
    %v672 = vsel %vm369, %v647, 0
    %674 = vmatprep.subr.mxu0 0.0
    %675 = vmatpush1.msra.mxu0 %v672
    %676 = vmatprep.subr.mxu0 0.0
    %677 = vmatpush1.msra.mxu0 0.0
    %678 = vmatprep.subr.mxu0 0.0
    %679 = vmatpush1.msra.mxu0 0.0
    %680 = vmatprep.subr.mxu0 0.0
    %681 = vmatpush1.msra.mxu0 0.0
    %682 = vmatprep.subr.mxu0 0.0
    %683 = vmatpush1.msra.mxu0 0.0
    %684 = vmatprep.subr.mxu0 0.0
    %685 = vmatpush1.msra.mxu0 0.0
    %686 = vmatprep.subr.mxu0 0.0
    %687 = vmatpush1.msra.mxu0 0.0
    %688 = vmatprep.subr.mxu0 0.0
    %689 = vmatpush1.msra.mxu0 0.0
    %690 = vmatprep.subr.mxu0 0.0
    %691 = vmatpush1.msra.mxu0 0.0
    %692 = vmatprep.subr.mxu0 0.0
    %693 = vmatpush1.msra.mxu0 0.0
    %694 = vmatprep.subr.mxu0 0.0
    %695 = vmatpush1.msra.mxu0 0.0
    %696 = vmatprep.subr.mxu0 0.0
    %697 = vmatpush1.msra.mxu0 0.0
    %698 = vmatprep.subr.mxu0 0.0
    %699 = vmatpush1.msra.mxu0 0.0
    %700 = vmatprep.subr.mxu0 0.0
    %701 = vmatpush1.msra.mxu0 0.0
    %702 = vmatprep.subr.mxu0 0.0
    %703 = vmatpush1.msra.mxu0 0.0
    %704 = vmatprep.subr.mxu0 0.0
    %705 = vmatpush1.msra.mxu0 0.0
    %706 = vmatprep.subr.mxu0 0.0
    %707 = vmatpush1.msra.mxu0 0.0
    %708 = vmatprep.subr.mxu0 0.0
    %709 = vmatpush1.msra.mxu0 0.0
    %710 = vmatprep.subr.mxu0 0.0
    %711 = vmatpush1.msra.mxu0 0.0
    %712 = vmatprep.subr.mxu0 0.0
    %713 = vmatpush1.msra.mxu0 0.0
    %714 = vmatprep.subr.mxu0 0.0
    %715 = vmatpush1.msra.mxu0 0.0
    %716 = vmatprep.subr.mxu0 0.0
    %717 = vmatpush1.msra.mxu0 0.0
    %718 = vmatprep.subr.mxu0 0.0
    %719 = vmatpush1.msra.mxu0 0.0
    %720 = vmatprep.subr.mxu0 0.0
    %721 = vmatpush1.msra.mxu0 0.0
    %722 = vmatprep.subr.mxu0 0.0
    %723 = vmatpush1.msra.mxu0 0.0
    %724 = vmatprep.subr.mxu0 0.0
    %725 = vmatpush1.msra.mxu0 0.0
    %726 = vmatprep.subr.mxu0 0.0
    %727 = vmatpush1.msra.mxu0 0.0
    %728 = vmatprep.subr.mxu0 0.0
    %729 = vmatpush1.msra.mxu0 0.0
    %730 = vmatprep.subr.mxu0 0.0
    %731 = vmatpush1.msra.mxu0 0.0
    %732 = vmatprep.subr.mxu0 0.0
    %733 = vmatpush1.msra.mxu0 0.0
    %734 = vmatprep.subr.mxu0 0.0
    %735 = vmatpush1.msra.mxu0 0.0
    %736 = vmatprep.subr.mxu0 0.0
    %737 = vmatpush1.msra.mxu0 0.0
    %738 = vmatprep.mubr.f32.mxu0 0.0
    %739 = vmatmul.mubr.f32.gmra.mrb[0].mxu0 %v657
    %v740 = vpop.f32.mrb[0].mxu0
    %v741 = vadd.f32 0.0, %v740
    %v742 = vpop.f32.mrb[0].mxu0
    %743 = vmatprep.mubr.f32.mxu0 0.0
    %744 = vmatmul.mubr.f32.gmra.mrb[0].mxu0 %v660
    %v745 = vpop.f32.mrb[0].mxu0
    %v746 = vadd.f32 0.0, %v745
    %v747 = vpop.f32.mrb[0].mxu0
    %748 = vmatprep.mubr.f32.mxu0 0.0
    %749 = vmatmul.mubr.f32.gmra.mrb[0].mxu0 %v663
    %v750 = vpop.f32.mrb[0].mxu0
    %v751 = vadd.f32 0.0, %v750
    %v752 = vpop.f32.mrb[0].mxu0
    %753 = vmatprep.mubr.f32.mxu0 0.0
    %754 = vmatmul.mubr.f32.gmra.mrb[0].mxu0 %v666
    %v755 = vpop.f32.mrb[0].mxu0
    %v756 = vadd.f32 0.0, %v755
    %v757 = vpop.f32.mrb[0].mxu0
    %758 = vmatprep.mubr.f32.mxu0 0.0
    %759 = vmatmul.mubr.f32.gmra.mrb[0].mxu0 %v669
    %v760 = vpop.f32.mrb[0].mxu0
    %v761 = vadd.f32 0.0, %v760
    %v762 = vpop.f32.mrb[0].mxu0
    %763 = vdwg.mxu0
    %v764 = vadd.f32 %v548, %v741
    %v765 = vadd.f32 %v553, %v746
    %v766 = vadd.f32 %v558, %v751
    %v767 = vadd.f32 %v563, %v756
    %v768 = vadd.f32 %v568, %v761
    %s769 = scalar_lea.vmem [#allocation2], 192
    %v770 = vld [vmem:[%s769] sm:$0xff]
    %v771 = vld [vmem:[%s769 + $0x8] sm:$0xff]
    %v772 = vld [vmem:[%s769 + $0x10] sm:$0xff]
    %v773 = vld [vmem:[%s769 + $0x18] sm:$0xff]
    %v774 = vld [vmem:[%s769 + $0x20] sm:$0xff]
    %v775 = vld [vmem:[%s769 + $0x28] sm:$0xff]
    %v776 = vld [vmem:[%s769 + $0x30] sm:$0xff]
    %v777 = vld [vmem:[%s769 + $0x38] sm:$0xff]
    %778 = vmatprep.subr.mxu0 0.0
    %779 = vmatpush1.msra.mxu0 %v770
    %780 = vmatprep.subr.mxu0 0.0
    %781 = vmatpush1.msra.mxu0 %v771
    %782 = vmatprep.subr.mxu0 0.0
    %783 = vmatpush1.msra.mxu0 %v772
    %784 = vmatprep.subr.mxu0 0.0
    %785 = vmatpush1.msra.mxu0 %v773
    %786 = vmatprep.subr.mxu0 0.0
    %787 = vmatpush1.msra.mxu0 %v774
    %788 = vmatprep.subr.mxu0 0.0
    %789 = vmatpush1.msra.mxu0 %v775
    %790 = vmatprep.subr.mxu0 0.0
    %791 = vmatpush1.msra.mxu0 %v776
    %792 = vmatprep.subr.mxu0 0.0
    %793 = vmatpush1.msra.mxu0 %v777
    %794 = vmatprep.subr.mxu0 0.0
    %795 = vmatpush1.msra.mxu0 0.0
    %796 = vmatprep.subr.mxu0 0.0
    %797 = vmatpush1.msra.mxu0 0.0
    %798 = vmatprep.subr.mxu0 0.0
    %799 = vmatpush1.msra.mxu0 0.0
    %800 = vmatprep.subr.mxu0 0.0
    %801 = vmatpush1.msra.mxu0 0.0
    %802 = vmatprep.subr.mxu0 0.0
    %803 = vmatpush1.msra.mxu0 0.0
    %804 = vmatprep.subr.mxu0 0.0
    %805 = vmatpush1.msra.mxu0 0.0
    %806 = vmatprep.subr.mxu0 0.0
    %807 = vmatpush1.msra.mxu0 0.0
    %808 = vmatprep.subr.mxu0 0.0
    %809 = vmatpush1.msra.mxu0 0.0
    %810 = vmatprep.subr.mxu0 0.0
    %811 = vmatpush1.msra.mxu0 0.0
    %812 = vmatprep.subr.mxu0 0.0
    %813 = vmatpush1.msra.mxu0 0.0
    %814 = vmatprep.subr.mxu0 0.0
    %815 = vmatpush1.msra.mxu0 0.0
    %816 = vmatprep.subr.mxu0 0.0
    %817 = vmatpush1.msra.mxu0 0.0
    %818 = vmatprep.subr.mxu0 0.0
    %819 = vmatpush1.msra.mxu0 0.0
    %820 = vmatprep.subr.mxu0 0.0
    %821 = vmatpush1.msra.mxu0 0.0
    %822 = vmatprep.subr.mxu0 0.0
    %823 = vmatpush1.msra.mxu0 0.0
    %824 = vmatprep.subr.mxu0 0.0
    %825 = vmatpush1.msra.mxu0 0.0
    %826 = vmatprep.subr.mxu0 0.0
    %827 = vmatpush1.msra.mxu0 0.0
    %828 = vmatprep.subr.mxu0 0.0
    %829 = vmatpush1.msra.mxu0 0.0
    %830 = vmatprep.subr.mxu0 0.0
    %831 = vmatpush1.msra.mxu0 0.0
    %832 = vmatprep.subr.mxu0 0.0
    %833 = vmatpush1.msra.mxu0 0.0
    %834 = vmatprep.subr.mxu0 0.0
    %835 = vmatpush1.msra.mxu0 0.0
    %836 = vmatprep.subr.mxu0 0.0
    %837 = vmatpush1.msra.mxu0 0.0
    %838 = vmatprep.subr.mxu0 0.0
    %839 = vmatpush1.msra.mxu0 0.0
    %840 = vmatprep.subr.mxu0 0.0
    %841 = vmatpush1.msra.mxu0 0.0
    %842 = vmatprep.mubr.f32.mxu0 0.0
    %843 = vmatmul.mubr.f32.gmra.mrb[0].mxu0 %v191
    %v844 = vpop.f32.mrb[0].mxu0
    %v845 = vadd.f32 0.0, %v844
    %v846 = vpop.f32.mrb[0].mxu0
    %847 = vdwg.mxu0
    %s848 = scalar_lea.vmem [#allocation9], 120
    %v849 = vld [vmem:[%s848] sm:$0xff]
    %v850 = vld [vmem:[%s848 + $0x8] sm:$0xff]
    %v851 = vld [vmem:[%s848 + $0x10] sm:$0xff]
    %v852 = vld [vmem:[%s848 + $0x18] sm:$0xff]
    %v853 = vld [vmem:[%s848 + $0x20] sm:$0xf]
    %v855 = vsel %vm353, %v849, 0
    %v858 = vsel %vm353, %v850, 0
    %v861 = vsel %vm353, %v851, 0
    %v864 = vsel %vm353, %v852, 0
    %v867 = vsel %vm353, %v853, 0
    %v870 = vsel %vm369, %v845, 0
    %872 = vmatprep.subr.mxu0 0.0
    %873 = vmatpush1.msra.mxu0 %v870
    %874 = vmatprep.subr.mxu0 0.0
    %875 = vmatpush1.msra.mxu0 0.0
    %876 = vmatprep.subr.mxu0 0.0
    %877 = vmatpush1.msra.mxu0 0.0
    %878 = vmatprep.subr.mxu0 0.0
    %879 = vmatpush1.msra.mxu0 0.0
    %880 = vmatprep.subr.mxu0 0.0
    %881 = vmatpush1.msra.mxu0 0.0
    %882 = vmatprep.subr.mxu0 0.0
    %883 = vmatpush1.msra.mxu0 0.0
    %884 = vmatprep.subr.mxu0 0.0
    %885 = vmatpush1.msra.mxu0 0.0
    %886 = vmatprep.subr.mxu0 0.0
    %887 = vmatpush1.msra.mxu0 0.0
    %888 = vmatprep.subr.mxu0 0.0
    %889 = vmatpush1.msra.mxu0 0.0
    %890 = vmatprep.subr.mxu0 0.0
    %891 = vmatpush1.msra.mxu0 0.0
    %892 = vmatprep.subr.mxu0 0.0
    %893 = vmatpush1.msra.mxu0 0.0
    %894 = vmatprep.subr.mxu0 0.0
    %895 = vmatpush1.msra.mxu0 0.0
    %896 = vmatprep.subr.mxu0 0.0
    %897 = vmatpush1.msra.mxu0 0.0
    %898 = vmatprep.subr.mxu0 0.0
    %899 = vmatpush1.msra.mxu0 0.0
    %900 = vmatprep.subr.mxu0 0.0
    %901 = vmatpush1.msra.mxu0 0.0
    %902 = vmatprep.subr.mxu0 0.0
    %903 = vmatpush1.msra.mxu0 0.0
    %904 = vmatprep.subr.mxu0 0.0
    %905 = vmatpush1.msra.mxu0 0.0
    %906 = vmatprep.subr.mxu0 0.0
    %907 = vmatpush1.msra.mxu0 0.0
    %908 = vmatprep.subr.mxu0 0.0
    %909 = vmatpush1.msra.mxu0 0.0
    %910 = vmatprep.subr.mxu0 0.0
    %911 = vmatpush1.msra.mxu0 0.0
    %912 = vmatprep.subr.mxu0 0.0
    %913 = vmatpush1.msra.mxu0 0.0
    %914 = vmatprep.subr.mxu0 0.0
    %915 = vmatpush1.msra.mxu0 0.0
    %916 = vmatprep.subr.mxu0 0.0
    %917 = vmatpush1.msra.mxu0 0.0
    %918 = vmatprep.subr.mxu0 0.0
    %919 = vmatpush1.msra.mxu0 0.0
    %920 = vmatprep.subr.mxu0 0.0
    %921 = vmatpush1.msra.mxu0 0.0
    %922 = vmatprep.subr.mxu0 0.0
    %923 = vmatpush1.msra.mxu0 0.0
    %924 = vmatprep.subr.mxu0 0.0
    %925 = vmatpush1.msra.mxu0 0.0
    %926 = vmatprep.subr.mxu0 0.0
    %927 = vmatpush1.msra.mxu0 0.0
    %928 = vmatprep.subr.mxu0 0.0
    %929 = vmatpush1.msra.mxu0 0.0
    %930 = vmatprep.subr.mxu0 0.0
    %931 = vmatpush1.msra.mxu0 0.0
    %932 = vmatprep.subr.mxu0 0.0
    %933 = vmatpush1.msra.mxu0 0.0
    %934 = vmatprep.subr.mxu0 0.0
    %935 = vmatpush1.msra.mxu0 0.0
    %936 = vmatprep.mubr.f32.mxu0 0.0
    %937 = vmatmul.mubr.f32.gmra.mrb[0].mxu0 %v855
    %v938 = vpop.f32.mrb[0].mxu0
    %v939 = vadd.f32 0.0, %v938
    %v940 = vpop.f32.mrb[0].mxu0
    %941 = vmatprep.mubr.f32.mxu0 0.0
    %942 = vmatmul.mubr.f32.gmra.mrb[0].mxu0 %v858
    %v943 = vpop.f32.mrb[0].mxu0
    %v944 = vadd.f32 0.0, %v943
    %v945 = vpop.f32.mrb[0].mxu0
    %946 = vmatprep.mubr.f32.mxu0 0.0
    %947 = vmatmul.mubr.f32.gmra.mrb[0].mxu0 %v861
    %v948 = vpop.f32.mrb[0].mxu0
    %v949 = vadd.f32 0.0, %v948
    %v950 = vpop.f32.mrb[0].mxu0
    %951 = vmatprep.mubr.f32.mxu0 0.0
    %952 = vmatmul.mubr.f32.gmra.mrb[0].mxu0 %v864
    %v953 = vpop.f32.mrb[0].mxu0
    %v954 = vadd.f32 0.0, %v953
    %v955 = vpop.f32.mrb[0].mxu0
    %956 = vmatprep.mubr.f32.mxu0 0.0
    %957 = vmatmul.mubr.f32.gmra.mrb[0].mxu0 %v867
    %v958 = vpop.f32.mrb[0].mxu0
    %v959 = vadd.f32 0.0, %v958
    %v960 = vpop.f32.mrb[0].mxu0
    %961 = vdwg.mxu0
    %v962 = vadd.f32 %v764, %v939
    %v963 = vadd.f32 %v765, %v944
    %v964 = vadd.f32 %v766, %v949
    %v965 = vadd.f32 %v767, %v954
    %v966 = vadd.f32 %v768, %v959
    %s967 = scalar_lea.vmem [#allocation2], 256
    %v968 = vld [vmem:[%s967] sm:$0xff]
    %v969 = vld [vmem:[%s967 + $0x8] sm:$0xff]
    %v970 = vld [vmem:[%s967 + $0x10] sm:$0xff]
    %v971 = vld [vmem:[%s967 + $0x18] sm:$0xff]
    %v972 = vld [vmem:[%s967 + $0x20] sm:$0xff]
    %v973 = vld [vmem:[%s967 + $0x28] sm:$0xff]
    %v974 = vld [vmem:[%s967 + $0x30] sm:$0xff]
    %v975 = vld [vmem:[%s967 + $0x38] sm:$0xff]
    %976 = vmatprep.subr.mxu0 0.0
    %977 = vmatpush1.msra.mxu0 %v968
    %978 = vmatprep.subr.mxu0 0.0
    %979 = vmatpush1.msra.mxu0 %v969
    %980 = vmatprep.subr.mxu0 0.0
    %981 = vmatpush1.msra.mxu0 %v970
    %982 = vmatprep.subr.mxu0 0.0
    %983 = vmatpush1.msra.mxu0 %v971
    %984 = vmatprep.subr.mxu0 0.0
    %985 = vmatpush1.msra.mxu0 %v972
    %986 = vmatprep.subr.mxu0 0.0
    %987 = vmatpush1.msra.mxu0 %v973
    %988 = vmatprep.subr.mxu0 0.0
    %989 = vmatpush1.msra.mxu0 %v974
    %990 = vmatprep.subr.mxu0 0.0
    %991 = vmatpush1.msra.mxu0 %v975
    %992 = vmatprep.subr.mxu0 0.0
    %993 = vmatpush1.msra.mxu0 0.0
    %994 = vmatprep.subr.mxu0 0.0
    %995 = vmatpush1.msra.mxu0 0.0
    %996 = vmatprep.subr.mxu0 0.0
    %997 = vmatpush1.msra.mxu0 0.0
    %998 = vmatprep.subr.mxu0 0.0
    %999 = vmatpush1.msra.mxu0 0.0
    %1000 = vmatprep.subr.mxu0 0.0
    %1001 = vmatpush1.msra.mxu0 0.0
    %1002 = vmatprep.subr.mxu0 0.0
    %1003 = vmatpush1.msra.mxu0 0.0
    %1004 = vmatprep.subr.mxu0 0.0
    %1005 = vmatpush1.msra.mxu0 0.0
    %1006 = vmatprep.subr.mxu0 0.0
    %1007 = vmatpush1.msra.mxu0 0.0
    %1008 = vmatprep.subr.mxu0 0.0
    %1009 = vmatpush1.msra.mxu0 0.0
    %1010 = vmatprep.subr.mxu0 0.0
    %1011 = vmatpush1.msra.mxu0 0.0
    %1012 = vmatprep.subr.mxu0 0.0
    %1013 = vmatpush1.msra.mxu0 0.0
    %1014 = vmatprep.subr.mxu0 0.0
    %1015 = vmatpush1.msra.mxu0 0.0
    %1016 = vmatprep.subr.mxu0 0.0
    %1017 = vmatpush1.msra.mxu0 0.0
    %1018 = vmatprep.subr.mxu0 0.0
    %1019 = vmatpush1.msra.mxu0 0.0
    %1020 = vmatprep.subr.mxu0 0.0
    %1021 = vmatpush1.msra.mxu0 0.0
    %1022 = vmatprep.subr.mxu0 0.0
    %1023 = vmatpush1.msra.mxu0 0.0
    %1024 = vmatprep.subr.mxu0 0.0
    %1025 = vmatpush1.msra.mxu0 0.0
    %1026 = vmatprep.subr.mxu0 0.0
    %1027 = vmatpush1.msra.mxu0 0.0
    %1028 = vmatprep.subr.mxu0 0.0
    %1029 = vmatpush1.msra.mxu0 0.0
    %1030 = vmatprep.subr.mxu0 0.0
    %1031 = vmatpush1.msra.mxu0 0.0
    %1032 = vmatprep.subr.mxu0 0.0
    %1033 = vmatpush1.msra.mxu0 0.0
    %1034 = vmatprep.subr.mxu0 0.0
    %1035 = vmatpush1.msra.mxu0 0.0
    %1036 = vmatprep.subr.mxu0 0.0
    %1037 = vmatpush1.msra.mxu0 0.0
    %1038 = vmatprep.subr.mxu0 0.0
    %1039 = vmatpush1.msra.mxu0 0.0
    %1040 = vmatprep.mubr.f32.mxu0 0.0
    %1041 = vmatmul.mubr.f32.gmra.mrb[0].mxu0 %v191
    %v1042 = vpop.f32.mrb[0].mxu0
    %v1043 = vadd.f32 0.0, %v1042
    %v1044 = vpop.f32.mrb[0].mxu0
    %1045 = vdwg.mxu0
    %s1046 = scalar_lea.vmem [#allocation9], 160
    %v1047 = vld [vmem:[%s1046] sm:$0xff]
    %v1048 = vld [vmem:[%s1046 + $0x8] sm:$0xff]
    %v1049 = vld [vmem:[%s1046 + $0x10] sm:$0xff]
    %v1050 = vld [vmem:[%s1046 + $0x18] sm:$0xff]
    %v1051 = vld [vmem:[%s1046 + $0x20] sm:$0xf]
    %v1053 = vsel %vm353, %v1047, 0
    %v1056 = vsel %vm353, %v1048, 0
    %v1059 = vsel %vm353, %v1049, 0
    %v1062 = vsel %vm353, %v1050, 0
    %v1065 = vsel %vm353, %v1051, 0
    %v1068 = vsel %vm369, %v1043, 0
    %1070 = vmatprep.subr.mxu0 0.0
    %1071 = vmatpush1.msra.mxu0 %v1068
    %1072 = vmatprep.subr.mxu0 0.0
    %1073 = vmatpush1.msra.mxu0 0.0
    %1074 = vmatprep.subr.mxu0 0.0
    %1075 = vmatpush1.msra.mxu0 0.0
    %1076 = vmatprep.subr.mxu0 0.0
    %1077 = vmatpush1.msra.mxu0 0.0
    %1078 = vmatprep.subr.mxu0 0.0
    %1079 = vmatpush1.msra.mxu0 0.0
    %1080 = vmatprep.subr.mxu0 0.0
    %1081 = vmatpush1.msra.mxu0 0.0
    %1082 = vmatprep.subr.mxu0 0.0
    %1083 = vmatpush1.msra.mxu0 0.0
    %1084 = vmatprep.subr.mxu0 0.0
    %1085 = vmatpush1.msra.mxu0 0.0
    %1086 = vmatprep.subr.mxu0 0.0
    %1087 = vmatpush1.msra.mxu0 0.0
    %1088 = vmatprep.subr.mxu0 0.0
    %1089 = vmatpush1.msra.mxu0 0.0
    %1090 = vmatprep.subr.mxu0 0.0
    %1091 = vmatpush1.msra.mxu0 0.0
    %1092 = vmatprep.subr.mxu0 0.0
    %1093 = vmatpush1.msra.mxu0 0.0
    %1094 = vmatprep.subr.mxu0 0.0
    %1095 = vmatpush1.msra.mxu0 0.0
    %1096 = vmatprep.subr.mxu0 0.0
    %1097 = vmatpush1.msra.mxu0 0.0
    %1098 = vmatprep.subr.mxu0 0.0
    %1099 = vmatpush1.msra.mxu0 0.0
    %1100 = vmatprep.subr.mxu0 0.0
    %1101 = vmatpush1.msra.mxu0 0.0
    %1102 = vmatprep.subr.mxu0 0.0
    %1103 = vmatpush1.msra.mxu0 0.0
    %1104 = vmatprep.subr.mxu0 0.0
    %1105 = vmatpush1.msra.mxu0 0.0
    %1106 = vmatprep.subr.mxu0 0.0
    %1107 = vmatpush1.msra.mxu0 0.0
    %1108 = vmatprep.subr.mxu0 0.0
    %1109 = vmatpush1.msra.mxu0 0.0
    %1110 = vmatprep.subr.mxu0 0.0
    %1111 = vmatpush1.msra.mxu0 0.0
    %1112 = vmatprep.subr.mxu0 0.0
    %1113 = vmatpush1.msra.mxu0 0.0
    %1114 = vmatprep.subr.mxu0 0.0
    %1115 = vmatpush1.msra.mxu0 0.0
    %1116 = vmatprep.subr.mxu0 0.0
    %1117 = vmatpush1.msra.mxu0 0.0
    %1118 = vmatprep.subr.mxu0 0.0
    %1119 = vmatpush1.msra.mxu0 0.0
    %1120 = vmatprep.subr.mxu0 0.0
    %1121 = vmatpush1.msra.mxu0 0.0
    %1122 = vmatprep.subr.mxu0 0.0
    %1123 = vmatpush1.msra.mxu0 0.0
    %1124 = vmatprep.subr.mxu0 0.0
    %1125 = vmatpush1.msra.mxu0 0.0
    %1126 = vmatprep.subr.mxu0 0.0
    %1127 = vmatpush1.msra.mxu0 0.0
    %1128 = vmatprep.subr.mxu0 0.0
    %1129 = vmatpush1.msra.mxu0 0.0
    %1130 = vmatprep.subr.mxu0 0.0
    %1131 = vmatpush1.msra.mxu0 0.0
    %1132 = vmatprep.subr.mxu0 0.0
    %1133 = vmatpush1.msra.mxu0 0.0
    %1134 = vmatprep.mubr.f32.mxu0 0.0
    %1135 = vmatmul.mubr.f32.gmra.mrb[0].mxu0 %v1053
    %v1136 = vpop.f32.mrb[0].mxu0
    %v1137 = vadd.f32 0.0, %v1136
    %v1138 = vpop.f32.mrb[0].mxu0
    %1139 = vmatprep.mubr.f32.mxu0 0.0
    %1140 = vmatmul.mubr.f32.gmra.mrb[0].mxu0 %v1056
    %v1141 = vpop.f32.mrb[0].mxu0
    %v1142 = vadd.f32 0.0, %v1141
    %v1143 = vpop.f32.mrb[0].mxu0
    %1144 = vmatprep.mubr.f32.mxu0 0.0
    %1145 = vmatmul.mubr.f32.gmra.mrb[0].mxu0 %v1059
    %v1146 = vpop.f32.mrb[0].mxu0
    %v1147 = vadd.f32 0.0, %v1146
    %v1148 = vpop.f32.mrb[0].mxu0
    %1149 = vmatprep.mubr.f32.mxu0 0.0
    %1150 = vmatmul.mubr.f32.gmra.mrb[0].mxu0 %v1062
    %v1151 = vpop.f32.mrb[0].mxu0
    %v1152 = vadd.f32 0.0, %v1151
    %v1153 = vpop.f32.mrb[0].mxu0
    %1154 = vmatprep.mubr.f32.mxu0 0.0
    %1155 = vmatmul.mubr.f32.gmra.mrb[0].mxu0 %v1065
    %v1156 = vpop.f32.mrb[0].mxu0
    %v1157 = vadd.f32 0.0, %v1156
    %v1158 = vpop.f32.mrb[0].mxu0
    %1159 = vdwg.mxu0
    %v1160 = vadd.f32 %v962, %v1137
    %v1161 = vadd.f32 %v963, %v1142
    %v1162 = vadd.f32 %v964, %v1147
    %v1163 = vadd.f32 %v965, %v1152
    %v1164 = vadd.f32 %v966, %v1157
    %s1165 = scalar_lea.vmem [#allocation2], 320
    %v1166 = vld [vmem:[%s1165] sm:$0xff]
    %v1167 = vld [vmem:[%s1165 + $0x8] sm:$0xff]
    %v1168 = vld [vmem:[%s1165 + $0x10] sm:$0xff]
    %v1169 = vld [vmem:[%s1165 + $0x18] sm:$0xff]
    %v1170 = vld [vmem:[%s1165 + $0x20] sm:$0xff]
    %v1171 = vld [vmem:[%s1165 + $0x28] sm:$0xff]
    %v1172 = vld [vmem:[%s1165 + $0x30] sm:$0xff]
    %v1173 = vld [vmem:[%s1165 + $0x38] sm:$0xff]
    %1174 = vmatprep.subr.mxu0 0.0
    %1175 = vmatpush1.msra.mxu0 %v1166
    %1176 = vmatprep.subr.mxu0 0.0
    %1177 = vmatpush1.msra.mxu0 %v1167
    %1178 = vmatprep.subr.mxu0 0.0
    %1179 = vmatpush1.msra.mxu0 %v1168
    %1180 = vmatprep.subr.mxu0 0.0
    %1181 = vmatpush1.msra.mxu0 %v1169
    %1182 = vmatprep.subr.mxu0 0.0
    %1183 = vmatpush1.msra.mxu0 %v1170
    %1184 = vmatprep.subr.mxu0 0.0
    %1185 = vmatpush1.msra.mxu0 %v1171
    %1186 = vmatprep.subr.mxu0 0.0
    %1187 = vmatpush1.msra.mxu0 %v1172
    %1188 = vmatprep.subr.mxu0 0.0
    %1189 = vmatpush1.msra.mxu0 %v1173
    %1190 = vmatprep.subr.mxu0 0.0
    %1191 = vmatpush1.msra.mxu0 0.0
    %1192 = vmatprep.subr.mxu0 0.0
    %1193 = vmatpush1.msra.mxu0 0.0
    %1194 = vmatprep.subr.mxu0 0.0
    %1195 = vmatpush1.msra.mxu0 0.0
    %1196 = vmatprep.subr.mxu0 0.0
    %1197 = vmatpush1.msra.mxu0 0.0
    %1198 = vmatprep.subr.mxu0 0.0
    %1199 = vmatpush1.msra.mxu0 0.0
    %1200 = vmatprep.subr.mxu0 0.0
    %1201 = vmatpush1.msra.mxu0 0.0
    %1202 = vmatprep.subr.mxu0 0.0
    %1203 = vmatpush1.msra.mxu0 0.0
    %1204 = vmatprep.subr.mxu0 0.0
    %1205 = vmatpush1.msra.mxu0 0.0
    %1206 = vmatprep.subr.mxu0 0.0
    %1207 = vmatpush1.msra.mxu0 0.0
    %1208 = vmatprep.subr.mxu0 0.0
    %1209 = vmatpush1.msra.mxu0 0.0
    %1210 = vmatprep.subr.mxu0 0.0
    %1211 = vmatpush1.msra.mxu0 0.0
    %1212 = vmatprep.subr.mxu0 0.0
    %1213 = vmatpush1.msra.mxu0 0.0
    %1214 = vmatprep.subr.mxu0 0.0
    %1215 = vmatpush1.msra.mxu0 0.0
    %1216 = vmatprep.subr.mxu0 0.0
    %1217 = vmatpush1.msra.mxu0 0.0
    %1218 = vmatprep.subr.mxu0 0.0
    %1219 = vmatpush1.msra.mxu0 0.0
    %1220 = vmatprep.subr.mxu0 0.0
    %1221 = vmatpush1.msra.mxu0 0.0
    %1222 = vmatprep.subr.mxu0 0.0
    %1223 = vmatpush1.msra.mxu0 0.0
    %1224 = vmatprep.subr.mxu0 0.0
    %1225 = vmatpush1.msra.mxu0 0.0
    %1226 = vmatprep.subr.mxu0 0.0
    %1227 = vmatpush1.msra.mxu0 0.0
    %1228 = vmatprep.subr.mxu0 0.0
    %1229 = vmatpush1.msra.mxu0 0.0
    %1230 = vmatprep.subr.mxu0 0.0
    %1231 = vmatpush1.msra.mxu0 0.0
    %1232 = vmatprep.subr.mxu0 0.0
    %1233 = vmatpush1.msra.mxu0 0.0
    %1234 = vmatprep.subr.mxu0 0.0
    %1235 = vmatpush1.msra.mxu0 0.0
    %1236 = vmatprep.subr.mxu0 0.0
    %1237 = vmatpush1.msra.mxu0 0.0
    %1238 = vmatprep.mubr.f32.mxu0 0.0
    %1239 = vmatmul.mubr.f32.gmra.mrb[0].mxu0 %v191
    %v1240 = vpop.f32.mrb[0].mxu0
    %v1241 = vadd.f32 0.0, %v1240
    %v1242 = vpop.f32.mrb[0].mxu0
    %1243 = vdwg.mxu0
    %s1244 = scalar_lea.vmem [#allocation9], 200
    %v1245 = vld [vmem:[%s1244] sm:$0xff]
    %v1246 = vld [vmem:[%s1244 + $0x8] sm:$0xff]
    %v1247 = vld [vmem:[%s1244 + $0x10] sm:$0xff]
    %v1248 = vld [vmem:[%s1244 + $0x18] sm:$0xff]
    %v1249 = vld [vmem:[%s1244 + $0x20] sm:$0xf]
    %v1251 = vsel %vm353, %v1245, 0
    %v1254 = vsel %vm353, %v1246, 0
    %v1257 = vsel %vm353, %v1247, 0
    %v1260 = vsel %vm353, %v1248, 0
    %v1263 = vsel %vm353, %v1249, 0
    %v1266 = vsel %vm369, %v1241, 0
    %1268 = vmatprep.subr.mxu0 0.0
    %1269 = vmatpush1.msra.mxu0 %v1266
    %1270 = vmatprep.subr.mxu0 0.0
    %1271 = vmatpush1.msra.mxu0 0.0
    %1272 = vmatprep.subr.mxu0 0.0
    %1273 = vmatpush1.msra.mxu0 0.0
    %1274 = vmatprep.subr.mxu0 0.0
    %1275 = vmatpush1.msra.mxu0 0.0
    %1276 = vmatprep.subr.mxu0 0.0
    %1277 = vmatpush1.msra.mxu0 0.0
    %1278 = vmatprep.subr.mxu0 0.0
    %1279 = vmatpush1.msra.mxu0 0.0
    %1280 = vmatprep.subr.mxu0 0.0
    %1281 = vmatpush1.msra.mxu0 0.0
    %1282 = vmatprep.subr.mxu0 0.0
    %1283 = vmatpush1.msra.mxu0 0.0
    %1284 = vmatprep.subr.mxu0 0.0
    %1285 = vmatpush1.msra.mxu0 0.0
    %1286 = vmatprep.subr.mxu0 0.0
    %1287 = vmatpush1.msra.mxu0 0.0
    %1288 = vmatprep.subr.mxu0 0.0
    %1289 = vmatpush1.msra.mxu0 0.0
    %1290 = vmatprep.subr.mxu0 0.0
    %1291 = vmatpush1.msra.mxu0 0.0
    %1292 = vmatprep.subr.mxu0 0.0
    %1293 = vmatpush1.msra.mxu0 0.0
    %1294 = vmatprep.subr.mxu0 0.0
    %1295 = vmatpush1.msra.mxu0 0.0
    %1296 = vmatprep.subr.mxu0 0.0
    %1297 = vmatpush1.msra.mxu0 0.0
    %1298 = vmatprep.subr.mxu0 0.0
    %1299 = vmatpush1.msra.mxu0 0.0
    %1300 = vmatprep.subr.mxu0 0.0
    %1301 = vmatpush1.msra.mxu0 0.0
    %1302 = vmatprep.subr.mxu0 0.0
    %1303 = vmatpush1.msra.mxu0 0.0
    %1304 = vmatprep.subr.mxu0 0.0
    %1305 = vmatpush1.msra.mxu0 0.0
    %1306 = vmatprep.subr.mxu0 0.0
    %1307 = vmatpush1.msra.mxu0 0.0
    %1308 = vmatprep.subr.mxu0 0.0
    %1309 = vmatpush1.msra.mxu0 0.0
    %1310 = vmatprep.subr.mxu0 0.0
    %1311 = vmatpush1.msra.mxu0 0.0
    %1312 = vmatprep.subr.mxu0 0.0
    %1313 = vmatpush1.msra.mxu0 0.0
    %1314 = vmatprep.subr.mxu0 0.0
    %1315 = vmatpush1.msra.mxu0 0.0
    %1316 = vmatprep.subr.mxu0 0.0
    %1317 = vmatpush1.msra.mxu0 0.0
    %1318 = vmatprep.subr.mxu0 0.0
    %1319 = vmatpush1.msra.mxu0 0.0
    %1320 = vmatprep.subr.mxu0 0.0
    %1321 = vmatpush1.msra.mxu0 0.0
    %1322 = vmatprep.subr.mxu0 0.0
    %1323 = vmatpush1.msra.mxu0 0.0
    %1324 = vmatprep.subr.mxu0 0.0
    %1325 = vmatpush1.msra.mxu0 0.0
    %1326 = vmatprep.subr.mxu0 0.0
    %1327 = vmatpush1.msra.mxu0 0.0
    %1328 = vmatprep.subr.mxu0 0.0
    %1329 = vmatpush1.msra.mxu0 0.0
    %1330 = vmatprep.subr.mxu0 0.0
    %1331 = vmatpush1.msra.mxu0 0.0
    %1332 = vmatprep.mubr.f32.mxu0 0.0
    %1333 = vmatmul.mubr.f32.gmra.mrb[0].mxu0 %v1251
    %v1334 = vpop.f32.mrb[0].mxu0
    %v1335 = vadd.f32 0.0, %v1334
    %v1336 = vpop.f32.mrb[0].mxu0
    %1337 = vmatprep.mubr.f32.mxu0 0.0
    %1338 = vmatmul.mubr.f32.gmra.mrb[0].mxu0 %v1254
    %v1339 = vpop.f32.mrb[0].mxu0
    %v1340 = vadd.f32 0.0, %v1339
    %v1341 = vpop.f32.mrb[0].mxu0
    %1342 = vmatprep.mubr.f32.mxu0 0.0
    %1343 = vmatmul.mubr.f32.gmra.mrb[0].mxu0 %v1257
    %v1344 = vpop.f32.mrb[0].mxu0
    %v1345 = vadd.f32 0.0, %v1344
    %v1346 = vpop.f32.mrb[0].mxu0
    %1347 = vmatprep.mubr.f32.mxu0 0.0
    %1348 = vmatmul.mubr.f32.gmra.mrb[0].mxu0 %v1260
    %v1349 = vpop.f32.mrb[0].mxu0
    %v1350 = vadd.f32 0.0, %v1349
    %v1351 = vpop.f32.mrb[0].mxu0
    %1352 = vmatprep.mubr.f32.mxu0 0.0
    %1353 = vmatmul.mubr.f32.gmra.mrb[0].mxu0 %v1263
    %v1354 = vpop.f32.mrb[0].mxu0
    %v1355 = vadd.f32 0.0, %v1354
    %v1356 = vpop.f32.mrb[0].mxu0
    %1357 = vdwg.mxu0
    %v1358 = vadd.f32 %v1160, %v1335
    %v1359 = vadd.f32 %v1161, %v1340
    %v1360 = vadd.f32 %v1162, %v1345
    %v1361 = vadd.f32 %v1163, %v1350
    %v1362 = vadd.f32 %v1164, %v1355
    %s1363 = scalar_lea.vmem [#allocation2], 384
    %v1364 = vld [vmem:[%s1363] sm:$0xff]
    %v1365 = vld [vmem:[%s1363 + $0x8] sm:$0xff]
    %v1366 = vld [vmem:[%s1363 + $0x10] sm:$0xff]
    %v1367 = vld [vmem:[%s1363 + $0x18] sm:$0xff]
    %v1368 = vld [vmem:[%s1363 + $0x20] sm:$0xff]
    %v1369 = vld [vmem:[%s1363 + $0x28] sm:$0xff]
    %v1370 = vld [vmem:[%s1363 + $0x30] sm:$0xff]
    %v1371 = vld [vmem:[%s1363 + $0x38] sm:$0xff]
    %1372 = vmatprep.subr.mxu0 0.0
    %1373 = vmatpush1.msra.mxu0 %v1364
    %1374 = vmatprep.subr.mxu0 0.0
    %1375 = vmatpush1.msra.mxu0 %v1365
    %1376 = vmatprep.subr.mxu0 0.0
    %1377 = vmatpush1.msra.mxu0 %v1366
    %1378 = vmatprep.subr.mxu0 0.0
    %1379 = vmatpush1.msra.mxu0 %v1367
    %1380 = vmatprep.subr.mxu0 0.0
    %1381 = vmatpush1.msra.mxu0 %v1368
    %1382 = vmatprep.subr.mxu0 0.0
    %1383 = vmatpush1.msra.mxu0 %v1369
    %1384 = vmatprep.subr.mxu0 0.0
    %1385 = vmatpush1.msra.mxu0 %v1370
    %1386 = vmatprep.subr.mxu0 0.0
    %1387 = vmatpush1.msra.mxu0 %v1371
    %1388 = vmatprep.subr.mxu0 0.0
    %1389 = vmatpush1.msra.mxu0 0.0
    %1390 = vmatprep.subr.mxu0 0.0
    %1391 = vmatpush1.msra.mxu0 0.0
    %1392 = vmatprep.subr.mxu0 0.0
    %1393 = vmatpush1.msra.mxu0 0.0
    %1394 = vmatprep.subr.mxu0 0.0
    %1395 = vmatpush1.msra.mxu0 0.0
    %1396 = vmatprep.subr.mxu0 0.0
    %1397 = vmatpush1.msra.mxu0 0.0
    %1398 = vmatprep.subr.mxu0 0.0
    %1399 = vmatpush1.msra.mxu0 0.0
    %1400 = vmatprep.subr.mxu0 0.0
    %1401 = vmatpush1.msra.mxu0 0.0
    %1402 = vmatprep.subr.mxu0 0.0
    %1403 = vmatpush1.msra.mxu0 0.0
    %1404 = vmatprep.subr.mxu0 0.0
    %1405 = vmatpush1.msra.mxu0 0.0
    %1406 = vmatprep.subr.mxu0 0.0
    %1407 = vmatpush1.msra.mxu0 0.0
    %1408 = vmatprep.subr.mxu0 0.0
    %1409 = vmatpush1.msra.mxu0 0.0
    %1410 = vmatprep.subr.mxu0 0.0
    %1411 = vmatpush1.msra.mxu0 0.0
    %1412 = vmatprep.subr.mxu0 0.0
    %1413 = vmatpush1.msra.mxu0 0.0
    %1414 = vmatprep.subr.mxu0 0.0
    %1415 = vmatpush1.msra.mxu0 0.0
    %1416 = vmatprep.subr.mxu0 0.0
    %1417 = vmatpush1.msra.mxu0 0.0
    %1418 = vmatprep.subr.mxu0 0.0
    %1419 = vmatpush1.msra.mxu0 0.0
    %1420 = vmatprep.subr.mxu0 0.0
    %1421 = vmatpush1.msra.mxu0 0.0
    %1422 = vmatprep.subr.mxu0 0.0
    %1423 = vmatpush1.msra.mxu0 0.0
    %1424 = vmatprep.subr.mxu0 0.0
    %1425 = vmatpush1.msra.mxu0 0.0
    %1426 = vmatprep.subr.mxu0 0.0
    %1427 = vmatpush1.msra.mxu0 0.0
    %1428 = vmatprep.subr.mxu0 0.0
    %1429 = vmatpush1.msra.mxu0 0.0
    %1430 = vmatprep.subr.mxu0 0.0
    %1431 = vmatpush1.msra.mxu0 0.0
    %1432 = vmatprep.subr.mxu0 0.0
    %1433 = vmatpush1.msra.mxu0 0.0
    %1434 = vmatprep.subr.mxu0 0.0
    %1435 = vmatpush1.msra.mxu0 0.0
    %1436 = vmatprep.mubr.f32.mxu0 0.0
    %1437 = vmatmul.mubr.f32.gmra.mrb[0].mxu0 %v191
    %v1438 = vpop.f32.mrb[0].mxu0
    %v1439 = vadd.f32 0.0, %v1438
    %v1440 = vpop.f32.mrb[0].mxu0
    %1441 = vdwg.mxu0
    %s1442 = scalar_lea.vmem [#allocation9], 240
    %v1443 = vld [vmem:[%s1442] sm:$0xff]
    %v1444 = vld [vmem:[%s1442 + $0x8] sm:$0xff]
    %v1445 = vld [vmem:[%s1442 + $0x10] sm:$0xff]
    %v1446 = vld [vmem:[%s1442 + $0x18] sm:$0xff]
    %v1447 = vld [vmem:[%s1442 + $0x20] sm:$0xf]
    %v1449 = vsel %vm353, %v1443, 0
    %v1452 = vsel %vm353, %v1444, 0
    %v1455 = vsel %vm353, %v1445, 0
    %v1458 = vsel %vm353, %v1446, 0
    %v1461 = vsel %vm353, %v1447, 0
    %v1464 = vsel %vm369, %v1439, 0
    %1466 = vmatprep.subr.mxu0 0.0
    %1467 = vmatpush1.msra.mxu0 %v1464
    %1468 = vmatprep.subr.mxu0 0.0
    %1469 = vmatpush1.msra.mxu0 0.0
    %1470 = vmatprep.subr.mxu0 0.0
    %1471 = vmatpush1.msra.mxu0 0.0
    %1472 = vmatprep.subr.mxu0 0.0
    %1473 = vmatpush1.msra.mxu0 0.0
    %1474 = vmatprep.subr.mxu0 0.0
    %1475 = vmatpush1.msra.mxu0 0.0
    %1476 = vmatprep.subr.mxu0 0.0
    %1477 = vmatpush1.msra.mxu0 0.0
    %1478 = vmatprep.subr.mxu0 0.0
    %1479 = vmatpush1.msra.mxu0 0.0
    %1480 = vmatprep.subr.mxu0 0.0
    %1481 = vmatpush1.msra.mxu0 0.0
    %1482 = vmatprep.subr.mxu0 0.0
    %1483 = vmatpush1.msra.mxu0 0.0
    %1484 = vmatprep.subr.mxu0 0.0
    %1485 = vmatpush1.msra.mxu0 0.0
    %1486 = vmatprep.subr.mxu0 0.0
    %1487 = vmatpush1.msra.mxu0 0.0
    %1488 = vmatprep.subr.mxu0 0.0
    %1489 = vmatpush1.msra.mxu0 0.0
    %1490 = vmatprep.subr.mxu0 0.0
    %1491 = vmatpush1.msra.mxu0 0.0
    %1492 = vmatprep.subr.mxu0 0.0
    %1493 = vmatpush1.msra.mxu0 0.0
    %1494 = vmatprep.subr.mxu0 0.0
    %1495 = vmatpush1.msra.mxu0 0.0
    %1496 = vmatprep.subr.mxu0 0.0
    %1497 = vmatpush1.msra.mxu0 0.0
    %1498 = vmatprep.subr.mxu0 0.0
    %1499 = vmatpush1.msra.mxu0 0.0
    %1500 = vmatprep.subr.mxu0 0.0
    %1501 = vmatpush1.msra.mxu0 0.0
    %1502 = vmatprep.subr.mxu0 0.0
    %1503 = vmatpush1.msra.mxu0 0.0
    %1504 = vmatprep.subr.mxu0 0.0
    %1505 = vmatpush1.msra.mxu0 0.0
    %1506 = vmatprep.subr.mxu0 0.0
    %1507 = vmatpush1.msra.mxu0 0.0
    %1508 = vmatprep.subr.mxu0 0.0
    %1509 = vmatpush1.msra.mxu0 0.0
    %1510 = vmatprep.subr.mxu0 0.0
    %1511 = vmatpush1.msra.mxu0 0.0
    %1512 = vmatprep.subr.mxu0 0.0
    %1513 = vmatpush1.msra.mxu0 0.0
    %1514 = vmatprep.subr.mxu0 0.0
    %1515 = vmatpush1.msra.mxu0 0.0
    %1516 = vmatprep.subr.mxu0 0.0
    %1517 = vmatpush1.msra.mxu0 0.0
    %1518 = vmatprep.subr.mxu0 0.0
    %1519 = vmatpush1.msra.mxu0 0.0
    %1520 = vmatprep.subr.mxu0 0.0
    %1521 = vmatpush1.msra.mxu0 0.0
    %1522 = vmatprep.subr.mxu0 0.0
    %1523 = vmatpush1.msra.mxu0 0.0
    %1524 = vmatprep.subr.mxu0 0.0
    %1525 = vmatpush1.msra.mxu0 0.0
    %1526 = vmatprep.subr.mxu0 0.0
    %1527 = vmatpush1.msra.mxu0 0.0
    %1528 = vmatprep.subr.mxu0 0.0
    %1529 = vmatpush1.msra.mxu0 0.0
    %1530 = vmatprep.mubr.f32.mxu0 0.0
    %1531 = vmatmul.mubr.f32.gmra.mrb[0].mxu0 %v1449
    %v1532 = vpop.f32.mrb[0].mxu0
    %v1533 = vadd.f32 0.0, %v1532
    %v1534 = vpop.f32.mrb[0].mxu0
    %1535 = vmatprep.mubr.f32.mxu0 0.0
    %1536 = vmatmul.mubr.f32.gmra.mrb[0].mxu0 %v1452
    %v1537 = vpop.f32.mrb[0].mxu0
    %v1538 = vadd.f32 0.0, %v1537
    %v1539 = vpop.f32.mrb[0].mxu0
    %1540 = vmatprep.mubr.f32.mxu0 0.0
    %1541 = vmatmul.mubr.f32.gmra.mrb[0].mxu0 %v1455
    %v1542 = vpop.f32.mrb[0].mxu0
    %v1543 = vadd.f32 0.0, %v1542
    %v1544 = vpop.f32.mrb[0].mxu0
    %1545 = vmatprep.mubr.f32.mxu0 0.0
    %1546 = vmatmul.mubr.f32.gmra.mrb[0].mxu0 %v1458
    %v1547 = vpop.f32.mrb[0].mxu0
    %v1548 = vadd.f32 0.0, %v1547
    %v1549 = vpop.f32.mrb[0].mxu0
    %1550 = vmatprep.mubr.f32.mxu0 0.0
    %1551 = vmatmul.mubr.f32.gmra.mrb[0].mxu0 %v1461
    %v1552 = vpop.f32.mrb[0].mxu0
    %v1553 = vadd.f32 0.0, %v1552
    %v1554 = vpop.f32.mrb[0].mxu0
    %1555 = vdwg.mxu0
    %v1556 = vadd.f32 %v1358, %v1533
    %v1557 = vadd.f32 %v1359, %v1538
    %v1558 = vadd.f32 %v1360, %v1543
    %v1559 = vadd.f32 %v1361, %v1548
    %v1560 = vadd.f32 %v1362, %v1553
    %s1561 = scalar_lea.vmem [#allocation2], 448
    %v1562 = vld [vmem:[%s1561] sm:$0xff]
    %v1563 = vld [vmem:[%s1561 + $0x8] sm:$0xff]
    %v1564 = vld [vmem:[%s1561 + $0x10] sm:$0xff]
    %v1565 = vld [vmem:[%s1561 + $0x18] sm:$0xff]
    %v1566 = vld [vmem:[%s1561 + $0x20] sm:$0xff]
    %v1567 = vld [vmem:[%s1561 + $0x28] sm:$0xff]
    %v1568 = vld [vmem:[%s1561 + $0x30] sm:$0xff]
    %v1569 = vld [vmem:[%s1561 + $0x38] sm:$0xff]
    %1570 = vmatprep.subr.mxu0 0.0
    %1571 = vmatpush1.msra.mxu0 %v1562
    %1572 = vmatprep.subr.mxu0 0.0
    %1573 = vmatpush1.msra.mxu0 %v1563
    %1574 = vmatprep.subr.mxu0 0.0
    %1575 = vmatpush1.msra.mxu0 %v1564
    %1576 = vmatprep.subr.mxu0 0.0
    %1577 = vmatpush1.msra.mxu0 %v1565
    %1578 = vmatprep.subr.mxu0 0.0
    %1579 = vmatpush1.msra.mxu0 %v1566
    %1580 = vmatprep.subr.mxu0 0.0
    %1581 = vmatpush1.msra.mxu0 %v1567
    %1582 = vmatprep.subr.mxu0 0.0
    %1583 = vmatpush1.msra.mxu0 %v1568
    %1584 = vmatprep.subr.mxu0 0.0
    %1585 = vmatpush1.msra.mxu0 %v1569
    %1586 = vmatprep.subr.mxu0 0.0
    %1587 = vmatpush1.msra.mxu0 0.0
    %1588 = vmatprep.subr.mxu0 0.0
    %1589 = vmatpush1.msra.mxu0 0.0
    %1590 = vmatprep.subr.mxu0 0.0
    %1591 = vmatpush1.msra.mxu0 0.0
    %1592 = vmatprep.subr.mxu0 0.0
    %1593 = vmatpush1.msra.mxu0 0.0
    %1594 = vmatprep.subr.mxu0 0.0
    %1595 = vmatpush1.msra.mxu0 0.0
    %1596 = vmatprep.subr.mxu0 0.0
    %1597 = vmatpush1.msra.mxu0 0.0
    %1598 = vmatprep.subr.mxu0 0.0
    %1599 = vmatpush1.msra.mxu0 0.0
    %1600 = vmatprep.subr.mxu0 0.0
    %1601 = vmatpush1.msra.mxu0 0.0
    %1602 = vmatprep.subr.mxu0 0.0
    %1603 = vmatpush1.msra.mxu0 0.0
    %1604 = vmatprep.subr.mxu0 0.0
    %1605 = vmatpush1.msra.mxu0 0.0
    %1606 = vmatprep.subr.mxu0 0.0
    %1607 = vmatpush1.msra.mxu0 0.0
    %1608 = vmatprep.subr.mxu0 0.0
    %1609 = vmatpush1.msra.mxu0 0.0
    %1610 = vmatprep.subr.mxu0 0.0
    %1611 = vmatpush1.msra.mxu0 0.0
    %1612 = vmatprep.subr.mxu0 0.0
    %1613 = vmatpush1.msra.mxu0 0.0
    %1614 = vmatprep.subr.mxu0 0.0
    %1615 = vmatpush1.msra.mxu0 0.0
    %1616 = vmatprep.subr.mxu0 0.0
    %1617 = vmatpush1.msra.mxu0 0.0
    %1618 = vmatprep.subr.mxu0 0.0
    %1619 = vmatpush1.msra.mxu0 0.0
    %1620 = vmatprep.subr.mxu0 0.0
    %1621 = vmatpush1.msra.mxu0 0.0
    %1622 = vmatprep.subr.mxu0 0.0
    %1623 = vmatpush1.msra.mxu0 0.0
    %1624 = vmatprep.subr.mxu0 0.0
    %1625 = vmatpush1.msra.mxu0 0.0
    %1626 = vmatprep.subr.mxu0 0.0
    %1627 = vmatpush1.msra.mxu0 0.0
    %1628 = vmatprep.subr.mxu0 0.0
    %1629 = vmatpush1.msra.mxu0 0.0
    %1630 = vmatprep.subr.mxu0 0.0
    %1631 = vmatpush1.msra.mxu0 0.0
    %1632 = vmatprep.subr.mxu0 0.0
    %1633 = vmatpush1.msra.mxu0 0.0
    %1634 = vmatprep.mubr.f32.mxu0 0.0
    %1635 = vmatmul.mubr.f32.gmra.mrb[0].mxu0 %v191
    %v1636 = vpop.f32.mrb[0].mxu0
    %v1637 = vadd.f32 0.0, %v1636
    %v1638 = vpop.f32.mrb[0].mxu0
    %1639 = vdwg.mxu0
    %s1640 = scalar_lea.vmem [#allocation9], 280
    %v1641 = vld [vmem:[%s1640] sm:$0xff]
    %v1642 = vld [vmem:[%s1640 + $0x8] sm:$0xff]
    %v1643 = vld [vmem:[%s1640 + $0x10] sm:$0xff]
    %v1644 = vld [vmem:[%s1640 + $0x18] sm:$0xff]
    %v1645 = vld [vmem:[%s1640 + $0x20] sm:$0xf]
    %v1647 = vsel %vm353, %v1641, 0
    %v1650 = vsel %vm353, %v1642, 0
    %v1653 = vsel %vm353, %v1643, 0
    %v1656 = vsel %vm353, %v1644, 0
    %v1659 = vsel %vm353, %v1645, 0
    %v1662 = vsel %vm369, %v1637, 0
    %1664 = vmatprep.subr.mxu0 0.0
    %1665 = vmatpush1.msra.mxu0 %v1662
    %1666 = vmatprep.subr.mxu0 0.0
    %1667 = vmatpush1.msra.mxu0 0.0
    %1668 = vmatprep.subr.mxu0 0.0
    %1669 = vmatpush1.msra.mxu0 0.0
    %1670 = vmatprep.subr.mxu0 0.0
    %1671 = vmatpush1.msra.mxu0 0.0
    %1672 = vmatprep.subr.mxu0 0.0
    %1673 = vmatpush1.msra.mxu0 0.0
    %1674 = vmatprep.subr.mxu0 0.0
    %1675 = vmatpush1.msra.mxu0 0.0
    %1676 = vmatprep.subr.mxu0 0.0
    %1677 = vmatpush1.msra.mxu0 0.0
    %1678 = vmatprep.subr.mxu0 0.0
    %1679 = vmatpush1.msra.mxu0 0.0
    %1680 = vmatprep.subr.mxu0 0.0
    %1681 = vmatpush1.msra.mxu0 0.0
    %1682 = vmatprep.subr.mxu0 0.0
    %1683 = vmatpush1.msra.mxu0 0.0
    %1684 = vmatprep.subr.mxu0 0.0
    %1685 = vmatpush1.msra.mxu0 0.0
    %1686 = vmatprep.subr.mxu0 0.0
    %1687 = vmatpush1.msra.mxu0 0.0
    %1688 = vmatprep.subr.mxu0 0.0
    %1689 = vmatpush1.msra.mxu0 0.0
    %1690 = vmatprep.subr.mxu0 0.0
    %1691 = vmatpush1.msra.mxu0 0.0
    %1692 = vmatprep.subr.mxu0 0.0
    %1693 = vmatpush1.msra.mxu0 0.0
    %1694 = vmatprep.subr.mxu0 0.0
    %1695 = vmatpush1.msra.mxu0 0.0
    %1696 = vmatprep.subr.mxu0 0.0
    %1697 = vmatpush1.msra.mxu0 0.0
    %1698 = vmatprep.subr.mxu0 0.0
    %1699 = vmatpush1.msra.mxu0 0.0
    %1700 = vmatprep.subr.mxu0 0.0
    %1701 = vmatpush1.msra.mxu0 0.0
    %1702 = vmatprep.subr.mxu0 0.0
    %1703 = vmatpush1.msra.mxu0 0.0
    %1704 = vmatprep.subr.mxu0 0.0
    %1705 = vmatpush1.msra.mxu0 0.0
    %1706 = vmatprep.subr.mxu0 0.0
    %1707 = vmatpush1.msra.mxu0 0.0
    %1708 = vmatprep.subr.mxu0 0.0
    %1709 = vmatpush1.msra.mxu0 0.0
    %1710 = vmatprep.subr.mxu0 0.0
    %1711 = vmatpush1.msra.mxu0 0.0
    %1712 = vmatprep.subr.mxu0 0.0
    %1713 = vmatpush1.msra.mxu0 0.0
    %1714 = vmatprep.subr.mxu0 0.0
    %1715 = vmatpush1.msra.mxu0 0.0
    %1716 = vmatprep.subr.mxu0 0.0
    %1717 = vmatpush1.msra.mxu0 0.0
    %1718 = vmatprep.subr.mxu0 0.0
    %1719 = vmatpush1.msra.mxu0 0.0
    %1720 = vmatprep.subr.mxu0 0.0
    %1721 = vmatpush1.msra.mxu0 0.0
    %1722 = vmatprep.subr.mxu0 0.0
    %1723 = vmatpush1.msra.mxu0 0.0
    %1724 = vmatprep.subr.mxu0 0.0
    %1725 = vmatpush1.msra.mxu0 0.0
    %1726 = vmatprep.subr.mxu0 0.0
    %1727 = vmatpush1.msra.mxu0 0.0
    %1728 = vmatprep.mubr.f32.mxu0 0.0
    %1729 = vmatmul.mubr.f32.gmra.mrb[0].mxu0 %v1647
    %v1730 = vpop.f32.mrb[0].mxu0
    %v1731 = vadd.f32 0.0, %v1730
    %v1732 = vpop.f32.mrb[0].mxu0
    %1733 = vmatprep.mubr.f32.mxu0 0.0
    %1734 = vmatmul.mubr.f32.gmra.mrb[0].mxu0 %v1650
    %v1735 = vpop.f32.mrb[0].mxu0
    %v1736 = vadd.f32 0.0, %v1735
    %v1737 = vpop.f32.mrb[0].mxu0
    %1738 = vmatprep.mubr.f32.mxu0 0.0
    %1739 = vmatmul.mubr.f32.gmra.mrb[0].mxu0 %v1653
    %v1740 = vpop.f32.mrb[0].mxu0
    %v1741 = vadd.f32 0.0, %v1740
    %v1742 = vpop.f32.mrb[0].mxu0
    %1743 = vmatprep.mubr.f32.mxu0 0.0
    %1744 = vmatmul.mubr.f32.gmra.mrb[0].mxu0 %v1656
    %v1745 = vpop.f32.mrb[0].mxu0
    %v1746 = vadd.f32 0.0, %v1745
    %v1747 = vpop.f32.mrb[0].mxu0
    %1748 = vmatprep.mubr.f32.mxu0 0.0
    %1749 = vmatmul.mubr.f32.gmra.mrb[0].mxu0 %v1659
    %v1750 = vpop.f32.mrb[0].mxu0
    %v1751 = vadd.f32 0.0, %v1750
    %v1752 = vpop.f32.mrb[0].mxu0
    %1753 = vdwg.mxu0
    %v1754 = vadd.f32 %v1556, %v1731
    %v1755 = vadd.f32 %v1557, %v1736
    %v1756 = vadd.f32 %v1558, %v1741
    %v1757 = vadd.f32 %v1559, %v1746
    %v1758 = vadd.f32 %v1560, %v1751
    %s1759 = scalar_lea.vmem [#allocation2], 512
    %v1760 = vld [vmem:[%s1759] sm:$0xff]
    %v1761 = vld [vmem:[%s1759 + $0x8] sm:$0xff]
    %v1762 = vld [vmem:[%s1759 + $0x10] sm:$0xff]
    %v1763 = vld [vmem:[%s1759 + $0x18] sm:$0xff]
    %v1764 = vld [vmem:[%s1759 + $0x20] sm:$0xff]
    %v1765 = vld [vmem:[%s1759 + $0x28] sm:$0xff]
    %v1766 = vld [vmem:[%s1759 + $0x30] sm:$0xff]
    %v1767 = vld [vmem:[%s1759 + $0x38] sm:$0xff]
    %1768 = vmatprep.subr.mxu0 0.0
    %1769 = vmatpush1.msra.mxu0 %v1760
    %1770 = vmatprep.subr.mxu0 0.0
    %1771 = vmatpush1.msra.mxu0 %v1761
    %1772 = vmatprep.subr.mxu0 0.0
    %1773 = vmatpush1.msra.mxu0 %v1762
    %1774 = vmatprep.subr.mxu0 0.0
    %1775 = vmatpush1.msra.mxu0 %v1763
    %1776 = vmatprep.subr.mxu0 0.0
    %1777 = vmatpush1.msra.mxu0 %v1764
    %1778 = vmatprep.subr.mxu0 0.0
    %1779 = vmatpush1.msra.mxu0 %v1765
    %1780 = vmatprep.subr.mxu0 0.0
    %1781 = vmatpush1.msra.mxu0 %v1766
    %1782 = vmatprep.subr.mxu0 0.0
    %1783 = vmatpush1.msra.mxu0 %v1767
    %1784 = vmatprep.subr.mxu0 0.0
    %1785 = vmatpush1.msra.mxu0 0.0
    %1786 = vmatprep.subr.mxu0 0.0
    %1787 = vmatpush1.msra.mxu0 0.0
    %1788 = vmatprep.subr.mxu0 0.0
    %1789 = vmatpush1.msra.mxu0 0.0
    %1790 = vmatprep.subr.mxu0 0.0
    %1791 = vmatpush1.msra.mxu0 0.0
    %1792 = vmatprep.subr.mxu0 0.0
    %1793 = vmatpush1.msra.mxu0 0.0
    %1794 = vmatprep.subr.mxu0 0.0
    %1795 = vmatpush1.msra.mxu0 0.0
    %1796 = vmatprep.subr.mxu0 0.0
    %1797 = vmatpush1.msra.mxu0 0.0
    %1798 = vmatprep.subr.mxu0 0.0
    %1799 = vmatpush1.msra.mxu0 0.0
    %1800 = vmatprep.subr.mxu0 0.0
    %1801 = vmatpush1.msra.mxu0 0.0
    %1802 = vmatprep.subr.mxu0 0.0
    %1803 = vmatpush1.msra.mxu0 0.0
    %1804 = vmatprep.subr.mxu0 0.0
    %1805 = vmatpush1.msra.mxu0 0.0
    %1806 = vmatprep.subr.mxu0 0.0
    %1807 = vmatpush1.msra.mxu0 0.0
    %1808 = vmatprep.subr.mxu0 0.0
    %1809 = vmatpush1.msra.mxu0 0.0
    %1810 = vmatprep.subr.mxu0 0.0
    %1811 = vmatpush1.msra.mxu0 0.0
    %1812 = vmatprep.subr.mxu0 0.0
    %1813 = vmatpush1.msra.mxu0 0.0
    %1814 = vmatprep.subr.mxu0 0.0
    %1815 = vmatpush1.msra.mxu0 0.0
    %1816 = vmatprep.subr.mxu0 0.0
    %1817 = vmatpush1.msra.mxu0 0.0
    %1818 = vmatprep.subr.mxu0 0.0
    %1819 = vmatpush1.msra.mxu0 0.0
    %1820 = vmatprep.subr.mxu0 0.0
    %1821 = vmatpush1.msra.mxu0 0.0
    %1822 = vmatprep.subr.mxu0 0.0
    %1823 = vmatpush1.msra.mxu0 0.0
    %1824 = vmatprep.subr.mxu0 0.0
    %1825 = vmatpush1.msra.mxu0 0.0
    %1826 = vmatprep.subr.mxu0 0.0
    %1827 = vmatpush1.msra.mxu0 0.0
    %1828 = vmatprep.subr.mxu0 0.0
    %1829 = vmatpush1.msra.mxu0 0.0
    %1830 = vmatprep.subr.mxu0 0.0
    %1831 = vmatpush1.msra.mxu0 0.0
    %1832 = vmatprep.mubr.f32.mxu0 0.0
    %1833 = vmatmul.mubr.f32.gmra.mrb[0].mxu0 %v191
    %v1834 = vpop.f32.mrb[0].mxu0
    %v1835 = vadd.f32 0.0, %v1834
    %v1836 = vpop.f32.mrb[0].mxu0
    %1837 = vdwg.mxu0
    %s1838 = scalar_lea.vmem [#allocation9], 320
    %v1839 = vld [vmem:[%s1838] sm:$0xff]
    %v1840 = vld [vmem:[%s1838 + $0x8] sm:$0xff]
    %v1841 = vld [vmem:[%s1838 + $0x10] sm:$0xff]
    %v1842 = vld [vmem:[%s1838 + $0x18] sm:$0xff]
    %v1843 = vld [vmem:[%s1838 + $0x20] sm:$0xf]
    %v1845 = vsel %vm353, %v1839, 0
    %v1848 = vsel %vm353, %v1840, 0
    %v1851 = vsel %vm353, %v1841, 0
    %v1854 = vsel %vm353, %v1842, 0
    %v1857 = vsel %vm353, %v1843, 0
    %v1860 = vsel %vm369, %v1835, 0
    %1862 = vmatprep.subr.mxu0 0.0
    %1863 = vmatpush1.msra.mxu0 %v1860
    %1864 = vmatprep.subr.mxu0 0.0
    %1865 = vmatpush1.msra.mxu0 0.0
    %1866 = vmatprep.subr.mxu0 0.0
    %1867 = vmatpush1.msra.mxu0 0.0
    %1868 = vmatprep.subr.mxu0 0.0
    %1869 = vmatpush1.msra.mxu0 0.0
    %1870 = vmatprep.subr.mxu0 0.0
    %1871 = vmatpush1.msra.mxu0 0.0
    %1872 = vmatprep.subr.mxu0 0.0
    %1873 = vmatpush1.msra.mxu0 0.0
    %1874 = vmatprep.subr.mxu0 0.0
    %1875 = vmatpush1.msra.mxu0 0.0
    %1876 = vmatprep.subr.mxu0 0.0
    %1877 = vmatpush1.msra.mxu0 0.0
    %1878 = vmatprep.subr.mxu0 0.0
    %1879 = vmatpush1.msra.mxu0 0.0
    %1880 = vmatprep.subr.mxu0 0.0
    %1881 = vmatpush1.msra.mxu0 0.0
    %1882 = vmatprep.subr.mxu0 0.0
    %1883 = vmatpush1.msra.mxu0 0.0
    %1884 = vmatprep.subr.mxu0 0.0
    %1885 = vmatpush1.msra.mxu0 0.0
    %1886 = vmatprep.subr.mxu0 0.0
    %1887 = vmatpush1.msra.mxu0 0.0
    %1888 = vmatprep.subr.mxu0 0.0
    %1889 = vmatpush1.msra.mxu0 0.0
    %1890 = vmatprep.subr.mxu0 0.0
    %1891 = vmatpush1.msra.mxu0 0.0
    %1892 = vmatprep.subr.mxu0 0.0
    %1893 = vmatpush1.msra.mxu0 0.0
    %1894 = vmatprep.subr.mxu0 0.0
    %1895 = vmatpush1.msra.mxu0 0.0
    %1896 = vmatprep.subr.mxu0 0.0
    %1897 = vmatpush1.msra.mxu0 0.0
    %1898 = vmatprep.subr.mxu0 0.0
    %1899 = vmatpush1.msra.mxu0 0.0
    %1900 = vmatprep.subr.mxu0 0.0
    %1901 = vmatpush1.msra.mxu0 0.0
    %1902 = vmatprep.subr.mxu0 0.0
    %1903 = vmatpush1.msra.mxu0 0.0
    %1904 = vmatprep.subr.mxu0 0.0
    %1905 = vmatpush1.msra.mxu0 0.0
    %1906 = vmatprep.subr.mxu0 0.0
    %1907 = vmatpush1.msra.mxu0 0.0
    %1908 = vmatprep.subr.mxu0 0.0
    %1909 = vmatpush1.msra.mxu0 0.0
    %1910 = vmatprep.subr.mxu0 0.0
    %1911 = vmatpush1.msra.mxu0 0.0
    %1912 = vmatprep.subr.mxu0 0.0
    %1913 = vmatpush1.msra.mxu0 0.0
    %1914 = vmatprep.subr.mxu0 0.0
    %1915 = vmatpush1.msra.mxu0 0.0
    %1916 = vmatprep.subr.mxu0 0.0
    %1917 = vmatpush1.msra.mxu0 0.0
    %1918 = vmatprep.subr.mxu0 0.0
    %1919 = vmatpush1.msra.mxu0 0.0
    %1920 = vmatprep.subr.mxu0 0.0
    %1921 = vmatpush1.msra.mxu0 0.0
    %1922 = vmatprep.subr.mxu0 0.0
    %1923 = vmatpush1.msra.mxu0 0.0
    %1924 = vmatprep.subr.mxu0 0.0
    %1925 = vmatpush1.msra.mxu0 0.0
    %1926 = vmatprep.mubr.f32.mxu0 0.0
    %1927 = vmatmul.mubr.f32.gmra.mrb[0].mxu0 %v1845
    %v1928 = vpop.f32.mrb[0].mxu0
    %v1929 = vadd.f32 0.0, %v1928
    %v1930 = vpop.f32.mrb[0].mxu0
    %1931 = vmatprep.mubr.f32.mxu0 0.0
    %1932 = vmatmul.mubr.f32.gmra.mrb[0].mxu0 %v1848
    %v1933 = vpop.f32.mrb[0].mxu0
    %v1934 = vadd.f32 0.0, %v1933
    %v1935 = vpop.f32.mrb[0].mxu0
    %1936 = vmatprep.mubr.f32.mxu0 0.0
    %1937 = vmatmul.mubr.f32.gmra.mrb[0].mxu0 %v1851
    %v1938 = vpop.f32.mrb[0].mxu0
    %v1939 = vadd.f32 0.0, %v1938
    %v1940 = vpop.f32.mrb[0].mxu0
    %1941 = vmatprep.mubr.f32.mxu0 0.0
    %1942 = vmatmul.mubr.f32.gmra.mrb[0].mxu0 %v1854
    %v1943 = vpop.f32.mrb[0].mxu0
    %v1944 = vadd.f32 0.0, %v1943
    %v1945 = vpop.f32.mrb[0].mxu0
    %1946 = vmatprep.mubr.f32.mxu0 0.0
    %1947 = vmatmul.mubr.f32.gmra.mrb[0].mxu0 %v1857
    %v1948 = vpop.f32.mrb[0].mxu0
    %v1949 = vadd.f32 0.0, %v1948
    %v1950 = vpop.f32.mrb[0].mxu0
    %1951 = vdwg.mxu0
    %v1952 = vadd.f32 %v1754, %v1929
    %v1953 = vadd.f32 %v1755, %v1934
    %v1954 = vadd.f32 %v1756, %v1939
    %v1955 = vadd.f32 %v1757, %v1944
    %v1956 = vadd.f32 %v1758, %v1949
    %v1957 = vld [vmem:[%s12] ss:$0 sm:$0xff]
    %v1958 = vld [vmem:[%s12 + $0x1] ss:$0 sm:$0xff]
    %v1959 = vld [vmem:[%s12 + $0x2] ss:$0 sm:$0xff]
    %v1960 = vld [vmem:[%s12 + $0x3] ss:$0 sm:$0xff]
    %v1961 = vld [vmem:[%s9] sm:$0xff]
    %v1962 = vld [vmem:[%s9 + $0x8] sm:$0xff]
    %v1963 = vld [vmem:[%s9 + $0x10] sm:$0xff]
    %v1964 = vld [vmem:[%s9 + $0x18] sm:$0xff]
    %v1965 = vld [vmem:[%s9 + $0x20] sm:$0xff]
    %v1966 = vld [vmem:[%s9 + $0x28] sm:$0xff]
    %v1967 = vld [vmem:[%s9 + $0x30] sm:$0xff]
    %v1968 = vld [vmem:[%s9 + $0x38] sm:$0xff]
    %v1969 = vld [vmem:[%s9 + $0x40] sm:$0xff]
    %v1970 = vld [vmem:[%s9 + $0x48] sm:$0xff]
    %vm1971 = vcmask 654336
    %v1972 = vsel %vm1971, %v1952, 0.0
    %v1973 = vsel %vm1971, %v1953, 0.0
    %v1974 = vadd.f32 %v1972, %v1973
    %v1975 = vsel %vm1971, %v1954, 0.0
    %v1976 = vadd.f32 %v1974, %v1975
    %v1977 = vsel %vm1971, %v1955, 0.0
    %v1978 = vadd.f32 %v1976, %v1977
    %vm1979 = vcmask 650240
    %v1980 = vsel %vm1979, %v1956, 0.0
    %v1981 = vadd.f32 %v1978, %v1980
    %v1982 = vrot.slane %v1981, 4
    %v1983 = vadd.f32 %v1981, %v1982
    %v1984 = vrot.slane %v1983, 2
    %v1985 = vadd.f32 %v1983, %v1984
    %v1986 = vrot.slane %v1985, 1
    %v1987 = vadd.f32 %v1985, %v1986
    %v1989 = vsel %vm1971, %v1987, 0
    %1991 = vmatprep.subr.mxu0 0.0
    %1992 = vmatpush1.msra.mxu0 %v1961
    %1993 = vmatprep.subr.mxu0 0.0
    %1994 = vmatpush1.msra.mxu0 %v1962
    %1995 = vmatprep.subr.mxu0 0.0
    %1996 = vmatpush1.msra.mxu0 %v1963
    %1997 = vmatprep.subr.mxu0 0.0
    %1998 = vmatpush1.msra.mxu0 %v1964
    %1999 = vmatprep.subr.mxu0 0.0
    %2000 = vmatpush1.msra.mxu0 %v1965
    %2001 = vmatprep.subr.mxu0 0.0
    %2002 = vmatpush1.msra.mxu0 %v1966
    %2003 = vmatprep.subr.mxu0 0.0
    %2004 = vmatpush1.msra.mxu0 %v1967
    %2005 = vmatprep.subr.mxu0 0.0
    %2006 = vmatpush1.msra.mxu0 %v1968
    %2007 = vmatprep.subr.mxu0 0.0
    %2008 = vmatpush1.msra.mxu0 %v1969
    %2009 = vmatprep.subr.mxu0 0.0
    %2010 = vmatpush1.msra.mxu0 %v1970
    %2011 = vmatprep.subr.mxu0 0.0
    %2012 = vmatpush1.msra.mxu0 0.0
    %2013 = vmatprep.subr.mxu0 0.0
    %2014 = vmatpush1.msra.mxu0 0.0
    %2015 = vmatprep.subr.mxu0 0.0
    %2016 = vmatpush1.msra.mxu0 0.0
    %2017 = vmatprep.subr.mxu0 0.0
    %2018 = vmatpush1.msra.mxu0 0.0
    %2019 = vmatprep.subr.mxu0 0.0
    %2020 = vmatpush1.msra.mxu0 0.0
    %2021 = vmatprep.subr.mxu0 0.0
    %2022 = vmatpush1.msra.mxu0 0.0
    %2023 = vmatprep.subr.mxu0 0.0
    %2024 = vmatpush1.msra.mxu0 0.0
    %2025 = vmatprep.subr.mxu0 0.0
    %2026 = vmatpush1.msra.mxu0 0.0
    %2027 = vmatprep.subr.mxu0 0.0
    %2028 = vmatpush1.msra.mxu0 0.0
    %2029 = vmatprep.subr.mxu0 0.0
    %2030 = vmatpush1.msra.mxu0 0.0
    %2031 = vmatprep.subr.mxu0 0.0
    %2032 = vmatpush1.msra.mxu0 0.0
    %2033 = vmatprep.subr.mxu0 0.0
    %2034 = vmatpush1.msra.mxu0 0.0
    %2035 = vmatprep.subr.mxu0 0.0
    %2036 = vmatpush1.msra.mxu0 0.0
    %2037 = vmatprep.subr.mxu0 0.0
    %2038 = vmatpush1.msra.mxu0 0.0
    %2039 = vmatprep.subr.mxu0 0.0
    %2040 = vmatpush1.msra.mxu0 0.0
    %2041 = vmatprep.subr.mxu0 0.0
    %2042 = vmatpush1.msra.mxu0 0.0
    %2043 = vmatprep.subr.mxu0 0.0
    %2044 = vmatpush1.msra.mxu0 0.0
    %2045 = vmatprep.subr.mxu0 0.0
    %2046 = vmatpush1.msra.mxu0 0.0
    %2047 = vmatprep.subr.mxu0 0.0
    %2048 = vmatpush1.msra.mxu0 0.0
    %2049 = vmatprep.subr.mxu0 0.0
    %2050 = vmatpush1.msra.mxu0 0.0
    %2051 = vmatprep.subr.mxu0 0.0
    %2052 = vmatpush1.msra.mxu0 0.0
    %2053 = vmatprep.subr.mxu0 0.0
    %2054 = vmatpush1.msra.mxu0 0.0
    %2055 = vmatprep.mubr.f32.mxu0 0.0
    %2056 = vmatmul.mubr.f32.gmra.mrb[0].mxu0 %v1989
    %v2057 = vpop.f32.mrb[0].mxu0
    %v2058 = vadd.f32 0.0, %v2057
    %v2059 = vpop.f32.mrb[0].mxu0
    %2060 = vdwg.mxu0
    %v2061 = vmul.f32 %v2058, 0.0034722222
    %v2062 = vlaneseq
    %v2063 = vshrl.u32 %v2062, 7
    %v2064 = vsub.s32 0, %v2063
    %v2065 = vrot.slane %v2061, %v2064
    %v2066 = vsub.f32 %v1952, %v2065
    %v2067 = vsub.f32 %v1953, %v2065
    %v2068 = vsub.f32 %v1954, %v2065
    %v2069 = vsub.f32 %v1955, %v2065
    %v2070 = vsub.f32 %v1956, %v2065
    %v2071 = vmul.f32 %v2066, %v2066
    %v2072 = vmul.f32 %v2067, %v2067
    %v2073 = vmul.f32 %v2068, %v2068
    %v2074 = vmul.f32 %v2069, %v2069
    %v2075 = vmul.f32 %v2070, %v2070
    %v2076 = vsel %vm1971, %v2071, 0.0
    %v2077 = vsel %vm1971, %v2072, 0.0
    %v2078 = vadd.f32 %v2076, %v2077
    %v2079 = vsel %vm1971, %v2073, 0.0
    %v2080 = vadd.f32 %v2078, %v2079
    %v2081 = vsel %vm1971, %v2074, 0.0
    %v2082 = vadd.f32 %v2080, %v2081
    %v2083 = vsel %vm1979, %v2075, 0.0
    %v2084 = vadd.f32 %v2082, %v2083
    %v2085 = vrot.slane %v2084, 4
    %v2086 = vadd.f32 %v2084, %v2085
    %v2087 = vrot.slane %v2086, 2
    %v2088 = vadd.f32 %v2086, %v2087
    %v2089 = vrot.slane %v2088, 1
    %v2090 = vadd.f32 %v2088, %v2089
    %v2092 = vsel %vm1971, %v2090, 0
    %2094 = vmatprep.subr.mxu0 0.0
    %2095 = vmatpush1.msra.mxu0 %v1961
    %2096 = vmatprep.subr.mxu0 0.0
    %2097 = vmatpush1.msra.mxu0 %v1962
    %2098 = vmatprep.subr.mxu0 0.0
    %2099 = vmatpush1.msra.mxu0 %v1963
    %2100 = vmatprep.subr.mxu0 0.0
    %2101 = vmatpush1.msra.mxu0 %v1964
    %2102 = vmatprep.subr.mxu0 0.0
    %2103 = vmatpush1.msra.mxu0 %v1965
    %2104 = vmatprep.subr.mxu0 0.0
    %2105 = vmatpush1.msra.mxu0 %v1966
    %2106 = vmatprep.subr.mxu0 0.0
    %2107 = vmatpush1.msra.mxu0 %v1967
    %2108 = vmatprep.subr.mxu0 0.0
    %2109 = vmatpush1.msra.mxu0 %v1968
    %2110 = vmatprep.subr.mxu0 0.0
    %2111 = vmatpush1.msra.mxu0 %v1969
    %2112 = vmatprep.subr.mxu0 0.0
    %2113 = vmatpush1.msra.mxu0 %v1970
    %2114 = vmatprep.subr.mxu0 0.0
    %2115 = vmatpush1.msra.mxu0 0.0
    %2116 = vmatprep.subr.mxu0 0.0
    %2117 = vmatpush1.msra.mxu0 0.0
    %2118 = vmatprep.subr.mxu0 0.0
    %2119 = vmatpush1.msra.mxu0 0.0
    %2120 = vmatprep.subr.mxu0 0.0
    %2121 = vmatpush1.msra.mxu0 0.0
    %2122 = vmatprep.subr.mxu0 0.0
    %2123 = vmatpush1.msra.mxu0 0.0
    %2124 = vmatprep.subr.mxu0 0.0
    %2125 = vmatpush1.msra.mxu0 0.0
    %2126 = vmatprep.subr.mxu0 0.0
    %2127 = vmatpush1.msra.mxu0 0.0
    %2128 = vmatprep.subr.mxu0 0.0
    %2129 = vmatpush1.msra.mxu0 0.0
    %2130 = vmatprep.subr.mxu0 0.0
    %2131 = vmatpush1.msra.mxu0 0.0
    %2132 = vmatprep.subr.mxu0 0.0
    %2133 = vmatpush1.msra.mxu0 0.0
    %2134 = vmatprep.subr.mxu0 0.0
    %2135 = vmatpush1.msra.mxu0 0.0
    %2136 = vmatprep.subr.mxu0 0.0
    %2137 = vmatpush1.msra.mxu0 0.0
    %2138 = vmatprep.subr.mxu0 0.0
    %2139 = vmatpush1.msra.mxu0 0.0
    %2140 = vmatprep.subr.mxu0 0.0
    %2141 = vmatpush1.msra.mxu0 0.0
    %2142 = vmatprep.subr.mxu0 0.0
    %2143 = vmatpush1.msra.mxu0 0.0
    %2144 = vmatprep.subr.mxu0 0.0
    %2145 = vmatpush1.msra.mxu0 0.0
    %2146 = vmatprep.subr.mxu0 0.0
    %2147 = vmatpush1.msra.mxu0 0.0
    %2148 = vmatprep.subr.mxu0 0.0
    %2149 = vmatpush1.msra.mxu0 0.0
    %2150 = vmatprep.subr.mxu0 0.0
    %2151 = vmatpush1.msra.mxu0 0.0
    %2152 = vmatprep.subr.mxu0 0.0
    %2153 = vmatpush1.msra.mxu0 0.0
    %2154 = vmatprep.subr.mxu0 0.0
    %2155 = vmatpush1.msra.mxu0 0.0
    %2156 = vmatprep.subr.mxu0 0.0
    %2157 = vmatpush1.msra.mxu0 0.0
    %2158 = vmatprep.mubr.f32.mxu0 0.0
    %2159 = vmatmul.mubr.f32.gmra.mrb[0].mxu0 %v2092
    %v2160 = vpop.f32.mrb[0].mxu0
    %v2161 = vadd.f32 0.0, %v2160
    %v2162 = vpop.f32.mrb[0].mxu0
    %2163 = vdwg.mxu0
    %v2164 = vmul.f32 %v2161, 0.0034722222
    %v2165 = vadd.f32 %v2164, 1e-05
    %v2166 = vrsqrt.pop %v2165
    %v2167 = vlaneseq
    %v2168 = vshrl.u32 %v2167, 7
    %v2169 = vsub.s32 0, %v2168
    %v2170 = vrot.slane %v2166, %v2169
    %v2171 = vmul.f32 %v2066, %v2170
    %v2172 = vmul.f32 %v2067, %v2170
    %v2173 = vmul.f32 %v2068, %v2170
    %v2174 = vmul.f32 %v2069, %v2170
    %v2175 = vmul.f32 %v2070, %v2170
    %v2176 = vmul.f32 %v2171, %v1957
    %v2177 = vmul.f32 %v2172, %v1957
    %v2178 = vmul.f32 %v2173, %v1957
    %v2179 = vmul.f32 %v2174, %v1957
    %v2180 = vmul.f32 %v2175, %v1957
    %v2181 = vadd.f32 %v2176, %v1958
    %v2182 = vadd.f32 %v2177, %v1958
    %v2183 = vadd.f32 %v2178, %v1958
    %v2184 = vadd.f32 %v2179, %v1958
    %v2185 = vadd.f32 %v2180, %v1958
    %v2186 = vmul.f32 %v2171, %v1959
    %v2187 = vmul.f32 %v2172, %v1959
    %v2188 = vmul.f32 %v2173, %v1959
    %v2189 = vmul.f32 %v2174, %v1959
    %v2190 = vmul.f32 %v2175, %v1959
    %v2191 = vadd.f32 %v2186, %v1960
    %v2192 = vadd.f32 %v2187, %v1960
    %v2193 = vadd.f32 %v2188, %v1960
    %v2194 = vadd.f32 %v2189, %v1960
    %v2195 = vadd.f32 %v2190, %v1960
    %v2196 = vxor.u32 %v2191, 2147483648
    %v2197 = vxor.u32 %v2192, 2147483648
    %v2198 = vxor.u32 %v2193, 2147483648
    %v2199 = vxor.u32 %v2194, 2147483648
    %v2200 = vxor.u32 %v2195, 2147483648
    %v2201 = vmul.f32 %v2196, 1.442695
    %v2202 = vpow.pop %v2201
    %v2203 = vmul.f32 %v2197, 1.442695
    %v2204 = vpow.pop %v2203
    %v2205 = vmul.f32 %v2198, 1.442695
    %v2206 = vpow.pop %v2205
    %v2207 = vmul.f32 %v2199, 1.442695
    %v2208 = vpow.pop %v2207
    %v2209 = vmul.f32 %v2200, 1.442695
    %v2210 = vpow.pop %v2209
    %v2211 = vadd.f32 %v2202, 1.0
    %v2212 = vadd.f32 %v2204, 1.0
    %v2213 = vadd.f32 %v2206, 1.0
    %v2214 = vadd.f32 %v2208, 1.0
    %v2215 = vadd.f32 %v2210, 1.0
    %v2216 = vrcp.pop %v2211
    %v2217 = vmul.f32 1.0, %v2216
    %v2218 = vrcp.pop %v2212
    %v2219 = vmul.f32 1.0, %v2218
    %v2220 = vrcp.pop %v2213
    %v2221 = vmul.f32 1.0, %v2220
    %v2222 = vrcp.pop %v2214
    %v2223 = vmul.f32 1.0, %v2222
    %v2224 = vrcp.pop %v2215
    %v2225 = vmul.f32 1.0, %v2224
    %v2226 = vmul.f32 %v2181, %v2217
    %v2227 = vmul.f32 %v2182, %v2219
    %v2228 = vmul.f32 %v2183, %v2221
    %v2229 = vmul.f32 %v2184, %v2223
    %v2230 = vmul.f32 %v2185, %v2225
    %v2231 = vld [vmem:[#allocation4] sm:$0xff]
    %v2232 = vld [vmem:[#allocation4 + $0x8] sm:$0xff]
    %v2233 = vld [vmem:[#allocation4 + $0x10] sm:$0xff]
    %v2234 = vld [vmem:[#allocation4 + $0x18] sm:$0xff]
    %v2235 = vld [vmem:[#allocation4 + $0x20] sm:$0xff]
    %v2236 = vld [vmem:[#allocation4 + $0x28] sm:$0xff]
    %v2237 = vld [vmem:[#allocation4 + $0x30] sm:$0xff]
    %v2238 = vld [vmem:[#allocation4 + $0x38] sm:$0xff]
    %v2239 = vld [vmem:[#allocation4 + $0x40] sm:$0xff]
    %v2240 = vld [vmem:[#allocation4 + $0x48] sm:$0xff]
    %v2241 = vld [vmem:[#allocation4 + $0x50] sm:$0xff]
    %v2242 = vld [vmem:[#allocation4 + $0x58] sm:$0xff]
    %v2243 = vld [vmem:[#allocation4 + $0x60] sm:$0xff]
    %v2244 = vld [vmem:[#allocation4 + $0x68] sm:$0xff]
    %v2245 = vld [vmem:[#allocation4 + $0x70] sm:$0xff]
    %v2246 = vld [vmem:[#allocation4 + $0x78] sm:$0xff]
    %v2247 = vld [vmem:[#allocation4 + $0x80] sm:$0xff]
    %v2248 = vld [vmem:[#allocation4 + $0x88] sm:$0xff]
    %v2249 = vld [vmem:[#allocation4 + $0x90] sm:$0xff]
    %v2250 = vld [vmem:[#allocation4 + $0x98] sm:$0xff]
    %v2252 = vsel %vm1971, %v2226, 0
    %v2255 = vsel %vm1971, %v2227, 0
    %v2258 = vsel %vm1971, %v2228, 0
    %v2261 = vsel %vm1971, %v2229, 0
    %v2264 = vsel %vm1971, %v2230, 0
    %2266 = vmatprep.subr.mxu0 %v2232
    %2267 = vmatpush1.msra.mxu0 %v2231
    %2268 = vmatprep.subr.mxu0 %v2234
    %2269 = vmatpush1.msra.mxu0 %v2233
    %2270 = vmatprep.subr.mxu0 %v2236
    %2271 = vmatpush1.msra.mxu0 %v2235
    %2272 = vmatprep.subr.mxu0 %v2238
    %2273 = vmatpush1.msra.mxu0 %v2237
    %2274 = vmatprep.subr.mxu0 %v2240
    %2275 = vmatpush1.msra.mxu0 %v2239
    %2276 = vmatprep.subr.mxu0 %v2242
    %2277 = vmatpush1.msra.mxu0 %v2241
    %2278 = vmatprep.subr.mxu0 %v2244
    %2279 = vmatpush1.msra.mxu0 %v2243
    %2280 = vmatprep.subr.mxu0 %v2246
    %2281 = vmatpush1.msra.mxu0 %v2245
    %2282 = vmatprep.subr.mxu0 %v2248
    %2283 = vmatpush1.msra.mxu0 %v2247
    %2284 = vmatprep.subr.mxu0 %v2250
    %2285 = vmatpush1.msra.mxu0 %v2249
    %2286 = vmatprep.subr.mxu0 0.0
    %2287 = vmatpush1.msra.mxu0 0.0
    %2288 = vmatprep.subr.mxu0 0.0
    %2289 = vmatpush1.msra.mxu0 0.0
    %2290 = vmatprep.subr.mxu0 0.0
    %2291 = vmatpush1.msra.mxu0 0.0
    %2292 = vmatprep.subr.mxu0 0.0
    %2293 = vmatpush1.msra.mxu0 0.0
    %2294 = vmatprep.subr.mxu0 0.0
    %2295 = vmatpush1.msra.mxu0 0.0
    %2296 = vmatprep.subr.mxu0 0.0
    %2297 = vmatpush1.msra.mxu0 0.0
    %2298 = vmatprep.subr.mxu0 0.0
    %2299 = vmatpush1.msra.mxu0 0.0
    %2300 = vmatprep.subr.mxu0 0.0
    %2301 = vmatpush1.msra.mxu0 0.0
    %2302 = vmatprep.subr.mxu0 0.0
    %2303 = vmatpush1.msra.mxu0 0.0
    %2304 = vmatprep.subr.mxu0 0.0
    %2305 = vmatpush1.msra.mxu0 0.0
    %2306 = vmatprep.subr.mxu0 0.0
    %2307 = vmatpush1.msra.mxu0 0.0
    %2308 = vmatprep.subr.mxu0 0.0
    %2309 = vmatpush1.msra.mxu0 0.0
    %2310 = vmatprep.subr.mxu0 0.0
    %2311 = vmatpush1.msra.mxu0 0.0
    %2312 = vmatprep.subr.mxu0 0.0
    %2313 = vmatpush1.msra.mxu0 0.0
    %2314 = vmatprep.subr.mxu0 0.0
    %2315 = vmatpush1.msra.mxu0 0.0
    %2316 = vmatprep.subr.mxu0 0.0
    %2317 = vmatpush1.msra.mxu0 0.0
    %2318 = vmatprep.subr.mxu0 0.0
    %2319 = vmatpush1.msra.mxu0 0.0
    %2320 = vmatprep.subr.mxu0 0.0
    %2321 = vmatpush1.msra.mxu0 0.0
    %2322 = vmatprep.subr.mxu0 0.0
    %2323 = vmatpush1.msra.mxu0 0.0
    %2324 = vmatprep.subr.mxu0 0.0
    %2325 = vmatpush1.msra.mxu0 0.0
    %2326 = vmatprep.subr.mxu0 0.0
    %2327 = vmatpush1.msra.mxu0 0.0
    %2328 = vmatprep.subr.mxu0 0.0
    %2329 = vmatpush1.msra.mxu0 0.0
    %2330 = vmatprep.mubr.f32.mxu0 0.0
    %2331 = vmatmul.mubr.f32.gmra.mrb[0].mxu0 %v2252
    %v2332 = vpop.f32.mrb[0].mxu0
    %v2333 = vadd.f32 0.0, %v2332
    %v2334 = vpop.f32.mrb[0].mxu0
    %v2335 = vadd.f32 0.0, %v2334
    %2336 = vmatprep.mubr.f32.mxu0 0.0
    %2337 = vmatmul.mubr.f32.gmra.mrb[0].mxu0 %v2255
    %v2338 = vpop.f32.mrb[0].mxu0
    %v2339 = vadd.f32 0.0, %v2338
    %v2340 = vpop.f32.mrb[0].mxu0
    %v2341 = vadd.f32 0.0, %v2340
    %2342 = vmatprep.mubr.f32.mxu0 0.0
    %2343 = vmatmul.mubr.f32.gmra.mrb[0].mxu0 %v2258
    %v2344 = vpop.f32.mrb[0].mxu0
    %v2345 = vadd.f32 0.0, %v2344
    %v2346 = vpop.f32.mrb[0].mxu0
    %v2347 = vadd.f32 0.0, %v2346
    %2348 = vmatprep.mubr.f32.mxu0 0.0
    %2349 = vmatmul.mubr.f32.gmra.mrb[0].mxu0 %v2261
    %v2350 = vpop.f32.mrb[0].mxu0
    %v2351 = vadd.f32 0.0, %v2350
    %v2352 = vpop.f32.mrb[0].mxu0
    %v2353 = vadd.f32 0.0, %v2352
    %2354 = vmatprep.mubr.f32.mxu0 0.0
    %2355 = vmatmul.mubr.f32.gmra.mrb[0].mxu0 %v2264
    %v2356 = vpop.f32.mrb[0].mxu0
    %v2357 = vadd.f32 0.0, %v2356
    %v2358 = vpop.f32.mrb[0].mxu0
    %v2359 = vadd.f32 0.0, %v2358
    %2360 = vdwg.mxu0
    %v2361 = vld [vmem:[#allocation10] sm:$0xff]
    %v2362 = vld [vmem:[#allocation10 + $0x8] sm:$0xff]
    %v2363 = vld [vmem:[#allocation10 + $0x10] sm:$0xff]
    %v2364 = vld [vmem:[#allocation10 + $0x18] sm:$0xff]
    %v2365 = vld [vmem:[#allocation10 + $0x20] sm:$0xff]
    %v2366 = vld [vmem:[#allocation10 + $0x28] sm:$0xff]
    %v2367 = vld [vmem:[#allocation10 + $0x30] sm:$0xff]
    %v2368 = vld [vmem:[#allocation10 + $0x38] sm:$0xff]
    %v2369 = vld [vmem:[#allocation10 + $0x40] sm:$0xff]
    %s2370 = scalar_lea.vmem [#allocation4], 160
    %v2371 = vld [vmem:[%s2370] sm:$0xff]
    %v2372 = vld [vmem:[%s2370 + $0x8] sm:$0xff]
    %v2373 = vld [vmem:[%s2370 + $0x10] sm:$0xff]
    %v2374 = vld [vmem:[%s2370 + $0x18] sm:$0xff]
    %v2375 = vld [vmem:[%s2370 + $0x20] sm:$0xff]
    %v2376 = vld [vmem:[%s2370 + $0x28] sm:$0xff]
    %v2377 = vld [vmem:[%s2370 + $0x30] sm:$0xff]
    %v2378 = vld [vmem:[%s2370 + $0x38] sm:$0xff]
    %v2379 = vld [vmem:[%s2370 + $0x40] sm:$0xff]
    %v2380 = vld [vmem:[%s2370 + $0x48] sm:$0xff]
    %v2381 = vld [vmem:[%s2370 + $0x50] sm:$0xff]
    %v2382 = vld [vmem:[%s2370 + $0x58] sm:$0xff]
    %v2383 = vld [vmem:[%s2370 + $0x60] sm:$0xff]
    %v2384 = vld [vmem:[%s2370 + $0x68] sm:$0xff]
    %v2385 = vld [vmem:[%s2370 + $0x70] sm:$0xff]
    %v2386 = vld [vmem:[%s2370 + $0x78] sm:$0xff]
    %v2387 = vld [vmem:[%s2370 + $0x80] sm:$0xff]
    %v2388 = vld [vmem:[%s2370 + $0x88] sm:$0xff]
    %v2389 = vld [vmem:[%s2370 + $0x90] sm:$0xff]
    %v2390 = vld [vmem:[%s2370 + $0x98] sm:$0xff]
    %2391 = vmatprep.subr.mxu0 %v2372
    %2392 = vmatpush1.msra.mxu0 %v2371
    %2393 = vmatprep.subr.mxu0 %v2374
    %2394 = vmatpush1.msra.mxu0 %v2373
    %2395 = vmatprep.subr.mxu0 %v2376
    %2396 = vmatpush1.msra.mxu0 %v2375
    %2397 = vmatprep.subr.mxu0 %v2378
    %2398 = vmatpush1.msra.mxu0 %v2377
    %2399 = vmatprep.subr.mxu0 %v2380
    %2400 = vmatpush1.msra.mxu0 %v2379
    %2401 = vmatprep.subr.mxu0 %v2382
    %2402 = vmatpush1.msra.mxu0 %v2381
    %2403 = vmatprep.subr.mxu0 %v2384
    %2404 = vmatpush1.msra.mxu0 %v2383
    %2405 = vmatprep.subr.mxu0 %v2386
    %2406 = vmatpush1.msra.mxu0 %v2385
    %2407 = vmatprep.subr.mxu0 %v2388
    %2408 = vmatpush1.msra.mxu0 %v2387
    %2409 = vmatprep.subr.mxu0 %v2390
    %2410 = vmatpush1.msra.mxu0 %v2389
    %2411 = vmatprep.subr.mxu0 0.0
    %2412 = vmatpush1.msra.mxu0 0.0
    %2413 = vmatprep.subr.mxu0 0.0
    %2414 = vmatpush1.msra.mxu0 0.0
    %2415 = vmatprep.subr.mxu0 0.0
    %2416 = vmatpush1.msra.mxu0 0.0
    %2417 = vmatprep.subr.mxu0 0.0
    %2418 = vmatpush1.msra.mxu0 0.0
    %2419 = vmatprep.subr.mxu0 0.0
    %2420 = vmatpush1.msra.mxu0 0.0
    %2421 = vmatprep.subr.mxu0 0.0
    %2422 = vmatpush1.msra.mxu0 0.0
    %2423 = vmatprep.subr.mxu0 0.0
    %2424 = vmatpush1.msra.mxu0 0.0
    %2425 = vmatprep.subr.mxu0 0.0
    %2426 = vmatpush1.msra.mxu0 0.0
    %2427 = vmatprep.subr.mxu0 0.0
    %2428 = vmatpush1.msra.mxu0 0.0
    %2429 = vmatprep.subr.mxu0 0.0
    %2430 = vmatpush1.msra.mxu0 0.0
    %2431 = vmatprep.subr.mxu0 0.0
    %2432 = vmatpush1.msra.mxu0 0.0
    %2433 = vmatprep.subr.mxu0 0.0
    %2434 = vmatpush1.msra.mxu0 0.0
    %2435 = vmatprep.subr.mxu0 0.0
    %2436 = vmatpush1.msra.mxu0 0.0
    %2437 = vmatprep.subr.mxu0 0.0
    %2438 = vmatpush1.msra.mxu0 0.0
    %2439 = vmatprep.subr.mxu0 0.0
    %2440 = vmatpush1.msra.mxu0 0.0
    %2441 = vmatprep.subr.mxu0 0.0
    %2442 = vmatpush1.msra.mxu0 0.0
    %2443 = vmatprep.subr.mxu0 0.0
    %2444 = vmatpush1.msra.mxu0 0.0
    %2445 = vmatprep.subr.mxu0 0.0
    %2446 = vmatpush1.msra.mxu0 0.0
    %2447 = vmatprep.subr.mxu0 0.0
    %2448 = vmatpush1.msra.mxu0 0.0
    %2449 = vmatprep.subr.mxu0 0.0
    %2450 = vmatpush1.msra.mxu0 0.0
    %2451 = vmatprep.subr.mxu0 0.0
    %2452 = vmatpush1.msra.mxu0 0.0
    %2453 = vmatprep.subr.mxu0 0.0
    %2454 = vmatpush1.msra.mxu0 0.0
    %2455 = vmatprep.mubr.f32.mxu0 0.0
    %2456 = vmatmul.mubr.f32.gmra.mrb[0].mxu0 %v2252
    %v2457 = vpop.f32.mrb[0].mxu0
    %v2458 = vadd.f32 0.0, %v2457
    %v2459 = vpop.f32.mrb[0].mxu0
    %v2460 = vadd.f32 0.0, %v2459
    %2461 = vmatprep.mubr.f32.mxu0 0.0
    %2462 = vmatmul.mubr.f32.gmra.mrb[0].mxu0 %v2255
    %v2463 = vpop.f32.mrb[0].mxu0
    %v2464 = vadd.f32 0.0, %v2463
    %v2465 = vpop.f32.mrb[0].mxu0
    %v2466 = vadd.f32 0.0, %v2465
    %2467 = vmatprep.mubr.f32.mxu0 0.0
    %2468 = vmatmul.mubr.f32.gmra.mrb[0].mxu0 %v2258
    %v2469 = vpop.f32.mrb[0].mxu0
    %v2470 = vadd.f32 0.0, %v2469
    %v2471 = vpop.f32.mrb[0].mxu0
    %v2472 = vadd.f32 0.0, %v2471
    %2473 = vmatprep.mubr.f32.mxu0 0.0
    %2474 = vmatmul.mubr.f32.gmra.mrb[0].mxu0 %v2261
    %v2475 = vpop.f32.mrb[0].mxu0
    %v2476 = vadd.f32 0.0, %v2475
    %v2477 = vpop.f32.mrb[0].mxu0
    %v2478 = vadd.f32 0.0, %v2477
    %2479 = vmatprep.mubr.f32.mxu0 0.0
    %2480 = vmatmul.mubr.f32.gmra.mrb[0].mxu0 %v2264
    %v2481 = vpop.f32.mrb[0].mxu0
    %v2482 = vadd.f32 0.0, %v2481
    %v2483 = vpop.f32.mrb[0].mxu0
    %v2484 = vadd.f32 0.0, %v2483
    %2485 = vdwg.mxu0
    %s2486 = scalar_lea.vmem [#allocation10], 72
    %v2487 = vld [vmem:[%s2486] sm:$0xff]
    %v2488 = vld [vmem:[%s2486 + $0x8] sm:$0xff]
    %v2489 = vld [vmem:[%s2486 + $0x10] sm:$0xff]
    %v2490 = vld [vmem:[%s2486 + $0x18] sm:$0xff]
    %v2491 = vld [vmem:[%s2486 + $0x20] sm:$0xff]
    %v2492 = vld [vmem:[%s2486 + $0x28] sm:$0xff]
    %v2493 = vld [vmem:[%s2486 + $0x30] sm:$0xff]
    %v2494 = vld [vmem:[%s2486 + $0x38] sm:$0xff]
    %v2495 = vld [vmem:[%s2486 + $0x40] sm:$0xff]
    %vm2496 = vcmask 293888
    %v2498 = vsel %vm2496, %v2487, 0
    %v2501 = vsel %vm2496, %v2488, 0
    %v2504 = vsel %vm2496, %v2489, 0
    %v2507 = vsel %vm2496, %v2490, 0
    %v2510 = vsel %vm2496, %v2491, 0
    %v2513 = vsel %vm2496, %v2492, 0
    %v2516 = vsel %vm2496, %v2493, 0
    %v2519 = vsel %vm2496, %v2494, 0
    %v2522 = vsel %vm2496, %v2495, 0
    %v2525 = vsel %vm369, %v2482, 0
    %v2528 = vsel %vm369, %v2484, 0
    %2530 = vmatprep.subr.mxu0 %v2460
    %2531 = vmatpush1.msra.mxu0 %v2458
    %2532 = vmatprep.subr.mxu0 %v2466
    %2533 = vmatpush1.msra.mxu0 %v2464
    %2534 = vmatprep.subr.mxu0 %v2472
    %2535 = vmatpush1.msra.mxu0 %v2470
    %2536 = vmatprep.subr.mxu0 %v2478
    %2537 = vmatpush1.msra.mxu0 %v2476
    %2538 = vmatprep.subr.mxu0 %v2528
    %2539 = vmatpush1.msra.mxu0 %v2525
    %2540 = vmatprep.subr.mxu0 0.0
    %2541 = vmatpush1.msra.mxu0 0.0
    %2542 = vmatprep.subr.mxu0 0.0
    %2543 = vmatpush1.msra.mxu0 0.0
    %2544 = vmatprep.subr.mxu0 0.0
    %2545 = vmatpush1.msra.mxu0 0.0
    %2546 = vmatprep.subr.mxu0 0.0
    %2547 = vmatpush1.msra.mxu0 0.0
    %2548 = vmatprep.subr.mxu0 0.0
    %2549 = vmatpush1.msra.mxu0 0.0
    %2550 = vmatprep.subr.mxu0 0.0
    %2551 = vmatpush1.msra.mxu0 0.0
    %2552 = vmatprep.subr.mxu0 0.0
    %2553 = vmatpush1.msra.mxu0 0.0
    %2554 = vmatprep.subr.mxu0 0.0
    %2555 = vmatpush1.msra.mxu0 0.0
    %2556 = vmatprep.subr.mxu0 0.0
    %2557 = vmatpush1.msra.mxu0 0.0
    %2558 = vmatprep.subr.mxu0 0.0
    %2559 = vmatpush1.msra.mxu0 0.0
    %2560 = vmatprep.subr.mxu0 0.0
    %2561 = vmatpush1.msra.mxu0 0.0
    %2562 = vmatprep.subr.mxu0 0.0
    %2563 = vmatpush1.msra.mxu0 0.0
    %2564 = vmatprep.subr.mxu0 0.0
    %2565 = vmatpush1.msra.mxu0 0.0
    %2566 = vmatprep.subr.mxu0 0.0
    %2567 = vmatpush1.msra.mxu0 0.0
    %2568 = vmatprep.subr.mxu0 0.0
    %2569 = vmatpush1.msra.mxu0 0.0
    %2570 = vmatprep.subr.mxu0 0.0
    %2571 = vmatpush1.msra.mxu0 0.0
    %2572 = vmatprep.subr.mxu0 0.0
    %2573 = vmatpush1.msra.mxu0 0.0
    %2574 = vmatprep.subr.mxu0 0.0
    %2575 = vmatpush1.msra.mxu0 0.0
    %2576 = vmatprep.subr.mxu0 0.0
    %2577 = vmatpush1.msra.mxu0 0.0
    %2578 = vmatprep.subr.mxu0 0.0
    %2579 = vmatpush1.msra.mxu0 0.0
    %2580 = vmatprep.subr.mxu0 0.0
    %2581 = vmatpush1.msra.mxu0 0.0
    %2582 = vmatprep.subr.mxu0 0.0
    %2583 = vmatpush1.msra.mxu0 0.0
    %2584 = vmatprep.subr.mxu0 0.0
    %2585 = vmatpush1.msra.mxu0 0.0
    %2586 = vmatprep.subr.mxu0 0.0
    %2587 = vmatpush1.msra.mxu0 0.0
    %2588 = vmatprep.subr.mxu0 0.0
    %2589 = vmatpush1.msra.mxu0 0.0
    %2590 = vmatprep.subr.mxu0 0.0
    %2591 = vmatpush1.msra.mxu0 0.0
    %2592 = vmatprep.subr.mxu0 0.0
    %2593 = vmatpush1.msra.mxu0 0.0
    %2594 = vmatprep.mubr.f32.mxu0 0.0
    %2595 = vmatmul.mubr.f32.gmra.mrb[0].mxu0 %v2498
    %v2596 = vpop.f32.mrb[0].mxu0
    %v2597 = vadd.f32 0.0, %v2596
    %v2598 = vpop.f32.mrb[0].mxu0
    %v2599 = vadd.f32 0.0, %v2598
    %2600 = vmatprep.mubr.f32.mxu0 0.0
    %2601 = vmatmul.mubr.f32.gmra.mrb[0].mxu0 %v2501
    %v2602 = vpop.f32.mrb[0].mxu0
    %v2603 = vadd.f32 0.0, %v2602
    %v2604 = vpop.f32.mrb[0].mxu0
    %v2605 = vadd.f32 0.0, %v2604
    %2606 = vmatprep.mubr.f32.mxu0 0.0
    %2607 = vmatmul.mubr.f32.gmra.mrb[0].mxu0 %v2504
    %v2608 = vpop.f32.mrb[0].mxu0
    %v2609 = vadd.f32 0.0, %v2608
    %v2610 = vpop.f32.mrb[0].mxu0
    %v2611 = vadd.f32 0.0, %v2610
    %2612 = vmatprep.mubr.f32.mxu0 0.0
    %2613 = vmatmul.mubr.f32.gmra.mrb[0].mxu0 %v2507
    %v2614 = vpop.f32.mrb[0].mxu0
    %v2615 = vadd.f32 0.0, %v2614
    %v2616 = vpop.f32.mrb[0].mxu0
    %v2617 = vadd.f32 0.0, %v2616
    %2618 = vmatprep.mubr.f32.mxu0 0.0
    %2619 = vmatmul.mubr.f32.gmra.mrb[0].mxu0 %v2510
    %v2620 = vpop.f32.mrb[0].mxu0
    %v2621 = vadd.f32 0.0, %v2620
    %v2622 = vpop.f32.mrb[0].mxu0
    %v2623 = vadd.f32 0.0, %v2622
    %2624 = vmatprep.mubr.f32.mxu0 0.0
    %2625 = vmatmul.mubr.f32.gmra.mrb[0].mxu0 %v2513
    %v2626 = vpop.f32.mrb[0].mxu0
    %v2627 = vadd.f32 0.0, %v2626
    %v2628 = vpop.f32.mrb[0].mxu0
    %v2629 = vadd.f32 0.0, %v2628
    %2630 = vmatprep.mubr.f32.mxu0 0.0
    %2631 = vmatmul.mubr.f32.gmra.mrb[0].mxu0 %v2516
    %v2632 = vpop.f32.mrb[0].mxu0
    %v2633 = vadd.f32 0.0, %v2632
    %v2634 = vpop.f32.mrb[0].mxu0
    %v2635 = vadd.f32 0.0, %v2634
    %2636 = vmatprep.mubr.f32.mxu0 0.0
    %2637 = vmatmul.mubr.f32.gmra.mrb[0].mxu0 %v2519
    %v2638 = vpop.f32.mrb[0].mxu0
    %v2639 = vadd.f32 0.0, %v2638
    %v2640 = vpop.f32.mrb[0].mxu0
    %v2641 = vadd.f32 0.0, %v2640
    %2642 = vmatprep.mubr.f32.mxu0 0.0
    %2643 = vmatmul.mubr.f32.gmra.mrb[0].mxu0 %v2522
    %v2644 = vpop.f32.mrb[0].mxu0
    %v2645 = vadd.f32 0.0, %v2644
    %v2646 = vpop.f32.mrb[0].mxu0
    %v2647 = vadd.f32 0.0, %v2646
    %2648 = vdwg.mxu0
    %v2650 = vsel %vm2496, %v2361, 0
    %v2653 = vsel %vm2496, %v2362, 0
    %v2656 = vsel %vm2496, %v2363, 0
    %v2659 = vsel %vm2496, %v2364, 0
    %v2662 = vsel %vm2496, %v2365, 0
    %v2665 = vsel %vm2496, %v2366, 0
    %v2668 = vsel %vm2496, %v2367, 0
    %v2671 = vsel %vm2496, %v2368, 0
    %v2674 = vsel %vm2496, %v2369, 0
    %v2677 = vsel %vm369, %v2357, 0
    %v2680 = vsel %vm369, %v2359, 0
    %2682 = vmatprep.subr.mxu0 %v2335
    %2683 = vmatpush1.msra.mxu0 %v2333
    %2684 = vmatprep.subr.mxu0 %v2341
    %2685 = vmatpush1.msra.mxu0 %v2339
    %2686 = vmatprep.subr.mxu0 %v2347
    %2687 = vmatpush1.msra.mxu0 %v2345
    %2688 = vmatprep.subr.mxu0 %v2353
    %2689 = vmatpush1.msra.mxu0 %v2351
    %2690 = vmatprep.subr.mxu0 %v2680
    %2691 = vmatpush1.msra.mxu0 %v2677
    %2692 = vmatprep.subr.mxu0 0.0
    %2693 = vmatpush1.msra.mxu0 0.0
    %2694 = vmatprep.subr.mxu0 0.0
    %2695 = vmatpush1.msra.mxu0 0.0
    %2696 = vmatprep.subr.mxu0 0.0
    %2697 = vmatpush1.msra.mxu0 0.0
    %2698 = vmatprep.subr.mxu0 0.0
    %2699 = vmatpush1.msra.mxu0 0.0
    %2700 = vmatprep.subr.mxu0 0.0
    %2701 = vmatpush1.msra.mxu0 0.0
    %2702 = vmatprep.subr.mxu0 0.0
    %2703 = vmatpush1.msra.mxu0 0.0
    %2704 = vmatprep.subr.mxu0 0.0
    %2705 = vmatpush1.msra.mxu0 0.0
    %2706 = vmatprep.subr.mxu0 0.0
    %2707 = vmatpush1.msra.mxu0 0.0
    %2708 = vmatprep.subr.mxu0 0.0
    %2709 = vmatpush1.msra.mxu0 0.0
    %2710 = vmatprep.subr.mxu0 0.0
    %2711 = vmatpush1.msra.mxu0 0.0
    %2712 = vmatprep.subr.mxu0 0.0
    %2713 = vmatpush1.msra.mxu0 0.0
    %2714 = vmatprep.subr.mxu0 0.0
    %2715 = vmatpush1.msra.mxu0 0.0
    %2716 = vmatprep.subr.mxu0 0.0
    %2717 = vmatpush1.msra.mxu0 0.0
    %2718 = vmatprep.subr.mxu0 0.0
    %2719 = vmatpush1.msra.mxu0 0.0
    %2720 = vmatprep.subr.mxu0 0.0
    %2721 = vmatpush1.msra.mxu0 0.0
    %2722 = vmatprep.subr.mxu0 0.0
    %2723 = vmatpush1.msra.mxu0 0.0
    %2724 = vmatprep.subr.mxu0 0.0
    %2725 = vmatpush1.msra.mxu0 0.0
    %2726 = vmatprep.subr.mxu0 0.0
    %2727 = vmatpush1.msra.mxu0 0.0
    %2728 = vmatprep.subr.mxu0 0.0
    %2729 = vmatpush1.msra.mxu0 0.0
    %2730 = vmatprep.subr.mxu0 0.0
    %2731 = vmatpush1.msra.mxu0 0.0
    %2732 = vmatprep.subr.mxu0 0.0
    %2733 = vmatpush1.msra.mxu0 0.0
    %2734 = vmatprep.subr.mxu0 0.0
    %2735 = vmatpush1.msra.mxu0 0.0
    %2736 = vmatprep.subr.mxu0 0.0
    %2737 = vmatpush1.msra.mxu0 0.0
    %2738 = vmatprep.subr.mxu0 0.0
    %2739 = vmatpush1.msra.mxu0 0.0
    %2740 = vmatprep.subr.mxu0 0.0
    %2741 = vmatpush1.msra.mxu0 0.0
    %2742 = vmatprep.subr.mxu0 0.0
    %2743 = vmatpush1.msra.mxu0 0.0
    %2744 = vmatprep.subr.mxu0 0.0
    %2745 = vmatpush1.msra.mxu0 0.0
    %2746 = vmatprep.mubr.f32.mxu0 0.0
    %2747 = vmatmul.mubr.f32.gmra.mrb[0].mxu0 %v2650
    %v2748 = vpop.f32.mrb[0].mxu0
    %v2749 = vadd.f32 %v2597, %v2748
    %v2750 = vpop.f32.mrb[0].mxu0
    %v2751 = vadd.f32 %v2599, %v2750
    %2752 = vmatprep.mubr.f32.mxu0 0.0
    %2753 = vmatmul.mubr.f32.gmra.mrb[0].mxu0 %v2653
    %v2754 = vpop.f32.mrb[0].mxu0
    %v2755 = vadd.f32 %v2603, %v2754
    %v2756 = vpop.f32.mrb[0].mxu0
    %v2757 = vadd.f32 %v2605, %v2756
    %2758 = vmatprep.mubr.f32.mxu0 0.0
    %2759 = vmatmul.mubr.f32.gmra.mrb[0].mxu0 %v2656
    %v2760 = vpop.f32.mrb[0].mxu0
    %v2761 = vadd.f32 %v2609, %v2760
    %v2762 = vpop.f32.mrb[0].mxu0
    %v2763 = vadd.f32 %v2611, %v2762
    %2764 = vmatprep.mubr.f32.mxu0 0.0
    %2765 = vmatmul.mubr.f32.gmra.mrb[0].mxu0 %v2659
    %v2766 = vpop.f32.mrb[0].mxu0
    %v2767 = vadd.f32 %v2615, %v2766
    %v2768 = vpop.f32.mrb[0].mxu0
    %v2769 = vadd.f32 %v2617, %v2768
    %2770 = vmatprep.mubr.f32.mxu0 0.0
    %2771 = vmatmul.mubr.f32.gmra.mrb[0].mxu0 %v2662
    %v2772 = vpop.f32.mrb[0].mxu0
    %v2773 = vadd.f32 %v2621, %v2772
    %v2774 = vpop.f32.mrb[0].mxu0
    %v2775 = vadd.f32 %v2623, %v2774
    %2776 = vmatprep.mubr.f32.mxu0 0.0
    %2777 = vmatmul.mubr.f32.gmra.mrb[0].mxu0 %v2665
    %v2778 = vpop.f32.mrb[0].mxu0
    %v2779 = vadd.f32 %v2627, %v2778
    %v2780 = vpop.f32.mrb[0].mxu0
    %v2781 = vadd.f32 %v2629, %v2780
    %2782 = vmatprep.mubr.f32.mxu0 0.0
    %2783 = vmatmul.mubr.f32.gmra.mrb[0].mxu0 %v2668
    %v2784 = vpop.f32.mrb[0].mxu0
    %v2785 = vadd.f32 %v2633, %v2784
    %v2786 = vpop.f32.mrb[0].mxu0
    %v2787 = vadd.f32 %v2635, %v2786
    %2788 = vmatprep.mubr.f32.mxu0 0.0
    %2789 = vmatmul.mubr.f32.gmra.mrb[0].mxu0 %v2671
    %v2790 = vpop.f32.mrb[0].mxu0
    %v2791 = vadd.f32 %v2639, %v2790
    %v2792 = vpop.f32.mrb[0].mxu0
    %v2793 = vadd.f32 %v2641, %v2792
    %2794 = vmatprep.mubr.f32.mxu0 0.0
    %2795 = vmatmul.mubr.f32.gmra.mrb[0].mxu0 %v2674
    %v2796 = vpop.f32.mrb[0].mxu0
    %v2797 = vadd.f32 %v2645, %v2796
    %v2798 = vpop.f32.mrb[0].mxu0
    %v2799 = vadd.f32 %v2647, %v2798
    %2800 = vdwg.mxu0
    %s2801 = scalar_lea.vmem [#allocation4], 320
    %v2802 = vld [vmem:[%s2801] sm:$0xff]
    %v2803 = vld [vmem:[%s2801 + $0x8] sm:$0xff]
    %v2804 = vld [vmem:[%s2801 + $0x10] sm:$0xff]
    %v2805 = vld [vmem:[%s2801 + $0x18] sm:$0xff]
    %v2806 = vld [vmem:[%s2801 + $0x20] sm:$0xff]
    %v2807 = vld [vmem:[%s2801 + $0x28] sm:$0xff]
    %v2808 = vld [vmem:[%s2801 + $0x30] sm:$0xff]
    %v2809 = vld [vmem:[%s2801 + $0x38] sm:$0xff]
    %v2810 = vld [vmem:[%s2801 + $0x40] sm:$0xff]
    %v2811 = vld [vmem:[%s2801 + $0x48] sm:$0xff]
    %v2812 = vld [vmem:[%s2801 + $0x50] sm:$0xff]
    %v2813 = vld [vmem:[%s2801 + $0x58] sm:$0xff]
    %v2814 = vld [vmem:[%s2801 + $0x60] sm:$0xff]
    %v2815 = vld [vmem:[%s2801 + $0x68] sm:$0xff]
    %v2816 = vld [vmem:[%s2801 + $0x70] sm:$0xff]
    %v2817 = vld [vmem:[%s2801 + $0x78] sm:$0xff]
    %v2818 = vld [vmem:[%s2801 + $0x80] sm:$0xff]
    %v2819 = vld [vmem:[%s2801 + $0x88] sm:$0xff]
    %v2820 = vld [vmem:[%s2801 + $0x90] sm:$0xff]
    %v2821 = vld [vmem:[%s2801 + $0x98] sm:$0xff]
    %2822 = vmatprep.subr.mxu0 %v2803
    %2823 = vmatpush1.msra.mxu0 %v2802
    %2824 = vmatprep.subr.mxu0 %v2805
    %2825 = vmatpush1.msra.mxu0 %v2804
    %2826 = vmatprep.subr.mxu0 %v2807
    %2827 = vmatpush1.msra.mxu0 %v2806
    %2828 = vmatprep.subr.mxu0 %v2809
    %2829 = vmatpush1.msra.mxu0 %v2808
    %2830 = vmatprep.subr.mxu0 %v2811
    %2831 = vmatpush1.msra.mxu0 %v2810
    %2832 = vmatprep.subr.mxu0 %v2813
    %2833 = vmatpush1.msra.mxu0 %v2812
    %2834 = vmatprep.subr.mxu0 %v2815
    %2835 = vmatpush1.msra.mxu0 %v2814
    %2836 = vmatprep.subr.mxu0 %v2817
    %2837 = vmatpush1.msra.mxu0 %v2816
    %2838 = vmatprep.subr.mxu0 %v2819
    %2839 = vmatpush1.msra.mxu0 %v2818
    %2840 = vmatprep.subr.mxu0 %v2821
    %2841 = vmatpush1.msra.mxu0 %v2820
    %2842 = vmatprep.subr.mxu0 0.0
    %2843 = vmatpush1.msra.mxu0 0.0
    %2844 = vmatprep.subr.mxu0 0.0
    %2845 = vmatpush1.msra.mxu0 0.0
    %2846 = vmatprep.subr.mxu0 0.0
    %2847 = vmatpush1.msra.mxu0 0.0
    %2848 = vmatprep.subr.mxu0 0.0
    %2849 = vmatpush1.msra.mxu0 0.0
    %2850 = vmatprep.subr.mxu0 0.0
    %2851 = vmatpush1.msra.mxu0 0.0
    %2852 = vmatprep.subr.mxu0 0.0
    %2853 = vmatpush1.msra.mxu0 0.0
    %2854 = vmatprep.subr.mxu0 0.0
    %2855 = vmatpush1.msra.mxu0 0.0
    %2856 = vmatprep.subr.mxu0 0.0
    %2857 = vmatpush1.msra.mxu0 0.0
    %2858 = vmatprep.subr.mxu0 0.0
    %2859 = vmatpush1.msra.mxu0 0.0
    %2860 = vmatprep.subr.mxu0 0.0
    %2861 = vmatpush1.msra.mxu0 0.0
    %2862 = vmatprep.subr.mxu0 0.0
    %2863 = vmatpush1.msra.mxu0 0.0
    %2864 = vmatprep.subr.mxu0 0.0
    %2865 = vmatpush1.msra.mxu0 0.0
    %2866 = vmatprep.subr.mxu0 0.0
    %2867 = vmatpush1.msra.mxu0 0.0
    %2868 = vmatprep.subr.mxu0 0.0
    %2869 = vmatpush1.msra.mxu0 0.0
    %2870 = vmatprep.subr.mxu0 0.0
    %2871 = vmatpush1.msra.mxu0 0.0
    %2872 = vmatprep.subr.mxu0 0.0
    %2873 = vmatpush1.msra.mxu0 0.0
    %2874 = vmatprep.subr.mxu0 0.0
    %2875 = vmatpush1.msra.mxu0 0.0
    %2876 = vmatprep.subr.mxu0 0.0
    %2877 = vmatpush1.msra.mxu0 0.0
    %2878 = vmatprep.subr.mxu0 0.0
    %2879 = vmatpush1.msra.mxu0 0.0
    %2880 = vmatprep.subr.mxu0 0.0
    %2881 = vmatpush1.msra.mxu0 0.0
    %2882 = vmatprep.subr.mxu0 0.0
    %2883 = vmatpush1.msra.mxu0 0.0
    %2884 = vmatprep.subr.mxu0 0.0
    %2885 = vmatpush1.msra.mxu0 0.0
    %2886 = vmatprep.mubr.f32.mxu0 0.0
    %2887 = vmatmul.mubr.f32.gmra.mrb[0].mxu0 %v2252
    %v2888 = vpop.f32.mrb[0].mxu0
    %v2889 = vadd.f32 0.0, %v2888
    %v2890 = vpop.f32.mrb[0].mxu0
    %v2891 = vadd.f32 0.0, %v2890
    %2892 = vmatprep.mubr.f32.mxu0 0.0
    %2893 = vmatmul.mubr.f32.gmra.mrb[0].mxu0 %v2255
    %v2894 = vpop.f32.mrb[0].mxu0
    %v2895 = vadd.f32 0.0, %v2894
    %v2896 = vpop.f32.mrb[0].mxu0
    %v2897 = vadd.f32 0.0, %v2896
    %2898 = vmatprep.mubr.f32.mxu0 0.0
    %2899 = vmatmul.mubr.f32.gmra.mrb[0].mxu0 %v2258
    %v2900 = vpop.f32.mrb[0].mxu0
    %v2901 = vadd.f32 0.0, %v2900
    %v2902 = vpop.f32.mrb[0].mxu0
    %v2903 = vadd.f32 0.0, %v2902
    %2904 = vmatprep.mubr.f32.mxu0 0.0
    %2905 = vmatmul.mubr.f32.gmra.mrb[0].mxu0 %v2261
    %v2906 = vpop.f32.mrb[0].mxu0
    %v2907 = vadd.f32 0.0, %v2906
    %v2908 = vpop.f32.mrb[0].mxu0
    %v2909 = vadd.f32 0.0, %v2908
    %2910 = vmatprep.mubr.f32.mxu0 0.0
    %2911 = vmatmul.mubr.f32.gmra.mrb[0].mxu0 %v2264
    %v2912 = vpop.f32.mrb[0].mxu0
    %v2913 = vadd.f32 0.0, %v2912
    %v2914 = vpop.f32.mrb[0].mxu0
    %v2915 = vadd.f32 0.0, %v2914
    %2916 = vdwg.mxu0
    %s2917 = scalar_lea.vmem [#allocation10], 144
    %v2918 = vld [vmem:[%s2917] sm:$0xff]
    %v2919 = vld [vmem:[%s2917 + $0x8] sm:$0xff]
    %v2920 = vld [vmem:[%s2917 + $0x10] sm:$0xff]
    %v2921 = vld [vmem:[%s2917 + $0x18] sm:$0xff]
    %v2922 = vld [vmem:[%s2917 + $0x20] sm:$0xff]
    %v2923 = vld [vmem:[%s2917 + $0x28] sm:$0xff]
    %v2924 = vld [vmem:[%s2917 + $0x30] sm:$0xff]
    %v2925 = vld [vmem:[%s2917 + $0x38] sm:$0xff]
    %v2926 = vld [vmem:[%s2917 + $0x40] sm:$0xff]
    %v2928 = vsel %vm2496, %v2918, 0
    %v2931 = vsel %vm2496, %v2919, 0
    %v2934 = vsel %vm2496, %v2920, 0
    %v2937 = vsel %vm2496, %v2921, 0
    %v2940 = vsel %vm2496, %v2922, 0
    %v2943 = vsel %vm2496, %v2923, 0
    %v2946 = vsel %vm2496, %v2924, 0
    %v2949 = vsel %vm2496, %v2925, 0
    %v2952 = vsel %vm2496, %v2926, 0
    %v2955 = vsel %vm369, %v2913, 0
    %v2958 = vsel %vm369, %v2915, 0
    %2960 = vmatprep.subr.mxu0 %v2891
    %2961 = vmatpush1.msra.mxu0 %v2889
    %2962 = vmatprep.subr.mxu0 %v2897
    %2963 = vmatpush1.msra.mxu0 %v2895
    %2964 = vmatprep.subr.mxu0 %v2903
    %2965 = vmatpush1.msra.mxu0 %v2901
    %2966 = vmatprep.subr.mxu0 %v2909
    %2967 = vmatpush1.msra.mxu0 %v2907
    %2968 = vmatprep.subr.mxu0 %v2958
    %2969 = vmatpush1.msra.mxu0 %v2955
    %2970 = vmatprep.subr.mxu0 0.0
    %2971 = vmatpush1.msra.mxu0 0.0
    %2972 = vmatprep.subr.mxu0 0.0
    %2973 = vmatpush1.msra.mxu0 0.0
    %2974 = vmatprep.subr.mxu0 0.0
    %2975 = vmatpush1.msra.mxu0 0.0
    %2976 = vmatprep.subr.mxu0 0.0
    %2977 = vmatpush1.msra.mxu0 0.0
    %2978 = vmatprep.subr.mxu0 0.0
    %2979 = vmatpush1.msra.mxu0 0.0
    %2980 = vmatprep.subr.mxu0 0.0
    %2981 = vmatpush1.msra.mxu0 0.0
    %2982 = vmatprep.subr.mxu0 0.0
    %2983 = vmatpush1.msra.mxu0 0.0
    %2984 = vmatprep.subr.mxu0 0.0
    %2985 = vmatpush1.msra.mxu0 0.0
    %2986 = vmatprep.subr.mxu0 0.0
    %2987 = vmatpush1.msra.mxu0 0.0
    %2988 = vmatprep.subr.mxu0 0.0
    %2989 = vmatpush1.msra.mxu0 0.0
    %2990 = vmatprep.subr.mxu0 0.0
    %2991 = vmatpush1.msra.mxu0 0.0
    %2992 = vmatprep.subr.mxu0 0.0
    %2993 = vmatpush1.msra.mxu0 0.0
    %2994 = vmatprep.subr.mxu0 0.0
    %2995 = vmatpush1.msra.mxu0 0.0
    %2996 = vmatprep.subr.mxu0 0.0
    %2997 = vmatpush1.msra.mxu0 0.0
    %2998 = vmatprep.subr.mxu0 0.0
    %2999 = vmatpush1.msra.mxu0 0.0
    %3000 = vmatprep.subr.mxu0 0.0
    %3001 = vmatpush1.msra.mxu0 0.0
    %3002 = vmatprep.subr.mxu0 0.0
    %3003 = vmatpush1.msra.mxu0 0.0
    %3004 = vmatprep.subr.mxu0 0.0
    %3005 = vmatpush1.msra.mxu0 0.0
    %3006 = vmatprep.subr.mxu0 0.0
    %3007 = vmatpush1.msra.mxu0 0.0
    %3008 = vmatprep.subr.mxu0 0.0
    %3009 = vmatpush1.msra.mxu0 0.0
    %3010 = vmatprep.subr.mxu0 0.0
    %3011 = vmatpush1.msra.mxu0 0.0
    %3012 = vmatprep.subr.mxu0 0.0
    %3013 = vmatpush1.msra.mxu0 0.0
    %3014 = vmatprep.subr.mxu0 0.0
    %3015 = vmatpush1.msra.mxu0 0.0
    %3016 = vmatprep.subr.mxu0 0.0
    %3017 = vmatpush1.msra.mxu0 0.0
    %3018 = vmatprep.subr.mxu0 0.0
    %3019 = vmatpush1.msra.mxu0 0.0
    %3020 = vmatprep.subr.mxu0 0.0
    %3021 = vmatpush1.msra.mxu0 0.0
    %3022 = vmatprep.subr.mxu0 0.0
    %3023 = vmatpush1.msra.mxu0 0.0
    %3024 = vmatprep.mubr.f32.mxu0 0.0
    %3025 = vmatmul.mubr.f32.gmra.mrb[0].mxu0 %v2928
    %v3026 = vpop.f32.mrb[0].mxu0
    %v3027 = vadd.f32 0.0, %v3026
    %v3028 = vpop.f32.mrb[0].mxu0
    %v3029 = vadd.f32 0.0, %v3028
    %3030 = vmatprep.mubr.f32.mxu0 0.0
    %3031 = vmatmul.mubr.f32.gmra.mrb[0].mxu0 %v2931
    %v3032 = vpop.f32.mrb[0].mxu0
    %v3033 = vadd.f32 0.0, %v3032
    %v3034 = vpop.f32.mrb[0].mxu0
    %v3035 = vadd.f32 0.0, %v3034
    %3036 = vmatprep.mubr.f32.mxu0 0.0
    %3037 = vmatmul.mubr.f32.gmra.mrb[0].mxu0 %v2934
    %v3038 = vpop.f32.mrb[0].mxu0
    %v3039 = vadd.f32 0.0, %v3038
    %v3040 = vpop.f32.mrb[0].mxu0
    %v3041 = vadd.f32 0.0, %v3040
    %3042 = vmatprep.mubr.f32.mxu0 0.0
    %3043 = vmatmul.mubr.f32.gmra.mrb[0].mxu0 %v2937
    %v3044 = vpop.f32.mrb[0].mxu0
    %v3045 = vadd.f32 0.0, %v3044
    %v3046 = vpop.f32.mrb[0].mxu0
    %v3047 = vadd.f32 0.0, %v3046
    %3048 = vmatprep.mubr.f32.mxu0 0.0
    %3049 = vmatmul.mubr.f32.gmra.mrb[0].mxu0 %v2940
    %v3050 = vpop.f32.mrb[0].mxu0
    %v3051 = vadd.f32 0.0, %v3050
    %v3052 = vpop.f32.mrb[0].mxu0
    %v3053 = vadd.f32 0.0, %v3052
    %3054 = vmatprep.mubr.f32.mxu0 0.0
    %3055 = vmatmul.mubr.f32.gmra.mrb[0].mxu0 %v2943
    %v3056 = vpop.f32.mrb[0].mxu0
    %v3057 = vadd.f32 0.0, %v3056
    %v3058 = vpop.f32.mrb[0].mxu0
    %v3059 = vadd.f32 0.0, %v3058
    %3060 = vmatprep.mubr.f32.mxu0 0.0
    %3061 = vmatmul.mubr.f32.gmra.mrb[0].mxu0 %v2946
    %v3062 = vpop.f32.mrb[0].mxu0
    %v3063 = vadd.f32 0.0, %v3062
    %v3064 = vpop.f32.mrb[0].mxu0
    %v3065 = vadd.f32 0.0, %v3064
    %3066 = vmatprep.mubr.f32.mxu0 0.0
    %3067 = vmatmul.mubr.f32.gmra.mrb[0].mxu0 %v2949
    %v3068 = vpop.f32.mrb[0].mxu0
    %v3069 = vadd.f32 0.0, %v3068
    %v3070 = vpop.f32.mrb[0].mxu0
    %v3071 = vadd.f32 0.0, %v3070
    %3072 = vmatprep.mubr.f32.mxu0 0.0
    %3073 = vmatmul.mubr.f32.gmra.mrb[0].mxu0 %v2952
    %v3074 = vpop.f32.mrb[0].mxu0
    %v3075 = vadd.f32 0.0, %v3074
    %v3076 = vpop.f32.mrb[0].mxu0
    %v3077 = vadd.f32 0.0, %v3076
    %3078 = vdwg.mxu0
    %v3079 = vadd.f32 %v2749, %v3027
    %v3080 = vadd.f32 %v2751, %v3029
    %v3081 = vadd.f32 %v2755, %v3033
    %v3082 = vadd.f32 %v2757, %v3035
    %v3083 = vadd.f32 %v2761, %v3039
    %v3084 = vadd.f32 %v2763, %v3041
    %v3085 = vadd.f32 %v2767, %v3045
    %v3086 = vadd.f32 %v2769, %v3047
    %v3087 = vadd.f32 %v2773, %v3051
    %v3088 = vadd.f32 %v2775, %v3053
    %v3089 = vadd.f32 %v2779, %v3057
    %v3090 = vadd.f32 %v2781, %v3059
    %v3091 = vadd.f32 %v2785, %v3063
    %v3092 = vadd.f32 %v2787, %v3065
    %v3093 = vadd.f32 %v2791, %v3069
    %v3094 = vadd.f32 %v2793, %v3071
    %v3095 = vadd.f32 %v2797, %v3075
    %v3096 = vadd.f32 %v2799, %v3077
    %s3097 = scalar_lea.vmem [#allocation4], 480
    %v3098 = vld [vmem:[%s3097] sm:$0xff]
    %v3099 = vld [vmem:[%s3097 + $0x8] sm:$0xff]
    %v3100 = vld [vmem:[%s3097 + $0x10] sm:$0xff]
    %v3101 = vld [vmem:[%s3097 + $0x18] sm:$0xff]
    %v3102 = vld [vmem:[%s3097 + $0x20] sm:$0xff]
    %v3103 = vld [vmem:[%s3097 + $0x28] sm:$0xff]
    %v3104 = vld [vmem:[%s3097 + $0x30] sm:$0xff]
    %v3105 = vld [vmem:[%s3097 + $0x38] sm:$0xff]
    %v3106 = vld [vmem:[%s3097 + $0x40] sm:$0xff]
    %v3107 = vld [vmem:[%s3097 + $0x48] sm:$0xff]
    %v3108 = vld [vmem:[%s3097 + $0x50] sm:$0xff]
    %v3109 = vld [vmem:[%s3097 + $0x58] sm:$0xff]
    %v3110 = vld [vmem:[%s3097 + $0x60] sm:$0xff]
    %v3111 = vld [vmem:[%s3097 + $0x68] sm:$0xff]
    %v3112 = vld [vmem:[%s3097 + $0x70] sm:$0xff]
    %v3113 = vld [vmem:[%s3097 + $0x78] sm:$0xff]
    %v3114 = vld [vmem:[%s3097 + $0x80] sm:$0xff]
    %v3115 = vld [vmem:[%s3097 + $0x88] sm:$0xff]
    %v3116 = vld [vmem:[%s3097 + $0x90] sm:$0xff]
    %v3117 = vld [vmem:[%s3097 + $0x98] sm:$0xff]
    %3118 = vmatprep.subr.mxu0 %v3099
    %3119 = vmatpush1.msra.mxu0 %v3098
    %3120 = vmatprep.subr.mxu0 %v3101
    %3121 = vmatpush1.msra.mxu0 %v3100
    %3122 = vmatprep.subr.mxu0 %v3103
    %3123 = vmatpush1.msra.mxu0 %v3102
    %3124 = vmatprep.subr.mxu0 %v3105
    %3125 = vmatpush1.msra.mxu0 %v3104
    %3126 = vmatprep.subr.mxu0 %v3107
    %3127 = vmatpush1.msra.mxu0 %v3106
    %3128 = vmatprep.subr.mxu0 %v3109
    %3129 = vmatpush1.msra.mxu0 %v3108
    %3130 = vmatprep.subr.mxu0 %v3111
    %3131 = vmatpush1.msra.mxu0 %v3110
    %3132 = vmatprep.subr.mxu0 %v3113
    %3133 = vmatpush1.msra.mxu0 %v3112
    %3134 = vmatprep.subr.mxu0 %v3115
    %3135 = vmatpush1.msra.mxu0 %v3114
    %3136 = vmatprep.subr.mxu0 %v3117
    %3137 = vmatpush1.msra.mxu0 %v3116
    %3138 = vmatprep.subr.mxu0 0.0
    %3139 = vmatpush1.msra.mxu0 0.0
    %3140 = vmatprep.subr.mxu0 0.0
    %3141 = vmatpush1.msra.mxu0 0.0
    %3142 = vmatprep.subr.mxu0 0.0
    %3143 = vmatpush1.msra.mxu0 0.0
    %3144 = vmatprep.subr.mxu0 0.0
    %3145 = vmatpush1.msra.mxu0 0.0
    %3146 = vmatprep.subr.mxu0 0.0
    %3147 = vmatpush1.msra.mxu0 0.0
    %3148 = vmatprep.subr.mxu0 0.0
    %3149 = vmatpush1.msra.mxu0 0.0
    %3150 = vmatprep.subr.mxu0 0.0
    %3151 = vmatpush1.msra.mxu0 0.0
    %3152 = vmatprep.subr.mxu0 0.0
    %3153 = vmatpush1.msra.mxu0 0.0
    %3154 = vmatprep.subr.mxu0 0.0
    %3155 = vmatpush1.msra.mxu0 0.0
    %3156 = vmatprep.subr.mxu0 0.0
    %3157 = vmatpush1.msra.mxu0 0.0
    %3158 = vmatprep.subr.mxu0 0.0
    %3159 = vmatpush1.msra.mxu0 0.0
    %3160 = vmatprep.subr.mxu0 0.0
    %3161 = vmatpush1.msra.mxu0 0.0
    %3162 = vmatprep.subr.mxu0 0.0
    %3163 = vmatpush1.msra.mxu0 0.0
    %3164 = vmatprep.subr.mxu0 0.0
    %3165 = vmatpush1.msra.mxu0 0.0
    %3166 = vmatprep.subr.mxu0 0.0
    %3167 = vmatpush1.msra.mxu0 0.0
    %3168 = vmatprep.subr.mxu0 0.0
    %3169 = vmatpush1.msra.mxu0 0.0
    %3170 = vmatprep.subr.mxu0 0.0
    %3171 = vmatpush1.msra.mxu0 0.0
    %3172 = vmatprep.subr.mxu0 0.0
    %3173 = vmatpush1.msra.mxu0 0.0
    %3174 = vmatprep.subr.mxu0 0.0
    %3175 = vmatpush1.msra.mxu0 0.0
    %3176 = vmatprep.subr.mxu0 0.0
    %3177 = vmatpush1.msra.mxu0 0.0
    %3178 = vmatprep.subr.mxu0 0.0
    %3179 = vmatpush1.msra.mxu0 0.0
    %3180 = vmatprep.subr.mxu0 0.0
    %3181 = vmatpush1.msra.mxu0 0.0
    %3182 = vmatprep.mubr.f32.mxu0 0.0
    %3183 = vmatmul.mubr.f32.gmra.mrb[0].mxu0 %v2252
    %v3184 = vpop.f32.mrb[0].mxu0
    %v3185 = vadd.f32 0.0, %v3184
    %v3186 = vpop.f32.mrb[0].mxu0
    %v3187 = vadd.f32 0.0, %v3186
    %3188 = vmatprep.mubr.f32.mxu0 0.0
    %3189 = vmatmul.mubr.f32.gmra.mrb[0].mxu0 %v2255
    %v3190 = vpop.f32.mrb[0].mxu0
    %v3191 = vadd.f32 0.0, %v3190
    %v3192 = vpop.f32.mrb[0].mxu0
    %v3193 = vadd.f32 0.0, %v3192
    %3194 = vmatprep.mubr.f32.mxu0 0.0
    %3195 = vmatmul.mubr.f32.gmra.mrb[0].mxu0 %v2258
    %v3196 = vpop.f32.mrb[0].mxu0
    %v3197 = vadd.f32 0.0, %v3196
    %v3198 = vpop.f32.mrb[0].mxu0
    %v3199 = vadd.f32 0.0, %v3198
    %3200 = vmatprep.mubr.f32.mxu0 0.0
    %3201 = vmatmul.mubr.f32.gmra.mrb[0].mxu0 %v2261
    %v3202 = vpop.f32.mrb[0].mxu0
    %v3203 = vadd.f32 0.0, %v3202
    %v3204 = vpop.f32.mrb[0].mxu0
    %v3205 = vadd.f32 0.0, %v3204
    %3206 = vmatprep.mubr.f32.mxu0 0.0
    %3207 = vmatmul.mubr.f32.gmra.mrb[0].mxu0 %v2264
    %v3208 = vpop.f32.mrb[0].mxu0
    %v3209 = vadd.f32 0.0, %v3208
    %v3210 = vpop.f32.mrb[0].mxu0
    %v3211 = vadd.f32 0.0, %v3210
    %3212 = vdwg.mxu0
    %s3213 = scalar_lea.vmem [#allocation10], 216
    %v3214 = vld [vmem:[%s3213] sm:$0xff]
    %v3215 = vld [vmem:[%s3213 + $0x8] sm:$0xff]
    %v3216 = vld [vmem:[%s3213 + $0x10] sm:$0xff]
    %v3217 = vld [vmem:[%s3213 + $0x18] sm:$0xff]
    %v3218 = vld [vmem:[%s3213 + $0x20] sm:$0xff]
    %v3219 = vld [vmem:[%s3213 + $0x28] sm:$0xff]
    %v3220 = vld [vmem:[%s3213 + $0x30] sm:$0xff]
    %v3221 = vld [vmem:[%s3213 + $0x38] sm:$0xff]
    %v3222 = vld [vmem:[%s3213 + $0x40] sm:$0xff]
    %v3224 = vsel %vm2496, %v3214, 0
    %v3227 = vsel %vm2496, %v3215, 0
    %v3230 = vsel %vm2496, %v3216, 0
    %v3233 = vsel %vm2496, %v3217, 0
    %v3236 = vsel %vm2496, %v3218, 0
    %v3239 = vsel %vm2496, %v3219, 0
    %v3242 = vsel %vm2496, %v3220, 0
    %v3245 = vsel %vm2496, %v3221, 0
    %v3248 = vsel %vm2496, %v3222, 0
    %v3251 = vsel %vm369, %v3209, 0
    %v3254 = vsel %vm369, %v3211, 0
    %3256 = vmatprep.subr.mxu0 %v3187
    %3257 = vmatpush1.msra.mxu0 %v3185
    %3258 = vmatprep.subr.mxu0 %v3193
    %3259 = vmatpush1.msra.mxu0 %v3191
    %3260 = vmatprep.subr.mxu0 %v3199
    %3261 = vmatpush1.msra.mxu0 %v3197
    %3262 = vmatprep.subr.mxu0 %v3205
    %3263 = vmatpush1.msra.mxu0 %v3203
    %3264 = vmatprep.subr.mxu0 %v3254
    %3265 = vmatpush1.msra.mxu0 %v3251
    %3266 = vmatprep.subr.mxu0 0.0
    %3267 = vmatpush1.msra.mxu0 0.0
    %3268 = vmatprep.subr.mxu0 0.0
    %3269 = vmatpush1.msra.mxu0 0.0
    %3270 = vmatprep.subr.mxu0 0.0
    %3271 = vmatpush1.msra.mxu0 0.0
    %3272 = vmatprep.subr.mxu0 0.0
    %3273 = vmatpush1.msra.mxu0 0.0
    %3274 = vmatprep.subr.mxu0 0.0
    %3275 = vmatpush1.msra.mxu0 0.0
    %3276 = vmatprep.subr.mxu0 0.0
    %3277 = vmatpush1.msra.mxu0 0.0
    %3278 = vmatprep.subr.mxu0 0.0
    %3279 = vmatpush1.msra.mxu0 0.0
    %3280 = vmatprep.subr.mxu0 0.0
    %3281 = vmatpush1.msra.mxu0 0.0
    %3282 = vmatprep.subr.mxu0 0.0
    %3283 = vmatpush1.msra.mxu0 0.0
    %3284 = vmatprep.subr.mxu0 0.0
    %3285 = vmatpush1.msra.mxu0 0.0
    %3286 = vmatprep.subr.mxu0 0.0
    %3287 = vmatpush1.msra.mxu0 0.0
    %3288 = vmatprep.subr.mxu0 0.0
    %3289 = vmatpush1.msra.mxu0 0.0
    %3290 = vmatprep.subr.mxu0 0.0
    %3291 = vmatpush1.msra.mxu0 0.0
    %3292 = vmatprep.subr.mxu0 0.0
    %3293 = vmatpush1.msra.mxu0 0.0
    %3294 = vmatprep.subr.mxu0 0.0
    %3295 = vmatpush1.msra.mxu0 0.0
    %3296 = vmatprep.subr.mxu0 0.0
    %3297 = vmatpush1.msra.mxu0 0.0
    %3298 = vmatprep.subr.mxu0 0.0
    %3299 = vmatpush1.msra.mxu0 0.0
    %3300 = vmatprep.subr.mxu0 0.0
    %3301 = vmatpush1.msra.mxu0 0.0
    %3302 = vmatprep.subr.mxu0 0.0
    %3303 = vmatpush1.msra.mxu0 0.0
    %3304 = vmatprep.subr.mxu0 0.0
    %3305 = vmatpush1.msra.mxu0 0.0
    %3306 = vmatprep.subr.mxu0 0.0
    %3307 = vmatpush1.msra.mxu0 0.0
    %3308 = vmatprep.subr.mxu0 0.0
    %3309 = vmatpush1.msra.mxu0 0.0
    %3310 = vmatprep.subr.mxu0 0.0
    %3311 = vmatpush1.msra.mxu0 0.0
    %3312 = vmatprep.subr.mxu0 0.0
    %3313 = vmatpush1.msra.mxu0 0.0
    %3314 = vmatprep.subr.mxu0 0.0
    %3315 = vmatpush1.msra.mxu0 0.0
    %3316 = vmatprep.subr.mxu0 0.0
    %3317 = vmatpush1.msra.mxu0 0.0
    %3318 = vmatprep.subr.mxu0 0.0
    %3319 = vmatpush1.msra.mxu0 0.0
    %3320 = vmatprep.mubr.f32.mxu0 0.0
    %3321 = vmatmul.mubr.f32.gmra.mrb[0].mxu0 %v3224
    %v3322 = vpop.f32.mrb[0].mxu0
    %v3323 = vadd.f32 0.0, %v3322
    %v3324 = vpop.f32.mrb[0].mxu0
    %v3325 = vadd.f32 0.0, %v3324
    %3326 = vmatprep.mubr.f32.mxu0 0.0
    %3327 = vmatmul.mubr.f32.gmra.mrb[0].mxu0 %v3227
    %v3328 = vpop.f32.mrb[0].mxu0
    %v3329 = vadd.f32 0.0, %v3328
    %v3330 = vpop.f32.mrb[0].mxu0
    %v3331 = vadd.f32 0.0, %v3330
    %3332 = vmatprep.mubr.f32.mxu0 0.0
    %3333 = vmatmul.mubr.f32.gmra.mrb[0].mxu0 %v3230
    %v3334 = vpop.f32.mrb[0].mxu0
    %v3335 = vadd.f32 0.0, %v3334
    %v3336 = vpop.f32.mrb[0].mxu0
    %v3337 = vadd.f32 0.0, %v3336
    %3338 = vmatprep.mubr.f32.mxu0 0.0
    %3339 = vmatmul.mubr.f32.gmra.mrb[0].mxu0 %v3233
    %v3340 = vpop.f32.mrb[0].mxu0
    %v3341 = vadd.f32 0.0, %v3340
    %v3342 = vpop.f32.mrb[0].mxu0
    %v3343 = vadd.f32 0.0, %v3342
    %3344 = vmatprep.mubr.f32.mxu0 0.0
    %3345 = vmatmul.mubr.f32.gmra.mrb[0].mxu0 %v3236
    %v3346 = vpop.f32.mrb[0].mxu0
    %v3347 = vadd.f32 0.0, %v3346
    %v3348 = vpop.f32.mrb[0].mxu0
    %v3349 = vadd.f32 0.0, %v3348
    %3350 = vmatprep.mubr.f32.mxu0 0.0
    %3351 = vmatmul.mubr.f32.gmra.mrb[0].mxu0 %v3239
    %v3352 = vpop.f32.mrb[0].mxu0
    %v3353 = vadd.f32 0.0, %v3352
    %v3354 = vpop.f32.mrb[0].mxu0
    %v3355 = vadd.f32 0.0, %v3354
    %3356 = vmatprep.mubr.f32.mxu0 0.0
    %3357 = vmatmul.mubr.f32.gmra.mrb[0].mxu0 %v3242
    %v3358 = vpop.f32.mrb[0].mxu0
    %v3359 = vadd.f32 0.0, %v3358
    %v3360 = vpop.f32.mrb[0].mxu0
    %v3361 = vadd.f32 0.0, %v3360
    %3362 = vmatprep.mubr.f32.mxu0 0.0
    %3363 = vmatmul.mubr.f32.gmra.mrb[0].mxu0 %v3245
    %v3364 = vpop.f32.mrb[0].mxu0
    %v3365 = vadd.f32 0.0, %v3364
    %v3366 = vpop.f32.mrb[0].mxu0
    %v3367 = vadd.f32 0.0, %v3366
    %3368 = vmatprep.mubr.f32.mxu0 0.0
    %3369 = vmatmul.mubr.f32.gmra.mrb[0].mxu0 %v3248
    %v3370 = vpop.f32.mrb[0].mxu0
    %v3371 = vadd.f32 0.0, %v3370
    %v3372 = vpop.f32.mrb[0].mxu0
    %v3373 = vadd.f32 0.0, %v3372
    %3374 = vdwg.mxu0
    %v3375 = vadd.f32 %v3079, %v3323
    %v3376 = vadd.f32 %v3080, %v3325
    %v3377 = vadd.f32 %v3081, %v3329
    %v3378 = vadd.f32 %v3082, %v3331
    %v3379 = vadd.f32 %v3083, %v3335
    %v3380 = vadd.f32 %v3084, %v3337
    %v3381 = vadd.f32 %v3085, %v3341
    %v3382 = vadd.f32 %v3086, %v3343
    %v3383 = vadd.f32 %v3087, %v3347
    %v3384 = vadd.f32 %v3088, %v3349
    %v3385 = vadd.f32 %v3089, %v3353
    %v3386 = vadd.f32 %v3090, %v3355
    %v3387 = vadd.f32 %v3091, %v3359
    %v3388 = vadd.f32 %v3092, %v3361
    %v3389 = vadd.f32 %v3093, %v3365
    %v3390 = vadd.f32 %v3094, %v3367
    %v3391 = vadd.f32 %v3095, %v3371
    %v3392 = vadd.f32 %v3096, %v3373
    %s3393 = scalar_lea.vmem %s12, 4
    %v3394 = vld [vmem:[%s3393] ss:$8 sm:$0x3]
    %s3395 = scalar_lea.vmem %s12, 5
    %v3396 = vld [vmem:[%s3395] ss:$8 sm:$0x3]
    %s3397 = scalar_lea.vmem %s12, 6
    %v3398 = vld [vmem:[%s3397] ss:$8 sm:$0x3]
    %s3399 = scalar_lea.vmem %s12, 7
    %v3400 = vld [vmem:[%s3399] ss:$8 sm:$0x3]
    %v3401 = vld [vmem:[#allocation15] sm:$0xff]
    %v3402 = vld [vmem:[#allocation15 + $0x8] sm:$0xff]
    %v3403 = vld [vmem:[#allocation15 + $0x10] sm:$0xff]
    %v3404 = vld [vmem:[#allocation15 + $0x18] sm:$0xff]
    %v3405 = vld [vmem:[#allocation15 + $0x20] sm:$0xff]
    %v3406 = vld [vmem:[#allocation15 + $0x28] sm:$0xff]
    %v3407 = vld [vmem:[#allocation15 + $0x30] sm:$0xff]
    %v3408 = vld [vmem:[#allocation15 + $0x38] sm:$0xff]
    %v3409 = vld [vmem:[#allocation15 + $0x40] sm:$0xff]
    %v3410 = vld [vmem:[#allocation15 + $0x48] sm:$0xff]
    %v3411 = vld [vmem:[#allocation15 + $0x50] sm:$0xff]
    %v3412 = vld [vmem:[#allocation15 + $0x58] sm:$0xff]
    %v3413 = vld [vmem:[#allocation15 + $0x60] sm:$0xff]
    %v3414 = vld [vmem:[#allocation15 + $0x68] sm:$0xff]
    %v3415 = vld [vmem:[#allocation15 + $0x70] sm:$0xff]
    %v3416 = vld [vmem:[#allocation15 + $0x78] sm:$0xff]
    %v3417 = vld [vmem:[#allocation15 + $0x80] sm:$0xff]
    %v3418 = vld [vmem:[#allocation15 + $0x88] sm:$0xff]
    %v3419 = vld [vmem:[#allocation15 + $0x90] sm:$0xff]
    %v3420 = vld [vmem:[#allocation15 + $0x98] sm:$0xff]
    %v3421 = vld [vmem:[#allocation15 + $0xa0] sm:$0xff]
    %v3422 = vld [vmem:[#allocation15 + $0xa8] sm:$0xff]
    %v3423 = vld [vmem:[#allocation15 + $0xb0] sm:$0xff]
    %v3424 = vld [vmem:[#allocation15 + $0xb8] sm:$0xff]
    %v3425 = vld [vmem:[#allocation15 + $0xc0] sm:$0xff]
    %v3426 = vld [vmem:[#allocation15 + $0xc8] sm:$0xff]
    %v3427 = vld [vmem:[#allocation15 + $0xd0] sm:$0xff]
    %v3428 = vld [vmem:[#allocation15 + $0xd8] sm:$0xff]
    %v3429 = vld [vmem:[#allocation15 + $0xe0] sm:$0xff]
    %v3430 = vld [vmem:[#allocation15 + $0xe8] sm:$0xff]
    %v3431 = vld [vmem:[#allocation15 + $0xf0] sm:$0xff]
    %v3432 = vld [vmem:[#allocation15 + $0xf8] sm:$0xff]
    %v3433 = vld [vmem:[#allocation15 + $0x100] sm:$0xff]
    %v3434 = vld [vmem:[#allocation15 + $0x108] sm:$0xff]
    %v3435 = vld [vmem:[#allocation15 + $0x110] sm:$0xff]
    %v3436 = vld [vmem:[#allocation15 + $0x118] sm:$0xff]
    %v3437 = vld [vmem:[#allocation15 + $0x120] sm:$0xff]
    %v3438 = vld [vmem:[#allocation15 + $0x128] sm:$0xff]
    %v3439 = vld [vmem:[#allocation15 + $0x130] sm:$0xff]
    %v3440 = vld [vmem:[#allocation15 + $0x138] sm:$0xff]
    %v3441 = vadd.f32 %v3375, %v3377
    %v3442 = vadd.f32 %v3441, %v3379
    %v3443 = vadd.f32 %v3442, %v3381
    %v3444 = vadd.f32 %v3443, %v3383
    %v3445 = vadd.f32 %v3444, %v3385
    %v3446 = vadd.f32 %v3445, %v3387
    %v3447 = vadd.f32 %v3446, %v3389
    %v3448 = vadd.f32 %v3447, %v3391
    %v3449 = vrot.slane %v3448, 4
    %v3450 = vadd.f32 %v3448, %v3449
    %v3451 = vrot.slane %v3450, 2
    %v3452 = vadd.f32 %v3450, %v3451
    %v3453 = vrot.slane %v3452, 1
    %v3454 = vadd.f32 %v3452, %v3453
    %vm3455 = vcmask 261120
    %v3456 = vsel %vm3455, %v3376, 0.0
    %v3457 = vsel %vm3455, %v3378, 0.0
    %v3458 = vadd.f32 %v3456, %v3457
    %v3459 = vsel %vm3455, %v3380, 0.0
    %v3460 = vadd.f32 %v3458, %v3459
    %v3461 = vsel %vm3455, %v3382, 0.0
    %v3462 = vadd.f32 %v3460, %v3461
    %v3463 = vsel %vm3455, %v3384, 0.0
    %v3464 = vadd.f32 %v3462, %v3463
    %v3465 = vsel %vm3455, %v3386, 0.0
    %v3466 = vadd.f32 %v3464, %v3465
    %v3467 = vsel %vm3455, %v3388, 0.0
    %v3468 = vadd.f32 %v3466, %v3467
    %v3469 = vsel %vm3455, %v3390, 0.0
    %v3470 = vadd.f32 %v3468, %v3469
    %v3471 = vsel %vm3455, %v3392, 0.0
    %v3472 = vadd.f32 %v3470, %v3471
    %v3473 = vrot.slane %v3472, 4
    %v3474 = vadd.f32 %v3472, %v3473
    %v3475 = vrot.slane %v3474, 2
    %v3476 = vadd.f32 %v3474, %v3475
    %v3477 = vrot.slane %v3476, 1
    %v3478 = vadd.f32 %v3476, %v3477
    %v3480 = vsel %vm3455, %v3478, 0
    %3482 = vmatprep.subr.mxu0 %v3402
    %3483 = vmatpush1.msra.mxu0 %v3401
    %3484 = vmatprep.subr.mxu0 %v3404
    %3485 = vmatpush1.msra.mxu0 %v3403
    %3486 = vmatprep.subr.mxu0 %v3406
    %3487 = vmatpush1.msra.mxu0 %v3405
    %3488 = vmatprep.subr.mxu0 %v3408
    %3489 = vmatpush1.msra.mxu0 %v3407
    %3490 = vmatprep.subr.mxu0 %v3410
    %3491 = vmatpush1.msra.mxu0 %v3409
    %3492 = vmatprep.subr.mxu0 %v3412
    %3493 = vmatpush1.msra.mxu0 %v3411
    %3494 = vmatprep.subr.mxu0 %v3414
    %3495 = vmatpush1.msra.mxu0 %v3413
    %3496 = vmatprep.subr.mxu0 %v3416
    %3497 = vmatpush1.msra.mxu0 %v3415
    %3498 = vmatprep.subr.mxu0 %v3418
    %3499 = vmatpush1.msra.mxu0 %v3417
    %3500 = vmatprep.subr.mxu0 %v3420
    %3501 = vmatpush1.msra.mxu0 %v3419
    %3502 = vmatprep.subr.mxu0 %v3422
    %3503 = vmatpush1.msra.mxu0 %v3421
    %3504 = vmatprep.subr.mxu0 %v3424
    %3505 = vmatpush1.msra.mxu0 %v3423
    %3506 = vmatprep.subr.mxu0 %v3426
    %3507 = vmatpush1.msra.mxu0 %v3425
    %3508 = vmatprep.subr.mxu0 %v3428
    %3509 = vmatpush1.msra.mxu0 %v3427
    %3510 = vmatprep.subr.mxu0 %v3430
    %3511 = vmatpush1.msra.mxu0 %v3429
    %3512 = vmatprep.subr.mxu0 %v3432
    %3513 = vmatpush1.msra.mxu0 %v3431
    %3514 = vmatprep.subr.mxu0 %v3434
    %3515 = vmatpush1.msra.mxu0 %v3433
    %3516 = vmatprep.subr.mxu0 %v3436
    %3517 = vmatpush1.msra.mxu0 %v3435
    %3518 = vmatprep.subr.mxu0 %v3438
    %3519 = vmatpush1.msra.mxu0 %v3437
    %3520 = vmatprep.subr.mxu0 %v3440
    %3521 = vmatpush1.msra.mxu0 %v3439
    %3522 = vmatprep.subr.mxu0 0.0
    %3523 = vmatpush1.msra.mxu0 0.0
    %3524 = vmatprep.subr.mxu0 0.0
    %3525 = vmatpush1.msra.mxu0 0.0
    %3526 = vmatprep.subr.mxu0 0.0
    %3527 = vmatpush1.msra.mxu0 0.0
    %3528 = vmatprep.subr.mxu0 0.0
    %3529 = vmatpush1.msra.mxu0 0.0
    %3530 = vmatprep.subr.mxu0 0.0
    %3531 = vmatpush1.msra.mxu0 0.0
    %3532 = vmatprep.subr.mxu0 0.0
    %3533 = vmatpush1.msra.mxu0 0.0
    %3534 = vmatprep.subr.mxu0 0.0
    %3535 = vmatpush1.msra.mxu0 0.0
    %3536 = vmatprep.subr.mxu0 0.0
    %3537 = vmatpush1.msra.mxu0 0.0
    %3538 = vmatprep.subr.mxu0 0.0
    %3539 = vmatpush1.msra.mxu0 0.0
    %3540 = vmatprep.subr.mxu0 0.0
    %3541 = vmatpush1.msra.mxu0 0.0
    %3542 = vmatprep.subr.mxu0 0.0
    %3543 = vmatpush1.msra.mxu0 0.0
    %3544 = vmatprep.subr.mxu0 0.0
    %3545 = vmatpush1.msra.mxu0 0.0
    %3546 = vmatprep.mubr.f32.mxu0 %v3480
    %3547 = vmatmul.mubr.f32.gmra.mrb[0].mxu0 %v3454
    %v3548 = vpop.f32.mrb[0].mxu0
    %v3549 = vadd.f32 0.0, %v3548
    %v3550 = vpop.f32.mrb[0].mxu0
    %v3551 = vadd.f32 0.0, %v3550
    %3552 = vdwg.mxu0
    %v3553 = vmul.f32 %v3549, 0.00086805556
    %v3554 = vmul.f32 %v3551, 0.00086805556
    %v3555 = vlaneseq
    %v3556 = vshrl.u32 %v3555, 7
    %v3557 = vsub.s32 0, %v3556
    %v3558 = vrot.slane %v3553, %v3557
    %v3559 = vlaneseq
    %v3560 = vshrl.u32 %v3559, 7
    %v3561 = vsub.s32 0, %v3560
    %v3562 = vrot.slane %v3554, %v3561
    %v3563 = vsub.f32 %v3375, %v3558
    %v3564 = vsub.f32 %v3376, %v3562
    %v3565 = vsub.f32 %v3377, %v3558
    %v3566 = vsub.f32 %v3378, %v3562
    %v3567 = vsub.f32 %v3379, %v3558
    %v3568 = vsub.f32 %v3380, %v3562
    %v3569 = vsub.f32 %v3381, %v3558
    %v3570 = vsub.f32 %v3382, %v3562
    %v3571 = vsub.f32 %v3383, %v3558
    %v3572 = vsub.f32 %v3384, %v3562
    %v3573 = vsub.f32 %v3385, %v3558
    %v3574 = vsub.f32 %v3386, %v3562
    %v3575 = vsub.f32 %v3387, %v3558
    %v3576 = vsub.f32 %v3388, %v3562
    %v3577 = vsub.f32 %v3389, %v3558
    %v3578 = vsub.f32 %v3390, %v3562
    %v3579 = vsub.f32 %v3391, %v3558
    %v3580 = vsub.f32 %v3392, %v3562
    %v3581 = vmul.f32 %v3563, %v3563
    %v3582 = vmul.f32 %v3564, %v3564
    %v3583 = vmul.f32 %v3565, %v3565
    %v3584 = vmul.f32 %v3566, %v3566
    %v3585 = vmul.f32 %v3567, %v3567
    %v3586 = vmul.f32 %v3568, %v3568
    %v3587 = vmul.f32 %v3569, %v3569
    %v3588 = vmul.f32 %v3570, %v3570
    %v3589 = vmul.f32 %v3571, %v3571
    %v3590 = vmul.f32 %v3572, %v3572
    %v3591 = vmul.f32 %v3573, %v3573
    %v3592 = vmul.f32 %v3574, %v3574
    %v3593 = vmul.f32 %v3575, %v3575
    %v3594 = vmul.f32 %v3576, %v3576
    %v3595 = vmul.f32 %v3577, %v3577
    %v3596 = vmul.f32 %v3578, %v3578
    %v3597 = vmul.f32 %v3579, %v3579
    %v3598 = vmul.f32 %v3580, %v3580
    %v3599 = vadd.f32 %v3581, %v3583
    %v3600 = vadd.f32 %v3599, %v3585
    %v3601 = vadd.f32 %v3600, %v3587
    %v3602 = vadd.f32 %v3601, %v3589
    %v3603 = vadd.f32 %v3602, %v3591
    %v3604 = vadd.f32 %v3603, %v3593
    %v3605 = vadd.f32 %v3604, %v3595
    %v3606 = vadd.f32 %v3605, %v3597
    %v3607 = vrot.slane %v3606, 4
    %v3608 = vadd.f32 %v3606, %v3607
    %v3609 = vrot.slane %v3608, 2
    %v3610 = vadd.f32 %v3608, %v3609
    %v3611 = vrot.slane %v3610, 1
    %v3612 = vadd.f32 %v3610, %v3611
    %v3613 = vsel %vm3455, %v3582, 0.0
    %v3614 = vsel %vm3455, %v3584, 0.0
    %v3615 = vadd.f32 %v3613, %v3614
    %v3616 = vsel %vm3455, %v3586, 0.0
    %v3617 = vadd.f32 %v3615, %v3616
    %v3618 = vsel %vm3455, %v3588, 0.0
    %v3619 = vadd.f32 %v3617, %v3618
    %v3620 = vsel %vm3455, %v3590, 0.0
    %v3621 = vadd.f32 %v3619, %v3620
    %v3622 = vsel %vm3455, %v3592, 0.0
    %v3623 = vadd.f32 %v3621, %v3622
    %v3624 = vsel %vm3455, %v3594, 0.0
    %v3625 = vadd.f32 %v3623, %v3624
    %v3626 = vsel %vm3455, %v3596, 0.0
    %v3627 = vadd.f32 %v3625, %v3626
    %v3628 = vsel %vm3455, %v3598, 0.0
    %v3629 = vadd.f32 %v3627, %v3628
    %v3630 = vrot.slane %v3629, 4
    %v3631 = vadd.f32 %v3629, %v3630
    %v3632 = vrot.slane %v3631, 2
    %v3633 = vadd.f32 %v3631, %v3632
    %v3634 = vrot.slane %v3633, 1
    %v3635 = vadd.f32 %v3633, %v3634
    %v3637 = vsel %vm3455, %v3635, 0
    %3639 = vmatprep.subr.mxu0 %v3402
    %3640 = vmatpush1.msra.mxu0 %v3401
    %3641 = vmatprep.subr.mxu0 %v3404
    %3642 = vmatpush1.msra.mxu0 %v3403
    %3643 = vmatprep.subr.mxu0 %v3406
    %3644 = vmatpush1.msra.mxu0 %v3405
    %3645 = vmatprep.subr.mxu0 %v3408
    %3646 = vmatpush1.msra.mxu0 %v3407
    %3647 = vmatprep.subr.mxu0 %v3410
    %3648 = vmatpush1.msra.mxu0 %v3409
    %3649 = vmatprep.subr.mxu0 %v3412
    %3650 = vmatpush1.msra.mxu0 %v3411
    %3651 = vmatprep.subr.mxu0 %v3414
    %3652 = vmatpush1.msra.mxu0 %v3413
    %3653 = vmatprep.subr.mxu0 %v3416
    %3654 = vmatpush1.msra.mxu0 %v3415
    %3655 = vmatprep.subr.mxu0 %v3418
    %3656 = vmatpush1.msra.mxu0 %v3417
    %3657 = vmatprep.subr.mxu0 %v3420
    %3658 = vmatpush1.msra.mxu0 %v3419
    %3659 = vmatprep.subr.mxu0 %v3422
    %3660 = vmatpush1.msra.mxu0 %v3421
    %3661 = vmatprep.subr.mxu0 %v3424
    %3662 = vmatpush1.msra.mxu0 %v3423
    %3663 = vmatprep.subr.mxu0 %v3426
    %3664 = vmatpush1.msra.mxu0 %v3425
    %3665 = vmatprep.subr.mxu0 %v3428
    %3666 = vmatpush1.msra.mxu0 %v3427
    %3667 = vmatprep.subr.mxu0 %v3430
    %3668 = vmatpush1.msra.mxu0 %v3429
    %3669 = vmatprep.subr.mxu0 %v3432
    %3670 = vmatpush1.msra.mxu0 %v3431
    %3671 = vmatprep.subr.mxu0 %v3434
    %3672 = vmatpush1.msra.mxu0 %v3433
    %3673 = vmatprep.subr.mxu0 %v3436
    %3674 = vmatpush1.msra.mxu0 %v3435
    %3675 = vmatprep.subr.mxu0 %v3438
    %3676 = vmatpush1.msra.mxu0 %v3437
    %3677 = vmatprep.subr.mxu0 %v3440
    %3678 = vmatpush1.msra.mxu0 %v3439
    %3679 = vmatprep.subr.mxu0 0.0
    %3680 = vmatpush1.msra.mxu0 0.0
    %3681 = vmatprep.subr.mxu0 0.0
    %3682 = vmatpush1.msra.mxu0 0.0
    %3683 = vmatprep.subr.mxu0 0.0
    %3684 = vmatpush1.msra.mxu0 0.0
    %3685 = vmatprep.subr.mxu0 0.0
    %3686 = vmatpush1.msra.mxu0 0.0
    %3687 = vmatprep.subr.mxu0 0.0
    %3688 = vmatpush1.msra.mxu0 0.0
    %3689 = vmatprep.subr.mxu0 0.0
    %3690 = vmatpush1.msra.mxu0 0.0
    %3691 = vmatprep.subr.mxu0 0.0
    %3692 = vmatpush1.msra.mxu0 0.0
    %3693 = vmatprep.subr.mxu0 0.0
    %3694 = vmatpush1.msra.mxu0 0.0
    %3695 = vmatprep.subr.mxu0 0.0
    %3696 = vmatpush1.msra.mxu0 0.0
    %3697 = vmatprep.subr.mxu0 0.0
    %3698 = vmatpush1.msra.mxu0 0.0
    %3699 = vmatprep.subr.mxu0 0.0
    %3700 = vmatpush1.msra.mxu0 0.0
    %3701 = vmatprep.subr.mxu0 0.0
    %3702 = vmatpush1.msra.mxu0 0.0
    %3703 = vmatprep.mubr.f32.mxu0 %v3637
    %3704 = vmatmul.mubr.f32.gmra.mrb[0].mxu0 %v3612
    %v3705 = vpop.f32.mrb[0].mxu0
    %v3706 = vadd.f32 0.0, %v3705
    %v3707 = vpop.f32.mrb[0].mxu0
    %v3708 = vadd.f32 0.0, %v3707
    %3709 = vdwg.mxu0
    %v3710 = vmul.f32 %v3706, 0.00086805556
    %v3711 = vmul.f32 %v3708, 0.00086805556
    %v3712 = vadd.f32 %v3710, 1e-05
    %v3713 = vadd.f32 %v3711, 1e-05
    %v3714 = vrsqrt.pop %v3712
    %v3715 = vrsqrt.pop %v3713
    %v3716 = vlaneseq
    %v3717 = vshrl.u32 %v3716, 7
    %v3718 = vsub.s32 0, %v3717
    %v3719 = vrot.slane %v3714, %v3718
    %v3720 = vlaneseq
    %v3721 = vshrl.u32 %v3720, 7
    %v3722 = vsub.s32 0, %v3721
    %v3723 = vrot.slane %v3715, %v3722
    %v3724 = vmul.f32 %v3563, %v3719
    %v3725 = vmul.f32 %v3564, %v3723
    %v3726 = vmul.f32 %v3565, %v3719
    %v3727 = vmul.f32 %v3566, %v3723
    %v3728 = vmul.f32 %v3567, %v3719
    %v3729 = vmul.f32 %v3568, %v3723
    %v3730 = vmul.f32 %v3569, %v3719
    %v3731 = vmul.f32 %v3570, %v3723
    %v3732 = vmul.f32 %v3571, %v3719
    %v3733 = vmul.f32 %v3572, %v3723
    %v3734 = vmul.f32 %v3573, %v3719
    %v3735 = vmul.f32 %v3574, %v3723
    %v3736 = vmul.f32 %v3575, %v3719
    %v3737 = vmul.f32 %v3576, %v3723
    %v3738 = vmul.f32 %v3577, %v3719
    %v3739 = vmul.f32 %v3578, %v3723
    %v3740 = vmul.f32 %v3579, %v3719
    %v3741 = vmul.f32 %v3580, %v3723
    %v3743 = vlaneseq
    %v3744 = vshrl.u32 %v3743, 7
    %v3745 = vsub.s32 0, %v3744
    %v3746 = vrot.slane %v3394, %v3745
    %v3747 = vlaneseq
    %v3748 = vshrl.u32 %v3747, 7
    %v3749 = vsub.s32 1, %v3748
    %v3750 = vrot.slane %v3394, %v3749
    %v3753 = vmul.f32 %v3724, %v3746
    %v3754 = vmul.f32 %v3725, %v3750
    %v3755 = vmul.f32 %v3726, %v3746
    %v3756 = vmul.f32 %v3727, %v3750
    %v3757 = vmul.f32 %v3728, %v3746
    %v3758 = vmul.f32 %v3729, %v3750
    %v3759 = vmul.f32 %v3730, %v3746
    %v3760 = vmul.f32 %v3731, %v3750
    %v3761 = vmul.f32 %v3732, %v3746
    %v3762 = vmul.f32 %v3733, %v3750
    %v3763 = vmul.f32 %v3734, %v3746
    %v3764 = vmul.f32 %v3735, %v3750
    %v3765 = vmul.f32 %v3736, %v3746
    %v3766 = vmul.f32 %v3737, %v3750
    %v3767 = vmul.f32 %v3738, %v3746
    %v3768 = vmul.f32 %v3739, %v3750
    %v3769 = vmul.f32 %v3740, %v3746
    %v3770 = vmul.f32 %v3741, %v3750
    %v3772 = vlaneseq
    %v3773 = vshrl.u32 %v3772, 7
    %v3774 = vsub.s32 0, %v3773
    %v3775 = vrot.slane %v3396, %v3774
    %v3776 = vlaneseq
    %v3777 = vshrl.u32 %v3776, 7
    %v3778 = vsub.s32 1, %v3777
    %v3779 = vrot.slane %v3396, %v3778
    %v3782 = vadd.f32 %v3753, %v3775
    %v3783 = vadd.f32 %v3754, %v3779
    %v3784 = vadd.f32 %v3755, %v3775
    %v3785 = vadd.f32 %v3756, %v3779
    %v3786 = vadd.f32 %v3757, %v3775
    %v3787 = vadd.f32 %v3758, %v3779
    %v3788 = vadd.f32 %v3759, %v3775
    %v3789 = vadd.f32 %v3760, %v3779
    %v3790 = vadd.f32 %v3761, %v3775
    %v3791 = vadd.f32 %v3762, %v3779
    %v3792 = vadd.f32 %v3763, %v3775
    %v3793 = vadd.f32 %v3764, %v3779
    %v3794 = vadd.f32 %v3765, %v3775
    %v3795 = vadd.f32 %v3766, %v3779
    %v3796 = vadd.f32 %v3767, %v3775
    %v3797 = vadd.f32 %v3768, %v3779
    %v3798 = vadd.f32 %v3769, %v3775
    %v3799 = vadd.f32 %v3770, %v3779
    %v3801 = vlaneseq
    %v3802 = vshrl.u32 %v3801, 7
    %v3803 = vsub.s32 0, %v3802
    %v3804 = vrot.slane %v3398, %v3803
    %v3805 = vlaneseq
    %v3806 = vshrl.u32 %v3805, 7
    %v3807 = vsub.s32 1, %v3806
    %v3808 = vrot.slane %v3398, %v3807
    %v3811 = vmul.f32 %v3724, %v3804
    %v3812 = vmul.f32 %v3725, %v3808
    %v3813 = vmul.f32 %v3726, %v3804
    %v3814 = vmul.f32 %v3727, %v3808
    %v3815 = vmul.f32 %v3728, %v3804
    %v3816 = vmul.f32 %v3729, %v3808
    %v3817 = vmul.f32 %v3730, %v3804
    %v3818 = vmul.f32 %v3731, %v3808
    %v3819 = vmul.f32 %v3732, %v3804
    %v3820 = vmul.f32 %v3733, %v3808
    %v3821 = vmul.f32 %v3734, %v3804
    %v3822 = vmul.f32 %v3735, %v3808
    %v3823 = vmul.f32 %v3736, %v3804
    %v3824 = vmul.f32 %v3737, %v3808
    %v3825 = vmul.f32 %v3738, %v3804
    %v3826 = vmul.f32 %v3739, %v3808
    %v3827 = vmul.f32 %v3740, %v3804
    %v3828 = vmul.f32 %v3741, %v3808
    %v3830 = vlaneseq
    %v3831 = vshrl.u32 %v3830, 7
    %v3832 = vsub.s32 0, %v3831
    %v3833 = vrot.slane %v3400, %v3832
    %v3834 = vlaneseq
    %v3835 = vshrl.u32 %v3834, 7
    %v3836 = vsub.s32 1, %v3835
    %v3837 = vrot.slane %v3400, %v3836
    %v3840 = vadd.f32 %v3811, %v3833
    %v3841 = vadd.f32 %v3812, %v3837
    %v3842 = vadd.f32 %v3813, %v3833
    %v3843 = vadd.f32 %v3814, %v3837
    %v3844 = vadd.f32 %v3815, %v3833
    %v3845 = vadd.f32 %v3816, %v3837
    %v3846 = vadd.f32 %v3817, %v3833
    %v3847 = vadd.f32 %v3818, %v3837
    %v3848 = vadd.f32 %v3819, %v3833
    %v3849 = vadd.f32 %v3820, %v3837
    %v3850 = vadd.f32 %v3821, %v3833
    %v3851 = vadd.f32 %v3822, %v3837
    %v3852 = vadd.f32 %v3823, %v3833
    %v3853 = vadd.f32 %v3824, %v3837
    %v3854 = vadd.f32 %v3825, %v3833
    %v3855 = vadd.f32 %v3826, %v3837
    %v3856 = vadd.f32 %v3827, %v3833
    %v3857 = vadd.f32 %v3828, %v3837
    %v3858 = vxor.u32 %v3840, 2147483648
    %v3859 = vxor.u32 %v3841, 2147483648
    %v3860 = vxor.u32 %v3842, 2147483648
    %v3861 = vxor.u32 %v3843, 2147483648
    %v3862 = vxor.u32 %v3844, 2147483648
    %v3863 = vxor.u32 %v3845, 2147483648
    %v3864 = vxor.u32 %v3846, 2147483648
    %v3865 = vxor.u32 %v3847, 2147483648
    %v3866 = vxor.u32 %v3848, 2147483648
    %v3867 = vxor.u32 %v3849, 2147483648
    %v3868 = vxor.u32 %v3850, 2147483648
    %v3869 = vxor.u32 %v3851, 2147483648
    %v3870 = vxor.u32 %v3852, 2147483648
    %v3871 = vxor.u32 %v3853, 2147483648
    %v3872 = vxor.u32 %v3854, 2147483648
    %v3873 = vxor.u32 %v3855, 2147483648
    %v3874 = vxor.u32 %v3856, 2147483648
    %v3875 = vxor.u32 %v3857, 2147483648
    %v3876 = vmul.f32 %v3858, 1.442695
    %v3877 = vpow.pop %v3876
    %v3878 = vmul.f32 %v3859, 1.442695
    %v3879 = vpow.pop %v3878
    %v3880 = vmul.f32 %v3860, 1.442695
    %v3881 = vpow.pop %v3880
    %v3882 = vmul.f32 %v3861, 1.442695
    %v3883 = vpow.pop %v3882
    %v3884 = vmul.f32 %v3862, 1.442695
    %v3885 = vpow.pop %v3884
    %v3886 = vmul.f32 %v3863, 1.442695
    %v3887 = vpow.pop %v3886
    %v3888 = vmul.f32 %v3864, 1.442695
    %v3889 = vpow.pop %v3888
    %v3890 = vmul.f32 %v3865, 1.442695
    %v3891 = vpow.pop %v3890
    %v3892 = vmul.f32 %v3866, 1.442695
    %v3893 = vpow.pop %v3892
    %v3894 = vmul.f32 %v3867, 1.442695
    %v3895 = vpow.pop %v3894
    %v3896 = vmul.f32 %v3868, 1.442695
    %v3897 = vpow.pop %v3896
    %v3898 = vmul.f32 %v3869, 1.442695
    %v3899 = vpow.pop %v3898
    %v3900 = vmul.f32 %v3870, 1.442695
    %v3901 = vpow.pop %v3900
    %v3902 = vmul.f32 %v3871, 1.442695
    %v3903 = vpow.pop %v3902
    %v3904 = vmul.f32 %v3872, 1.442695
    %v3905 = vpow.pop %v3904
    %v3906 = vmul.f32 %v3873, 1.442695
    %v3907 = vpow.pop %v3906
    %v3908 = vmul.f32 %v3874, 1.442695
    %v3909 = vpow.pop %v3908
    %v3910 = vmul.f32 %v3875, 1.442695
    %v3911 = vpow.pop %v3910
    %v3912 = vadd.f32 %v3877, 1.0
    %v3913 = vadd.f32 %v3879, 1.0
    %v3914 = vadd.f32 %v3881, 1.0
    %v3915 = vadd.f32 %v3883, 1.0
    %v3916 = vadd.f32 %v3885, 1.0
    %v3917 = vadd.f32 %v3887, 1.0
    %v3918 = vadd.f32 %v3889, 1.0
    %v3919 = vadd.f32 %v3891, 1.0
    %v3920 = vadd.f32 %v3893, 1.0
    %v3921 = vadd.f32 %v3895, 1.0
    %v3922 = vadd.f32 %v3897, 1.0
    %v3923 = vadd.f32 %v3899, 1.0
    %v3924 = vadd.f32 %v3901, 1.0
    %v3925 = vadd.f32 %v3903, 1.0
    %v3926 = vadd.f32 %v3905, 1.0
    %v3927 = vadd.f32 %v3907, 1.0
    %v3928 = vadd.f32 %v3909, 1.0
    %v3929 = vadd.f32 %v3911, 1.0
    %v3930 = vrcp.pop %v3912
    %v3931 = vmul.f32 1.0, %v3930
    %v3932 = vrcp.pop %v3913
    %v3933 = vmul.f32 1.0, %v3932
    %v3934 = vrcp.pop %v3914
    %v3935 = vmul.f32 1.0, %v3934
    %v3936 = vrcp.pop %v3915
    %v3937 = vmul.f32 1.0, %v3936
    %v3938 = vrcp.pop %v3916
    %v3939 = vmul.f32 1.0, %v3938
    %v3940 = vrcp.pop %v3917
    %v3941 = vmul.f32 1.0, %v3940
    %v3942 = vrcp.pop %v3918
    %v3943 = vmul.f32 1.0, %v3942
    %v3944 = vrcp.pop %v3919
    %v3945 = vmul.f32 1.0, %v3944
    %v3946 = vrcp.pop %v3920
    %v3947 = vmul.f32 1.0, %v3946
    %v3948 = vrcp.pop %v3921
    %v3949 = vmul.f32 1.0, %v3948
    %v3950 = vrcp.pop %v3922
    %v3951 = vmul.f32 1.0, %v3950
    %v3952 = vrcp.pop %v3923
    %v3953 = vmul.f32 1.0, %v3952
    %v3954 = vrcp.pop %v3924
    %v3955 = vmul.f32 1.0, %v3954
    %v3956 = vrcp.pop %v3925
    %v3957 = vmul.f32 1.0, %v3956
    %v3958 = vrcp.pop %v3926
    %v3959 = vmul.f32 1.0, %v3958
    %v3960 = vrcp.pop %v3927
    %v3961 = vmul.f32 1.0, %v3960
    %v3962 = vrcp.pop %v3928
    %v3963 = vmul.f32 1.0, %v3962
    %v3964 = vrcp.pop %v3929
    %v3965 = vmul.f32 1.0, %v3964
    %v3966 = vmul.f32 %v3782, %v3931
    %v3967 = vmul.f32 %v3783, %v3933
    %v3968 = vmul.f32 %v3784, %v3935
    %v3969 = vmul.f32 %v3785, %v3937
    %v3970 = vmul.f32 %v3786, %v3939
    %v3971 = vmul.f32 %v3787, %v3941
    %v3972 = vmul.f32 %v3788, %v3943
    %v3973 = vmul.f32 %v3789, %v3945
    %v3974 = vmul.f32 %v3790, %v3947
    %v3975 = vmul.f32 %v3791, %v3949
    %v3976 = vmul.f32 %v3792, %v3951
    %v3977 = vmul.f32 %v3793, %v3953
    %v3978 = vmul.f32 %v3794, %v3955
    %v3979 = vmul.f32 %v3795, %v3957
    %v3980 = vmul.f32 %v3796, %v3959
    %v3981 = vmul.f32 %v3797, %v3961
    %v3982 = vmul.f32 %v3798, %v3963
    %v3983 = vmul.f32 %v3799, %v3965
    %v3984 = vld [vmem:[#allocation6] sm:$0xff]
    %v3985 = vld [vmem:[#allocation6 + $0x8] sm:$0xff]
    %v3986 = vld [vmem:[#allocation6 + $0x10] sm:$0xff]
    %v3987 = vld [vmem:[#allocation6 + $0x18] sm:$0xff]
    %v3988 = vld [vmem:[#allocation6 + $0x20] sm:$0xff]
    %v3989 = vld [vmem:[#allocation6 + $0x28] sm:$0xff]
    %v3990 = vld [vmem:[#allocation6 + $0x30] sm:$0xff]
    %v3991 = vld [vmem:[#allocation6 + $0x38] sm:$0xff]
    %v3992 = vld [vmem:[#allocation6 + $0x40] sm:$0xff]
    %v3993 = vld [vmem:[#allocation6 + $0x48] sm:$0xff]
    %v3994 = vld [vmem:[#allocation6 + $0x50] sm:$0xff]
    %v3995 = vld [vmem:[#allocation6 + $0x58] sm:$0xff]
    %v3996 = vld [vmem:[#allocation6 + $0x60] sm:$0xff]
    %v3997 = vld [vmem:[#allocation6 + $0x68] sm:$0xff]
    %v3998 = vld [vmem:[#allocation6 + $0x70] sm:$0xff]
    %v3999 = vld [vmem:[#allocation6 + $0x78] sm:$0xff]
    %v4000 = vld [vmem:[#allocation6 + $0x80] sm:$0xff]
    %v4001 = vld [vmem:[#allocation6 + $0x88] sm:$0xff]
    %v4002 = vld [vmem:[#allocation6 + $0x90] sm:$0xff]
    %v4003 = vld [vmem:[#allocation6 + $0x98] sm:$0xff]
    %v4004 = vld [vmem:[#allocation6 + $0xa0] sm:$0xff]
    %v4005 = vld [vmem:[#allocation6 + $0xa8] sm:$0xff]
    %v4006 = vld [vmem:[#allocation6 + $0xb0] sm:$0xff]
    %v4007 = vld [vmem:[#allocation6 + $0xb8] sm:$0xff]
    %v4008 = vld [vmem:[#allocation6 + $0xc0] sm:$0xff]
    %v4009 = vld [vmem:[#allocation6 + $0xc8] sm:$0xff]
    %v4010 = vld [vmem:[#allocation6 + $0xd0] sm:$0xff]
    %v4011 = vld [vmem:[#allocation6 + $0xd8] sm:$0xff]
    %v4012 = vld [vmem:[#allocation6 + $0xe0] sm:$0xff]
    %v4013 = vld [vmem:[#allocation6 + $0xe8] sm:$0xff]
    %v4014 = vld [vmem:[#allocation6 + $0xf0] sm:$0xff]
    %v4015 = vld [vmem:[#allocation6 + $0xf8] sm:$0xff]
    %v4016 = vld [vmem:[#allocation6 + $0x100] sm:$0xff]
    %v4017 = vld [vmem:[#allocation6 + $0x108] sm:$0xff]
    %v4018 = vld [vmem:[#allocation6 + $0x110] sm:$0xff]
    %v4019 = vld [vmem:[#allocation6 + $0x118] sm:$0xff]
    %v4020 = vld [vmem:[#allocation6 + $0x120] sm:$0xff]
    %v4021 = vld [vmem:[#allocation6 + $0x128] sm:$0xff]
    %v4022 = vld [vmem:[#allocation6 + $0x130] sm:$0xff]
    %v4023 = vld [vmem:[#allocation6 + $0x138] sm:$0xff]
    %v4025 = vsel %vm3455, %v3967, 0
    %v4028 = vsel %vm3455, %v3969, 0
    %v4031 = vsel %vm3455, %v3971, 0
    %v4034 = vsel %vm3455, %v3973, 0
    %v4037 = vsel %vm3455, %v3975, 0
    %v4040 = vsel %vm3455, %v3977, 0
    %v4043 = vsel %vm3455, %v3979, 0
    %v4046 = vsel %vm3455, %v3981, 0
    %v4049 = vsel %vm3455, %v3983, 0
    %4051 = vmatprep.subr.mxu0 %v3985
    %4052 = vmatpush1.msra.mxu0 %v3984
    %4053 = vmatprep.subr.mxu0 %v3987
    %4054 = vmatpush1.msra.mxu0 %v3986
    %4055 = vmatprep.subr.mxu0 %v3989
    %4056 = vmatpush1.msra.mxu0 %v3988
    %4057 = vmatprep.subr.mxu0 %v3991
    %4058 = vmatpush1.msra.mxu0 %v3990
    %4059 = vmatprep.subr.mxu0 %v3993
    %4060 = vmatpush1.msra.mxu0 %v3992
    %4061 = vmatprep.subr.mxu0 %v3995
    %4062 = vmatpush1.msra.mxu0 %v3994
    %4063 = vmatprep.subr.mxu0 %v3997
    %4064 = vmatpush1.msra.mxu0 %v3996
    %4065 = vmatprep.subr.mxu0 %v3999
    %4066 = vmatpush1.msra.mxu0 %v3998
    %4067 = vmatprep.subr.mxu0 %v4001
    %4068 = vmatpush1.msra.mxu0 %v4000
    %4069 = vmatprep.subr.mxu0 %v4003
    %4070 = vmatpush1.msra.mxu0 %v4002
    %4071 = vmatprep.subr.mxu0 %v4005
    %4072 = vmatpush1.msra.mxu0 %v4004
    %4073 = vmatprep.subr.mxu0 %v4007
    %4074 = vmatpush1.msra.mxu0 %v4006
    %4075 = vmatprep.subr.mxu0 %v4009
    %4076 = vmatpush1.msra.mxu0 %v4008
    %4077 = vmatprep.subr.mxu0 %v4011
    %4078 = vmatpush1.msra.mxu0 %v4010
    %4079 = vmatprep.subr.mxu0 %v4013
    %4080 = vmatpush1.msra.mxu0 %v4012
    %4081 = vmatprep.subr.mxu0 %v4015
    %4082 = vmatpush1.msra.mxu0 %v4014
    %4083 = vmatprep.subr.mxu0 %v4017
    %4084 = vmatpush1.msra.mxu0 %v4016
    %4085 = vmatprep.subr.mxu0 %v4019
    %4086 = vmatpush1.msra.mxu0 %v4018
    %4087 = vmatprep.subr.mxu0 %v4021
    %4088 = vmatpush1.msra.mxu0 %v4020
    %4089 = vmatprep.subr.mxu0 %v4023
    %4090 = vmatpush1.msra.mxu0 %v4022
    %4091 = vmatprep.subr.mxu0 0.0
    %4092 = vmatpush1.msra.mxu0 0.0
    %4093 = vmatprep.subr.mxu0 0.0
    %4094 = vmatpush1.msra.mxu0 0.0
    %4095 = vmatprep.subr.mxu0 0.0
    %4096 = vmatpush1.msra.mxu0 0.0
    %4097 = vmatprep.subr.mxu0 0.0
    %4098 = vmatpush1.msra.mxu0 0.0
    %4099 = vmatprep.subr.mxu0 0.0
    %4100 = vmatpush1.msra.mxu0 0.0
    %4101 = vmatprep.subr.mxu0 0.0
    %4102 = vmatpush1.msra.mxu0 0.0
    %4103 = vmatprep.subr.mxu0 0.0
    %4104 = vmatpush1.msra.mxu0 0.0
    %4105 = vmatprep.subr.mxu0 0.0
    %4106 = vmatpush1.msra.mxu0 0.0
    %4107 = vmatprep.subr.mxu0 0.0
    %4108 = vmatpush1.msra.mxu0 0.0
    %4109 = vmatprep.subr.mxu0 0.0
    %4110 = vmatpush1.msra.mxu0 0.0
    %4111 = vmatprep.subr.mxu0 0.0
    %4112 = vmatpush1.msra.mxu0 0.0
    %4113 = vmatprep.subr.mxu0 0.0
    %4114 = vmatpush1.msra.mxu0 0.0
    %4115 = vmatprep.mubr.f32.mxu0 %v4025
    %4116 = vmatmul.mubr.f32.gmra.mrb[0].mxu0 %v3966
    %v4117 = vpop.f32.mrb[0].mxu0
    %v4118 = vadd.f32 0.0, %v4117
    %v4119 = vpop.f32.mrb[0].mxu0
    %v4120 = vadd.f32 0.0, %v4119
    %4121 = vmatprep.mubr.f32.mxu0 %v4028
    %4122 = vmatmul.mubr.f32.gmra.mrb[0].mxu0 %v3968
    %v4123 = vpop.f32.mrb[0].mxu0
    %v4124 = vadd.f32 0.0, %v4123
    %v4125 = vpop.f32.mrb[0].mxu0
    %v4126 = vadd.f32 0.0, %v4125
    %4127 = vmatprep.mubr.f32.mxu0 %v4031
    %4128 = vmatmul.mubr.f32.gmra.mrb[0].mxu0 %v3970
    %v4129 = vpop.f32.mrb[0].mxu0
    %v4130 = vadd.f32 0.0, %v4129
    %v4131 = vpop.f32.mrb[0].mxu0
    %v4132 = vadd.f32 0.0, %v4131
    %4133 = vmatprep.mubr.f32.mxu0 %v4034
    %4134 = vmatmul.mubr.f32.gmra.mrb[0].mxu0 %v3972
    %v4135 = vpop.f32.mrb[0].mxu0
    %v4136 = vadd.f32 0.0, %v4135
    %v4137 = vpop.f32.mrb[0].mxu0
    %v4138 = vadd.f32 0.0, %v4137
    %4139 = vmatprep.mubr.f32.mxu0 %v4037
    %4140 = vmatmul.mubr.f32.gmra.mrb[0].mxu0 %v3974
    %v4141 = vpop.f32.mrb[0].mxu0
    %v4142 = vadd.f32 0.0, %v4141
    %v4143 = vpop.f32.mrb[0].mxu0
    %v4144 = vadd.f32 0.0, %v4143
    %4145 = vmatprep.mubr.f32.mxu0 %v4040
    %4146 = vmatmul.mubr.f32.gmra.mrb[0].mxu0 %v3976
    %v4147 = vpop.f32.mrb[0].mxu0
    %v4148 = vadd.f32 0.0, %v4147
    %v4149 = vpop.f32.mrb[0].mxu0
    %v4150 = vadd.f32 0.0, %v4149
    %4151 = vmatprep.mubr.f32.mxu0 %v4043
    %4152 = vmatmul.mubr.f32.gmra.mrb[0].mxu0 %v3978
    %v4153 = vpop.f32.mrb[0].mxu0
    %v4154 = vadd.f32 0.0, %v4153
    %v4155 = vpop.f32.mrb[0].mxu0
    %v4156 = vadd.f32 0.0, %v4155
    %4157 = vmatprep.mubr.f32.mxu0 %v4046
    %4158 = vmatmul.mubr.f32.gmra.mrb[0].mxu0 %v3980
    %v4159 = vpop.f32.mrb[0].mxu0
    %v4160 = vadd.f32 0.0, %v4159
    %v4161 = vpop.f32.mrb[0].mxu0
    %v4162 = vadd.f32 0.0, %v4161
    %4163 = vmatprep.mubr.f32.mxu0 %v4049
    %4164 = vmatmul.mubr.f32.gmra.mrb[0].mxu0 %v3982
    %v4165 = vpop.f32.mrb[0].mxu0
    %v4166 = vadd.f32 0.0, %v4165
    %v4167 = vpop.f32.mrb[0].mxu0
    %v4168 = vadd.f32 0.0, %v4167
    %4169 = vdwg.mxu0
    %v4170 = vld [vmem:[#allocation12] sm:$0xff]
    %v4171 = vld [vmem:[#allocation12 + $0x8] sm:$0xff]
    %v4172 = vld [vmem:[#allocation12 + $0x10] sm:$0xff]
    %v4173 = vld [vmem:[#allocation12 + $0x18] sm:$0xff]
    %v4174 = vld [vmem:[#allocation12 + $0x20] sm:$0xff]
    %v4175 = vld [vmem:[#allocation12 + $0x28] sm:$0xff]
    %v4176 = vld [vmem:[#allocation12 + $0x30] sm:$0xff]
    %v4177 = vld [vmem:[#allocation12 + $0x38] sm:$0xff]
    %v4178 = vld [vmem:[#allocation12 + $0x40] sm:$0xff]
    %v4179 = vld [vmem:[#allocation12 + $0x48] sm:$0xff]
    %v4180 = vld [vmem:[#allocation12 + $0x50] sm:$0xff]
    %v4181 = vld [vmem:[#allocation12 + $0x58] sm:$0xff]
    %v4182 = vld [vmem:[#allocation12 + $0x60] sm:$0xff]
    %v4183 = vld [vmem:[#allocation12 + $0x68] sm:$0xff]
    %v4184 = vld [vmem:[#allocation12 + $0x70] sm:$0xff]
    %v4185 = vld [vmem:[#allocation12 + $0x78] sm:$0xff]
    %v4186 = vld [vmem:[#allocation12 + $0x80] sm:$0xff]
    %v4187 = vld [vmem:[#allocation12 + $0x88] sm:$0xff]
    %s4188 = scalar_lea.vmem [#allocation6], 320
    %v4189 = vld [vmem:[%s4188] sm:$0xff]
    %v4190 = vld [vmem:[%s4188 + $0x8] sm:$0xff]
    %v4191 = vld [vmem:[%s4188 + $0x10] sm:$0xff]
    %v4192 = vld [vmem:[%s4188 + $0x18] sm:$0xff]
    %v4193 = vld [vmem:[%s4188 + $0x20] sm:$0xff]
    %v4194 = vld [vmem:[%s4188 + $0x28] sm:$0xff]
    %v4195 = vld [vmem:[%s4188 + $0x30] sm:$0xff]
    %v4196 = vld [vmem:[%s4188 + $0x38] sm:$0xff]
    %v4197 = vld [vmem:[%s4188 + $0x40] sm:$0xff]
    %v4198 = vld [vmem:[%s4188 + $0x48] sm:$0xff]
    %v4199 = vld [vmem:[%s4188 + $0x50] sm:$0xff]
    %v4200 = vld [vmem:[%s4188 + $0x58] sm:$0xff]
    %v4201 = vld [vmem:[%s4188 + $0x60] sm:$0xff]
    %v4202 = vld [vmem:[%s4188 + $0x68] sm:$0xff]
    %v4203 = vld [vmem:[%s4188 + $0x70] sm:$0xff]
    %v4204 = vld [vmem:[%s4188 + $0x78] sm:$0xff]
    %v4205 = vld [vmem:[%s4188 + $0x80] sm:$0xff]
    %v4206 = vld [vmem:[%s4188 + $0x88] sm:$0xff]
    %v4207 = vld [vmem:[%s4188 + $0x90] sm:$0xff]
    %v4208 = vld [vmem:[%s4188 + $0x98] sm:$0xff]
    %v4209 = vld [vmem:[%s4188 + $0xa0] sm:$0xff]
    %v4210 = vld [vmem:[%s4188 + $0xa8] sm:$0xff]
    %v4211 = vld [vmem:[%s4188 + $0xb0] sm:$0xff]
    %v4212 = vld [vmem:[%s4188 + $0xb8] sm:$0xff]
    %v4213 = vld [vmem:[%s4188 + $0xc0] sm:$0xff]
    %v4214 = vld [vmem:[%s4188 + $0xc8] sm:$0xff]
    %v4215 = vld [vmem:[%s4188 + $0xd0] sm:$0xff]
    %v4216 = vld [vmem:[%s4188 + $0xd8] sm:$0xff]
    %v4217 = vld [vmem:[%s4188 + $0xe0] sm:$0xff]
    %v4218 = vld [vmem:[%s4188 + $0xe8] sm:$0xff]
    %v4219 = vld [vmem:[%s4188 + $0xf0] sm:$0xff]
    %v4220 = vld [vmem:[%s4188 + $0xf8] sm:$0xff]
    %v4221 = vld [vmem:[%s4188 + $0x100] sm:$0xff]
    %v4222 = vld [vmem:[%s4188 + $0x108] sm:$0xff]
    %v4223 = vld [vmem:[%s4188 + $0x110] sm:$0xff]
    %v4224 = vld [vmem:[%s4188 + $0x118] sm:$0xff]
    %v4225 = vld [vmem:[%s4188 + $0x120] sm:$0xff]
    %v4226 = vld [vmem:[%s4188 + $0x128] sm:$0xff]
    %v4227 = vld [vmem:[%s4188 + $0x130] sm:$0xff]
    %v4228 = vld [vmem:[%s4188 + $0x138] sm:$0xff]
    %4229 = vmatprep.subr.mxu0 %v4190
    %4230 = vmatpush1.msra.mxu0 %v4189
    %4231 = vmatprep.subr.mxu0 %v4192
    %4232 = vmatpush1.msra.mxu0 %v4191
    %4233 = vmatprep.subr.mxu0 %v4194
    %4234 = vmatpush1.msra.mxu0 %v4193
    %4235 = vmatprep.subr.mxu0 %v4196
    %4236 = vmatpush1.msra.mxu0 %v4195
    %4237 = vmatprep.subr.mxu0 %v4198
    %4238 = vmatpush1.msra.mxu0 %v4197
    %4239 = vmatprep.subr.mxu0 %v4200
    %4240 = vmatpush1.msra.mxu0 %v4199
    %4241 = vmatprep.subr.mxu0 %v4202
    %4242 = vmatpush1.msra.mxu0 %v4201
    %4243 = vmatprep.subr.mxu0 %v4204
    %4244 = vmatpush1.msra.mxu0 %v4203
    %4245 = vmatprep.subr.mxu0 %v4206
    %4246 = vmatpush1.msra.mxu0 %v4205
    %4247 = vmatprep.subr.mxu0 %v4208
    %4248 = vmatpush1.msra.mxu0 %v4207
    %4249 = vmatprep.subr.mxu0 %v4210
    %4250 = vmatpush1.msra.mxu0 %v4209
    %4251 = vmatprep.subr.mxu0 %v4212
    %4252 = vmatpush1.msra.mxu0 %v4211
    %4253 = vmatprep.subr.mxu0 %v4214
    %4254 = vmatpush1.msra.mxu0 %v4213
    %4255 = vmatprep.subr.mxu0 %v4216
    %4256 = vmatpush1.msra.mxu0 %v4215
    %4257 = vmatprep.subr.mxu0 %v4218
    %4258 = vmatpush1.msra.mxu0 %v4217
    %4259 = vmatprep.subr.mxu0 %v4220
    %4260 = vmatpush1.msra.mxu0 %v4219
    %4261 = vmatprep.subr.mxu0 %v4222
    %4262 = vmatpush1.msra.mxu0 %v4221
    %4263 = vmatprep.subr.mxu0 %v4224
    %4264 = vmatpush1.msra.mxu0 %v4223
    %4265 = vmatprep.subr.mxu0 %v4226
    %4266 = vmatpush1.msra.mxu0 %v4225
    %4267 = vmatprep.subr.mxu0 %v4228
    %4268 = vmatpush1.msra.mxu0 %v4227
    %4269 = vmatprep.subr.mxu0 0.0
    %4270 = vmatpush1.msra.mxu0 0.0
    %4271 = vmatprep.subr.mxu0 0.0
    %4272 = vmatpush1.msra.mxu0 0.0
    %4273 = vmatprep.subr.mxu0 0.0
    %4274 = vmatpush1.msra.mxu0 0.0
    %4275 = vmatprep.subr.mxu0 0.0
    %4276 = vmatpush1.msra.mxu0 0.0
    %4277 = vmatprep.subr.mxu0 0.0
    %4278 = vmatpush1.msra.mxu0 0.0
    %4279 = vmatprep.subr.mxu0 0.0
    %4280 = vmatpush1.msra.mxu0 0.0
    %4281 = vmatprep.subr.mxu0 0.0
    %4282 = vmatpush1.msra.mxu0 0.0
    %4283 = vmatprep.subr.mxu0 0.0
    %4284 = vmatpush1.msra.mxu0 0.0
    %4285 = vmatprep.subr.mxu0 0.0
    %4286 = vmatpush1.msra.mxu0 0.0
    %4287 = vmatprep.subr.mxu0 0.0
    %4288 = vmatpush1.msra.mxu0 0.0
    %4289 = vmatprep.subr.mxu0 0.0
    %4290 = vmatpush1.msra.mxu0 0.0
    %4291 = vmatprep.subr.mxu0 0.0
    %4292 = vmatpush1.msra.mxu0 0.0
    %4293 = vmatprep.mubr.f32.mxu0 %v4025
    %4294 = vmatmul.mubr.f32.gmra.mrb[0].mxu0 %v3966
    %v4295 = vpop.f32.mrb[0].mxu0
    %v4296 = vadd.f32 0.0, %v4295
    %v4297 = vpop.f32.mrb[0].mxu0
    %v4298 = vadd.f32 0.0, %v4297
    %4299 = vmatprep.mubr.f32.mxu0 %v4028
    %4300 = vmatmul.mubr.f32.gmra.mrb[0].mxu0 %v3968
    %v4301 = vpop.f32.mrb[0].mxu0
    %v4302 = vadd.f32 0.0, %v4301
    %v4303 = vpop.f32.mrb[0].mxu0
    %v4304 = vadd.f32 0.0, %v4303
    %4305 = vmatprep.mubr.f32.mxu0 %v4031
    %4306 = vmatmul.mubr.f32.gmra.mrb[0].mxu0 %v3970
    %v4307 = vpop.f32.mrb[0].mxu0
    %v4308 = vadd.f32 0.0, %v4307
    %v4309 = vpop.f32.mrb[0].mxu0
    %v4310 = vadd.f32 0.0, %v4309
    %4311 = vmatprep.mubr.f32.mxu0 %v4034
    %4312 = vmatmul.mubr.f32.gmra.mrb[0].mxu0 %v3972
    %v4313 = vpop.f32.mrb[0].mxu0
    %v4314 = vadd.f32 0.0, %v4313
    %v4315 = vpop.f32.mrb[0].mxu0
    %v4316 = vadd.f32 0.0, %v4315
    %4317 = vmatprep.mubr.f32.mxu0 %v4037
    %4318 = vmatmul.mubr.f32.gmra.mrb[0].mxu0 %v3974
    %v4319 = vpop.f32.mrb[0].mxu0
    %v4320 = vadd.f32 0.0, %v4319
    %v4321 = vpop.f32.mrb[0].mxu0
    %v4322 = vadd.f32 0.0, %v4321
    %4323 = vmatprep.mubr.f32.mxu0 %v4040
    %4324 = vmatmul.mubr.f32.gmra.mrb[0].mxu0 %v3976
    %v4325 = vpop.f32.mrb[0].mxu0
    %v4326 = vadd.f32 0.0, %v4325
    %v4327 = vpop.f32.mrb[0].mxu0
    %v4328 = vadd.f32 0.0, %v4327
    %4329 = vmatprep.mubr.f32.mxu0 %v4043
    %4330 = vmatmul.mubr.f32.gmra.mrb[0].mxu0 %v3978
    %v4331 = vpop.f32.mrb[0].mxu0
    %v4332 = vadd.f32 0.0, %v4331
    %v4333 = vpop.f32.mrb[0].mxu0
    %v4334 = vadd.f32 0.0, %v4333
    %4335 = vmatprep.mubr.f32.mxu0 %v4046
    %4336 = vmatmul.mubr.f32.gmra.mrb[0].mxu0 %v3980
    %v4337 = vpop.f32.mrb[0].mxu0
    %v4338 = vadd.f32 0.0, %v4337
    %v4339 = vpop.f32.mrb[0].mxu0
    %v4340 = vadd.f32 0.0, %v4339
    %4341 = vmatprep.mubr.f32.mxu0 %v4049
    %4342 = vmatmul.mubr.f32.gmra.mrb[0].mxu0 %v3982
    %v4343 = vpop.f32.mrb[0].mxu0
    %v4344 = vadd.f32 0.0, %v4343
    %v4345 = vpop.f32.mrb[0].mxu0
    %v4346 = vadd.f32 0.0, %v4345
    %4347 = vdwg.mxu0
    %s4348 = scalar_lea.vmem [#allocation12], 144
    %v4349 = vld [vmem:[%s4348] sm:$0xff]
    %v4350 = vld [vmem:[%s4348 + $0x8] sm:$0xff]
    %v4351 = vld [vmem:[%s4348 + $0x10] sm:$0xff]
    %v4352 = vld [vmem:[%s4348 + $0x18] sm:$0xff]
    %v4353 = vld [vmem:[%s4348 + $0x20] sm:$0xff]
    %v4354 = vld [vmem:[%s4348 + $0x28] sm:$0xff]
    %v4355 = vld [vmem:[%s4348 + $0x30] sm:$0xff]
    %v4356 = vld [vmem:[%s4348 + $0x38] sm:$0xff]
    %v4357 = vld [vmem:[%s4348 + $0x40] sm:$0xff]
    %v4358 = vld [vmem:[%s4348 + $0x48] sm:$0xff]
    %v4359 = vld [vmem:[%s4348 + $0x50] sm:$0xff]
    %v4360 = vld [vmem:[%s4348 + $0x58] sm:$0xff]
    %v4361 = vld [vmem:[%s4348 + $0x60] sm:$0xff]
    %v4362 = vld [vmem:[%s4348 + $0x68] sm:$0xff]
    %v4363 = vld [vmem:[%s4348 + $0x70] sm:$0xff]
    %v4364 = vld [vmem:[%s4348 + $0x78] sm:$0xff]
    %v4365 = vld [vmem:[%s4348 + $0x80] sm:$0xff]
    %v4366 = vld [vmem:[%s4348 + $0x88] sm:$0xff]
    %vm4367 = vcmask 588800
    %v4369 = vsel %vm4367, %v4349, 0
    %v4372 = vsel %vm4367, %v4350, 0
    %v4375 = vsel %vm4367, %v4351, 0
    %v4378 = vsel %vm4367, %v4352, 0
    %v4381 = vsel %vm4367, %v4353, 0
    %v4384 = vsel %vm4367, %v4354, 0
    %v4387 = vsel %vm4367, %v4355, 0
    %v4390 = vsel %vm4367, %v4356, 0
    %v4393 = vsel %vm4367, %v4357, 0
    %v4396 = vsel %vm4367, %v4358, 0
    %v4399 = vsel %vm4367, %v4359, 0
    %v4402 = vsel %vm4367, %v4360, 0
    %v4405 = vsel %vm4367, %v4361, 0
    %v4408 = vsel %vm4367, %v4362, 0
    %v4411 = vsel %vm4367, %v4363, 0
    %v4414 = vsel %vm4367, %v4364, 0
    %v4417 = vsel %vm4367, %v4365, 0
    %v4420 = vsel %vm4367, %v4366, 0
    %4422 = vmatprep.subr.mxu0 %v4298
    %4423 = vmatpush1.msra.mxu0 %v4296
    %4424 = vmatprep.subr.mxu0 %v4304
    %4425 = vmatpush1.msra.mxu0 %v4302
    %4426 = vmatprep.subr.mxu0 %v4310
    %4427 = vmatpush1.msra.mxu0 %v4308
    %4428 = vmatprep.subr.mxu0 %v4316
    %4429 = vmatpush1.msra.mxu0 %v4314
    %4430 = vmatprep.subr.mxu0 %v4322
    %4431 = vmatpush1.msra.mxu0 %v4320
    %4432 = vmatprep.subr.mxu0 %v4328
    %4433 = vmatpush1.msra.mxu0 %v4326
    %4434 = vmatprep.subr.mxu0 %v4334
    %4435 = vmatpush1.msra.mxu0 %v4332
    %4436 = vmatprep.subr.mxu0 %v4340
    %4437 = vmatpush1.msra.mxu0 %v4338
    %4438 = vmatprep.subr.mxu0 %v4346
    %4439 = vmatpush1.msra.mxu0 %v4344
    %4440 = vmatprep.subr.mxu0 0.0
    %4441 = vmatpush1.msra.mxu0 0.0
    %4442 = vmatprep.subr.mxu0 0.0
    %4443 = vmatpush1.msra.mxu0 0.0
    %4444 = vmatprep.subr.mxu0 0.0
    %4445 = vmatpush1.msra.mxu0 0.0
    %4446 = vmatprep.subr.mxu0 0.0
    %4447 = vmatpush1.msra.mxu0 0.0
    %4448 = vmatprep.subr.mxu0 0.0
    %4449 = vmatpush1.msra.mxu0 0.0
    %4450 = vmatprep.subr.mxu0 0.0
    %4451 = vmatpush1.msra.mxu0 0.0
    %4452 = vmatprep.subr.mxu0 0.0
    %4453 = vmatpush1.msra.mxu0 0.0
    %4454 = vmatprep.subr.mxu0 0.0
    %4455 = vmatpush1.msra.mxu0 0.0
    %4456 = vmatprep.subr.mxu0 0.0
    %4457 = vmatpush1.msra.mxu0 0.0
    %4458 = vmatprep.subr.mxu0 0.0
    %4459 = vmatpush1.msra.mxu0 0.0
    %4460 = vmatprep.subr.mxu0 0.0
    %4461 = vmatpush1.msra.mxu0 0.0
    %4462 = vmatprep.subr.mxu0 0.0
    %4463 = vmatpush1.msra.mxu0 0.0
    %4464 = vmatprep.subr.mxu0 0.0
    %4465 = vmatpush1.msra.mxu0 0.0
    %4466 = vmatprep.subr.mxu0 0.0
    %4467 = vmatpush1.msra.mxu0 0.0
    %4468 = vmatprep.subr.mxu0 0.0
    %4469 = vmatpush1.msra.mxu0 0.0
    %4470 = vmatprep.subr.mxu0 0.0
    %4471 = vmatpush1.msra.mxu0 0.0
    %4472 = vmatprep.subr.mxu0 0.0
    %4473 = vmatpush1.msra.mxu0 0.0
    %4474 = vmatprep.subr.mxu0 0.0
    %4475 = vmatpush1.msra.mxu0 0.0
    %4476 = vmatprep.subr.mxu0 0.0
    %4477 = vmatpush1.msra.mxu0 0.0
    %4478 = vmatprep.subr.mxu0 0.0
    %4479 = vmatpush1.msra.mxu0 0.0
    %4480 = vmatprep.subr.mxu0 0.0
    %4481 = vmatpush1.msra.mxu0 0.0
    %4482 = vmatprep.subr.mxu0 0.0
    %4483 = vmatpush1.msra.mxu0 0.0
    %4484 = vmatprep.subr.mxu0 0.0
    %4485 = vmatpush1.msra.mxu0 0.0
    %4486 = vmatprep.mubr.f32.mxu0 0.0
    %4487 = vmatmul.mubr.f32.gmra.mrb[0].mxu0 %v4369
    %v4488 = vpop.f32.mrb[0].mxu0
    %v4489 = vadd.f32 0.0, %v4488
    %v4490 = vpop.f32.mrb[0].mxu0
    %v4491 = vadd.f32 0.0, %v4490
    %4492 = vmatprep.mubr.f32.mxu0 0.0
    %4493 = vmatmul.mubr.f32.gmra.mrb[0].mxu0 %v4372
    %v4494 = vpop.f32.mrb[0].mxu0
    %v4495 = vadd.f32 0.0, %v4494
    %v4496 = vpop.f32.mrb[0].mxu0
    %v4497 = vadd.f32 0.0, %v4496
    %4498 = vmatprep.mubr.f32.mxu0 0.0
    %4499 = vmatmul.mubr.f32.gmra.mrb[0].mxu0 %v4375
    %v4500 = vpop.f32.mrb[0].mxu0
    %v4501 = vadd.f32 0.0, %v4500
    %v4502 = vpop.f32.mrb[0].mxu0
    %v4503 = vadd.f32 0.0, %v4502
    %4504 = vmatprep.mubr.f32.mxu0 0.0
    %4505 = vmatmul.mubr.f32.gmra.mrb[0].mxu0 %v4378
    %v4506 = vpop.f32.mrb[0].mxu0
    %v4507 = vadd.f32 0.0, %v4506
    %v4508 = vpop.f32.mrb[0].mxu0
    %v4509 = vadd.f32 0.0, %v4508
    %4510 = vmatprep.mubr.f32.mxu0 0.0
    %4511 = vmatmul.mubr.f32.gmra.mrb[0].mxu0 %v4381
    %v4512 = vpop.f32.mrb[0].mxu0
    %v4513 = vadd.f32 0.0, %v4512
    %v4514 = vpop.f32.mrb[0].mxu0
    %v4515 = vadd.f32 0.0, %v4514
    %4516 = vmatprep.mubr.f32.mxu0 0.0
    %4517 = vmatmul.mubr.f32.gmra.mrb[0].mxu0 %v4384
    %v4518 = vpop.f32.mrb[0].mxu0
    %v4519 = vadd.f32 0.0, %v4518
    %v4520 = vpop.f32.mrb[0].mxu0
    %v4521 = vadd.f32 0.0, %v4520
    %4522 = vmatprep.mubr.f32.mxu0 0.0
    %4523 = vmatmul.mubr.f32.gmra.mrb[0].mxu0 %v4387
    %v4524 = vpop.f32.mrb[0].mxu0
    %v4525 = vadd.f32 0.0, %v4524
    %v4526 = vpop.f32.mrb[0].mxu0
    %v4527 = vadd.f32 0.0, %v4526
    %4528 = vmatprep.mubr.f32.mxu0 0.0
    %4529 = vmatmul.mubr.f32.gmra.mrb[0].mxu0 %v4390
    %v4530 = vpop.f32.mrb[0].mxu0
    %v4531 = vadd.f32 0.0, %v4530
    %v4532 = vpop.f32.mrb[0].mxu0
    %v4533 = vadd.f32 0.0, %v4532
    %4534 = vmatprep.mubr.f32.mxu0 0.0
    %4535 = vmatmul.mubr.f32.gmra.mrb[0].mxu0 %v4393
    %v4536 = vpop.f32.mrb[0].mxu0
    %v4537 = vadd.f32 0.0, %v4536
    %v4538 = vpop.f32.mrb[0].mxu0
    %v4539 = vadd.f32 0.0, %v4538
    %4540 = vmatprep.mubr.f32.mxu0 0.0
    %4541 = vmatmul.mubr.f32.gmra.mrb[0].mxu0 %v4396
    %v4542 = vpop.f32.mrb[0].mxu0
    %v4543 = vadd.f32 0.0, %v4542
    %v4544 = vpop.f32.mrb[0].mxu0
    %v4545 = vadd.f32 0.0, %v4544
    %4546 = vmatprep.mubr.f32.mxu0 0.0
    %4547 = vmatmul.mubr.f32.gmra.mrb[0].mxu0 %v4399
    %v4548 = vpop.f32.mrb[0].mxu0
    %v4549 = vadd.f32 0.0, %v4548
    %v4550 = vpop.f32.mrb[0].mxu0
    %v4551 = vadd.f32 0.0, %v4550
    %4552 = vmatprep.mubr.f32.mxu0 0.0
    %4553 = vmatmul.mubr.f32.gmra.mrb[0].mxu0 %v4402
    %v4554 = vpop.f32.mrb[0].mxu0
    %v4555 = vadd.f32 0.0, %v4554
    %v4556 = vpop.f32.mrb[0].mxu0
    %v4557 = vadd.f32 0.0, %v4556
    %4558 = vmatprep.mubr.f32.mxu0 0.0
    %4559 = vmatmul.mubr.f32.gmra.mrb[0].mxu0 %v4405
    %v4560 = vpop.f32.mrb[0].mxu0
    %v4561 = vadd.f32 0.0, %v4560
    %v4562 = vpop.f32.mrb[0].mxu0
    %v4563 = vadd.f32 0.0, %v4562
    %4564 = vmatprep.mubr.f32.mxu0 0.0
    %4565 = vmatmul.mubr.f32.gmra.mrb[0].mxu0 %v4408
    %v4566 = vpop.f32.mrb[0].mxu0
    %v4567 = vadd.f32 0.0, %v4566
    %v4568 = vpop.f32.mrb[0].mxu0
    %v4569 = vadd.f32 0.0, %v4568
    %4570 = vmatprep.mubr.f32.mxu0 0.0
    %4571 = vmatmul.mubr.f32.gmra.mrb[0].mxu0 %v4411
    %v4572 = vpop.f32.mrb[0].mxu0
    %v4573 = vadd.f32 0.0, %v4572
    %v4574 = vpop.f32.mrb[0].mxu0
    %v4575 = vadd.f32 0.0, %v4574
    %4576 = vmatprep.mubr.f32.mxu0 0.0
    %4577 = vmatmul.mubr.f32.gmra.mrb[0].mxu0 %v4414
    %v4578 = vpop.f32.mrb[0].mxu0
    %v4579 = vadd.f32 0.0, %v4578
    %v4580 = vpop.f32.mrb[0].mxu0
    %v4581 = vadd.f32 0.0, %v4580
    %4582 = vmatprep.mubr.f32.mxu0 0.0
    %4583 = vmatmul.mubr.f32.gmra.mrb[0].mxu0 %v4417
    %v4584 = vpop.f32.mrb[0].mxu0
    %v4585 = vadd.f32 0.0, %v4584
    %v4586 = vpop.f32.mrb[0].mxu0
    %v4587 = vadd.f32 0.0, %v4586
    %4588 = vmatprep.mubr.f32.mxu0 0.0
    %4589 = vmatmul.mubr.f32.gmra.mrb[0].mxu0 %v4420
    %v4590 = vpop.f32.mrb[0].mxu0
    %v4591 = vadd.f32 0.0, %v4590
    %v4592 = vpop.f32.mrb[0].mxu0
    %v4593 = vadd.f32 0.0, %v4592
    %4594 = vdwg.mxu0
    %v4596 = vsel %vm4367, %v4170, 0
    %v4599 = vsel %vm4367, %v4171, 0
    %v4602 = vsel %vm4367, %v4172, 0
    %v4605 = vsel %vm4367, %v4173, 0
    %v4608 = vsel %vm4367, %v4174, 0
    %v4611 = vsel %vm4367, %v4175, 0
    %v4614 = vsel %vm4367, %v4176, 0
    %v4617 = vsel %vm4367, %v4177, 0
    %v4620 = vsel %vm4367, %v4178, 0
    %v4623 = vsel %vm4367, %v4179, 0
    %v4626 = vsel %vm4367, %v4180, 0
    %v4629 = vsel %vm4367, %v4181, 0
    %v4632 = vsel %vm4367, %v4182, 0
    %v4635 = vsel %vm4367, %v4183, 0
    %v4638 = vsel %vm4367, %v4184, 0
    %v4641 = vsel %vm4367, %v4185, 0
    %v4644 = vsel %vm4367, %v4186, 0
    %v4647 = vsel %vm4367, %v4187, 0
    %4649 = vmatprep.subr.mxu0 %v4120
    %4650 = vmatpush1.msra.mxu0 %v4118
    %4651 = vmatprep.subr.mxu0 %v4126
    %4652 = vmatpush1.msra.mxu0 %v4124
    %4653 = vmatprep.subr.mxu0 %v4132
    %4654 = vmatpush1.msra.mxu0 %v4130
    %4655 = vmatprep.subr.mxu0 %v4138
    %4656 = vmatpush1.msra.mxu0 %v4136
    %4657 = vmatprep.subr.mxu0 %v4144
    %4658 = vmatpush1.msra.mxu0 %v4142
    %4659 = vmatprep.subr.mxu0 %v4150
    %4660 = vmatpush1.msra.mxu0 %v4148
    %4661 = vmatprep.subr.mxu0 %v4156
    %4662 = vmatpush1.msra.mxu0 %v4154
    %4663 = vmatprep.subr.mxu0 %v4162
    %4664 = vmatpush1.msra.mxu0 %v4160
    %4665 = vmatprep.subr.mxu0 %v4168
    %4666 = vmatpush1.msra.mxu0 %v4166
    %4667 = vmatprep.subr.mxu0 0.0
    %4668 = vmatpush1.msra.mxu0 0.0
    %4669 = vmatprep.subr.mxu0 0.0
    %4670 = vmatpush1.msra.mxu0 0.0
    %4671 = vmatprep.subr.mxu0 0.0
    %4672 = vmatpush1.msra.mxu0 0.0
    %4673 = vmatprep.subr.mxu0 0.0
    %4674 = vmatpush1.msra.mxu0 0.0
    %4675 = vmatprep.subr.mxu0 0.0
    %4676 = vmatpush1.msra.mxu0 0.0
    %4677 = vmatprep.subr.mxu0 0.0
    %4678 = vmatpush1.msra.mxu0 0.0
    %4679 = vmatprep.subr.mxu0 0.0
    %4680 = vmatpush1.msra.mxu0 0.0
    %4681 = vmatprep.subr.mxu0 0.0
    %4682 = vmatpush1.msra.mxu0 0.0
    %4683 = vmatprep.subr.mxu0 0.0
    %4684 = vmatpush1.msra.mxu0 0.0
    %4685 = vmatprep.subr.mxu0 0.0
    %4686 = vmatpush1.msra.mxu0 0.0
    %4687 = vmatprep.subr.mxu0 0.0
    %4688 = vmatpush1.msra.mxu0 0.0
    %4689 = vmatprep.subr.mxu0 0.0
    %4690 = vmatpush1.msra.mxu0 0.0
    %4691 = vmatprep.subr.mxu0 0.0
    %4692 = vmatpush1.msra.mxu0 0.0
    %4693 = vmatprep.subr.mxu0 0.0
    %4694 = vmatpush1.msra.mxu0 0.0
    %4695 = vmatprep.subr.mxu0 0.0
    %4696 = vmatpush1.msra.mxu0 0.0
    %4697 = vmatprep.subr.mxu0 0.0
    %4698 = vmatpush1.msra.mxu0 0.0
    %4699 = vmatprep.subr.mxu0 0.0
    %4700 = vmatpush1.msra.mxu0 0.0
    %4701 = vmatprep.subr.mxu0 0.0
    %4702 = vmatpush1.msra.mxu0 0.0
    %4703 = vmatprep.subr.mxu0 0.0
    %4704 = vmatpush1.msra.mxu0 0.0
    %4705 = vmatprep.subr.mxu0 0.0
    %4706 = vmatpush1.msra.mxu0 0.0
    %4707 = vmatprep.subr.mxu0 0.0
    %4708 = vmatpush1.msra.mxu0 0.0
    %4709 = vmatprep.subr.mxu0 0.0
    %4710 = vmatpush1.msra.mxu0 0.0
    %4711 = vmatprep.subr.mxu0 0.0
    %4712 = vmatpush1.msra.mxu0 0.0
    %4713 = vmatprep.mubr.f32.mxu0 0.0
    %4714 = vmatmul.mubr.f32.gmra.mrb[0].mxu0 %v4596
    %v4715 = vpop.f32.mrb[0].mxu0
    %v4716 = vadd.f32 %v4489, %v4715
    %v4717 = vpop.f32.mrb[0].mxu0
    %v4718 = vadd.f32 %v4491, %v4717
    %4719 = vmatprep.mubr.f32.mxu0 0.0
    %4720 = vmatmul.mubr.f32.gmra.mrb[0].mxu0 %v4599
    %v4721 = vpop.f32.mrb[0].mxu0
    %v4722 = vadd.f32 %v4495, %v4721
    %v4723 = vpop.f32.mrb[0].mxu0
    %v4724 = vadd.f32 %v4497, %v4723
    %4725 = vmatprep.mubr.f32.mxu0 0.0
    %4726 = vmatmul.mubr.f32.gmra.mrb[0].mxu0 %v4602
    %v4727 = vpop.f32.mrb[0].mxu0
    %v4728 = vadd.f32 %v4501, %v4727
    %v4729 = vpop.f32.mrb[0].mxu0
    %v4730 = vadd.f32 %v4503, %v4729
    %4731 = vmatprep.mubr.f32.mxu0 0.0
    %4732 = vmatmul.mubr.f32.gmra.mrb[0].mxu0 %v4605
    %v4733 = vpop.f32.mrb[0].mxu0
    %v4734 = vadd.f32 %v4507, %v4733
    %v4735 = vpop.f32.mrb[0].mxu0
    %v4736 = vadd.f32 %v4509, %v4735
    %4737 = vmatprep.mubr.f32.mxu0 0.0
    %4738 = vmatmul.mubr.f32.gmra.mrb[0].mxu0 %v4608
    %v4739 = vpop.f32.mrb[0].mxu0
    %v4740 = vadd.f32 %v4513, %v4739
    %v4741 = vpop.f32.mrb[0].mxu0
    %v4742 = vadd.f32 %v4515, %v4741
    %4743 = vmatprep.mubr.f32.mxu0 0.0
    %4744 = vmatmul.mubr.f32.gmra.mrb[0].mxu0 %v4611
    %v4745 = vpop.f32.mrb[0].mxu0
    %v4746 = vadd.f32 %v4519, %v4745
    %v4747 = vpop.f32.mrb[0].mxu0
    %v4748 = vadd.f32 %v4521, %v4747
    %4749 = vmatprep.mubr.f32.mxu0 0.0
    %4750 = vmatmul.mubr.f32.gmra.mrb[0].mxu0 %v4614
    %v4751 = vpop.f32.mrb[0].mxu0
    %v4752 = vadd.f32 %v4525, %v4751
    %v4753 = vpop.f32.mrb[0].mxu0
    %v4754 = vadd.f32 %v4527, %v4753
    %4755 = vmatprep.mubr.f32.mxu0 0.0
    %4756 = vmatmul.mubr.f32.gmra.mrb[0].mxu0 %v4617
    %v4757 = vpop.f32.mrb[0].mxu0
    %v4758 = vadd.f32 %v4531, %v4757
    %v4759 = vpop.f32.mrb[0].mxu0
    %v4760 = vadd.f32 %v4533, %v4759
    %4761 = vmatprep.mubr.f32.mxu0 0.0
    %4762 = vmatmul.mubr.f32.gmra.mrb[0].mxu0 %v4620
    %v4763 = vpop.f32.mrb[0].mxu0
    %v4764 = vadd.f32 %v4537, %v4763
    %v4765 = vpop.f32.mrb[0].mxu0
    %v4766 = vadd.f32 %v4539, %v4765
    %4767 = vmatprep.mubr.f32.mxu0 0.0
    %4768 = vmatmul.mubr.f32.gmra.mrb[0].mxu0 %v4623
    %v4769 = vpop.f32.mrb[0].mxu0
    %v4770 = vadd.f32 %v4543, %v4769
    %v4771 = vpop.f32.mrb[0].mxu0
    %v4772 = vadd.f32 %v4545, %v4771
    %4773 = vmatprep.mubr.f32.mxu0 0.0
    %4774 = vmatmul.mubr.f32.gmra.mrb[0].mxu0 %v4626
    %v4775 = vpop.f32.mrb[0].mxu0
    %v4776 = vadd.f32 %v4549, %v4775
    %v4777 = vpop.f32.mrb[0].mxu0
    %v4778 = vadd.f32 %v4551, %v4777
    %4779 = vmatprep.mubr.f32.mxu0 0.0
    %4780 = vmatmul.mubr.f32.gmra.mrb[0].mxu0 %v4629
    %v4781 = vpop.f32.mrb[0].mxu0
    %v4782 = vadd.f32 %v4555, %v4781
    %v4783 = vpop.f32.mrb[0].mxu0
    %v4784 = vadd.f32 %v4557, %v4783
    %4785 = vmatprep.mubr.f32.mxu0 0.0
    %4786 = vmatmul.mubr.f32.gmra.mrb[0].mxu0 %v4632
    %v4787 = vpop.f32.mrb[0].mxu0
    %v4788 = vadd.f32 %v4561, %v4787
    %v4789 = vpop.f32.mrb[0].mxu0
    %v4790 = vadd.f32 %v4563, %v4789
    %4791 = vmatprep.mubr.f32.mxu0 0.0
    %4792 = vmatmul.mubr.f32.gmra.mrb[0].mxu0 %v4635
    %v4793 = vpop.f32.mrb[0].mxu0
    %v4794 = vadd.f32 %v4567, %v4793
    %v4795 = vpop.f32.mrb[0].mxu0
    %v4796 = vadd.f32 %v4569, %v4795
    %4797 = vmatprep.mubr.f32.mxu0 0.0
    %4798 = vmatmul.mubr.f32.gmra.mrb[0].mxu0 %v4638
    %v4799 = vpop.f32.mrb[0].mxu0
    %v4800 = vadd.f32 %v4573, %v4799
    %v4801 = vpop.f32.mrb[0].mxu0
    %v4802 = vadd.f32 %v4575, %v4801
    %4803 = vmatprep.mubr.f32.mxu0 0.0
    %4804 = vmatmul.mubr.f32.gmra.mrb[0].mxu0 %v4641
    %v4805 = vpop.f32.mrb[0].mxu0
    %v4806 = vadd.f32 %v4579, %v4805
    %v4807 = vpop.f32.mrb[0].mxu0
    %v4808 = vadd.f32 %v4581, %v4807
    %4809 = vmatprep.mubr.f32.mxu0 0.0
    %4810 = vmatmul.mubr.f32.gmra.mrb[0].mxu0 %v4644
    %v4811 = vpop.f32.mrb[0].mxu0
    %v4812 = vadd.f32 %v4585, %v4811
    %v4813 = vpop.f32.mrb[0].mxu0
    %v4814 = vadd.f32 %v4587, %v4813
    %4815 = vmatprep.mubr.f32.mxu0 0.0
    %4816 = vmatmul.mubr.f32.gmra.mrb[0].mxu0 %v4647
    %v4817 = vpop.f32.mrb[0].mxu0
    %v4818 = vadd.f32 %v4591, %v4817
    %v4819 = vpop.f32.mrb[0].mxu0
    %v4820 = vadd.f32 %v4593, %v4819
    %4821 = vdwg.mxu0
    %s4822 = scalar_lea.vmem [#allocation6], 640
    %v4823 = vld [vmem:[%s4822] sm:$0xff]
    %v4824 = vld [vmem:[%s4822 + $0x8] sm:$0xff]
    %v4825 = vld [vmem:[%s4822 + $0x10] sm:$0xff]
    %v4826 = vld [vmem:[%s4822 + $0x18] sm:$0xff]
    %v4827 = vld [vmem:[%s4822 + $0x20] sm:$0xff]
    %v4828 = vld [vmem:[%s4822 + $0x28] sm:$0xff]
    %v4829 = vld [vmem:[%s4822 + $0x30] sm:$0xff]
    %v4830 = vld [vmem:[%s4822 + $0x38] sm:$0xff]
    %v4831 = vld [vmem:[%s4822 + $0x40] sm:$0xff]
    %v4832 = vld [vmem:[%s4822 + $0x48] sm:$0xff]
    %v4833 = vld [vmem:[%s4822 + $0x50] sm:$0xff]
    %v4834 = vld [vmem:[%s4822 + $0x58] sm:$0xff]
    %v4835 = vld [vmem:[%s4822 + $0x60] sm:$0xff]
    %v4836 = vld [vmem:[%s4822 + $0x68] sm:$0xff]
    %v4837 = vld [vmem:[%s4822 + $0x70] sm:$0xff]
    %v4838 = vld [vmem:[%s4822 + $0x78] sm:$0xff]
    %v4839 = vld [vmem:[%s4822 + $0x80] sm:$0xff]
    %v4840 = vld [vmem:[%s4822 + $0x88] sm:$0xff]
    %v4841 = vld [vmem:[%s4822 + $0x90] sm:$0xff]
    %v4842 = vld [vmem:[%s4822 + $0x98] sm:$0xff]
    %v4843 = vld [vmem:[%s4822 + $0xa0] sm:$0xff]
    %v4844 = vld [vmem:[%s4822 + $0xa8] sm:$0xff]
    %v4845 = vld [vmem:[%s4822 + $0xb0] sm:$0xff]
    %v4846 = vld [vmem:[%s4822 + $0xb8] sm:$0xff]
    %v4847 = vld [vmem:[%s4822 + $0xc0] sm:$0xff]
    %v4848 = vld [vmem:[%s4822 + $0xc8] sm:$0xff]
    %v4849 = vld [vmem:[%s4822 + $0xd0] sm:$0xff]
    %v4850 = vld [vmem:[%s4822 + $0xd8] sm:$0xff]
    %v4851 = vld [vmem:[%s4822 + $0xe0] sm:$0xff]
    %v4852 = vld [vmem:[%s4822 + $0xe8] sm:$0xff]
    %v4853 = vld [vmem:[%s4822 + $0xf0] sm:$0xff]
    %v4854 = vld [vmem:[%s4822 + $0xf8] sm:$0xff]
    %v4855 = vld [vmem:[%s4822 + $0x100] sm:$0xff]
    %v4856 = vld [vmem:[%s4822 + $0x108] sm:$0xff]
    %v4857 = vld [vmem:[%s4822 + $0x110] sm:$0xff]
    %v4858 = vld [vmem:[%s4822 + $0x118] sm:$0xff]
    %v4859 = vld [vmem:[%s4822 + $0x120] sm:$0xff]
    %v4860 = vld [vmem:[%s4822 + $0x128] sm:$0xff]
    %v4861 = vld [vmem:[%s4822 + $0x130] sm:$0xff]
    %v4862 = vld [vmem:[%s4822 + $0x138] sm:$0xff]
    %4863 = vmatprep.subr.mxu0 %v4824
    %4864 = vmatpush1.msra.mxu0 %v4823
    %4865 = vmatprep.subr.mxu0 %v4826
    %4866 = vmatpush1.msra.mxu0 %v4825
    %4867 = vmatprep.subr.mxu0 %v4828
    %4868 = vmatpush1.msra.mxu0 %v4827
    %4869 = vmatprep.subr.mxu0 %v4830
    %4870 = vmatpush1.msra.mxu0 %v4829
    %4871 = vmatprep.subr.mxu0 %v4832
    %4872 = vmatpush1.msra.mxu0 %v4831
    %4873 = vmatprep.subr.mxu0 %v4834
    %4874 = vmatpush1.msra.mxu0 %v4833
    %4875 = vmatprep.subr.mxu0 %v4836
    %4876 = vmatpush1.msra.mxu0 %v4835
    %4877 = vmatprep.subr.mxu0 %v4838
    %4878 = vmatpush1.msra.mxu0 %v4837
    %4879 = vmatprep.subr.mxu0 %v4840
    %4880 = vmatpush1.msra.mxu0 %v4839
    %4881 = vmatprep.subr.mxu0 %v4842
    %4882 = vmatpush1.msra.mxu0 %v4841
    %4883 = vmatprep.subr.mxu0 %v4844
    %4884 = vmatpush1.msra.mxu0 %v4843
    %4885 = vmatprep.subr.mxu0 %v4846
    %4886 = vmatpush1.msra.mxu0 %v4845
    %4887 = vmatprep.subr.mxu0 %v4848
    %4888 = vmatpush1.msra.mxu0 %v4847
    %4889 = vmatprep.subr.mxu0 %v4850
    %4890 = vmatpush1.msra.mxu0 %v4849
    %4891 = vmatprep.subr.mxu0 %v4852
    %4892 = vmatpush1.msra.mxu0 %v4851
    %4893 = vmatprep.subr.mxu0 %v4854
    %4894 = vmatpush1.msra.mxu0 %v4853
    %4895 = vmatprep.subr.mxu0 %v4856
    %4896 = vmatpush1.msra.mxu0 %v4855
    %4897 = vmatprep.subr.mxu0 %v4858
    %4898 = vmatpush1.msra.mxu0 %v4857
    %4899 = vmatprep.subr.mxu0 %v4860
    %4900 = vmatpush1.msra.mxu0 %v4859
    %4901 = vmatprep.subr.mxu0 %v4862
    %4902 = vmatpush1.msra.mxu0 %v4861
    %4903 = vmatprep.subr.mxu0 0.0
    %4904 = vmatpush1.msra.mxu0 0.0
    %4905 = vmatprep.subr.mxu0 0.0
    %4906 = vmatpush1.msra.mxu0 0.0
    %4907 = vmatprep.subr.mxu0 0.0
    %4908 = vmatpush1.msra.mxu0 0.0
    %4909 = vmatprep.subr.mxu0 0.0
    %4910 = vmatpush1.msra.mxu0 0.0
    %4911 = vmatprep.subr.mxu0 0.0
    %4912 = vmatpush1.msra.mxu0 0.0
    %4913 = vmatprep.subr.mxu0 0.0
    %4914 = vmatpush1.msra.mxu0 0.0
    %4915 = vmatprep.subr.mxu0 0.0
    %4916 = vmatpush1.msra.mxu0 0.0
    %4917 = vmatprep.subr.mxu0 0.0
    %4918 = vmatpush1.msra.mxu0 0.0
    %4919 = vmatprep.subr.mxu0 0.0
    %4920 = vmatpush1.msra.mxu0 0.0
    %4921 = vmatprep.subr.mxu0 0.0
    %4922 = vmatpush1.msra.mxu0 0.0
    %4923 = vmatprep.subr.mxu0 0.0
    %4924 = vmatpush1.msra.mxu0 0.0
    %4925 = vmatprep.subr.mxu0 0.0
    %4926 = vmatpush1.msra.mxu0 0.0
    %4927 = vmatprep.mubr.f32.mxu0 %v4025
    %4928 = vmatmul.mubr.f32.gmra.mrb[0].mxu0 %v3966
    %v4929 = vpop.f32.mrb[0].mxu0
    %v4930 = vadd.f32 0.0, %v4929
    %v4931 = vpop.f32.mrb[0].mxu0
    %v4932 = vadd.f32 0.0, %v4931
    %4933 = vmatprep.mubr.f32.mxu0 %v4028
    %4934 = vmatmul.mubr.f32.gmra.mrb[0].mxu0 %v3968
    %v4935 = vpop.f32.mrb[0].mxu0
    %v4936 = vadd.f32 0.0, %v4935
    %v4937 = vpop.f32.mrb[0].mxu0
    %v4938 = vadd.f32 0.0, %v4937
    %4939 = vmatprep.mubr.f32.mxu0 %v4031
    %4940 = vmatmul.mubr.f32.gmra.mrb[0].mxu0 %v3970
    %v4941 = vpop.f32.mrb[0].mxu0
    %v4942 = vadd.f32 0.0, %v4941
    %v4943 = vpop.f32.mrb[0].mxu0
    %v4944 = vadd.f32 0.0, %v4943
    %4945 = vmatprep.mubr.f32.mxu0 %v4034
    %4946 = vmatmul.mubr.f32.gmra.mrb[0].mxu0 %v3972
    %v4947 = vpop.f32.mrb[0].mxu0
    %v4948 = vadd.f32 0.0, %v4947
    %v4949 = vpop.f32.mrb[0].mxu0
    %v4950 = vadd.f32 0.0, %v4949
    %4951 = vmatprep.mubr.f32.mxu0 %v4037
    %4952 = vmatmul.mubr.f32.gmra.mrb[0].mxu0 %v3974
    %v4953 = vpop.f32.mrb[0].mxu0
    %v4954 = vadd.f32 0.0, %v4953
    %v4955 = vpop.f32.mrb[0].mxu0
    %v4956 = vadd.f32 0.0, %v4955
    %4957 = vmatprep.mubr.f32.mxu0 %v4040
    %4958 = vmatmul.mubr.f32.gmra.mrb[0].mxu0 %v3976
    %v4959 = vpop.f32.mrb[0].mxu0
    %v4960 = vadd.f32 0.0, %v4959
    %v4961 = vpop.f32.mrb[0].mxu0
    %v4962 = vadd.f32 0.0, %v4961
    %4963 = vmatprep.mubr.f32.mxu0 %v4043
    %4964 = vmatmul.mubr.f32.gmra.mrb[0].mxu0 %v3978
    %v4965 = vpop.f32.mrb[0].mxu0
    %v4966 = vadd.f32 0.0, %v4965
    %v4967 = vpop.f32.mrb[0].mxu0
    %v4968 = vadd.f32 0.0, %v4967
    %4969 = vmatprep.mubr.f32.mxu0 %v4046
    %4970 = vmatmul.mubr.f32.gmra.mrb[0].mxu0 %v3980
    %v4971 = vpop.f32.mrb[0].mxu0
    %v4972 = vadd.f32 0.0, %v4971
    %v4973 = vpop.f32.mrb[0].mxu0
    %v4974 = vadd.f32 0.0, %v4973
    %4975 = vmatprep.mubr.f32.mxu0 %v4049
    %4976 = vmatmul.mubr.f32.gmra.mrb[0].mxu0 %v3982
    %v4977 = vpop.f32.mrb[0].mxu0
    %v4978 = vadd.f32 0.0, %v4977
    %v4979 = vpop.f32.mrb[0].mxu0
    %v4980 = vadd.f32 0.0, %v4979
    %4981 = vdwg.mxu0
    %s4982 = scalar_lea.vmem [#allocation12], 288
    %v4983 = vld [vmem:[%s4982] sm:$0xff]
    %v4984 = vld [vmem:[%s4982 + $0x8] sm:$0xff]
    %v4985 = vld [vmem:[%s4982 + $0x10] sm:$0xff]
    %v4986 = vld [vmem:[%s4982 + $0x18] sm:$0xff]
    %v4987 = vld [vmem:[%s4982 + $0x20] sm:$0xff]
    %v4988 = vld [vmem:[%s4982 + $0x28] sm:$0xff]
    %v4989 = vld [vmem:[%s4982 + $0x30] sm:$0xff]
    %v4990 = vld [vmem:[%s4982 + $0x38] sm:$0xff]
    %v4991 = vld [vmem:[%s4982 + $0x40] sm:$0xff]
    %v4992 = vld [vmem:[%s4982 + $0x48] sm:$0xff]
    %v4993 = vld [vmem:[%s4982 + $0x50] sm:$0xff]
    %v4994 = vld [vmem:[%s4982 + $0x58] sm:$0xff]
    %v4995 = vld [vmem:[%s4982 + $0x60] sm:$0xff]
    %v4996 = vld [vmem:[%s4982 + $0x68] sm:$0xff]
    %v4997 = vld [vmem:[%s4982 + $0x70] sm:$0xff]
    %v4998 = vld [vmem:[%s4982 + $0x78] sm:$0xff]
    %v4999 = vld [vmem:[%s4982 + $0x80] sm:$0xff]
    %v5000 = vld [vmem:[%s4982 + $0x88] sm:$0xff]
    %v5002 = vsel %vm4367, %v4983, 0
    %v5005 = vsel %vm4367, %v4984, 0
    %v5008 = vsel %vm4367, %v4985, 0
    %v5011 = vsel %vm4367, %v4986, 0
    %v5014 = vsel %vm4367, %v4987, 0
    %v5017 = vsel %vm4367, %v4988, 0
    %v5020 = vsel %vm4367, %v4989, 0
    %v5023 = vsel %vm4367, %v4990, 0
    %v5026 = vsel %vm4367, %v4991, 0
    %v5029 = vsel %vm4367, %v4992, 0
    %v5032 = vsel %vm4367, %v4993, 0
    %v5035 = vsel %vm4367, %v4994, 0
    %v5038 = vsel %vm4367, %v4995, 0
    %v5041 = vsel %vm4367, %v4996, 0
    %v5044 = vsel %vm4367, %v4997, 0
    %v5047 = vsel %vm4367, %v4998, 0
    %v5050 = vsel %vm4367, %v4999, 0
    %v5053 = vsel %vm4367, %v5000, 0
    %5055 = vmatprep.subr.mxu0 %v4932
    %5056 = vmatpush1.msra.mxu0 %v4930
    %5057 = vmatprep.subr.mxu0 %v4938
    %5058 = vmatpush1.msra.mxu0 %v4936
    %5059 = vmatprep.subr.mxu0 %v4944
    %5060 = vmatpush1.msra.mxu0 %v4942
    %5061 = vmatprep.subr.mxu0 %v4950
    %5062 = vmatpush1.msra.mxu0 %v4948
    %5063 = vmatprep.subr.mxu0 %v4956
    %5064 = vmatpush1.msra.mxu0 %v4954
    %5065 = vmatprep.subr.mxu0 %v4962
    %5066 = vmatpush1.msra.mxu0 %v4960
    %5067 = vmatprep.subr.mxu0 %v4968
    %5068 = vmatpush1.msra.mxu0 %v4966
    %5069 = vmatprep.subr.mxu0 %v4974
    %5070 = vmatpush1.msra.mxu0 %v4972
    %5071 = vmatprep.subr.mxu0 %v4980
    %5072 = vmatpush1.msra.mxu0 %v4978
    %5073 = vmatprep.subr.mxu0 0.0
    %5074 = vmatpush1.msra.mxu0 0.0
    %5075 = vmatprep.subr.mxu0 0.0
    %5076 = vmatpush1.msra.mxu0 0.0
    %5077 = vmatprep.subr.mxu0 0.0
    %5078 = vmatpush1.msra.mxu0 0.0
    %5079 = vmatprep.subr.mxu0 0.0
    %5080 = vmatpush1.msra.mxu0 0.0
    %5081 = vmatprep.subr.mxu0 0.0
    %5082 = vmatpush1.msra.mxu0 0.0
    %5083 = vmatprep.subr.mxu0 0.0
    %5084 = vmatpush1.msra.mxu0 0.0
    %5085 = vmatprep.subr.mxu0 0.0
    %5086 = vmatpush1.msra.mxu0 0.0
    %5087 = vmatprep.subr.mxu0 0.0
    %5088 = vmatpush1.msra.mxu0 0.0
    %5089 = vmatprep.subr.mxu0 0.0
    %5090 = vmatpush1.msra.mxu0 0.0
    %5091 = vmatprep.subr.mxu0 0.0
    %5092 = vmatpush1.msra.mxu0 0.0
    %5093 = vmatprep.subr.mxu0 0.0
    %5094 = vmatpush1.msra.mxu0 0.0
    %5095 = vmatprep.subr.mxu0 0.0
    %5096 = vmatpush1.msra.mxu0 0.0
    %5097 = vmatprep.subr.mxu0 0.0
    %5098 = vmatpush1.msra.mxu0 0.0
    %5099 = vmatprep.subr.mxu0 0.0
    %5100 = vmatpush1.msra.mxu0 0.0
    %5101 = vmatprep.subr.mxu0 0.0
    %5102 = vmatpush1.msra.mxu0 0.0
    %5103 = vmatprep.subr.mxu0 0.0
    %5104 = vmatpush1.msra.mxu0 0.0
    %5105 = vmatprep.subr.mxu0 0.0
    %5106 = vmatpush1.msra.mxu0 0.0
    %5107 = vmatprep.subr.mxu0 0.0
    %5108 = vmatpush1.msra.mxu0 0.0
    %5109 = vmatprep.subr.mxu0 0.0
    %5110 = vmatpush1.msra.mxu0 0.0
    %5111 = vmatprep.subr.mxu0 0.0
    %5112 = vmatpush1.msra.mxu0 0.0
    %5113 = vmatprep.subr.mxu0 0.0
    %5114 = vmatpush1.msra.mxu0 0.0
    %5115 = vmatprep.subr.mxu0 0.0
    %5116 = vmatpush1.msra.mxu0 0.0
    %5117 = vmatprep.subr.mxu0 0.0
    %5118 = vmatpush1.msra.mxu0 0.0
    %5119 = vmatprep.mubr.f32.mxu0 0.0
    %5120 = vmatmul.mubr.f32.gmra.mrb[0].mxu0 %v5002
    %v5121 = vpop.f32.mrb[0].mxu0
    %v5122 = vadd.f32 0.0, %v5121
    %v5123 = vpop.f32.mrb[0].mxu0
    %v5124 = vadd.f32 0.0, %v5123
    %5125 = vmatprep.mubr.f32.mxu0 0.0
    %5126 = vmatmul.mubr.f32.gmra.mrb[0].mxu0 %v5005
    %v5127 = vpop.f32.mrb[0].mxu0
    %v5128 = vadd.f32 0.0, %v5127
    %v5129 = vpop.f32.mrb[0].mxu0
    %v5130 = vadd.f32 0.0, %v5129
    %5131 = vmatprep.mubr.f32.mxu0 0.0
    %5132 = vmatmul.mubr.f32.gmra.mrb[0].mxu0 %v5008
    %v5133 = vpop.f32.mrb[0].mxu0
    %v5134 = vadd.f32 0.0, %v5133
    %v5135 = vpop.f32.mrb[0].mxu0
    %v5136 = vadd.f32 0.0, %v5135
    %5137 = vmatprep.mubr.f32.mxu0 0.0
    %5138 = vmatmul.mubr.f32.gmra.mrb[0].mxu0 %v5011
    %v5139 = vpop.f32.mrb[0].mxu0
    %v5140 = vadd.f32 0.0, %v5139
    %v5141 = vpop.f32.mrb[0].mxu0
    %v5142 = vadd.f32 0.0, %v5141
    %5143 = vmatprep.mubr.f32.mxu0 0.0
    %5144 = vmatmul.mubr.f32.gmra.mrb[0].mxu0 %v5014
    %v5145 = vpop.f32.mrb[0].mxu0
    %v5146 = vadd.f32 0.0, %v5145
    %v5147 = vpop.f32.mrb[0].mxu0
    %v5148 = vadd.f32 0.0, %v5147
    %5149 = vmatprep.mubr.f32.mxu0 0.0
    %5150 = vmatmul.mubr.f32.gmra.mrb[0].mxu0 %v5017
    %v5151 = vpop.f32.mrb[0].mxu0
    %v5152 = vadd.f32 0.0, %v5151
    %v5153 = vpop.f32.mrb[0].mxu0
    %v5154 = vadd.f32 0.0, %v5153
    %5155 = vmatprep.mubr.f32.mxu0 0.0
    %5156 = vmatmul.mubr.f32.gmra.mrb[0].mxu0 %v5020
    %v5157 = vpop.f32.mrb[0].mxu0
    %v5158 = vadd.f32 0.0, %v5157
    %v5159 = vpop.f32.mrb[0].mxu0
    %v5160 = vadd.f32 0.0, %v5159
    %5161 = vmatprep.mubr.f32.mxu0 0.0
    %5162 = vmatmul.mubr.f32.gmra.mrb[0].mxu0 %v5023
    %v5163 = vpop.f32.mrb[0].mxu0
    %v5164 = vadd.f32 0.0, %v5163
    %v5165 = vpop.f32.mrb[0].mxu0
    %v5166 = vadd.f32 0.0, %v5165
    %5167 = vmatprep.mubr.f32.mxu0 0.0
    %5168 = vmatmul.mubr.f32.gmra.mrb[0].mxu0 %v5026
    %v5169 = vpop.f32.mrb[0].mxu0
    %v5170 = vadd.f32 0.0, %v5169
    %v5171 = vpop.f32.mrb[0].mxu0
    %v5172 = vadd.f32 0.0, %v5171
    %5173 = vmatprep.mubr.f32.mxu0 0.0
    %5174 = vmatmul.mubr.f32.gmra.mrb[0].mxu0 %v5029
    %v5175 = vpop.f32.mrb[0].mxu0
    %v5176 = vadd.f32 0.0, %v5175
    %v5177 = vpop.f32.mrb[0].mxu0
    %v5178 = vadd.f32 0.0, %v5177
    %5179 = vmatprep.mubr.f32.mxu0 0.0
    %5180 = vmatmul.mubr.f32.gmra.mrb[0].mxu0 %v5032
    %v5181 = vpop.f32.mrb[0].mxu0
    %v5182 = vadd.f32 0.0, %v5181
    %v5183 = vpop.f32.mrb[0].mxu0
    %v5184 = vadd.f32 0.0, %v5183
    %5185 = vmatprep.mubr.f32.mxu0 0.0
    %5186 = vmatmul.mubr.f32.gmra.mrb[0].mxu0 %v5035
    %v5187 = vpop.f32.mrb[0].mxu0
    %v5188 = vadd.f32 0.0, %v5187
    %v5189 = vpop.f32.mrb[0].mxu0
    %v5190 = vadd.f32 0.0, %v5189
    %5191 = vmatprep.mubr.f32.mxu0 0.0
    %5192 = vmatmul.mubr.f32.gmra.mrb[0].mxu0 %v5038
    %v5193 = vpop.f32.mrb[0].mxu0
    %v5194 = vadd.f32 0.0, %v5193
    %v5195 = vpop.f32.mrb[0].mxu0
    %v5196 = vadd.f32 0.0, %v5195
    %5197 = vmatprep.mubr.f32.mxu0 0.0
    %5198 = vmatmul.mubr.f32.gmra.mrb[0].mxu0 %v5041
    %v5199 = vpop.f32.mrb[0].mxu0
    %v5200 = vadd.f32 0.0, %v5199
    %v5201 = vpop.f32.mrb[0].mxu0
    %v5202 = vadd.f32 0.0, %v5201
    %5203 = vmatprep.mubr.f32.mxu0 0.0
    %5204 = vmatmul.mubr.f32.gmra.mrb[0].mxu0 %v5044
    %v5205 = vpop.f32.mrb[0].mxu0
    %v5206 = vadd.f32 0.0, %v5205
    %v5207 = vpop.f32.mrb[0].mxu0
    %v5208 = vadd.f32 0.0, %v5207
    %5209 = vmatprep.mubr.f32.mxu0 0.0
    %5210 = vmatmul.mubr.f32.gmra.mrb[0].mxu0 %v5047
    %v5211 = vpop.f32.mrb[0].mxu0
    %v5212 = vadd.f32 0.0, %v5211
    %v5213 = vpop.f32.mrb[0].mxu0
    %v5214 = vadd.f32 0.0, %v5213
    %5215 = vmatprep.mubr.f32.mxu0 0.0
    %5216 = vmatmul.mubr.f32.gmra.mrb[0].mxu0 %v5050
    %v5217 = vpop.f32.mrb[0].mxu0
    %v5218 = vadd.f32 0.0, %v5217
    %v5219 = vpop.f32.mrb[0].mxu0
    %v5220 = vadd.f32 0.0, %v5219
    %5221 = vmatprep.mubr.f32.mxu0 0.0
    %5222 = vmatmul.mubr.f32.gmra.mrb[0].mxu0 %v5053
    %v5223 = vpop.f32.mrb[0].mxu0
    %v5224 = vadd.f32 0.0, %v5223
    %v5225 = vpop.f32.mrb[0].mxu0
    %v5226 = vadd.f32 0.0, %v5225
    %5227 = vdwg.mxu0
    %v5228 = vadd.f32 %v4716, %v5122
    %v5229 = vadd.f32 %v4718, %v5124
    %v5230 = vadd.f32 %v4722, %v5128
    %v5231 = vadd.f32 %v4724, %v5130
    %v5232 = vadd.f32 %v4728, %v5134
    %v5233 = vadd.f32 %v4730, %v5136
    %v5234 = vadd.f32 %v4734, %v5140
    %v5235 = vadd.f32 %v4736, %v5142
    %v5236 = vadd.f32 %v4740, %v5146
    %v5237 = vadd.f32 %v4742, %v5148
    %v5238 = vadd.f32 %v4746, %v5152
    %v5239 = vadd.f32 %v4748, %v5154
    %v5240 = vadd.f32 %v4752, %v5158
    %v5241 = vadd.f32 %v4754, %v5160
    %v5242 = vadd.f32 %v4758, %v5164
    %v5243 = vadd.f32 %v4760, %v5166
    %v5244 = vadd.f32 %v4764, %v5170
    %v5245 = vadd.f32 %v4766, %v5172
    %v5246 = vadd.f32 %v4770, %v5176
    %v5247 = vadd.f32 %v4772, %v5178
    %v5248 = vadd.f32 %v4776, %v5182
    %v5249 = vadd.f32 %v4778, %v5184
    %v5250 = vadd.f32 %v4782, %v5188
    %v5251 = vadd.f32 %v4784, %v5190
    %v5252 = vadd.f32 %v4788, %v5194
    %v5253 = vadd.f32 %v4790, %v5196
    %v5254 = vadd.f32 %v4794, %v5200
    %v5255 = vadd.f32 %v4796, %v5202
    %v5256 = vadd.f32 %v4800, %v5206
    %v5257 = vadd.f32 %v4802, %v5208
    %v5258 = vadd.f32 %v4806, %v5212
    %v5259 = vadd.f32 %v4808, %v5214
    %v5260 = vadd.f32 %v4812, %v5218
    %v5261 = vadd.f32 %v4814, %v5220
    %v5262 = vadd.f32 %v4818, %v5224
    %v5263 = vadd.f32 %v4820, %v5226
    %s5264 = scalar_lea.vmem [#allocation6], 960
    %v5265 = vld [vmem:[%s5264] sm:$0xff]
    %v5266 = vld [vmem:[%s5264 + $0x8] sm:$0xff]
    %v5267 = vld [vmem:[%s5264 + $0x10] sm:$0xff]
    %v5268 = vld [vmem:[%s5264 + $0x18] sm:$0xff]
    %v5269 = vld [vmem:[%s5264 + $0x20] sm:$0xff]
    %v5270 = vld [vmem:[%s5264 + $0x28] sm:$0xff]
    %v5271 = vld [vmem:[%s5264 + $0x30] sm:$0xff]
    %v5272 = vld [vmem:[%s5264 + $0x38] sm:$0xff]
    %v5273 = vld [vmem:[%s5264 + $0x40] sm:$0xff]
    %v5274 = vld [vmem:[%s5264 + $0x48] sm:$0xff]
    %v5275 = vld [vmem:[%s5264 + $0x50] sm:$0xff]
    %v5276 = vld [vmem:[%s5264 + $0x58] sm:$0xff]
    %v5277 = vld [vmem:[%s5264 + $0x60] sm:$0xff]
    %v5278 = vld [vmem:[%s5264 + $0x68] sm:$0xff]
    %v5279 = vld [vmem:[%s5264 + $0x70] sm:$0xff]
    %v5280 = vld [vmem:[%s5264 + $0x78] sm:$0xff]
    %v5281 = vld [vmem:[%s5264 + $0x80] sm:$0xff]
    %v5282 = vld [vmem:[%s5264 + $0x88] sm:$0xff]
    %v5283 = vld [vmem:[%s5264 + $0x90] sm:$0xff]
    %v5284 = vld [vmem:[%s5264 + $0x98] sm:$0xff]
    %v5285 = vld [vmem:[%s5264 + $0xa0] sm:$0xff]
    %v5286 = vld [vmem:[%s5264 + $0xa8] sm:$0xff]
    %v5287 = vld [vmem:[%s5264 + $0xb0] sm:$0xff]
    %v5288 = vld [vmem:[%s5264 + $0xb8] sm:$0xff]
    %v5289 = vld [vmem:[%s5264 + $0xc0] sm:$0xff]
    %v5290 = vld [vmem:[%s5264 + $0xc8] sm:$0xff]
    %v5291 = vld [vmem:[%s5264 + $0xd0] sm:$0xff]
    %v5292 = vld [vmem:[%s5264 + $0xd8] sm:$0xff]
    %v5293 = vld [vmem:[%s5264 + $0xe0] sm:$0xff]
    %v5294 = vld [vmem:[%s5264 + $0xe8] sm:$0xff]
    %v5295 = vld [vmem:[%s5264 + $0xf0] sm:$0xff]
    %v5296 = vld [vmem:[%s5264 + $0xf8] sm:$0xff]
    %v5297 = vld [vmem:[%s5264 + $0x100] sm:$0xff]
    %v5298 = vld [vmem:[%s5264 + $0x108] sm:$0xff]
    %v5299 = vld [vmem:[%s5264 + $0x110] sm:$0xff]
    %v5300 = vld [vmem:[%s5264 + $0x118] sm:$0xff]
    %v5301 = vld [vmem:[%s5264 + $0x120] sm:$0xff]
    %v5302 = vld [vmem:[%s5264 + $0x128] sm:$0xff]
    %v5303 = vld [vmem:[%s5264 + $0x130] sm:$0xff]
    %v5304 = vld [vmem:[%s5264 + $0x138] sm:$0xff]
    %5305 = vmatprep.subr.mxu0 %v5266
    %5306 = vmatpush1.msra.mxu0 %v5265
    %5307 = vmatprep.subr.mxu0 %v5268
    %5308 = vmatpush1.msra.mxu0 %v5267
    %5309 = vmatprep.subr.mxu0 %v5270
    %5310 = vmatpush1.msra.mxu0 %v5269
    %5311 = vmatprep.subr.mxu0 %v5272
    %5312 = vmatpush1.msra.mxu0 %v5271
    %5313 = vmatprep.subr.mxu0 %v5274
    %5314 = vmatpush1.msra.mxu0 %v5273
    %5315 = vmatprep.subr.mxu0 %v5276
    %5316 = vmatpush1.msra.mxu0 %v5275
    %5317 = vmatprep.subr.mxu0 %v5278
    %5318 = vmatpush1.msra.mxu0 %v5277
    %5319 = vmatprep.subr.mxu0 %v5280
    %5320 = vmatpush1.msra.mxu0 %v5279
    %5321 = vmatprep.subr.mxu0 %v5282
    %5322 = vmatpush1.msra.mxu0 %v5281
    %5323 = vmatprep.subr.mxu0 %v5284
    %5324 = vmatpush1.msra.mxu0 %v5283
    %5325 = vmatprep.subr.mxu0 %v5286
    %5326 = vmatpush1.msra.mxu0 %v5285
    %5327 = vmatprep.subr.mxu0 %v5288
    %5328 = vmatpush1.msra.mxu0 %v5287
    %5329 = vmatprep.subr.mxu0 %v5290
    %5330 = vmatpush1.msra.mxu0 %v5289
    %5331 = vmatprep.subr.mxu0 %v5292
    %5332 = vmatpush1.msra.mxu0 %v5291
    %5333 = vmatprep.subr.mxu0 %v5294
    %5334 = vmatpush1.msra.mxu0 %v5293
    %5335 = vmatprep.subr.mxu0 %v5296
    %5336 = vmatpush1.msra.mxu0 %v5295
    %5337 = vmatprep.subr.mxu0 %v5298
    %5338 = vmatpush1.msra.mxu0 %v5297
    %5339 = vmatprep.subr.mxu0 %v5300
    %5340 = vmatpush1.msra.mxu0 %v5299
    %5341 = vmatprep.subr.mxu0 %v5302
    %5342 = vmatpush1.msra.mxu0 %v5301
    %5343 = vmatprep.subr.mxu0 %v5304
    %5344 = vmatpush1.msra.mxu0 %v5303
    %5345 = vmatprep.subr.mxu0 0.0
    %5346 = vmatpush1.msra.mxu0 0.0
    %5347 = vmatprep.subr.mxu0 0.0
    %5348 = vmatpush1.msra.mxu0 0.0
    %5349 = vmatprep.subr.mxu0 0.0
    %5350 = vmatpush1.msra.mxu0 0.0
    %5351 = vmatprep.subr.mxu0 0.0
    %5352 = vmatpush1.msra.mxu0 0.0
    %5353 = vmatprep.subr.mxu0 0.0
    %5354 = vmatpush1.msra.mxu0 0.0
    %5355 = vmatprep.subr.mxu0 0.0
    %5356 = vmatpush1.msra.mxu0 0.0
    %5357 = vmatprep.subr.mxu0 0.0
    %5358 = vmatpush1.msra.mxu0 0.0
    %5359 = vmatprep.subr.mxu0 0.0
    %5360 = vmatpush1.msra.mxu0 0.0
    %5361 = vmatprep.subr.mxu0 0.0
    %5362 = vmatpush1.msra.mxu0 0.0
    %5363 = vmatprep.subr.mxu0 0.0
    %5364 = vmatpush1.msra.mxu0 0.0
    %5365 = vmatprep.subr.mxu0 0.0
    %5366 = vmatpush1.msra.mxu0 0.0
    %5367 = vmatprep.subr.mxu0 0.0
    %5368 = vmatpush1.msra.mxu0 0.0
    %5369 = vmatprep.mubr.f32.mxu0 %v4025
    %5370 = vmatmul.mubr.f32.gmra.mrb[0].mxu0 %v3966
    %v5371 = vpop.f32.mrb[0].mxu0
    %v5372 = vadd.f32 0.0, %v5371
    %v5373 = vpop.f32.mrb[0].mxu0
    %v5374 = vadd.f32 0.0, %v5373
    %5375 = vmatprep.mubr.f32.mxu0 %v4028
    %5376 = vmatmul.mubr.f32.gmra.mrb[0].mxu0 %v3968
    %v5377 = vpop.f32.mrb[0].mxu0
    %v5378 = vadd.f32 0.0, %v5377
    %v5379 = vpop.f32.mrb[0].mxu0
    %v5380 = vadd.f32 0.0, %v5379
    %5381 = vmatprep.mubr.f32.mxu0 %v4031
    %5382 = vmatmul.mubr.f32.gmra.mrb[0].mxu0 %v3970
    %v5383 = vpop.f32.mrb[0].mxu0
    %v5384 = vadd.f32 0.0, %v5383
    %v5385 = vpop.f32.mrb[0].mxu0
    %v5386 = vadd.f32 0.0, %v5385
    %5387 = vmatprep.mubr.f32.mxu0 %v4034
    %5388 = vmatmul.mubr.f32.gmra.mrb[0].mxu0 %v3972
    %v5389 = vpop.f32.mrb[0].mxu0
    %v5390 = vadd.f32 0.0, %v5389
    %v5391 = vpop.f32.mrb[0].mxu0
    %v5392 = vadd.f32 0.0, %v5391
    %5393 = vmatprep.mubr.f32.mxu0 %v4037
    %5394 = vmatmul.mubr.f32.gmra.mrb[0].mxu0 %v3974
    %v5395 = vpop.f32.mrb[0].mxu0
    %v5396 = vadd.f32 0.0, %v5395
    %v5397 = vpop.f32.mrb[0].mxu0
    %v5398 = vadd.f32 0.0, %v5397
    %5399 = vmatprep.mubr.f32.mxu0 %v4040
    %5400 = vmatmul.mubr.f32.gmra.mrb[0].mxu0 %v3976
    %v5401 = vpop.f32.mrb[0].mxu0
    %v5402 = vadd.f32 0.0, %v5401
    %v5403 = vpop.f32.mrb[0].mxu0
    %v5404 = vadd.f32 0.0, %v5403
    %5405 = vmatprep.mubr.f32.mxu0 %v4043
    %5406 = vmatmul.mubr.f32.gmra.mrb[0].mxu0 %v3978
    %v5407 = vpop.f32.mrb[0].mxu0
    %v5408 = vadd.f32 0.0, %v5407
    %v5409 = vpop.f32.mrb[0].mxu0
    %v5410 = vadd.f32 0.0, %v5409
    %5411 = vmatprep.mubr.f32.mxu0 %v4046
    %5412 = vmatmul.mubr.f32.gmra.mrb[0].mxu0 %v3980
    %v5413 = vpop.f32.mrb[0].mxu0
    %v5414 = vadd.f32 0.0, %v5413
    %v5415 = vpop.f32.mrb[0].mxu0
    %v5416 = vadd.f32 0.0, %v5415
    %5417 = vmatprep.mubr.f32.mxu0 %v4049
    %5418 = vmatmul.mubr.f32.gmra.mrb[0].mxu0 %v3982
    %v5419 = vpop.f32.mrb[0].mxu0
    %v5420 = vadd.f32 0.0, %v5419
    %v5421 = vpop.f32.mrb[0].mxu0
    %v5422 = vadd.f32 0.0, %v5421
    %5423 = vdwg.mxu0
    %s5424 = scalar_lea.vmem [#allocation12], 432
    %v5425 = vld [vmem:[%s5424] sm:$0xff]
    %v5426 = vld [vmem:[%s5424 + $0x8] sm:$0xff]
    %v5427 = vld [vmem:[%s5424 + $0x10] sm:$0xff]
    %v5428 = vld [vmem:[%s5424 + $0x18] sm:$0xff]
    %v5429 = vld [vmem:[%s5424 + $0x20] sm:$0xff]
    %v5430 = vld [vmem:[%s5424 + $0x28] sm:$0xff]
    %v5431 = vld [vmem:[%s5424 + $0x30] sm:$0xff]
    %v5432 = vld [vmem:[%s5424 + $0x38] sm:$0xff]
    %v5433 = vld [vmem:[%s5424 + $0x40] sm:$0xff]
    %v5434 = vld [vmem:[%s5424 + $0x48] sm:$0xff]
    %v5435 = vld [vmem:[%s5424 + $0x50] sm:$0xff]
    %v5436 = vld [vmem:[%s5424 + $0x58] sm:$0xff]
    %v5437 = vld [vmem:[%s5424 + $0x60] sm:$0xff]
    %v5438 = vld [vmem:[%s5424 + $0x68] sm:$0xff]
    %v5439 = vld [vmem:[%s5424 + $0x70] sm:$0xff]
    %v5440 = vld [vmem:[%s5424 + $0x78] sm:$0xff]
    %v5441 = vld [vmem:[%s5424 + $0x80] sm:$0xff]
    %v5442 = vld [vmem:[%s5424 + $0x88] sm:$0xff]
    %v5444 = vsel %vm4367, %v5425, 0
    %v5447 = vsel %vm4367, %v5426, 0
    %v5450 = vsel %vm4367, %v5427, 0
    %v5453 = vsel %vm4367, %v5428, 0
    %v5456 = vsel %vm4367, %v5429, 0
    %v5459 = vsel %vm4367, %v5430, 0
    %v5462 = vsel %vm4367, %v5431, 0
    %v5465 = vsel %vm4367, %v5432, 0
    %v5468 = vsel %vm4367, %v5433, 0
    %v5471 = vsel %vm4367, %v5434, 0
    %v5474 = vsel %vm4367, %v5435, 0
    %v5477 = vsel %vm4367, %v5436, 0
    %v5480 = vsel %vm4367, %v5437, 0
    %v5483 = vsel %vm4367, %v5438, 0
    %v5486 = vsel %vm4367, %v5439, 0
    %v5489 = vsel %vm4367, %v5440, 0
    %v5492 = vsel %vm4367, %v5441, 0
    %v5495 = vsel %vm4367, %v5442, 0
    %5497 = vmatprep.subr.mxu0 %v5374
    %5498 = vmatpush1.msra.mxu0 %v5372
    %5499 = vmatprep.subr.mxu0 %v5380
    %5500 = vmatpush1.msra.mxu0 %v5378
    %5501 = vmatprep.subr.mxu0 %v5386
    %5502 = vmatpush1.msra.mxu0 %v5384
    %5503 = vmatprep.subr.mxu0 %v5392
    %5504 = vmatpush1.msra.mxu0 %v5390
    %5505 = vmatprep.subr.mxu0 %v5398
    %5506 = vmatpush1.msra.mxu0 %v5396
    %5507 = vmatprep.subr.mxu0 %v5404
    %5508 = vmatpush1.msra.mxu0 %v5402
    %5509 = vmatprep.subr.mxu0 %v5410
    %5510 = vmatpush1.msra.mxu0 %v5408
    %5511 = vmatprep.subr.mxu0 %v5416
    %5512 = vmatpush1.msra.mxu0 %v5414
    %5513 = vmatprep.subr.mxu0 %v5422
    %5514 = vmatpush1.msra.mxu0 %v5420
    %5515 = vmatprep.subr.mxu0 0.0
    %5516 = vmatpush1.msra.mxu0 0.0
    %5517 = vmatprep.subr.mxu0 0.0
    %5518 = vmatpush1.msra.mxu0 0.0
    %5519 = vmatprep.subr.mxu0 0.0
    %5520 = vmatpush1.msra.mxu0 0.0
    %5521 = vmatprep.subr.mxu0 0.0
    %5522 = vmatpush1.msra.mxu0 0.0
    %5523 = vmatprep.subr.mxu0 0.0
    %5524 = vmatpush1.msra.mxu0 0.0
    %5525 = vmatprep.subr.mxu0 0.0
    %5526 = vmatpush1.msra.mxu0 0.0
    %5527 = vmatprep.subr.mxu0 0.0
    %5528 = vmatpush1.msra.mxu0 0.0
    %5529 = vmatprep.subr.mxu0 0.0
    %5530 = vmatpush1.msra.mxu0 0.0
    %5531 = vmatprep.subr.mxu0 0.0
    %5532 = vmatpush1.msra.mxu0 0.0
    %5533 = vmatprep.subr.mxu0 0.0
    %5534 = vmatpush1.msra.mxu0 0.0
    %5535 = vmatprep.subr.mxu0 0.0
    %5536 = vmatpush1.msra.mxu0 0.0
    %5537 = vmatprep.subr.mxu0 0.0
    %5538 = vmatpush1.msra.mxu0 0.0
    %5539 = vmatprep.subr.mxu0 0.0
    %5540 = vmatpush1.msra.mxu0 0.0
    %5541 = vmatprep.subr.mxu0 0.0
    %5542 = vmatpush1.msra.mxu0 0.0
    %5543 = vmatprep.subr.mxu0 0.0
    %5544 = vmatpush1.msra.mxu0 0.0
    %5545 = vmatprep.subr.mxu0 0.0
    %5546 = vmatpush1.msra.mxu0 0.0
    %5547 = vmatprep.subr.mxu0 0.0
    %5548 = vmatpush1.msra.mxu0 0.0
    %5549 = vmatprep.subr.mxu0 0.0
    %5550 = vmatpush1.msra.mxu0 0.0
    %5551 = vmatprep.subr.mxu0 0.0
    %5552 = vmatpush1.msra.mxu0 0.0
    %5553 = vmatprep.subr.mxu0 0.0
    %5554 = vmatpush1.msra.mxu0 0.0
    %5555 = vmatprep.subr.mxu0 0.0
    %5556 = vmatpush1.msra.mxu0 0.0
    %5557 = vmatprep.subr.mxu0 0.0
    %5558 = vmatpush1.msra.mxu0 0.0
    %5559 = vmatprep.subr.mxu0 0.0
    %5560 = vmatpush1.msra.mxu0 0.0
    %5561 = vmatprep.mubr.f32.mxu0 0.0
    %5562 = vmatmul.mubr.f32.gmra.mrb[0].mxu0 %v5444
    %v5563 = vpop.f32.mrb[0].mxu0
    %v5564 = vadd.f32 0.0, %v5563
    %v5565 = vpop.f32.mrb[0].mxu0
    %v5566 = vadd.f32 0.0, %v5565
    %5567 = vmatprep.mubr.f32.mxu0 0.0
    %5568 = vmatmul.mubr.f32.gmra.mrb[0].mxu0 %v5447
    %v5569 = vpop.f32.mrb[0].mxu0
    %v5570 = vadd.f32 0.0, %v5569
    %v5571 = vpop.f32.mrb[0].mxu0
    %v5572 = vadd.f32 0.0, %v5571
    %5573 = vmatprep.mubr.f32.mxu0 0.0
    %5574 = vmatmul.mubr.f32.gmra.mrb[0].mxu0 %v5450
    %v5575 = vpop.f32.mrb[0].mxu0
    %v5576 = vadd.f32 0.0, %v5575
    %v5577 = vpop.f32.mrb[0].mxu0
    %v5578 = vadd.f32 0.0, %v5577
    %5579 = vmatprep.mubr.f32.mxu0 0.0
    %5580 = vmatmul.mubr.f32.gmra.mrb[0].mxu0 %v5453
    %v5581 = vpop.f32.mrb[0].mxu0
    %v5582 = vadd.f32 0.0, %v5581
    %v5583 = vpop.f32.mrb[0].mxu0
    %v5584 = vadd.f32 0.0, %v5583
    %5585 = vmatprep.mubr.f32.mxu0 0.0
    %5586 = vmatmul.mubr.f32.gmra.mrb[0].mxu0 %v5456
    %v5587 = vpop.f32.mrb[0].mxu0
    %v5588 = vadd.f32 0.0, %v5587
    %v5589 = vpop.f32.mrb[0].mxu0
    %v5590 = vadd.f32 0.0, %v5589
    %5591 = vmatprep.mubr.f32.mxu0 0.0
    %5592 = vmatmul.mubr.f32.gmra.mrb[0].mxu0 %v5459
    %v5593 = vpop.f32.mrb[0].mxu0
    %v5594 = vadd.f32 0.0, %v5593
    %v5595 = vpop.f32.mrb[0].mxu0
    %v5596 = vadd.f32 0.0, %v5595
    %5597 = vmatprep.mubr.f32.mxu0 0.0
    %5598 = vmatmul.mubr.f32.gmra.mrb[0].mxu0 %v5462
    %v5599 = vpop.f32.mrb[0].mxu0
    %v5600 = vadd.f32 0.0, %v5599
    %v5601 = vpop.f32.mrb[0].mxu0
    %v5602 = vadd.f32 0.0, %v5601
    %5603 = vmatprep.mubr.f32.mxu0 0.0
    %5604 = vmatmul.mubr.f32.gmra.mrb[0].mxu0 %v5465
    %v5605 = vpop.f32.mrb[0].mxu0
    %v5606 = vadd.f32 0.0, %v5605
    %v5607 = vpop.f32.mrb[0].mxu0
    %v5608 = vadd.f32 0.0, %v5607
    %5609 = vmatprep.mubr.f32.mxu0 0.0
    %5610 = vmatmul.mubr.f32.gmra.mrb[0].mxu0 %v5468
    %v5611 = vpop.f32.mrb[0].mxu0
    %v5612 = vadd.f32 0.0, %v5611
    %v5613 = vpop.f32.mrb[0].mxu0
    %v5614 = vadd.f32 0.0, %v5613
    %5615 = vmatprep.mubr.f32.mxu0 0.0
    %5616 = vmatmul.mubr.f32.gmra.mrb[0].mxu0 %v5471
    %v5617 = vpop.f32.mrb[0].mxu0
    %v5618 = vadd.f32 0.0, %v5617
    %v5619 = vpop.f32.mrb[0].mxu0
    %v5620 = vadd.f32 0.0, %v5619
    %5621 = vmatprep.mubr.f32.mxu0 0.0
    %5622 = vmatmul.mubr.f32.gmra.mrb[0].mxu0 %v5474
    %v5623 = vpop.f32.mrb[0].mxu0
    %v5624 = vadd.f32 0.0, %v5623
    %v5625 = vpop.f32.mrb[0].mxu0
    %v5626 = vadd.f32 0.0, %v5625
    %5627 = vmatprep.mubr.f32.mxu0 0.0
    %5628 = vmatmul.mubr.f32.gmra.mrb[0].mxu0 %v5477
    %v5629 = vpop.f32.mrb[0].mxu0
    %v5630 = vadd.f32 0.0, %v5629
    %v5631 = vpop.f32.mrb[0].mxu0
    %v5632 = vadd.f32 0.0, %v5631
    %5633 = vmatprep.mubr.f32.mxu0 0.0
    %5634 = vmatmul.mubr.f32.gmra.mrb[0].mxu0 %v5480
    %v5635 = vpop.f32.mrb[0].mxu0
    %v5636 = vadd.f32 0.0, %v5635
    %v5637 = vpop.f32.mrb[0].mxu0
    %v5638 = vadd.f32 0.0, %v5637
    %5639 = vmatprep.mubr.f32.mxu0 0.0
    %5640 = vmatmul.mubr.f32.gmra.mrb[0].mxu0 %v5483
    %v5641 = vpop.f32.mrb[0].mxu0
    %v5642 = vadd.f32 0.0, %v5641
    %v5643 = vpop.f32.mrb[0].mxu0
    %v5644 = vadd.f32 0.0, %v5643
    %5645 = vmatprep.mubr.f32.mxu0 0.0
    %5646 = vmatmul.mubr.f32.gmra.mrb[0].mxu0 %v5486
    %v5647 = vpop.f32.mrb[0].mxu0
    %v5648 = vadd.f32 0.0, %v5647
    %v5649 = vpop.f32.mrb[0].mxu0
    %v5650 = vadd.f32 0.0, %v5649
    %5651 = vmatprep.mubr.f32.mxu0 0.0
    %5652 = vmatmul.mubr.f32.gmra.mrb[0].mxu0 %v5489
    %v5653 = vpop.f32.mrb[0].mxu0
    %v5654 = vadd.f32 0.0, %v5653
    %v5655 = vpop.f32.mrb[0].mxu0
    %v5656 = vadd.f32 0.0, %v5655
    %5657 = vmatprep.mubr.f32.mxu0 0.0
    %5658 = vmatmul.mubr.f32.gmra.mrb[0].mxu0 %v5492
    %v5659 = vpop.f32.mrb[0].mxu0
    %v5660 = vadd.f32 0.0, %v5659
    %v5661 = vpop.f32.mrb[0].mxu0
    %v5662 = vadd.f32 0.0, %v5661
    %5663 = vmatprep.mubr.f32.mxu0 0.0
    %5664 = vmatmul.mubr.f32.gmra.mrb[0].mxu0 %v5495
    %v5665 = vpop.f32.mrb[0].mxu0
    %v5666 = vadd.f32 0.0, %v5665
    %v5667 = vpop.f32.mrb[0].mxu0
    %v5668 = vadd.f32 0.0, %v5667
    %5669 = vdwg.mxu0
    %v5670 = vadd.f32 %v5228, %v5564
    %v5671 = vadd.f32 %v5229, %v5566
    %v5672 = vadd.f32 %v5230, %v5570
    %v5673 = vadd.f32 %v5231, %v5572
    %v5674 = vadd.f32 %v5232, %v5576
    %v5675 = vadd.f32 %v5233, %v5578
    %v5676 = vadd.f32 %v5234, %v5582
    %v5677 = vadd.f32 %v5235, %v5584
    %v5678 = vadd.f32 %v5236, %v5588
    %v5679 = vadd.f32 %v5237, %v5590
    %v5680 = vadd.f32 %v5238, %v5594
    %v5681 = vadd.f32 %v5239, %v5596
    %v5682 = vadd.f32 %v5240, %v5600
    %v5683 = vadd.f32 %v5241, %v5602
    %v5684 = vadd.f32 %v5242, %v5606
    %v5685 = vadd.f32 %v5243, %v5608
    %v5686 = vadd.f32 %v5244, %v5612
    %v5687 = vadd.f32 %v5245, %v5614
    %v5688 = vadd.f32 %v5246, %v5618
    %v5689 = vadd.f32 %v5247, %v5620
    %v5690 = vadd.f32 %v5248, %v5624
    %v5691 = vadd.f32 %v5249, %v5626
    %v5692 = vadd.f32 %v5250, %v5630
    %v5693 = vadd.f32 %v5251, %v5632
    %v5694 = vadd.f32 %v5252, %v5636
    %v5695 = vadd.f32 %v5253, %v5638
    %v5696 = vadd.f32 %v5254, %v5642
    %v5697 = vadd.f32 %v5255, %v5644
    %v5698 = vadd.f32 %v5256, %v5648
    %v5699 = vadd.f32 %v5257, %v5650
    %v5700 = vadd.f32 %v5258, %v5654
    %v5701 = vadd.f32 %v5259, %v5656
    %v5702 = vadd.f32 %v5260, %v5660
    %v5703 = vadd.f32 %v5261, %v5662
    %v5704 = vadd.f32 %v5262, %v5666
    %v5705 = vadd.f32 %v5263, %v5668
    %s5706 = scalar_lea.vmem %s12, 16
    %v5707 = vld [vmem:[%s5706] ss:$8 sm:$0x3]
    %s5708 = scalar_lea.vmem %s12, 17
    %v5709 = vld [vmem:[%s5708] ss:$8 sm:$0x3]
    %s5710 = scalar_lea.vmem %s12, 18
    %v5711 = vld [vmem:[%s5710] ss:$8 sm:$0x3]
    %s5712 = scalar_lea.vmem %s12, 19
    %v5713 = vld [vmem:[%s5712] ss:$8 sm:$0x3]
    %v5714 = vld [vmem:[#allocation16] sm:$0xff]
    %v5715 = vld [vmem:[#allocation16 + $0x8] sm:$0xff]
    %v5716 = vld [vmem:[#allocation16 + $0x10] sm:$0xff]
    %v5717 = vld [vmem:[#allocation16 + $0x18] sm:$0xff]
    %v5718 = vld [vmem:[#allocation16 + $0x20] sm:$0xff]
    %v5719 = vld [vmem:[#allocation16 + $0x28] sm:$0xff]
    %v5720 = vld [vmem:[#allocation16 + $0x30] sm:$0xff]
    %v5721 = vld [vmem:[#allocation16 + $0x38] sm:$0xff]
    %v5722 = vld [vmem:[#allocation16 + $0x40] sm:$0xff]
    %v5723 = vld [vmem:[#allocation16 + $0x48] sm:$0xff]
    %v5724 = vld [vmem:[#allocation16 + $0x50] sm:$0xff]
    %v5725 = vld [vmem:[#allocation16 + $0x58] sm:$0xff]
    %v5726 = vld [vmem:[#allocation16 + $0x60] sm:$0xff]
    %v5727 = vld [vmem:[#allocation16 + $0x68] sm:$0xff]
    %v5728 = vld [vmem:[#allocation16 + $0x70] sm:$0xff]
    %v5729 = vld [vmem:[#allocation16 + $0x78] sm:$0xff]
    %v5730 = vld [vmem:[#allocation16 + $0x80] sm:$0xff]
    %v5731 = vld [vmem:[#allocation16 + $0x88] sm:$0xff]
    %v5732 = vld [vmem:[#allocation16 + $0x90] sm:$0xff]
    %v5733 = vld [vmem:[#allocation16 + $0x98] sm:$0xff]
    %v5734 = vld [vmem:[#allocation16 + $0xa0] sm:$0xff]
    %v5735 = vld [vmem:[#allocation16 + $0xa8] sm:$0xff]
    %v5736 = vld [vmem:[#allocation16 + $0xb0] sm:$0xff]
    %v5737 = vld [vmem:[#allocation16 + $0xb8] sm:$0xff]
    %v5738 = vld [vmem:[#allocation16 + $0xc0] sm:$0xff]
    %v5739 = vld [vmem:[#allocation16 + $0xc8] sm:$0xff]
    %v5740 = vld [vmem:[#allocation16 + $0xd0] sm:$0xff]
    %v5741 = vld [vmem:[#allocation16 + $0xd8] sm:$0xff]
    %v5742 = vld [vmem:[#allocation16 + $0xe0] sm:$0xff]
    %v5743 = vld [vmem:[#allocation16 + $0xe8] sm:$0xff]
    %v5744 = vld [vmem:[#allocation16 + $0xf0] sm:$0xff]
    %v5745 = vld [vmem:[#allocation16 + $0xf8] sm:$0xff]
    %v5746 = vld [vmem:[#allocation16 + $0x100] sm:$0xff]
    %v5747 = vld [vmem:[#allocation16 + $0x108] sm:$0xff]
    %v5748 = vld [vmem:[#allocation16 + $0x110] sm:$0xff]
    %v5749 = vld [vmem:[#allocation16 + $0x118] sm:$0xff]
    %v5750 = vld [vmem:[#allocation16 + $0x120] sm:$0xff]
    %v5751 = vld [vmem:[#allocation16 + $0x128] sm:$0xff]
    %v5752 = vld [vmem:[#allocation16 + $0x130] sm:$0xff]
    %v5753 = vld [vmem:[#allocation16 + $0x138] sm:$0xff]
    %v5754 = vadd.f32 %v5670, %v5672
    %v5755 = vadd.f32 %v5754, %v5674
    %v5756 = vadd.f32 %v5755, %v5676
    %v5757 = vadd.f32 %v5756, %v5678
    %v5758 = vadd.f32 %v5757, %v5680
    %v5759 = vadd.f32 %v5758, %v5682
    %v5760 = vadd.f32 %v5759, %v5684
    %v5761 = vadd.f32 %v5760, %v5686
    %v5762 = vadd.f32 %v5761, %v5688
    %v5763 = vadd.f32 %v5762, %v5690
    %v5764 = vadd.f32 %v5763, %v5692
    %v5765 = vadd.f32 %v5764, %v5694
    %v5766 = vadd.f32 %v5765, %v5696
    %v5767 = vadd.f32 %v5766, %v5698
    %v5768 = vadd.f32 %v5767, %v5700
    %v5769 = vadd.f32 %v5768, %v5702
    %v5770 = vadd.f32 %v5769, %v5704
    %v5771 = vrot.slane %v5770, 4
    %v5772 = vadd.f32 %v5770, %v5771
    %v5773 = vrot.slane %v5772, 2
    %v5774 = vadd.f32 %v5772, %v5773
    %v5775 = vrot.slane %v5774, 1
    %v5776 = vadd.f32 %v5774, %v5775
    %v5777 = vsel %vm3455, %v5671, 0.0
    %v5778 = vsel %vm3455, %v5673, 0.0
    %v5779 = vadd.f32 %v5777, %v5778
    %v5780 = vsel %vm3455, %v5675, 0.0
    %v5781 = vadd.f32 %v5779, %v5780
    %v5782 = vsel %vm3455, %v5677, 0.0
    %v5783 = vadd.f32 %v5781, %v5782
    %v5784 = vsel %vm3455, %v5679, 0.0
    %v5785 = vadd.f32 %v5783, %v5784
    %v5786 = vsel %vm3455, %v5681, 0.0
    %v5787 = vadd.f32 %v5785, %v5786
    %v5788 = vsel %vm3455, %v5683, 0.0
    %v5789 = vadd.f32 %v5787, %v5788
    %v5790 = vsel %vm3455, %v5685, 0.0
    %v5791 = vadd.f32 %v5789, %v5790
    %v5792 = vsel %vm3455, %v5687, 0.0
    %v5793 = vadd.f32 %v5791, %v5792
    %v5794 = vsel %vm3455, %v5689, 0.0
    %v5795 = vadd.f32 %v5793, %v5794
    %v5796 = vsel %vm3455, %v5691, 0.0
    %v5797 = vadd.f32 %v5795, %v5796
    %v5798 = vsel %vm3455, %v5693, 0.0
    %v5799 = vadd.f32 %v5797, %v5798
    %v5800 = vsel %vm3455, %v5695, 0.0
    %v5801 = vadd.f32 %v5799, %v5800
    %v5802 = vsel %vm3455, %v5697, 0.0
    %v5803 = vadd.f32 %v5801, %v5802
    %v5804 = vsel %vm3455, %v5699, 0.0
    %v5805 = vadd.f32 %v5803, %v5804
    %v5806 = vsel %vm3455, %v5701, 0.0
    %v5807 = vadd.f32 %v5805, %v5806
    %v5808 = vsel %vm3455, %v5703, 0.0
    %v5809 = vadd.f32 %v5807, %v5808
    %v5810 = vsel %vm3455, %v5705, 0.0
    %v5811 = vadd.f32 %v5809, %v5810
    %v5812 = vrot.slane %v5811, 4
    %v5813 = vadd.f32 %v5811, %v5812
    %v5814 = vrot.slane %v5813, 2
    %v5815 = vadd.f32 %v5813, %v5814
    %v5816 = vrot.slane %v5815, 1
    %v5817 = vadd.f32 %v5815, %v5816
    %v5819 = vsel %vm3455, %v5817, 0
    %5821 = vmatprep.subr.mxu0 %v5715
    %5822 = vmatpush1.msra.mxu0 %v5714
    %5823 = vmatprep.subr.mxu0 %v5717
    %5824 = vmatpush1.msra.mxu0 %v5716
    %5825 = vmatprep.subr.mxu0 %v5719
    %5826 = vmatpush1.msra.mxu0 %v5718
    %5827 = vmatprep.subr.mxu0 %v5721
    %5828 = vmatpush1.msra.mxu0 %v5720
    %5829 = vmatprep.subr.mxu0 %v5723
    %5830 = vmatpush1.msra.mxu0 %v5722
    %5831 = vmatprep.subr.mxu0 %v5725
    %5832 = vmatpush1.msra.mxu0 %v5724
    %5833 = vmatprep.subr.mxu0 %v5727
    %5834 = vmatpush1.msra.mxu0 %v5726
    %5835 = vmatprep.subr.mxu0 %v5729
    %5836 = vmatpush1.msra.mxu0 %v5728
    %5837 = vmatprep.subr.mxu0 %v5731
    %5838 = vmatpush1.msra.mxu0 %v5730
    %5839 = vmatprep.subr.mxu0 %v5733
    %5840 = vmatpush1.msra.mxu0 %v5732
    %5841 = vmatprep.subr.mxu0 %v5735
    %5842 = vmatpush1.msra.mxu0 %v5734
    %5843 = vmatprep.subr.mxu0 %v5737
    %5844 = vmatpush1.msra.mxu0 %v5736
    %5845 = vmatprep.subr.mxu0 %v5739
    %5846 = vmatpush1.msra.mxu0 %v5738
    %5847 = vmatprep.subr.mxu0 %v5741
    %5848 = vmatpush1.msra.mxu0 %v5740
    %5849 = vmatprep.subr.mxu0 %v5743
    %5850 = vmatpush1.msra.mxu0 %v5742
    %5851 = vmatprep.subr.mxu0 %v5745
    %5852 = vmatpush1.msra.mxu0 %v5744
    %5853 = vmatprep.subr.mxu0 %v5747
    %5854 = vmatpush1.msra.mxu0 %v5746
    %5855 = vmatprep.subr.mxu0 %v5749
    %5856 = vmatpush1.msra.mxu0 %v5748
    %5857 = vmatprep.subr.mxu0 %v5751
    %5858 = vmatpush1.msra.mxu0 %v5750
    %5859 = vmatprep.subr.mxu0 %v5753
    %5860 = vmatpush1.msra.mxu0 %v5752
    %5861 = vmatprep.subr.mxu0 0.0
    %5862 = vmatpush1.msra.mxu0 0.0
    %5863 = vmatprep.subr.mxu0 0.0
    %5864 = vmatpush1.msra.mxu0 0.0
    %5865 = vmatprep.subr.mxu0 0.0
    %5866 = vmatpush1.msra.mxu0 0.0
    %5867 = vmatprep.subr.mxu0 0.0
    %5868 = vmatpush1.msra.mxu0 0.0
    %5869 = vmatprep.subr.mxu0 0.0
    %5870 = vmatpush1.msra.mxu0 0.0
    %5871 = vmatprep.subr.mxu0 0.0
    %5872 = vmatpush1.msra.mxu0 0.0
    %5873 = vmatprep.subr.mxu0 0.0
    %5874 = vmatpush1.msra.mxu0 0.0
    %5875 = vmatprep.subr.mxu0 0.0
    %5876 = vmatpush1.msra.mxu0 0.0
    %5877 = vmatprep.subr.mxu0 0.0
    %5878 = vmatpush1.msra.mxu0 0.0
    %5879 = vmatprep.subr.mxu0 0.0
    %5880 = vmatpush1.msra.mxu0 0.0
    %5881 = vmatprep.subr.mxu0 0.0
    %5882 = vmatpush1.msra.mxu0 0.0
    %5883 = vmatprep.subr.mxu0 0.0
    %5884 = vmatpush1.msra.mxu0 0.0
    %5885 = vmatprep.mubr.f32.mxu0 %v5819
    %5886 = vmatmul.mubr.f32.gmra.mrb[0].mxu0 %v5776
    %v5887 = vpop.f32.mrb[0].mxu0
    %v5888 = vadd.f32 0.0, %v5887
    %v5889 = vpop.f32.mrb[0].mxu0
    %v5890 = vadd.f32 0.0, %v5889
    %5891 = vdwg.mxu0
    %v5892 = vmul.f32 %v5888, 0.00021701389
    %v5893 = vmul.f32 %v5890, 0.00021701389
    %v5894 = vlaneseq
    %v5895 = vshrl.u32 %v5894, 7
    %v5896 = vsub.s32 0, %v5895
    %v5897 = vrot.slane %v5892, %v5896
    %v5898 = vlaneseq
    %v5899 = vshrl.u32 %v5898, 7
    %v5900 = vsub.s32 0, %v5899
    %v5901 = vrot.slane %v5893, %v5900
    %v5902 = vsub.f32 %v5670, %v5897
    %v5903 = vsub.f32 %v5671, %v5901
    %v5904 = vsub.f32 %v5672, %v5897
    %v5905 = vsub.f32 %v5673, %v5901
    %v5906 = vsub.f32 %v5674, %v5897
    %v5907 = vsub.f32 %v5675, %v5901
    %v5908 = vsub.f32 %v5676, %v5897
    %v5909 = vsub.f32 %v5677, %v5901
    %v5910 = vsub.f32 %v5678, %v5897
    %v5911 = vsub.f32 %v5679, %v5901
    %v5912 = vsub.f32 %v5680, %v5897
    %v5913 = vsub.f32 %v5681, %v5901
    %v5914 = vsub.f32 %v5682, %v5897
    %v5915 = vsub.f32 %v5683, %v5901
    %v5916 = vsub.f32 %v5684, %v5897
    %v5917 = vsub.f32 %v5685, %v5901
    %v5918 = vsub.f32 %v5686, %v5897
    %v5919 = vsub.f32 %v5687, %v5901
    %v5920 = vsub.f32 %v5688, %v5897
    %v5921 = vsub.f32 %v5689, %v5901
    %v5922 = vsub.f32 %v5690, %v5897
    %v5923 = vsub.f32 %v5691, %v5901
    %v5924 = vsub.f32 %v5692, %v5897
    %v5925 = vsub.f32 %v5693, %v5901
    %v5926 = vsub.f32 %v5694, %v5897
    %v5927 = vsub.f32 %v5695, %v5901
    %v5928 = vsub.f32 %v5696, %v5897
    %v5929 = vsub.f32 %v5697, %v5901
    %v5930 = vsub.f32 %v5698, %v5897
    %v5931 = vsub.f32 %v5699, %v5901
    %v5932 = vsub.f32 %v5700, %v5897
    %v5933 = vsub.f32 %v5701, %v5901
    %v5934 = vsub.f32 %v5702, %v5897
    %v5935 = vsub.f32 %v5703, %v5901
    %v5936 = vsub.f32 %v5704, %v5897
    %v5937 = vsub.f32 %v5705, %v5901
    %v5938 = vmul.f32 %v5902, %v5902
    %v5939 = vmul.f32 %v5903, %v5903
    %v5940 = vmul.f32 %v5904, %v5904
    %v5941 = vmul.f32 %v5905, %v5905
    %v5942 = vmul.f32 %v5906, %v5906
    %v5943 = vmul.f32 %v5907, %v5907
    %v5944 = vmul.f32 %v5908, %v5908
    %v5945 = vmul.f32 %v5909, %v5909
    %v5946 = vmul.f32 %v5910, %v5910
    %v5947 = vmul.f32 %v5911, %v5911
    %v5948 = vmul.f32 %v5912, %v5912
    %v5949 = vmul.f32 %v5913, %v5913
    %v5950 = vmul.f32 %v5914, %v5914
    %v5951 = vmul.f32 %v5915, %v5915
    %v5952 = vmul.f32 %v5916, %v5916
    %v5953 = vmul.f32 %v5917, %v5917
    %v5954 = vmul.f32 %v5918, %v5918
    %v5955 = vmul.f32 %v5919, %v5919
    %v5956 = vmul.f32 %v5920, %v5920
    %v5957 = vmul.f32 %v5921, %v5921
    %v5958 = vmul.f32 %v5922, %v5922
    %v5959 = vmul.f32 %v5923, %v5923
    %v5960 = vmul.f32 %v5924, %v5924
    %v5961 = vmul.f32 %v5925, %v5925
    %v5962 = vmul.f32 %v5926, %v5926
    %v5963 = vmul.f32 %v5927, %v5927
    %v5964 = vmul.f32 %v5928, %v5928
    %v5965 = vmul.f32 %v5929, %v5929
    %v5966 = vmul.f32 %v5930, %v5930
    %v5967 = vmul.f32 %v5931, %v5931
    %v5968 = vmul.f32 %v5932, %v5932
    %v5969 = vmul.f32 %v5933, %v5933
    %v5970 = vmul.f32 %v5934, %v5934
    %v5971 = vmul.f32 %v5935, %v5935
    %v5972 = vmul.f32 %v5936, %v5936
    %v5973 = vmul.f32 %v5937, %v5937
    %v5974 = vadd.f32 %v5938, %v5940
    %v5975 = vadd.f32 %v5974, %v5942
    %v5976 = vadd.f32 %v5975, %v5944
    %v5977 = vadd.f32 %v5976, %v5946
    %v5978 = vadd.f32 %v5977, %v5948
    %v5979 = vadd.f32 %v5978, %v5950
    %v5980 = vadd.f32 %v5979, %v5952
    %v5981 = vadd.f32 %v5980, %v5954
    %v5982 = vadd.f32 %v5981, %v5956
    %v5983 = vadd.f32 %v5982, %v5958
    %v5984 = vadd.f32 %v5983, %v5960
    %v5985 = vadd.f32 %v5984, %v5962
    %v5986 = vadd.f32 %v5985, %v5964
    %v5987 = vadd.f32 %v5986, %v5966
    %v5988 = vadd.f32 %v5987, %v5968
    %v5989 = vadd.f32 %v5988, %v5970
    %v5990 = vadd.f32 %v5989, %v5972
    %v5991 = vrot.slane %v5990, 4
    %v5992 = vadd.f32 %v5990, %v5991
    %v5993 = vrot.slane %v5992, 2
    %v5994 = vadd.f32 %v5992, %v5993
    %v5995 = vrot.slane %v5994, 1
    %v5996 = vadd.f32 %v5994, %v5995
    %v5997 = vsel %vm3455, %v5939, 0.0
    %v5998 = vsel %vm3455, %v5941, 0.0
    %v5999 = vadd.f32 %v5997, %v5998
    %v6000 = vsel %vm3455, %v5943, 0.0
    %v6001 = vadd.f32 %v5999, %v6000
    %v6002 = vsel %vm3455, %v5945, 0.0
    %v6003 = vadd.f32 %v6001, %v6002
    %v6004 = vsel %vm3455, %v5947, 0.0
    %v6005 = vadd.f32 %v6003, %v6004
    %v6006 = vsel %vm3455, %v5949, 0.0
    %v6007 = vadd.f32 %v6005, %v6006
    %v6008 = vsel %vm3455, %v5951, 0.0
    %v6009 = vadd.f32 %v6007, %v6008
    %v6010 = vsel %vm3455, %v5953, 0.0
    %v6011 = vadd.f32 %v6009, %v6010
    %v6012 = vsel %vm3455, %v5955, 0.0
    %v6013 = vadd.f32 %v6011, %v6012
    %v6014 = vsel %vm3455, %v5957, 0.0
    %v6015 = vadd.f32 %v6013, %v6014
    %v6016 = vsel %vm3455, %v5959, 0.0
    %v6017 = vadd.f32 %v6015, %v6016
    %v6018 = vsel %vm3455, %v5961, 0.0
    %v6019 = vadd.f32 %v6017, %v6018
    %v6020 = vsel %vm3455, %v5963, 0.0
    %v6021 = vadd.f32 %v6019, %v6020
    %v6022 = vsel %vm3455, %v5965, 0.0
    %v6023 = vadd.f32 %v6021, %v6022
    %v6024 = vsel %vm3455, %v5967, 0.0
    %v6025 = vadd.f32 %v6023, %v6024
    %v6026 = vsel %vm3455, %v5969, 0.0
    %v6027 = vadd.f32 %v6025, %v6026
    %v6028 = vsel %vm3455, %v5971, 0.0
    %v6029 = vadd.f32 %v6027, %v6028
    %v6030 = vsel %vm3455, %v5973, 0.0
    %v6031 = vadd.f32 %v6029, %v6030
    %v6032 = vrot.slane %v6031, 4
    %v6033 = vadd.f32 %v6031, %v6032
    %v6034 = vrot.slane %v6033, 2
    %v6035 = vadd.f32 %v6033, %v6034
    %v6036 = vrot.slane %v6035, 1
    %v6037 = vadd.f32 %v6035, %v6036
    %v6039 = vsel %vm3455, %v6037, 0
    %6041 = vmatprep.subr.mxu0 %v5715
    %6042 = vmatpush1.msra.mxu0 %v5714
    %6043 = vmatprep.subr.mxu0 %v5717
    %6044 = vmatpush1.msra.mxu0 %v5716
    %6045 = vmatprep.subr.mxu0 %v5719
    %6046 = vmatpush1.msra.mxu0 %v5718
    %6047 = vmatprep.subr.mxu0 %v5721
    %6048 = vmatpush1.msra.mxu0 %v5720
    %6049 = vmatprep.subr.mxu0 %v5723
    %6050 = vmatpush1.msra.mxu0 %v5722
    %6051 = vmatprep.subr.mxu0 %v5725
    %6052 = vmatpush1.msra.mxu0 %v5724
    %6053 = vmatprep.subr.mxu0 %v5727
    %6054 = vmatpush1.msra.mxu0 %v5726
    %6055 = vmatprep.subr.mxu0 %v5729
    %6056 = vmatpush1.msra.mxu0 %v5728
    %6057 = vmatprep.subr.mxu0 %v5731
    %6058 = vmatpush1.msra.mxu0 %v5730
    %6059 = vmatprep.subr.mxu0 %v5733
    %6060 = vmatpush1.msra.mxu0 %v5732
    %6061 = vmatprep.subr.mxu0 %v5735
    %6062 = vmatpush1.msra.mxu0 %v5734
    %6063 = vmatprep.subr.mxu0 %v5737
    %6064 = vmatpush1.msra.mxu0 %v5736
    %6065 = vmatprep.subr.mxu0 %v5739
    %6066 = vmatpush1.msra.mxu0 %v5738
    %6067 = vmatprep.subr.mxu0 %v5741
    %6068 = vmatpush1.msra.mxu0 %v5740
    %6069 = vmatprep.subr.mxu0 %v5743
    %6070 = vmatpush1.msra.mxu0 %v5742
    %6071 = vmatprep.subr.mxu0 %v5745
    %6072 = vmatpush1.msra.mxu0 %v5744
    %6073 = vmatprep.subr.mxu0 %v5747
    %6074 = vmatpush1.msra.mxu0 %v5746
    %6075 = vmatprep.subr.mxu0 %v5749
    %6076 = vmatpush1.msra.mxu0 %v5748
    %6077 = vmatprep.subr.mxu0 %v5751
    %6078 = vmatpush1.msra.mxu0 %v5750
    %6079 = vmatprep.subr.mxu0 %v5753
    %6080 = vmatpush1.msra.mxu0 %v5752
    %6081 = vmatprep.subr.mxu0 0.0
    %6082 = vmatpush1.msra.mxu0 0.0
    %6083 = vmatprep.subr.mxu0 0.0
    %6084 = vmatpush1.msra.mxu0 0.0
    %6085 = vmatprep.subr.mxu0 0.0
    %6086 = vmatpush1.msra.mxu0 0.0
    %6087 = vmatprep.subr.mxu0 0.0
    %6088 = vmatpush1.msra.mxu0 0.0
    %6089 = vmatprep.subr.mxu0 0.0
    %6090 = vmatpush1.msra.mxu0 0.0
    %6091 = vmatprep.subr.mxu0 0.0
    %6092 = vmatpush1.msra.mxu0 0.0
    %6093 = vmatprep.subr.mxu0 0.0
    %6094 = vmatpush1.msra.mxu0 0.0
    %6095 = vmatprep.subr.mxu0 0.0
    %6096 = vmatpush1.msra.mxu0 0.0
    %6097 = vmatprep.subr.mxu0 0.0
    %6098 = vmatpush1.msra.mxu0 0.0
    %6099 = vmatprep.subr.mxu0 0.0
    %6100 = vmatpush1.msra.mxu0 0.0
    %6101 = vmatprep.subr.mxu0 0.0
    %6102 = vmatpush1.msra.mxu0 0.0
    %6103 = vmatprep.subr.mxu0 0.0
    %6104 = vmatpush1.msra.mxu0 0.0
    %6105 = vmatprep.mubr.f32.mxu0 %v6039
    %6106 = vmatmul.mubr.f32.gmra.mrb[0].mxu0 %v5996
    %v6107 = vpop.f32.mrb[0].mxu0
    %v6108 = vadd.f32 0.0, %v6107
    %v6109 = vpop.f32.mrb[0].mxu0
    %v6110 = vadd.f32 0.0, %v6109
    %6111 = vdwg.mxu0
    %v6112 = vmul.f32 %v6108, 0.00021701389
    %v6113 = vmul.f32 %v6110, 0.00021701389
    %v6114 = vadd.f32 %v6112, 1e-05
    %v6115 = vadd.f32 %v6113, 1e-05
    %v6116 = vrsqrt.pop %v6114
    %v6117 = vrsqrt.pop %v6115
    %v6118 = vlaneseq
    %v6119 = vshrl.u32 %v6118, 7
    %v6120 = vsub.s32 0, %v6119
    %v6121 = vrot.slane %v6116, %v6120
    %v6122 = vlaneseq
    %v6123 = vshrl.u32 %v6122, 7
    %v6124 = vsub.s32 0, %v6123
    %v6125 = vrot.slane %v6117, %v6124
    %v6126 = vmul.f32 %v5902, %v6121
    %v6127 = vmul.f32 %v5903, %v6125
    %v6128 = vmul.f32 %v5904, %v6121
    %v6129 = vmul.f32 %v5905, %v6125
    %v6130 = vmul.f32 %v5906, %v6121
    %v6131 = vmul.f32 %v5907, %v6125
    %v6132 = vmul.f32 %v5908, %v6121
    %v6133 = vmul.f32 %v5909, %v6125
    %v6134 = vmul.f32 %v5910, %v6121
    %v6135 = vmul.f32 %v5911, %v6125
    %v6136 = vmul.f32 %v5912, %v6121
    %v6137 = vmul.f32 %v5913, %v6125
    %v6138 = vmul.f32 %v5914, %v6121
    %v6139 = vmul.f32 %v5915, %v6125
    %v6140 = vmul.f32 %v5916, %v6121
    %v6141 = vmul.f32 %v5917, %v6125
    %v6142 = vmul.f32 %v5918, %v6121
    %v6143 = vmul.f32 %v5919, %v6125
    %v6144 = vmul.f32 %v5920, %v6121
    %v6145 = vmul.f32 %v5921, %v6125
    %v6146 = vmul.f32 %v5922, %v6121
    %v6147 = vmul.f32 %v5923, %v6125
    %v6148 = vmul.f32 %v5924, %v6121
    %v6149 = vmul.f32 %v5925, %v6125
    %v6150 = vmul.f32 %v5926, %v6121
    %v6151 = vmul.f32 %v5927, %v6125
    %v6152 = vmul.f32 %v5928, %v6121
    %v6153 = vmul.f32 %v5929, %v6125
    %v6154 = vmul.f32 %v5930, %v6121
    %v6155 = vmul.f32 %v5931, %v6125
    %v6156 = vmul.f32 %v5932, %v6121
    %v6157 = vmul.f32 %v5933, %v6125
    %v6158 = vmul.f32 %v5934, %v6121
    %v6159 = vmul.f32 %v5935, %v6125
    %v6160 = vmul.f32 %v5936, %v6121
    %v6161 = vmul.f32 %v5937, %v6125
    %v6163 = vlaneseq
    %v6164 = vshrl.u32 %v6163, 7
    %v6165 = vsub.s32 0, %v6164
    %v6166 = vrot.slane %v5707, %v6165
    %v6167 = vlaneseq
    %v6168 = vshrl.u32 %v6167, 7
    %v6169 = vsub.s32 1, %v6168
    %v6170 = vrot.slane %v5707, %v6169
    %v6173 = vmul.f32 %v6126, %v6166
    %v6174 = vmul.f32 %v6127, %v6170
    %v6175 = vmul.f32 %v6128, %v6166
    %v6176 = vmul.f32 %v6129, %v6170
    %v6177 = vmul.f32 %v6130, %v6166
    %v6178 = vmul.f32 %v6131, %v6170
    %v6179 = vmul.f32 %v6132, %v6166
    %v6180 = vmul.f32 %v6133, %v6170
    %v6181 = vmul.f32 %v6134, %v6166
    %v6182 = vmul.f32 %v6135, %v6170
    %v6183 = vmul.f32 %v6136, %v6166
    %v6184 = vmul.f32 %v6137, %v6170
    %v6185 = vmul.f32 %v6138, %v6166
    %v6186 = vmul.f32 %v6139, %v6170
    %v6187 = vmul.f32 %v6140, %v6166
    %v6188 = vmul.f32 %v6141, %v6170
    %v6189 = vmul.f32 %v6142, %v6166
    %v6190 = vmul.f32 %v6143, %v6170
    %v6191 = vmul.f32 %v6144, %v6166
    %v6192 = vmul.f32 %v6145, %v6170
    %v6193 = vmul.f32 %v6146, %v6166
    %v6194 = vmul.f32 %v6147, %v6170
    %v6195 = vmul.f32 %v6148, %v6166
    %v6196 = vmul.f32 %v6149, %v6170
    %v6197 = vmul.f32 %v6150, %v6166
    %v6198 = vmul.f32 %v6151, %v6170
    %v6199 = vmul.f32 %v6152, %v6166
    %v6200 = vmul.f32 %v6153, %v6170
    %v6201 = vmul.f32 %v6154, %v6166
    %v6202 = vmul.f32 %v6155, %v6170
    %v6203 = vmul.f32 %v6156, %v6166
    %v6204 = vmul.f32 %v6157, %v6170
    %v6205 = vmul.f32 %v6158, %v6166
    %v6206 = vmul.f32 %v6159, %v6170
    %v6207 = vmul.f32 %v6160, %v6166
    %v6208 = vmul.f32 %v6161, %v6170
    %v6210 = vlaneseq
    %v6211 = vshrl.u32 %v6210, 7
    %v6212 = vsub.s32 0, %v6211
    %v6213 = vrot.slane %v5709, %v6212
    %v6214 = vlaneseq
    %v6215 = vshrl.u32 %v6214, 7
    %v6216 = vsub.s32 1, %v6215
    %v6217 = vrot.slane %v5709, %v6216
    %v6220 = vadd.f32 %v6173, %v6213
    %v6221 = vadd.f32 %v6174, %v6217
    %v6222 = vadd.f32 %v6175, %v6213
    %v6223 = vadd.f32 %v6176, %v6217
    %v6224 = vadd.f32 %v6177, %v6213
    %v6225 = vadd.f32 %v6178, %v6217
    %v6226 = vadd.f32 %v6179, %v6213
    %v6227 = vadd.f32 %v6180, %v6217
    %v6228 = vadd.f32 %v6181, %v6213
    %v6229 = vadd.f32 %v6182, %v6217
    %v6230 = vadd.f32 %v6183, %v6213
    %v6231 = vadd.f32 %v6184, %v6217
    %v6232 = vadd.f32 %v6185, %v6213
    %v6233 = vadd.f32 %v6186, %v6217
    %v6234 = vadd.f32 %v6187, %v6213
    %v6235 = vadd.f32 %v6188, %v6217
    %v6236 = vadd.f32 %v6189, %v6213
    %v6237 = vadd.f32 %v6190, %v6217
    %v6238 = vadd.f32 %v6191, %v6213
    %v6239 = vadd.f32 %v6192, %v6217
    %v6240 = vadd.f32 %v6193, %v6213
    %v6241 = vadd.f32 %v6194, %v6217
    %v6242 = vadd.f32 %v6195, %v6213
    %v6243 = vadd.f32 %v6196, %v6217
    %v6244 = vadd.f32 %v6197, %v6213
    %v6245 = vadd.f32 %v6198, %v6217
    %v6246 = vadd.f32 %v6199, %v6213
    %v6247 = vadd.f32 %v6200, %v6217
    %v6248 = vadd.f32 %v6201, %v6213
    %v6249 = vadd.f32 %v6202, %v6217
    %v6250 = vadd.f32 %v6203, %v6213
    %v6251 = vadd.f32 %v6204, %v6217
    %v6252 = vadd.f32 %v6205, %v6213
    %v6253 = vadd.f32 %v6206, %v6217
    %v6254 = vadd.f32 %v6207, %v6213
    %v6255 = vadd.f32 %v6208, %v6217
    %v6257 = vlaneseq
    %v6258 = vshrl.u32 %v6257, 7
    %v6259 = vsub.s32 0, %v6258
    %v6260 = vrot.slane %v5711, %v6259
    %v6261 = vlaneseq
    %v6262 = vshrl.u32 %v6261, 7
    %v6263 = vsub.s32 1, %v6262
    %v6264 = vrot.slane %v5711, %v6263
    %v6267 = vmul.f32 %v6126, %v6260
    %v6268 = vmul.f32 %v6127, %v6264
    %v6269 = vmul.f32 %v6128, %v6260
    %v6270 = vmul.f32 %v6129, %v6264
    %v6271 = vmul.f32 %v6130, %v6260
    %v6272 = vmul.f32 %v6131, %v6264
    %v6273 = vmul.f32 %v6132, %v6260
    %v6274 = vmul.f32 %v6133, %v6264
    %v6275 = vmul.f32 %v6134, %v6260
    %v6276 = vmul.f32 %v6135, %v6264
    %v6277 = vmul.f32 %v6136, %v6260
    %v6278 = vmul.f32 %v6137, %v6264
    %v6279 = vmul.f32 %v6138, %v6260
    %v6280 = vmul.f32 %v6139, %v6264
    %v6281 = vmul.f32 %v6140, %v6260
    %v6282 = vmul.f32 %v6141, %v6264
    %v6283 = vmul.f32 %v6142, %v6260
    %v6284 = vmul.f32 %v6143, %v6264
    %v6285 = vmul.f32 %v6144, %v6260
    %v6286 = vmul.f32 %v6145, %v6264
    %v6287 = vmul.f32 %v6146, %v6260
    %v6288 = vmul.f32 %v6147, %v6264
    %v6289 = vmul.f32 %v6148, %v6260
    %v6290 = vmul.f32 %v6149, %v6264
    %v6291 = vmul.f32 %v6150, %v6260
    %v6292 = vmul.f32 %v6151, %v6264
    %v6293 = vmul.f32 %v6152, %v6260
    %v6294 = vmul.f32 %v6153, %v6264
    %v6295 = vmul.f32 %v6154, %v6260
    %v6296 = vmul.f32 %v6155, %v6264
    %v6297 = vmul.f32 %v6156, %v6260
    %v6298 = vmul.f32 %v6157, %v6264
    %v6299 = vmul.f32 %v6158, %v6260
    %v6300 = vmul.f32 %v6159, %v6264
    %v6301 = vmul.f32 %v6160, %v6260
    %v6302 = vmul.f32 %v6161, %v6264
    %v6304 = vlaneseq
    %v6305 = vshrl.u32 %v6304, 7
    %v6306 = vsub.s32 0, %v6305
    %v6307 = vrot.slane %v5713, %v6306
    %v6308 = vlaneseq
    %v6309 = vshrl.u32 %v6308, 7
    %v6310 = vsub.s32 1, %v6309
    %v6311 = vrot.slane %v5713, %v6310
    %v6314 = vadd.f32 %v6267, %v6307
    %v6315 = vadd.f32 %v6268, %v6311
    %v6316 = vadd.f32 %v6269, %v6307
    %v6317 = vadd.f32 %v6270, %v6311
    %v6318 = vadd.f32 %v6271, %v6307
    %v6319 = vadd.f32 %v6272, %v6311
    %v6320 = vadd.f32 %v6273, %v6307
    %v6321 = vadd.f32 %v6274, %v6311
    %v6322 = vadd.f32 %v6275, %v6307
    %v6323 = vadd.f32 %v6276, %v6311
    %v6324 = vadd.f32 %v6277, %v6307
    %v6325 = vadd.f32 %v6278, %v6311
    %v6326 = vadd.f32 %v6279, %v6307
    %v6327 = vadd.f32 %v6280, %v6311
    %v6328 = vadd.f32 %v6281, %v6307
    %v6329 = vadd.f32 %v6282, %v6311
    %v6330 = vadd.f32 %v6283, %v6307
    %v6331 = vadd.f32 %v6284, %v6311
    %v6332 = vadd.f32 %v6285, %v6307
    %v6333 = vadd.f32 %v6286, %v6311
    %v6334 = vadd.f32 %v6287, %v6307
    %v6335 = vadd.f32 %v6288, %v6311
    %v6336 = vadd.f32 %v6289, %v6307
    %v6337 = vadd.f32 %v6290, %v6311
    %v6338 = vadd.f32 %v6291, %v6307
    %v6339 = vadd.f32 %v6292, %v6311
    %v6340 = vadd.f32 %v6293, %v6307
    %v6341 = vadd.f32 %v6294, %v6311
    %v6342 = vadd.f32 %v6295, %v6307
    %v6343 = vadd.f32 %v6296, %v6311
    %v6344 = vadd.f32 %v6297, %v6307
    %v6345 = vadd.f32 %v6298, %v6311
    %v6346 = vadd.f32 %v6299, %v6307
    %v6347 = vadd.f32 %v6300, %v6311
    %v6348 = vadd.f32 %v6301, %v6307
    %v6349 = vadd.f32 %v6302, %v6311
    %v6350 = vxor.u32 %v6314, 2147483648
    %v6351 = vxor.u32 %v6315, 2147483648
    %v6352 = vxor.u32 %v6316, 2147483648
    %v6353 = vxor.u32 %v6317, 2147483648
    %v6354 = vxor.u32 %v6318, 2147483648
    %v6355 = vxor.u32 %v6319, 2147483648
    %v6356 = vxor.u32 %v6320, 2147483648
    %v6357 = vxor.u32 %v6321, 2147483648
    %v6358 = vxor.u32 %v6322, 2147483648
    %v6359 = vxor.u32 %v6323, 2147483648
    %v6360 = vxor.u32 %v6324, 2147483648
    %v6361 = vxor.u32 %v6325, 2147483648
    %v6362 = vxor.u32 %v6326, 2147483648
    %v6363 = vxor.u32 %v6327, 2147483648
    %v6364 = vxor.u32 %v6328, 2147483648
    %v6365 = vxor.u32 %v6329, 2147483648
    %v6366 = vxor.u32 %v6330, 2147483648
    %v6367 = vxor.u32 %v6331, 2147483648
    %v6368 = vxor.u32 %v6332, 2147483648
    %v6369 = vxor.u32 %v6333, 2147483648
    %v6370 = vxor.u32 %v6334, 2147483648
    %v6371 = vxor.u32 %v6335, 2147483648
    %v6372 = vxor.u32 %v6336, 2147483648
    %v6373 = vxor.u32 %v6337, 2147483648
    %v6374 = vxor.u32 %v6338, 2147483648
    %v6375 = vxor.u32 %v6339, 2147483648
    %v6376 = vxor.u32 %v6340, 2147483648
    %v6377 = vxor.u32 %v6341, 2147483648
    %v6378 = vxor.u32 %v6342, 2147483648
    %v6379 = vxor.u32 %v6343, 2147483648
    %v6380 = vxor.u32 %v6344, 2147483648
    %v6381 = vxor.u32 %v6345, 2147483648
    %v6382 = vxor.u32 %v6346, 2147483648
    %v6383 = vxor.u32 %v6347, 2147483648
    %v6384 = vxor.u32 %v6348, 2147483648
    %v6385 = vxor.u32 %v6349, 2147483648
    %v6386 = vmul.f32 %v6350, 1.442695
    %v6387 = vpow.pop %v6386
    %v6388 = vmul.f32 %v6351, 1.442695
    %v6389 = vpow.pop %v6388
    %v6390 = vmul.f32 %v6352, 1.442695
    %v6391 = vpow.pop %v6390
    %v6392 = vmul.f32 %v6353, 1.442695
    %v6393 = vpow.pop %v6392
    %v6394 = vmul.f32 %v6354, 1.442695
    %v6395 = vpow.pop %v6394
    %v6396 = vmul.f32 %v6355, 1.442695
    %v6397 = vpow.pop %v6396
    %v6398 = vmul.f32 %v6356, 1.442695
    %v6399 = vpow.pop %v6398
    %v6400 = vmul.f32 %v6357, 1.442695
    %v6401 = vpow.pop %v6400
    %v6402 = vmul.f32 %v6358, 1.442695
    %v6403 = vpow.pop %v6402
    %v6404 = vmul.f32 %v6359, 1.442695
    %v6405 = vpow.pop %v6404
    %v6406 = vmul.f32 %v6360, 1.442695
    %v6407 = vpow.pop %v6406
    %v6408 = vmul.f32 %v6361, 1.442695
    %v6409 = vpow.pop %v6408
    %v6410 = vmul.f32 %v6362, 1.442695
    %v6411 = vpow.pop %v6410
    %v6412 = vmul.f32 %v6363, 1.442695
    %v6413 = vpow.pop %v6412
    %v6414 = vmul.f32 %v6364, 1.442695
    %v6415 = vpow.pop %v6414
    %v6416 = vmul.f32 %v6365, 1.442695
    %v6417 = vpow.pop %v6416
    %v6418 = vmul.f32 %v6366, 1.442695
    %v6419 = vpow.pop %v6418
    %v6420 = vmul.f32 %v6367, 1.442695
    %v6421 = vpow.pop %v6420
    %v6422 = vmul.f32 %v6368, 1.442695
    %v6423 = vpow.pop %v6422
    %v6424 = vmul.f32 %v6369, 1.442695
    %v6425 = vpow.pop %v6424
    %v6426 = vmul.f32 %v6370, 1.442695
    %v6427 = vpow.pop %v6426
    %v6428 = vmul.f32 %v6371, 1.442695
    %v6429 = vpow.pop %v6428
    %v6430 = vmul.f32 %v6372, 1.442695
    %v6431 = vpow.pop %v6430
    %v6432 = vmul.f32 %v6373, 1.442695
    %v6433 = vpow.pop %v6432
    %v6434 = vmul.f32 %v6374, 1.442695
    %v6435 = vpow.pop %v6434
    %v6436 = vmul.f32 %v6375, 1.442695
    %v6437 = vpow.pop %v6436
    %v6438 = vmul.f32 %v6376, 1.442695
    %v6439 = vpow.pop %v6438
    %v6440 = vmul.f32 %v6377, 1.442695
    %v6441 = vpow.pop %v6440
    %v6442 = vmul.f32 %v6378, 1.442695
    %v6443 = vpow.pop %v6442
    %v6444 = vmul.f32 %v6379, 1.442695
    %v6445 = vpow.pop %v6444
    %v6446 = vmul.f32 %v6380, 1.442695
    %v6447 = vpow.pop %v6446
    %v6448 = vmul.f32 %v6381, 1.442695
    %v6449 = vpow.pop %v6448
    %v6450 = vmul.f32 %v6382, 1.442695
    %v6451 = vpow.pop %v6450
    %v6452 = vmul.f32 %v6383, 1.442695
    %v6453 = vpow.pop %v6452
    %v6454 = vmul.f32 %v6384, 1.442695
    %v6455 = vpow.pop %v6454
    %v6456 = vmul.f32 %v6385, 1.442695
    %v6457 = vpow.pop %v6456
    %v6458 = vadd.f32 %v6387, 1.0
    %v6459 = vadd.f32 %v6389, 1.0
    %v6460 = vadd.f32 %v6391, 1.0
    %v6461 = vadd.f32 %v6393, 1.0
    %v6462 = vadd.f32 %v6395, 1.0
    %v6463 = vadd.f32 %v6397, 1.0
    %v6464 = vadd.f32 %v6399, 1.0
    %v6465 = vadd.f32 %v6401, 1.0
    %v6466 = vadd.f32 %v6403, 1.0
    %v6467 = vadd.f32 %v6405, 1.0
    %v6468 = vadd.f32 %v6407, 1.0
    %v6469 = vadd.f32 %v6409, 1.0
    %v6470 = vadd.f32 %v6411, 1.0
    %v6471 = vadd.f32 %v6413, 1.0
    %v6472 = vadd.f32 %v6415, 1.0
    %v6473 = vadd.f32 %v6417, 1.0
    %v6474 = vadd.f32 %v6419, 1.0
    %v6475 = vadd.f32 %v6421, 1.0
    %v6476 = vadd.f32 %v6423, 1.0
    %v6477 = vadd.f32 %v6425, 1.0
    %v6478 = vadd.f32 %v6427, 1.0
    %v6479 = vadd.f32 %v6429, 1.0
    %v6480 = vadd.f32 %v6431, 1.0
    %v6481 = vadd.f32 %v6433, 1.0
    %v6482 = vadd.f32 %v6435, 1.0
    %v6483 = vadd.f32 %v6437, 1.0
    %v6484 = vadd.f32 %v6439, 1.0
    %v6485 = vadd.f32 %v6441, 1.0
    %v6486 = vadd.f32 %v6443, 1.0
    %v6487 = vadd.f32 %v6445, 1.0
    %v6488 = vadd.f32 %v6447, 1.0
    %v6489 = vadd.f32 %v6449, 1.0
    %v6490 = vadd.f32 %v6451, 1.0
    %v6491 = vadd.f32 %v6453, 1.0
    %v6492 = vadd.f32 %v6455, 1.0
    %v6493 = vadd.f32 %v6457, 1.0
    %v6494 = vrcp.pop %v6458
    %v6495 = vmul.f32 1.0, %v6494
    %v6496 = vrcp.pop %v6459
    %v6497 = vmul.f32 1.0, %v6496
    %v6498 = vrcp.pop %v6460
    %v6499 = vmul.f32 1.0, %v6498
    %v6500 = vrcp.pop %v6461
    %v6501 = vmul.f32 1.0, %v6500
    %v6502 = vrcp.pop %v6462
    %v6503 = vmul.f32 1.0, %v6502
    %v6504 = vrcp.pop %v6463
    %v6505 = vmul.f32 1.0, %v6504
    %v6506 = vrcp.pop %v6464
    %v6507 = vmul.f32 1.0, %v6506
    %v6508 = vrcp.pop %v6465
    %v6509 = vmul.f32 1.0, %v6508
    %v6510 = vrcp.pop %v6466
    %v6511 = vmul.f32 1.0, %v6510
    %v6512 = vrcp.pop %v6467
    %v6513 = vmul.f32 1.0, %v6512
    %v6514 = vrcp.pop %v6468
    %v6515 = vmul.f32 1.0, %v6514
    %v6516 = vrcp.pop %v6469
    %v6517 = vmul.f32 1.0, %v6516
    %v6518 = vrcp.pop %v6470
    %v6519 = vmul.f32 1.0, %v6518
    %v6520 = vrcp.pop %v6471
    %v6521 = vmul.f32 1.0, %v6520
    %v6522 = vrcp.pop %v6472
    %v6523 = vmul.f32 1.0, %v6522
    %v6524 = vrcp.pop %v6473
    %v6525 = vmul.f32 1.0, %v6524
    %v6526 = vrcp.pop %v6474
    %v6527 = vmul.f32 1.0, %v6526
    %v6528 = vrcp.pop %v6475
    %v6529 = vmul.f32 1.0, %v6528
    %v6530 = vrcp.pop %v6476
    %v6531 = vmul.f32 1.0, %v6530
    %v6532 = vrcp.pop %v6477
    %v6533 = vmul.f32 1.0, %v6532
    %v6534 = vrcp.pop %v6478
    %v6535 = vmul.f32 1.0, %v6534
    %v6536 = vrcp.pop %v6479
    %v6537 = vmul.f32 1.0, %v6536
    %v6538 = vrcp.pop %v6480
    %v6539 = vmul.f32 1.0, %v6538
    %v6540 = vrcp.pop %v6481
    %v6541 = vmul.f32 1.0, %v6540
    %v6542 = vrcp.pop %v6482
    %v6543 = vmul.f32 1.0, %v6542
    %v6544 = vrcp.pop %v6483
    %v6545 = vmul.f32 1.0, %v6544
    %v6546 = vrcp.pop %v6484
    %v6547 = vmul.f32 1.0, %v6546
    %v6548 = vrcp.pop %v6485
    %v6549 = vmul.f32 1.0, %v6548
    %v6550 = vrcp.pop %v6486
    %v6551 = vmul.f32 1.0, %v6550
    %v6552 = vrcp.pop %v6487
    %v6553 = vmul.f32 1.0, %v6552
    %v6554 = vrcp.pop %v6488
    %v6555 = vmul.f32 1.0, %v6554
    %v6556 = vrcp.pop %v6489
    %v6557 = vmul.f32 1.0, %v6556
    %v6558 = vrcp.pop %v6490
    %v6559 = vmul.f32 1.0, %v6558
    %v6560 = vrcp.pop %v6491
    %v6561 = vmul.f32 1.0, %v6560
    %v6562 = vrcp.pop %v6492
    %v6563 = vmul.f32 1.0, %v6562
    %v6564 = vrcp.pop %v6493
    %v6565 = vmul.f32 1.0, %v6564
    %v6566 = vmul.f32 %v6220, %v6495
    %v6567 = vmul.f32 %v6221, %v6497
    %v6568 = vmul.f32 %v6222, %v6499
    %v6569 = vmul.f32 %v6223, %v6501
    %v6570 = vmul.f32 %v6224, %v6503
    %v6571 = vmul.f32 %v6225, %v6505
    %v6572 = vmul.f32 %v6226, %v6507
    %v6573 = vmul.f32 %v6227, %v6509
    %v6574 = vmul.f32 %v6228, %v6511
    %v6575 = vmul.f32 %v6229, %v6513
    %v6576 = vmul.f32 %v6230, %v6515
    %v6577 = vmul.f32 %v6231, %v6517
    %v6578 = vmul.f32 %v6232, %v6519
    %v6579 = vmul.f32 %v6233, %v6521
    %v6580 = vmul.f32 %v6234, %v6523
    %v6581 = vmul.f32 %v6235, %v6525
    %v6582 = vmul.f32 %v6236, %v6527
    %v6583 = vmul.f32 %v6237, %v6529
    %v6584 = vmul.f32 %v6238, %v6531
    %v6585 = vmul.f32 %v6239, %v6533
    %v6586 = vmul.f32 %v6240, %v6535
    %v6587 = vmul.f32 %v6241, %v6537
    %v6588 = vmul.f32 %v6242, %v6539
    %v6589 = vmul.f32 %v6243, %v6541
    %v6590 = vmul.f32 %v6244, %v6543
    %v6591 = vmul.f32 %v6245, %v6545
    %v6592 = vmul.f32 %v6246, %v6547
    %v6593 = vmul.f32 %v6247, %v6549
    %v6594 = vmul.f32 %v6248, %v6551
    %v6595 = vmul.f32 %v6249, %v6553
    %v6596 = vmul.f32 %v6250, %v6555
    %v6597 = vmul.f32 %v6251, %v6557
    %v6598 = vmul.f32 %v6252, %v6559
    %v6599 = vmul.f32 %v6253, %v6561
    %v6600 = vmul.f32 %v6254, %v6563
    %v6601 = vmul.f32 %v6255, %v6565
    %v6602 = vld [vmem:[#allocation7] sm:$0xff]
    %v6603 = vld [vmem:[#allocation7 + $0x8] sm:$0xff]
    %v6604 = vld [vmem:[#allocation7 + $0x10] sm:$0xff]
    %v6605 = vld [vmem:[#allocation7 + $0x18] sm:$0xff]
    %v6606 = vld [vmem:[#allocation7 + $0x20] sm:$0xff]
    %v6607 = vld [vmem:[#allocation7 + $0x28] sm:$0xff]
    %v6608 = vld [vmem:[#allocation7 + $0x30] sm:$0xff]
    %v6609 = vld [vmem:[#allocation7 + $0x38] sm:$0xff]
    %v6610 = vld [vmem:[#allocation7 + $0x40] sm:$0xff]
    %v6611 = vld [vmem:[#allocation7 + $0x48] sm:$0xff]
    %v6612 = vld [vmem:[#allocation7 + $0x50] sm:$0xff]
    %v6613 = vld [vmem:[#allocation7 + $0x58] sm:$0xff]
    %v6614 = vld [vmem:[#allocation7 + $0x60] sm:$0xff]
    %v6615 = vld [vmem:[#allocation7 + $0x68] sm:$0xff]
    %v6616 = vld [vmem:[#allocation7 + $0x70] sm:$0xff]
    %v6617 = vld [vmem:[#allocation7 + $0x78] sm:$0xff]
    %v6618 = vld [vmem:[#allocation7 + $0x80] sm:$0xff]
    %v6619 = vld [vmem:[#allocation7 + $0x88] sm:$0xff]
    %v6620 = vld [vmem:[#allocation7 + $0x90] sm:$0xff]
    %v6621 = vld [vmem:[#allocation7 + $0x98] sm:$0xff]
    %v6623 = vsel %vm3455, %v6567, 0
    %v6626 = vsel %vm3455, %v6569, 0
    %v6629 = vsel %vm3455, %v6571, 0
    %v6632 = vsel %vm3455, %v6573, 0
    %v6635 = vsel %vm3455, %v6575, 0
    %v6638 = vsel %vm3455, %v6577, 0
    %v6641 = vsel %vm3455, %v6579, 0
    %v6644 = vsel %vm3455, %v6581, 0
    %v6647 = vsel %vm3455, %v6583, 0
    %v6650 = vsel %vm3455, %v6585, 0
    %v6653 = vsel %vm3455, %v6587, 0
    %v6656 = vsel %vm3455, %v6589, 0
    %v6659 = vsel %vm3455, %v6591, 0
    %v6662 = vsel %vm3455, %v6593, 0
    %v6665 = vsel %vm3455, %v6595, 0
    %v6668 = vsel %vm3455, %v6597, 0
    %v6671 = vsel %vm3455, %v6599, 0
    %v6674 = vsel %vm3455, %v6601, 0
    %6676 = vmatprep.subr.mxu0 0.0
    %6677 = vmatpush1.msra.mxu0 %v6602
    %6678 = vmatprep.subr.mxu0 0.0
    %6679 = vmatpush1.msra.mxu0 %v6603
    %6680 = vmatprep.subr.mxu0 0.0
    %6681 = vmatpush1.msra.mxu0 %v6604
    %6682 = vmatprep.subr.mxu0 0.0
    %6683 = vmatpush1.msra.mxu0 %v6605
    %6684 = vmatprep.subr.mxu0 0.0
    %6685 = vmatpush1.msra.mxu0 %v6606
    %6686 = vmatprep.subr.mxu0 0.0
    %6687 = vmatpush1.msra.mxu0 %v6607
    %6688 = vmatprep.subr.mxu0 0.0
    %6689 = vmatpush1.msra.mxu0 %v6608
    %6690 = vmatprep.subr.mxu0 0.0
    %6691 = vmatpush1.msra.mxu0 %v6609
    %6692 = vmatprep.subr.mxu0 0.0
    %6693 = vmatpush1.msra.mxu0 %v6610
    %6694 = vmatprep.subr.mxu0 0.0
    %6695 = vmatpush1.msra.mxu0 %v6611
    %6696 = vmatprep.subr.mxu0 0.0
    %6697 = vmatpush1.msra.mxu0 %v6612
    %6698 = vmatprep.subr.mxu0 0.0
    %6699 = vmatpush1.msra.mxu0 %v6613
    %6700 = vmatprep.subr.mxu0 0.0
    %6701 = vmatpush1.msra.mxu0 %v6614
    %6702 = vmatprep.subr.mxu0 0.0
    %6703 = vmatpush1.msra.mxu0 %v6615
    %6704 = vmatprep.subr.mxu0 0.0
    %6705 = vmatpush1.msra.mxu0 %v6616
    %6706 = vmatprep.subr.mxu0 0.0
    %6707 = vmatpush1.msra.mxu0 %v6617
    %6708 = vmatprep.subr.mxu0 0.0
    %6709 = vmatpush1.msra.mxu0 %v6618
    %6710 = vmatprep.subr.mxu0 0.0
    %6711 = vmatpush1.msra.mxu0 %v6619
    %6712 = vmatprep.subr.mxu0 0.0
    %6713 = vmatpush1.msra.mxu0 %v6620
    %6714 = vmatprep.subr.mxu0 0.0
    %6715 = vmatpush1.msra.mxu0 %v6621
    %6716 = vmatprep.subr.mxu0 0.0
    %6717 = vmatpush1.msra.mxu0 0.0
    %6718 = vmatprep.subr.mxu0 0.0
    %6719 = vmatpush1.msra.mxu0 0.0
    %6720 = vmatprep.subr.mxu0 0.0
    %6721 = vmatpush1.msra.mxu0 0.0
    %6722 = vmatprep.subr.mxu0 0.0
    %6723 = vmatpush1.msra.mxu0 0.0
    %6724 = vmatprep.subr.mxu0 0.0
    %6725 = vmatpush1.msra.mxu0 0.0
    %6726 = vmatprep.subr.mxu0 0.0
    %6727 = vmatpush1.msra.mxu0 0.0
    %6728 = vmatprep.subr.mxu0 0.0
    %6729 = vmatpush1.msra.mxu0 0.0
    %6730 = vmatprep.subr.mxu0 0.0
    %6731 = vmatpush1.msra.mxu0 0.0
    %6732 = vmatprep.subr.mxu0 0.0
    %6733 = vmatpush1.msra.mxu0 0.0
    %6734 = vmatprep.subr.mxu0 0.0
    %6735 = vmatpush1.msra.mxu0 0.0
    %6736 = vmatprep.subr.mxu0 0.0
    %6737 = vmatpush1.msra.mxu0 0.0
    %6738 = vmatprep.subr.mxu0 0.0
    %6739 = vmatpush1.msra.mxu0 0.0
    %6740 = vmatprep.mubr.f32.mxu0 %v6623
    %6741 = vmatmul.mubr.f32.gmra.mrb[0].mxu0 %v6566
    %v6742 = vpop.f32.mrb[0].mxu0
    %v6743 = vadd.f32 0.0, %v6742
    %v6744 = vpop.f32.mrb[0].mxu0
    %6745 = vmatprep.mubr.f32.mxu0 %v6626
    %6746 = vmatmul.mubr.f32.gmra.mrb[0].mxu0 %v6568
    %v6747 = vpop.f32.mrb[0].mxu0
    %v6748 = vadd.f32 0.0, %v6747
    %v6749 = vpop.f32.mrb[0].mxu0
    %6750 = vmatprep.mubr.f32.mxu0 %v6629
    %6751 = vmatmul.mubr.f32.gmra.mrb[0].mxu0 %v6570
    %v6752 = vpop.f32.mrb[0].mxu0
    %v6753 = vadd.f32 0.0, %v6752
    %v6754 = vpop.f32.mrb[0].mxu0
    %6755 = vmatprep.mubr.f32.mxu0 %v6632
    %6756 = vmatmul.mubr.f32.gmra.mrb[0].mxu0 %v6572
    %v6757 = vpop.f32.mrb[0].mxu0
    %v6758 = vadd.f32 0.0, %v6757
    %v6759 = vpop.f32.mrb[0].mxu0
    %6760 = vmatprep.mubr.f32.mxu0 %v6635
    %6761 = vmatmul.mubr.f32.gmra.mrb[0].mxu0 %v6574
    %v6762 = vpop.f32.mrb[0].mxu0
    %v6763 = vadd.f32 0.0, %v6762
    %v6764 = vpop.f32.mrb[0].mxu0
    %6765 = vmatprep.mubr.f32.mxu0 %v6638
    %6766 = vmatmul.mubr.f32.gmra.mrb[0].mxu0 %v6576
    %v6767 = vpop.f32.mrb[0].mxu0
    %v6768 = vadd.f32 0.0, %v6767
    %v6769 = vpop.f32.mrb[0].mxu0
    %6770 = vmatprep.mubr.f32.mxu0 %v6641
    %6771 = vmatmul.mubr.f32.gmra.mrb[0].mxu0 %v6578
    %v6772 = vpop.f32.mrb[0].mxu0
    %v6773 = vadd.f32 0.0, %v6772
    %v6774 = vpop.f32.mrb[0].mxu0
    %6775 = vmatprep.mubr.f32.mxu0 %v6644
    %6776 = vmatmul.mubr.f32.gmra.mrb[0].mxu0 %v6580
    %v6777 = vpop.f32.mrb[0].mxu0
    %v6778 = vadd.f32 0.0, %v6777
    %v6779 = vpop.f32.mrb[0].mxu0
    %6780 = vmatprep.mubr.f32.mxu0 %v6647
    %6781 = vmatmul.mubr.f32.gmra.mrb[0].mxu0 %v6582
    %v6782 = vpop.f32.mrb[0].mxu0
    %v6783 = vadd.f32 0.0, %v6782
    %v6784 = vpop.f32.mrb[0].mxu0
    %6785 = vmatprep.mubr.f32.mxu0 %v6650
    %6786 = vmatmul.mubr.f32.gmra.mrb[0].mxu0 %v6584
    %v6787 = vpop.f32.mrb[0].mxu0
    %v6788 = vadd.f32 0.0, %v6787
    %v6789 = vpop.f32.mrb[0].mxu0
    %6790 = vmatprep.mubr.f32.mxu0 %v6653
    %6791 = vmatmul.mubr.f32.gmra.mrb[0].mxu0 %v6586
    %v6792 = vpop.f32.mrb[0].mxu0
    %v6793 = vadd.f32 0.0, %v6792
    %v6794 = vpop.f32.mrb[0].mxu0
    %6795 = vmatprep.mubr.f32.mxu0 %v6656
    %6796 = vmatmul.mubr.f32.gmra.mrb[0].mxu0 %v6588
    %v6797 = vpop.f32.mrb[0].mxu0
    %v6798 = vadd.f32 0.0, %v6797
    %v6799 = vpop.f32.mrb[0].mxu0
    %6800 = vmatprep.mubr.f32.mxu0 %v6659
    %6801 = vmatmul.mubr.f32.gmra.mrb[0].mxu0 %v6590
    %v6802 = vpop.f32.mrb[0].mxu0
    %v6803 = vadd.f32 0.0, %v6802
    %v6804 = vpop.f32.mrb[0].mxu0
    %6805 = vmatprep.mubr.f32.mxu0 %v6662
    %6806 = vmatmul.mubr.f32.gmra.mrb[0].mxu0 %v6592
    %v6807 = vpop.f32.mrb[0].mxu0
    %v6808 = vadd.f32 0.0, %v6807
    %v6809 = vpop.f32.mrb[0].mxu0
    %6810 = vmatprep.mubr.f32.mxu0 %v6665
    %6811 = vmatmul.mubr.f32.gmra.mrb[0].mxu0 %v6594
    %v6812 = vpop.f32.mrb[0].mxu0
    %v6813 = vadd.f32 0.0, %v6812
    %v6814 = vpop.f32.mrb[0].mxu0
    %6815 = vmatprep.mubr.f32.mxu0 %v6668
    %6816 = vmatmul.mubr.f32.gmra.mrb[0].mxu0 %v6596
    %v6817 = vpop.f32.mrb[0].mxu0
    %v6818 = vadd.f32 0.0, %v6817
    %v6819 = vpop.f32.mrb[0].mxu0
    %6820 = vmatprep.mubr.f32.mxu0 %v6671
    %6821 = vmatmul.mubr.f32.gmra.mrb[0].mxu0 %v6598
    %v6822 = vpop.f32.mrb[0].mxu0
    %v6823 = vadd.f32 0.0, %v6822
    %v6824 = vpop.f32.mrb[0].mxu0
    %6825 = vmatprep.mubr.f32.mxu0 %v6674
    %6826 = vmatmul.mubr.f32.gmra.mrb[0].mxu0 %v6600
    %v6827 = vpop.f32.mrb[0].mxu0
    %v6828 = vadd.f32 0.0, %v6827
    %v6829 = vpop.f32.mrb[0].mxu0
    %6830 = vdwg.mxu0
    %v6831 = vld [vmem:[#allocation13] sm:$0xff]
    %v6832 = vld [vmem:[#allocation13 + $0x8] sm:$0xff]
    %v6833 = vld [vmem:[#allocation13 + $0x10] sm:$0xff]
    %v6834 = vld [vmem:[#allocation13 + $0x18] sm:$0xff]
    %v6835 = vld [vmem:[#allocation13 + $0x20] sm:$0xff]
    %v6836 = vld [vmem:[#allocation13 + $0x28] sm:$0xff]
    %v6837 = vld [vmem:[#allocation13 + $0x30] sm:$0xff]
    %v6838 = vld [vmem:[#allocation13 + $0x38] sm:$0xff]
    %v6839 = vld [vmem:[#allocation13 + $0x40] sm:$0xff]
    %v6840 = vld [vmem:[#allocation13 + $0x48] sm:$0xff]
    %v6841 = vld [vmem:[#allocation13 + $0x50] sm:$0xff]
    %v6842 = vld [vmem:[#allocation13 + $0x58] sm:$0xff]
    %v6843 = vld [vmem:[#allocation13 + $0x60] sm:$0xff]
    %v6844 = vld [vmem:[#allocation13 + $0x68] sm:$0xff]
    %v6845 = vld [vmem:[#allocation13 + $0x70] sm:$0xff]
    %v6846 = vld [vmem:[#allocation13 + $0x78] sm:$0xff]
    %v6847 = vld [vmem:[#allocation13 + $0x80] sm:$0xff]
    %v6848 = vld [vmem:[#allocation13 + $0x88] sm:$0xff]
    %v6849 = vld [vmem:[#allocation13 + $0x90] sm:$0xff]
    %v6850 = vld [vmem:[#allocation13 + $0x98] sm:$0xff]
    %v6851 = vld [vmem:[#allocation13 + $0xa0] sm:$0xff]
    %v6852 = vld [vmem:[#allocation13 + $0xa8] sm:$0xff]
    %v6853 = vld [vmem:[#allocation13 + $0xb0] sm:$0xff]
    %v6854 = vld [vmem:[#allocation13 + $0xb8] sm:$0xff]
    %v6855 = vld [vmem:[#allocation13 + $0xc0] sm:$0xff]
    %v6856 = vld [vmem:[#allocation13 + $0xc8] sm:$0xff]
    %v6857 = vld [vmem:[#allocation13 + $0xd0] sm:$0xff]
    %v6858 = vld [vmem:[#allocation13 + $0xd8] sm:$0xff]
    %v6859 = vld [vmem:[#allocation13 + $0xe0] sm:$0xff]
    %v6860 = vld [vmem:[#allocation13 + $0xe8] sm:$0xff]
    %v6861 = vld [vmem:[#allocation13 + $0xf0] sm:$0xff]
    %v6862 = vld [vmem:[#allocation13 + $0xf8] sm:$0xff]
    %v6863 = vld [vmem:[#allocation13 + $0x100] sm:$0xff]
    %v6864 = vld [vmem:[#allocation13 + $0x108] sm:$0xff]
    %v6865 = vld [vmem:[#allocation13 + $0x110] sm:$0xff]
    %v6866 = vld [vmem:[#allocation13 + $0x118] sm:$0xff]
    %s6867 = scalar_lea.vmem [#allocation7], 160
    %v6868 = vld [vmem:[%s6867] sm:$0xff]
    %v6869 = vld [vmem:[%s6867 + $0x8] sm:$0xff]
    %v6870 = vld [vmem:[%s6867 + $0x10] sm:$0xff]
    %v6871 = vld [vmem:[%s6867 + $0x18] sm:$0xff]
    %v6872 = vld [vmem:[%s6867 + $0x20] sm:$0xff]
    %v6873 = vld [vmem:[%s6867 + $0x28] sm:$0xff]
    %v6874 = vld [vmem:[%s6867 + $0x30] sm:$0xff]
    %v6875 = vld [vmem:[%s6867 + $0x38] sm:$0xff]
    %v6876 = vld [vmem:[%s6867 + $0x40] sm:$0xff]
    %v6877 = vld [vmem:[%s6867 + $0x48] sm:$0xff]
    %v6878 = vld [vmem:[%s6867 + $0x50] sm:$0xff]
    %v6879 = vld [vmem:[%s6867 + $0x58] sm:$0xff]
    %v6880 = vld [vmem:[%s6867 + $0x60] sm:$0xff]
    %v6881 = vld [vmem:[%s6867 + $0x68] sm:$0xff]
    %v6882 = vld [vmem:[%s6867 + $0x70] sm:$0xff]
    %v6883 = vld [vmem:[%s6867 + $0x78] sm:$0xff]
    %v6884 = vld [vmem:[%s6867 + $0x80] sm:$0xff]
    %v6885 = vld [vmem:[%s6867 + $0x88] sm:$0xff]
    %v6886 = vld [vmem:[%s6867 + $0x90] sm:$0xff]
    %v6887 = vld [vmem:[%s6867 + $0x98] sm:$0xff]
    %6888 = vmatprep.subr.mxu0 0.0
    %6889 = vmatpush1.msra.mxu0 %v6868
    %6890 = vmatprep.subr.mxu0 0.0
    %6891 = vmatpush1.msra.mxu0 %v6869
    %6892 = vmatprep.subr.mxu0 0.0
    %6893 = vmatpush1.msra.mxu0 %v6870
    %6894 = vmatprep.subr.mxu0 0.0
    %6895 = vmatpush1.msra.mxu0 %v6871
    %6896 = vmatprep.subr.mxu0 0.0
    %6897 = vmatpush1.msra.mxu0 %v6872
    %6898 = vmatprep.subr.mxu0 0.0
    %6899 = vmatpush1.msra.mxu0 %v6873
    %6900 = vmatprep.subr.mxu0 0.0
    %6901 = vmatpush1.msra.mxu0 %v6874
    %6902 = vmatprep.subr.mxu0 0.0
    %6903 = vmatpush1.msra.mxu0 %v6875
    %6904 = vmatprep.subr.mxu0 0.0
    %6905 = vmatpush1.msra.mxu0 %v6876
    %6906 = vmatprep.subr.mxu0 0.0
    %6907 = vmatpush1.msra.mxu0 %v6877
    %6908 = vmatprep.subr.mxu0 0.0
    %6909 = vmatpush1.msra.mxu0 %v6878
    %6910 = vmatprep.subr.mxu0 0.0
    %6911 = vmatpush1.msra.mxu0 %v6879
    %6912 = vmatprep.subr.mxu0 0.0
    %6913 = vmatpush1.msra.mxu0 %v6880
    %6914 = vmatprep.subr.mxu0 0.0
    %6915 = vmatpush1.msra.mxu0 %v6881
    %6916 = vmatprep.subr.mxu0 0.0
    %6917 = vmatpush1.msra.mxu0 %v6882
    %6918 = vmatprep.subr.mxu0 0.0
    %6919 = vmatpush1.msra.mxu0 %v6883
    %6920 = vmatprep.subr.mxu0 0.0
    %6921 = vmatpush1.msra.mxu0 %v6884
    %6922 = vmatprep.subr.mxu0 0.0
    %6923 = vmatpush1.msra.mxu0 %v6885
    %6924 = vmatprep.subr.mxu0 0.0
    %6925 = vmatpush1.msra.mxu0 %v6886
    %6926 = vmatprep.subr.mxu0 0.0
    %6927 = vmatpush1.msra.mxu0 %v6887
    %6928 = vmatprep.subr.mxu0 0.0
    %6929 = vmatpush1.msra.mxu0 0.0
    %6930 = vmatprep.subr.mxu0 0.0
    %6931 = vmatpush1.msra.mxu0 0.0
    %6932 = vmatprep.subr.mxu0 0.0
    %6933 = vmatpush1.msra.mxu0 0.0
    %6934 = vmatprep.subr.mxu0 0.0
    %6935 = vmatpush1.msra.mxu0 0.0
    %6936 = vmatprep.subr.mxu0 0.0
    %6937 = vmatpush1.msra.mxu0 0.0
    %6938 = vmatprep.subr.mxu0 0.0
    %6939 = vmatpush1.msra.mxu0 0.0
    %6940 = vmatprep.subr.mxu0 0.0
    %6941 = vmatpush1.msra.mxu0 0.0
    %6942 = vmatprep.subr.mxu0 0.0
    %6943 = vmatpush1.msra.mxu0 0.0
    %6944 = vmatprep.subr.mxu0 0.0
    %6945 = vmatpush1.msra.mxu0 0.0
    %6946 = vmatprep.subr.mxu0 0.0
    %6947 = vmatpush1.msra.mxu0 0.0
    %6948 = vmatprep.subr.mxu0 0.0
    %6949 = vmatpush1.msra.mxu0 0.0
    %6950 = vmatprep.subr.mxu0 0.0
    %6951 = vmatpush1.msra.mxu0 0.0
    %6952 = vmatprep.mubr.f32.mxu0 %v6623
    %6953 = vmatmul.mubr.f32.gmra.mrb[0].mxu0 %v6566
    %v6954 = vpop.f32.mrb[0].mxu0
    %v6955 = vadd.f32 0.0, %v6954
    %v6956 = vpop.f32.mrb[0].mxu0
    %6957 = vmatprep.mubr.f32.mxu0 %v6626
    %6958 = vmatmul.mubr.f32.gmra.mrb[0].mxu0 %v6568
    %v6959 = vpop.f32.mrb[0].mxu0
    %v6960 = vadd.f32 0.0, %v6959
    %v6961 = vpop.f32.mrb[0].mxu0
    %6962 = vmatprep.mubr.f32.mxu0 %v6629
    %6963 = vmatmul.mubr.f32.gmra.mrb[0].mxu0 %v6570
    %v6964 = vpop.f32.mrb[0].mxu0
    %v6965 = vadd.f32 0.0, %v6964
    %v6966 = vpop.f32.mrb[0].mxu0
    %6967 = vmatprep.mubr.f32.mxu0 %v6632
    %6968 = vmatmul.mubr.f32.gmra.mrb[0].mxu0 %v6572
    %v6969 = vpop.f32.mrb[0].mxu0
    %v6970 = vadd.f32 0.0, %v6969
    %v6971 = vpop.f32.mrb[0].mxu0
    %6972 = vmatprep.mubr.f32.mxu0 %v6635
    %6973 = vmatmul.mubr.f32.gmra.mrb[0].mxu0 %v6574
    %v6974 = vpop.f32.mrb[0].mxu0
    %v6975 = vadd.f32 0.0, %v6974
    %v6976 = vpop.f32.mrb[0].mxu0
    %6977 = vmatprep.mubr.f32.mxu0 %v6638
    %6978 = vmatmul.mubr.f32.gmra.mrb[0].mxu0 %v6576
    %v6979 = vpop.f32.mrb[0].mxu0
    %v6980 = vadd.f32 0.0, %v6979
    %v6981 = vpop.f32.mrb[0].mxu0
    %6982 = vmatprep.mubr.f32.mxu0 %v6641
    %6983 = vmatmul.mubr.f32.gmra.mrb[0].mxu0 %v6578
    %v6984 = vpop.f32.mrb[0].mxu0
    %v6985 = vadd.f32 0.0, %v6984
    %v6986 = vpop.f32.mrb[0].mxu0
    %6987 = vmatprep.mubr.f32.mxu0 %v6644
    %6988 = vmatmul.mubr.f32.gmra.mrb[0].mxu0 %v6580
    %v6989 = vpop.f32.mrb[0].mxu0
    %v6990 = vadd.f32 0.0, %v6989
    %v6991 = vpop.f32.mrb[0].mxu0
    %6992 = vmatprep.mubr.f32.mxu0 %v6647
    %6993 = vmatmul.mubr.f32.gmra.mrb[0].mxu0 %v6582
    %v6994 = vpop.f32.mrb[0].mxu0
    %v6995 = vadd.f32 0.0, %v6994
    %v6996 = vpop.f32.mrb[0].mxu0
    %6997 = vmatprep.mubr.f32.mxu0 %v6650
    %6998 = vmatmul.mubr.f32.gmra.mrb[0].mxu0 %v6584
    %v6999 = vpop.f32.mrb[0].mxu0
    %v7000 = vadd.f32 0.0, %v6999
    %v7001 = vpop.f32.mrb[0].mxu0
    %7002 = vmatprep.mubr.f32.mxu0 %v6653
    %7003 = vmatmul.mubr.f32.gmra.mrb[0].mxu0 %v6586
    %v7004 = vpop.f32.mrb[0].mxu0
    %v7005 = vadd.f32 0.0, %v7004
    %v7006 = vpop.f32.mrb[0].mxu0
    %7007 = vmatprep.mubr.f32.mxu0 %v6656
    %7008 = vmatmul.mubr.f32.gmra.mrb[0].mxu0 %v6588
    %v7009 = vpop.f32.mrb[0].mxu0
    %v7010 = vadd.f32 0.0, %v7009
    %v7011 = vpop.f32.mrb[0].mxu0
    %7012 = vmatprep.mubr.f32.mxu0 %v6659
    %7013 = vmatmul.mubr.f32.gmra.mrb[0].mxu0 %v6590
    %v7014 = vpop.f32.mrb[0].mxu0
    %v7015 = vadd.f32 0.0, %v7014
    %v7016 = vpop.f32.mrb[0].mxu0
    %7017 = vmatprep.mubr.f32.mxu0 %v6662
    %7018 = vmatmul.mubr.f32.gmra.mrb[0].mxu0 %v6592
    %v7019 = vpop.f32.mrb[0].mxu0
    %v7020 = vadd.f32 0.0, %v7019
    %v7021 = vpop.f32.mrb[0].mxu0
    %7022 = vmatprep.mubr.f32.mxu0 %v6665
    %7023 = vmatmul.mubr.f32.gmra.mrb[0].mxu0 %v6594
    %v7024 = vpop.f32.mrb[0].mxu0
    %v7025 = vadd.f32 0.0, %v7024
    %v7026 = vpop.f32.mrb[0].mxu0
    %7027 = vmatprep.mubr.f32.mxu0 %v6668
    %7028 = vmatmul.mubr.f32.gmra.mrb[0].mxu0 %v6596
    %v7029 = vpop.f32.mrb[0].mxu0
    %v7030 = vadd.f32 0.0, %v7029
    %v7031 = vpop.f32.mrb[0].mxu0
    %7032 = vmatprep.mubr.f32.mxu0 %v6671
    %7033 = vmatmul.mubr.f32.gmra.mrb[0].mxu0 %v6598
    %v7034 = vpop.f32.mrb[0].mxu0
    %v7035 = vadd.f32 0.0, %v7034
    %v7036 = vpop.f32.mrb[0].mxu0
    %7037 = vmatprep.mubr.f32.mxu0 %v6674
    %7038 = vmatmul.mubr.f32.gmra.mrb[0].mxu0 %v6600
    %v7039 = vpop.f32.mrb[0].mxu0
    %v7040 = vadd.f32 0.0, %v7039
    %v7041 = vpop.f32.mrb[0].mxu0
    %7042 = vdwg.mxu0
    %s7043 = scalar_lea.vmem [#allocation13], 288
    %v7044 = vld [vmem:[%s7043] sm:$0xff]
    %v7045 = vld [vmem:[%s7043 + $0x8] sm:$0xff]
    %v7046 = vld [vmem:[%s7043 + $0x10] sm:$0xff]
    %v7047 = vld [vmem:[%s7043 + $0x18] sm:$0xff]
    %v7048 = vld [vmem:[%s7043 + $0x20] sm:$0xff]
    %v7049 = vld [vmem:[%s7043 + $0x28] sm:$0xff]
    %v7050 = vld [vmem:[%s7043 + $0x30] sm:$0xff]
    %v7051 = vld [vmem:[%s7043 + $0x38] sm:$0xff]
    %v7052 = vld [vmem:[%s7043 + $0x40] sm:$0xff]
    %v7053 = vld [vmem:[%s7043 + $0x48] sm:$0xff]
    %v7054 = vld [vmem:[%s7043 + $0x50] sm:$0xff]
    %v7055 = vld [vmem:[%s7043 + $0x58] sm:$0xff]
    %v7056 = vld [vmem:[%s7043 + $0x60] sm:$0xff]
    %v7057 = vld [vmem:[%s7043 + $0x68] sm:$0xff]
    %v7058 = vld [vmem:[%s7043 + $0x70] sm:$0xff]
    %v7059 = vld [vmem:[%s7043 + $0x78] sm:$0xff]
    %v7060 = vld [vmem:[%s7043 + $0x80] sm:$0xff]
    %v7061 = vld [vmem:[%s7043 + $0x88] sm:$0xff]
    %v7062 = vld [vmem:[%s7043 + $0x90] sm:$0xff]
    %v7063 = vld [vmem:[%s7043 + $0x98] sm:$0xff]
    %v7064 = vld [vmem:[%s7043 + $0xa0] sm:$0xff]
    %v7065 = vld [vmem:[%s7043 + $0xa8] sm:$0xff]
    %v7066 = vld [vmem:[%s7043 + $0xb0] sm:$0xff]
    %v7067 = vld [vmem:[%s7043 + $0xb8] sm:$0xff]
    %v7068 = vld [vmem:[%s7043 + $0xc0] sm:$0xff]
    %v7069 = vld [vmem:[%s7043 + $0xc8] sm:$0xff]
    %v7070 = vld [vmem:[%s7043 + $0xd0] sm:$0xff]
    %v7071 = vld [vmem:[%s7043 + $0xd8] sm:$0xff]
    %v7072 = vld [vmem:[%s7043 + $0xe0] sm:$0xff]
    %v7073 = vld [vmem:[%s7043 + $0xe8] sm:$0xff]
    %v7074 = vld [vmem:[%s7043 + $0xf0] sm:$0xff]
    %v7075 = vld [vmem:[%s7043 + $0xf8] sm:$0xff]
    %v7076 = vld [vmem:[%s7043 + $0x100] sm:$0xff]
    %v7077 = vld [vmem:[%s7043 + $0x108] sm:$0xff]
    %v7078 = vld [vmem:[%s7043 + $0x110] sm:$0xff]
    %v7079 = vld [vmem:[%s7043 + $0x118] sm:$0xff]
    %vm7080 = vcmask 130048
    %v7082 = vsel %vm7080, %v7045, 0
    %v7085 = vsel %vm7080, %v7047, 0
    %v7088 = vsel %vm7080, %v7049, 0
    %v7091 = vsel %vm7080, %v7051, 0
    %v7094 = vsel %vm7080, %v7053, 0
    %v7097 = vsel %vm7080, %v7055, 0
    %v7100 = vsel %vm7080, %v7057, 0
    %v7103 = vsel %vm7080, %v7059, 0
    %v7106 = vsel %vm7080, %v7061, 0
    %v7109 = vsel %vm7080, %v7063, 0
    %v7112 = vsel %vm7080, %v7065, 0
    %v7115 = vsel %vm7080, %v7067, 0
    %v7118 = vsel %vm7080, %v7069, 0
    %v7121 = vsel %vm7080, %v7071, 0
    %v7124 = vsel %vm7080, %v7073, 0
    %v7127 = vsel %vm7080, %v7075, 0
    %v7130 = vsel %vm7080, %v7077, 0
    %v7133 = vsel %vm7080, %v7079, 0
    %7135 = vmatprep.subr.mxu0 0.0
    %7136 = vmatpush1.msra.mxu0 %v6955
    %7137 = vmatprep.subr.mxu0 0.0
    %7138 = vmatpush1.msra.mxu0 %v6960
    %7139 = vmatprep.subr.mxu0 0.0
    %7140 = vmatpush1.msra.mxu0 %v6965
    %7141 = vmatprep.subr.mxu0 0.0
    %7142 = vmatpush1.msra.mxu0 %v6970
    %7143 = vmatprep.subr.mxu0 0.0
    %7144 = vmatpush1.msra.mxu0 %v6975
    %7145 = vmatprep.subr.mxu0 0.0
    %7146 = vmatpush1.msra.mxu0 %v6980
    %7147 = vmatprep.subr.mxu0 0.0
    %7148 = vmatpush1.msra.mxu0 %v6985
    %7149 = vmatprep.subr.mxu0 0.0
    %7150 = vmatpush1.msra.mxu0 %v6990
    %7151 = vmatprep.subr.mxu0 0.0
    %7152 = vmatpush1.msra.mxu0 %v6995
    %7153 = vmatprep.subr.mxu0 0.0
    %7154 = vmatpush1.msra.mxu0 %v7000
    %7155 = vmatprep.subr.mxu0 0.0
    %7156 = vmatpush1.msra.mxu0 %v7005
    %7157 = vmatprep.subr.mxu0 0.0
    %7158 = vmatpush1.msra.mxu0 %v7010
    %7159 = vmatprep.subr.mxu0 0.0
    %7160 = vmatpush1.msra.mxu0 %v7015
    %7161 = vmatprep.subr.mxu0 0.0
    %7162 = vmatpush1.msra.mxu0 %v7020
    %7163 = vmatprep.subr.mxu0 0.0
    %7164 = vmatpush1.msra.mxu0 %v7025
    %7165 = vmatprep.subr.mxu0 0.0
    %7166 = vmatpush1.msra.mxu0 %v7030
    %7167 = vmatprep.subr.mxu0 0.0
    %7168 = vmatpush1.msra.mxu0 %v7035
    %7169 = vmatprep.subr.mxu0 0.0
    %7170 = vmatpush1.msra.mxu0 %v7040
    %7171 = vmatprep.subr.mxu0 0.0
    %7172 = vmatpush1.msra.mxu0 0.0
    %7173 = vmatprep.subr.mxu0 0.0
    %7174 = vmatpush1.msra.mxu0 0.0
    %7175 = vmatprep.subr.mxu0 0.0
    %7176 = vmatpush1.msra.mxu0 0.0
    %7177 = vmatprep.subr.mxu0 0.0
    %7178 = vmatpush1.msra.mxu0 0.0
    %7179 = vmatprep.subr.mxu0 0.0
    %7180 = vmatpush1.msra.mxu0 0.0
    %7181 = vmatprep.subr.mxu0 0.0
    %7182 = vmatpush1.msra.mxu0 0.0
    %7183 = vmatprep.subr.mxu0 0.0
    %7184 = vmatpush1.msra.mxu0 0.0
    %7185 = vmatprep.subr.mxu0 0.0
    %7186 = vmatpush1.msra.mxu0 0.0
    %7187 = vmatprep.subr.mxu0 0.0
    %7188 = vmatpush1.msra.mxu0 0.0
    %7189 = vmatprep.subr.mxu0 0.0
    %7190 = vmatpush1.msra.mxu0 0.0
    %7191 = vmatprep.subr.mxu0 0.0
    %7192 = vmatpush1.msra.mxu0 0.0
    %7193 = vmatprep.subr.mxu0 0.0
    %7194 = vmatpush1.msra.mxu0 0.0
    %7195 = vmatprep.subr.mxu0 0.0
    %7196 = vmatpush1.msra.mxu0 0.0
    %7197 = vmatprep.subr.mxu0 0.0
    %7198 = vmatpush1.msra.mxu0 0.0
    %7199 = vmatprep.mubr.f32.mxu0 %v7082
    %7200 = vmatmul.mubr.f32.gmra.mrb[0].mxu0 %v7044
    %v7201 = vpop.f32.mrb[0].mxu0
    %v7202 = vadd.f32 0.0, %v7201
    %v7203 = vpop.f32.mrb[0].mxu0
    %7204 = vmatprep.mubr.f32.mxu0 %v7085
    %7205 = vmatmul.mubr.f32.gmra.mrb[0].mxu0 %v7046
    %v7206 = vpop.f32.mrb[0].mxu0
    %v7207 = vadd.f32 0.0, %v7206
    %v7208 = vpop.f32.mrb[0].mxu0
    %7209 = vmatprep.mubr.f32.mxu0 %v7088
    %7210 = vmatmul.mubr.f32.gmra.mrb[0].mxu0 %v7048
    %v7211 = vpop.f32.mrb[0].mxu0
    %v7212 = vadd.f32 0.0, %v7211
    %v7213 = vpop.f32.mrb[0].mxu0
    %7214 = vmatprep.mubr.f32.mxu0 %v7091
    %7215 = vmatmul.mubr.f32.gmra.mrb[0].mxu0 %v7050
    %v7216 = vpop.f32.mrb[0].mxu0
    %v7217 = vadd.f32 0.0, %v7216
    %v7218 = vpop.f32.mrb[0].mxu0
    %7219 = vmatprep.mubr.f32.mxu0 %v7094
    %7220 = vmatmul.mubr.f32.gmra.mrb[0].mxu0 %v7052
    %v7221 = vpop.f32.mrb[0].mxu0
    %v7222 = vadd.f32 0.0, %v7221
    %v7223 = vpop.f32.mrb[0].mxu0
    %7224 = vmatprep.mubr.f32.mxu0 %v7097
    %7225 = vmatmul.mubr.f32.gmra.mrb[0].mxu0 %v7054
    %v7226 = vpop.f32.mrb[0].mxu0
    %v7227 = vadd.f32 0.0, %v7226
    %v7228 = vpop.f32.mrb[0].mxu0
    %7229 = vmatprep.mubr.f32.mxu0 %v7100
    %7230 = vmatmul.mubr.f32.gmra.mrb[0].mxu0 %v7056
    %v7231 = vpop.f32.mrb[0].mxu0
    %v7232 = vadd.f32 0.0, %v7231
    %v7233 = vpop.f32.mrb[0].mxu0
    %7234 = vmatprep.mubr.f32.mxu0 %v7103
    %7235 = vmatmul.mubr.f32.gmra.mrb[0].mxu0 %v7058
    %v7236 = vpop.f32.mrb[0].mxu0
    %v7237 = vadd.f32 0.0, %v7236
    %v7238 = vpop.f32.mrb[0].mxu0
    %7239 = vmatprep.mubr.f32.mxu0 %v7106
    %7240 = vmatmul.mubr.f32.gmra.mrb[0].mxu0 %v7060
    %v7241 = vpop.f32.mrb[0].mxu0
    %v7242 = vadd.f32 0.0, %v7241
    %v7243 = vpop.f32.mrb[0].mxu0
    %7244 = vmatprep.mubr.f32.mxu0 %v7109
    %7245 = vmatmul.mubr.f32.gmra.mrb[0].mxu0 %v7062
    %v7246 = vpop.f32.mrb[0].mxu0
    %v7247 = vadd.f32 0.0, %v7246
    %v7248 = vpop.f32.mrb[0].mxu0
    %7249 = vmatprep.mubr.f32.mxu0 %v7112
    %7250 = vmatmul.mubr.f32.gmra.mrb[0].mxu0 %v7064
    %v7251 = vpop.f32.mrb[0].mxu0
    %v7252 = vadd.f32 0.0, %v7251
    %v7253 = vpop.f32.mrb[0].mxu0
    %7254 = vmatprep.mubr.f32.mxu0 %v7115
    %7255 = vmatmul.mubr.f32.gmra.mrb[0].mxu0 %v7066
    %v7256 = vpop.f32.mrb[0].mxu0
    %v7257 = vadd.f32 0.0, %v7256
    %v7258 = vpop.f32.mrb[0].mxu0
    %7259 = vmatprep.mubr.f32.mxu0 %v7118
    %7260 = vmatmul.mubr.f32.gmra.mrb[0].mxu0 %v7068
    %v7261 = vpop.f32.mrb[0].mxu0
    %v7262 = vadd.f32 0.0, %v7261
    %v7263 = vpop.f32.mrb[0].mxu0
    %7264 = vmatprep.mubr.f32.mxu0 %v7121
    %7265 = vmatmul.mubr.f32.gmra.mrb[0].mxu0 %v7070
    %v7266 = vpop.f32.mrb[0].mxu0
    %v7267 = vadd.f32 0.0, %v7266
    %v7268 = vpop.f32.mrb[0].mxu0
    %7269 = vmatprep.mubr.f32.mxu0 %v7124
    %7270 = vmatmul.mubr.f32.gmra.mrb[0].mxu0 %v7072
    %v7271 = vpop.f32.mrb[0].mxu0
    %v7272 = vadd.f32 0.0, %v7271
    %v7273 = vpop.f32.mrb[0].mxu0
    %7274 = vmatprep.mubr.f32.mxu0 %v7127
    %7275 = vmatmul.mubr.f32.gmra.mrb[0].mxu0 %v7074
    %v7276 = vpop.f32.mrb[0].mxu0
    %v7277 = vadd.f32 0.0, %v7276
    %v7278 = vpop.f32.mrb[0].mxu0
    %7279 = vmatprep.mubr.f32.mxu0 %v7130
    %7280 = vmatmul.mubr.f32.gmra.mrb[0].mxu0 %v7076
    %v7281 = vpop.f32.mrb[0].mxu0
    %v7282 = vadd.f32 0.0, %v7281
    %v7283 = vpop.f32.mrb[0].mxu0
    %7284 = vmatprep.mubr.f32.mxu0 %v7133
    %7285 = vmatmul.mubr.f32.gmra.mrb[0].mxu0 %v7078
    %v7286 = vpop.f32.mrb[0].mxu0
    %v7287 = vadd.f32 0.0, %v7286
    %v7288 = vpop.f32.mrb[0].mxu0
    %7289 = vdwg.mxu0
    %v7291 = vsel %vm7080, %v6832, 0
    %v7294 = vsel %vm7080, %v6834, 0
    %v7297 = vsel %vm7080, %v6836, 0
    %v7300 = vsel %vm7080, %v6838, 0
    %v7303 = vsel %vm7080, %v6840, 0
    %v7306 = vsel %vm7080, %v6842, 0
    %v7309 = vsel %vm7080, %v6844, 0
    %v7312 = vsel %vm7080, %v6846, 0
    %v7315 = vsel %vm7080, %v6848, 0
    %v7318 = vsel %vm7080, %v6850, 0
    %v7321 = vsel %vm7080, %v6852, 0
    %v7324 = vsel %vm7080, %v6854, 0
    %v7327 = vsel %vm7080, %v6856, 0
    %v7330 = vsel %vm7080, %v6858, 0
    %v7333 = vsel %vm7080, %v6860, 0
    %v7336 = vsel %vm7080, %v6862, 0
    %v7339 = vsel %vm7080, %v6864, 0
    %v7342 = vsel %vm7080, %v6866, 0
    %7344 = vmatprep.subr.mxu0 0.0
    %7345 = vmatpush1.msra.mxu0 %v6743
    %7346 = vmatprep.subr.mxu0 0.0
    %7347 = vmatpush1.msra.mxu0 %v6748
    %7348 = vmatprep.subr.mxu0 0.0
    %7349 = vmatpush1.msra.mxu0 %v6753
    %7350 = vmatprep.subr.mxu0 0.0
    %7351 = vmatpush1.msra.mxu0 %v6758
    %7352 = vmatprep.subr.mxu0 0.0
    %7353 = vmatpush1.msra.mxu0 %v6763
    %7354 = vmatprep.subr.mxu0 0.0
    %7355 = vmatpush1.msra.mxu0 %v6768
    %7356 = vmatprep.subr.mxu0 0.0
    %7357 = vmatpush1.msra.mxu0 %v6773
    %7358 = vmatprep.subr.mxu0 0.0
    %7359 = vmatpush1.msra.mxu0 %v6778
    %7360 = vmatprep.subr.mxu0 0.0
    %7361 = vmatpush1.msra.mxu0 %v6783
    %7362 = vmatprep.subr.mxu0 0.0
    %7363 = vmatpush1.msra.mxu0 %v6788
    %7364 = vmatprep.subr.mxu0 0.0
    %7365 = vmatpush1.msra.mxu0 %v6793
    %7366 = vmatprep.subr.mxu0 0.0
    %7367 = vmatpush1.msra.mxu0 %v6798
    %7368 = vmatprep.subr.mxu0 0.0
    %7369 = vmatpush1.msra.mxu0 %v6803
    %7370 = vmatprep.subr.mxu0 0.0
    %7371 = vmatpush1.msra.mxu0 %v6808
    %7372 = vmatprep.subr.mxu0 0.0
    %7373 = vmatpush1.msra.mxu0 %v6813
    %7374 = vmatprep.subr.mxu0 0.0
    %7375 = vmatpush1.msra.mxu0 %v6818
    %7376 = vmatprep.subr.mxu0 0.0
    %7377 = vmatpush1.msra.mxu0 %v6823
    %7378 = vmatprep.subr.mxu0 0.0
    %7379 = vmatpush1.msra.mxu0 %v6828
    %7380 = vmatprep.subr.mxu0 0.0
    %7381 = vmatpush1.msra.mxu0 0.0
    %7382 = vmatprep.subr.mxu0 0.0
    %7383 = vmatpush1.msra.mxu0 0.0
    %7384 = vmatprep.subr.mxu0 0.0
    %7385 = vmatpush1.msra.mxu0 0.0
    %7386 = vmatprep.subr.mxu0 0.0
    %7387 = vmatpush1.msra.mxu0 0.0
    %7388 = vmatprep.subr.mxu0 0.0
    %7389 = vmatpush1.msra.mxu0 0.0
    %7390 = vmatprep.subr.mxu0 0.0
    %7391 = vmatpush1.msra.mxu0 0.0
    %7392 = vmatprep.subr.mxu0 0.0
    %7393 = vmatpush1.msra.mxu0 0.0
    %7394 = vmatprep.subr.mxu0 0.0
    %7395 = vmatpush1.msra.mxu0 0.0
    %7396 = vmatprep.subr.mxu0 0.0
    %7397 = vmatpush1.msra.mxu0 0.0
    %7398 = vmatprep.subr.mxu0 0.0
    %7399 = vmatpush1.msra.mxu0 0.0
    %7400 = vmatprep.subr.mxu0 0.0
    %7401 = vmatpush1.msra.mxu0 0.0
    %7402 = vmatprep.subr.mxu0 0.0
    %7403 = vmatpush1.msra.mxu0 0.0
    %7404 = vmatprep.subr.mxu0 0.0
    %7405 = vmatpush1.msra.mxu0 0.0
    %7406 = vmatprep.subr.mxu0 0.0
    %7407 = vmatpush1.msra.mxu0 0.0
    %7408 = vmatprep.mubr.f32.mxu0 %v7291
    %7409 = vmatmul.mubr.f32.gmra.mrb[0].mxu0 %v6831
    %v7410 = vpop.f32.mrb[0].mxu0
    %v7411 = vadd.f32 %v7202, %v7410
    %v7412 = vpop.f32.mrb[0].mxu0
    %7413 = vmatprep.mubr.f32.mxu0 %v7294
    %7414 = vmatmul.mubr.f32.gmra.mrb[0].mxu0 %v6833
    %v7415 = vpop.f32.mrb[0].mxu0
    %v7416 = vadd.f32 %v7207, %v7415
    %v7417 = vpop.f32.mrb[0].mxu0
    %7418 = vmatprep.mubr.f32.mxu0 %v7297
    %7419 = vmatmul.mubr.f32.gmra.mrb[0].mxu0 %v6835
    %v7420 = vpop.f32.mrb[0].mxu0
    %v7421 = vadd.f32 %v7212, %v7420
    %v7422 = vpop.f32.mrb[0].mxu0
    %7423 = vmatprep.mubr.f32.mxu0 %v7300
    %7424 = vmatmul.mubr.f32.gmra.mrb[0].mxu0 %v6837
    %v7425 = vpop.f32.mrb[0].mxu0
    %v7426 = vadd.f32 %v7217, %v7425
    %v7427 = vpop.f32.mrb[0].mxu0
    %7428 = vmatprep.mubr.f32.mxu0 %v7303
    %7429 = vmatmul.mubr.f32.gmra.mrb[0].mxu0 %v6839
    %v7430 = vpop.f32.mrb[0].mxu0
    %v7431 = vadd.f32 %v7222, %v7430
    %v7432 = vpop.f32.mrb[0].mxu0
    %7433 = vmatprep.mubr.f32.mxu0 %v7306
    %7434 = vmatmul.mubr.f32.gmra.mrb[0].mxu0 %v6841
    %v7435 = vpop.f32.mrb[0].mxu0
    %v7436 = vadd.f32 %v7227, %v7435
    %v7437 = vpop.f32.mrb[0].mxu0
    %7438 = vmatprep.mubr.f32.mxu0 %v7309
    %7439 = vmatmul.mubr.f32.gmra.mrb[0].mxu0 %v6843
    %v7440 = vpop.f32.mrb[0].mxu0
    %v7441 = vadd.f32 %v7232, %v7440
    %v7442 = vpop.f32.mrb[0].mxu0
    %7443 = vmatprep.mubr.f32.mxu0 %v7312
    %7444 = vmatmul.mubr.f32.gmra.mrb[0].mxu0 %v6845
    %v7445 = vpop.f32.mrb[0].mxu0
    %v7446 = vadd.f32 %v7237, %v7445
    %v7447 = vpop.f32.mrb[0].mxu0
    %7448 = vmatprep.mubr.f32.mxu0 %v7315
    %7449 = vmatmul.mubr.f32.gmra.mrb[0].mxu0 %v6847
    %v7450 = vpop.f32.mrb[0].mxu0
    %v7451 = vadd.f32 %v7242, %v7450
    %v7452 = vpop.f32.mrb[0].mxu0
    %7453 = vmatprep.mubr.f32.mxu0 %v7318
    %7454 = vmatmul.mubr.f32.gmra.mrb[0].mxu0 %v6849
    %v7455 = vpop.f32.mrb[0].mxu0
    %v7456 = vadd.f32 %v7247, %v7455
    %v7457 = vpop.f32.mrb[0].mxu0
    %7458 = vmatprep.mubr.f32.mxu0 %v7321
    %7459 = vmatmul.mubr.f32.gmra.mrb[0].mxu0 %v6851
    %v7460 = vpop.f32.mrb[0].mxu0
    %v7461 = vadd.f32 %v7252, %v7460
    %v7462 = vpop.f32.mrb[0].mxu0
    %7463 = vmatprep.mubr.f32.mxu0 %v7324
    %7464 = vmatmul.mubr.f32.gmra.mrb[0].mxu0 %v6853
    %v7465 = vpop.f32.mrb[0].mxu0
    %v7466 = vadd.f32 %v7257, %v7465
    %v7467 = vpop.f32.mrb[0].mxu0
    %7468 = vmatprep.mubr.f32.mxu0 %v7327
    %7469 = vmatmul.mubr.f32.gmra.mrb[0].mxu0 %v6855
    %v7470 = vpop.f32.mrb[0].mxu0
    %v7471 = vadd.f32 %v7262, %v7470
    %v7472 = vpop.f32.mrb[0].mxu0
    %7473 = vmatprep.mubr.f32.mxu0 %v7330
    %7474 = vmatmul.mubr.f32.gmra.mrb[0].mxu0 %v6857
    %v7475 = vpop.f32.mrb[0].mxu0
    %v7476 = vadd.f32 %v7267, %v7475
    %v7477 = vpop.f32.mrb[0].mxu0
    %7478 = vmatprep.mubr.f32.mxu0 %v7333
    %7479 = vmatmul.mubr.f32.gmra.mrb[0].mxu0 %v6859
    %v7480 = vpop.f32.mrb[0].mxu0
    %v7481 = vadd.f32 %v7272, %v7480
    %v7482 = vpop.f32.mrb[0].mxu0
    %7483 = vmatprep.mubr.f32.mxu0 %v7336
    %7484 = vmatmul.mubr.f32.gmra.mrb[0].mxu0 %v6861
    %v7485 = vpop.f32.mrb[0].mxu0
    %v7486 = vadd.f32 %v7277, %v7485
    %v7487 = vpop.f32.mrb[0].mxu0
    %7488 = vmatprep.mubr.f32.mxu0 %v7339
    %7489 = vmatmul.mubr.f32.gmra.mrb[0].mxu0 %v6863
    %v7490 = vpop.f32.mrb[0].mxu0
    %v7491 = vadd.f32 %v7282, %v7490
    %v7492 = vpop.f32.mrb[0].mxu0
    %7493 = vmatprep.mubr.f32.mxu0 %v7342
    %7494 = vmatmul.mubr.f32.gmra.mrb[0].mxu0 %v6865
    %v7495 = vpop.f32.mrb[0].mxu0
    %v7496 = vadd.f32 %v7287, %v7495
    %v7497 = vpop.f32.mrb[0].mxu0
    %7498 = vdwg.mxu0
    %s7499 = scalar_lea.vmem [#allocation7], 320
    %v7500 = vld [vmem:[%s7499] sm:$0xff]
    %v7501 = vld [vmem:[%s7499 + $0x8] sm:$0xff]
    %v7502 = vld [vmem:[%s7499 + $0x10] sm:$0xff]
    %v7503 = vld [vmem:[%s7499 + $0x18] sm:$0xff]
    %v7504 = vld [vmem:[%s7499 + $0x20] sm:$0xff]
    %v7505 = vld [vmem:[%s7499 + $0x28] sm:$0xff]
    %v7506 = vld [vmem:[%s7499 + $0x30] sm:$0xff]
    %v7507 = vld [vmem:[%s7499 + $0x38] sm:$0xff]
    %v7508 = vld [vmem:[%s7499 + $0x40] sm:$0xff]
    %v7509 = vld [vmem:[%s7499 + $0x48] sm:$0xff]
    %v7510 = vld [vmem:[%s7499 + $0x50] sm:$0xff]
    %v7511 = vld [vmem:[%s7499 + $0x58] sm:$0xff]
    %v7512 = vld [vmem:[%s7499 + $0x60] sm:$0xff]
    %v7513 = vld [vmem:[%s7499 + $0x68] sm:$0xff]
    %v7514 = vld [vmem:[%s7499 + $0x70] sm:$0xff]
    %v7515 = vld [vmem:[%s7499 + $0x78] sm:$0xff]
    %v7516 = vld [vmem:[%s7499 + $0x80] sm:$0xff]
    %v7517 = vld [vmem:[%s7499 + $0x88] sm:$0xff]
    %v7518 = vld [vmem:[%s7499 + $0x90] sm:$0xff]
    %v7519 = vld [vmem:[%s7499 + $0x98] sm:$0xff]
    %7520 = vmatprep.subr.mxu0 0.0
    %7521 = vmatpush1.msra.mxu0 %v7500
    %7522 = vmatprep.subr.mxu0 0.0
    %7523 = vmatpush1.msra.mxu0 %v7501
    %7524 = vmatprep.subr.mxu0 0.0
    %7525 = vmatpush1.msra.mxu0 %v7502
    %7526 = vmatprep.subr.mxu0 0.0
    %7527 = vmatpush1.msra.mxu0 %v7503
    %7528 = vmatprep.subr.mxu0 0.0
    %7529 = vmatpush1.msra.mxu0 %v7504
    %7530 = vmatprep.subr.mxu0 0.0
    %7531 = vmatpush1.msra.mxu0 %v7505
    %7532 = vmatprep.subr.mxu0 0.0
    %7533 = vmatpush1.msra.mxu0 %v7506
    %7534 = vmatprep.subr.mxu0 0.0
    %7535 = vmatpush1.msra.mxu0 %v7507
    %7536 = vmatprep.subr.mxu0 0.0
    %7537 = vmatpush1.msra.mxu0 %v7508
    %7538 = vmatprep.subr.mxu0 0.0
    %7539 = vmatpush1.msra.mxu0 %v7509
    %7540 = vmatprep.subr.mxu0 0.0
    %7541 = vmatpush1.msra.mxu0 %v7510
    %7542 = vmatprep.subr.mxu0 0.0
    %7543 = vmatpush1.msra.mxu0 %v7511
    %7544 = vmatprep.subr.mxu0 0.0
    %7545 = vmatpush1.msra.mxu0 %v7512
    %7546 = vmatprep.subr.mxu0 0.0
    %7547 = vmatpush1.msra.mxu0 %v7513
    %7548 = vmatprep.subr.mxu0 0.0
    %7549 = vmatpush1.msra.mxu0 %v7514
    %7550 = vmatprep.subr.mxu0 0.0
    %7551 = vmatpush1.msra.mxu0 %v7515
    %7552 = vmatprep.subr.mxu0 0.0
    %7553 = vmatpush1.msra.mxu0 %v7516
    %7554 = vmatprep.subr.mxu0 0.0
    %7555 = vmatpush1.msra.mxu0 %v7517
    %7556 = vmatprep.subr.mxu0 0.0
    %7557 = vmatpush1.msra.mxu0 %v7518
    %7558 = vmatprep.subr.mxu0 0.0
    %7559 = vmatpush1.msra.mxu0 %v7519
    %7560 = vmatprep.subr.mxu0 0.0
    %7561 = vmatpush1.msra.mxu0 0.0
    %7562 = vmatprep.subr.mxu0 0.0
    %7563 = vmatpush1.msra.mxu0 0.0
    %7564 = vmatprep.subr.mxu0 0.0
    %7565 = vmatpush1.msra.mxu0 0.0
    %7566 = vmatprep.subr.mxu0 0.0
    %7567 = vmatpush1.msra.mxu0 0.0
    %7568 = vmatprep.subr.mxu0 0.0
    %7569 = vmatpush1.msra.mxu0 0.0
    %7570 = vmatprep.subr.mxu0 0.0
    %7571 = vmatpush1.msra.mxu0 0.0
    %7572 = vmatprep.subr.mxu0 0.0
    %7573 = vmatpush1.msra.mxu0 0.0
    %7574 = vmatprep.subr.mxu0 0.0
    %7575 = vmatpush1.msra.mxu0 0.0
    %7576 = vmatprep.subr.mxu0 0.0
    %7577 = vmatpush1.msra.mxu0 0.0
    %7578 = vmatprep.subr.mxu0 0.0
    %7579 = vmatpush1.msra.mxu0 0.0
    %7580 = vmatprep.subr.mxu0 0.0
    %7581 = vmatpush1.msra.mxu0 0.0
    %7582 = vmatprep.subr.mxu0 0.0
    %7583 = vmatpush1.msra.mxu0 0.0
    %7584 = vmatprep.mubr.f32.mxu0 %v6623
    %7585 = vmatmul.mubr.f32.gmra.mrb[0].mxu0 %v6566
    %v7586 = vpop.f32.mrb[0].mxu0
    %v7587 = vadd.f32 0.0, %v7586
    %v7588 = vpop.f32.mrb[0].mxu0
    %7589 = vmatprep.mubr.f32.mxu0 %v6626
    %7590 = vmatmul.mubr.f32.gmra.mrb[0].mxu0 %v6568
    %v7591 = vpop.f32.mrb[0].mxu0
    %v7592 = vadd.f32 0.0, %v7591
    %v7593 = vpop.f32.mrb[0].mxu0
    %7594 = vmatprep.mubr.f32.mxu0 %v6629
    %7595 = vmatmul.mubr.f32.gmra.mrb[0].mxu0 %v6570
    %v7596 = vpop.f32.mrb[0].mxu0
    %v7597 = vadd.f32 0.0, %v7596
    %v7598 = vpop.f32.mrb[0].mxu0
    %7599 = vmatprep.mubr.f32.mxu0 %v6632
    %7600 = vmatmul.mubr.f32.gmra.mrb[0].mxu0 %v6572
    %v7601 = vpop.f32.mrb[0].mxu0
    %v7602 = vadd.f32 0.0, %v7601
    %v7603 = vpop.f32.mrb[0].mxu0
    %7604 = vmatprep.mubr.f32.mxu0 %v6635
    %7605 = vmatmul.mubr.f32.gmra.mrb[0].mxu0 %v6574
    %v7606 = vpop.f32.mrb[0].mxu0
    %v7607 = vadd.f32 0.0, %v7606
    %v7608 = vpop.f32.mrb[0].mxu0
    %7609 = vmatprep.mubr.f32.mxu0 %v6638
    %7610 = vmatmul.mubr.f32.gmra.mrb[0].mxu0 %v6576
    %v7611 = vpop.f32.mrb[0].mxu0
    %v7612 = vadd.f32 0.0, %v7611
    %v7613 = vpop.f32.mrb[0].mxu0
    %7614 = vmatprep.mubr.f32.mxu0 %v6641
    %7615 = vmatmul.mubr.f32.gmra.mrb[0].mxu0 %v6578
    %v7616 = vpop.f32.mrb[0].mxu0
    %v7617 = vadd.f32 0.0, %v7616
    %v7618 = vpop.f32.mrb[0].mxu0
    %7619 = vmatprep.mubr.f32.mxu0 %v6644
    %7620 = vmatmul.mubr.f32.gmra.mrb[0].mxu0 %v6580
    %v7621 = vpop.f32.mrb[0].mxu0
    %v7622 = vadd.f32 0.0, %v7621
    %v7623 = vpop.f32.mrb[0].mxu0
    %7624 = vmatprep.mubr.f32.mxu0 %v6647
    %7625 = vmatmul.mubr.f32.gmra.mrb[0].mxu0 %v6582
    %v7626 = vpop.f32.mrb[0].mxu0
    %v7627 = vadd.f32 0.0, %v7626
    %v7628 = vpop.f32.mrb[0].mxu0
    %7629 = vmatprep.mubr.f32.mxu0 %v6650
    %7630 = vmatmul.mubr.f32.gmra.mrb[0].mxu0 %v6584
    %v7631 = vpop.f32.mrb[0].mxu0
    %v7632 = vadd.f32 0.0, %v7631
    %v7633 = vpop.f32.mrb[0].mxu0
    %7634 = vmatprep.mubr.f32.mxu0 %v6653
    %7635 = vmatmul.mubr.f32.gmra.mrb[0].mxu0 %v6586
    %v7636 = vpop.f32.mrb[0].mxu0
    %v7637 = vadd.f32 0.0, %v7636
    %v7638 = vpop.f32.mrb[0].mxu0
    %7639 = vmatprep.mubr.f32.mxu0 %v6656
    %7640 = vmatmul.mubr.f32.gmra.mrb[0].mxu0 %v6588
    %v7641 = vpop.f32.mrb[0].mxu0
    %v7642 = vadd.f32 0.0, %v7641
    %v7643 = vpop.f32.mrb[0].mxu0
    %7644 = vmatprep.mubr.f32.mxu0 %v6659
    %7645 = vmatmul.mubr.f32.gmra.mrb[0].mxu0 %v6590
    %v7646 = vpop.f32.mrb[0].mxu0
    %v7647 = vadd.f32 0.0, %v7646
    %v7648 = vpop.f32.mrb[0].mxu0
    %7649 = vmatprep.mubr.f32.mxu0 %v6662
    %7650 = vmatmul.mubr.f32.gmra.mrb[0].mxu0 %v6592
    %v7651 = vpop.f32.mrb[0].mxu0
    %v7652 = vadd.f32 0.0, %v7651
    %v7653 = vpop.f32.mrb[0].mxu0
    %7654 = vmatprep.mubr.f32.mxu0 %v6665
    %7655 = vmatmul.mubr.f32.gmra.mrb[0].mxu0 %v6594
    %v7656 = vpop.f32.mrb[0].mxu0
    %v7657 = vadd.f32 0.0, %v7656
    %v7658 = vpop.f32.mrb[0].mxu0
    %7659 = vmatprep.mubr.f32.mxu0 %v6668
    %7660 = vmatmul.mubr.f32.gmra.mrb[0].mxu0 %v6596
    %v7661 = vpop.f32.mrb[0].mxu0
    %v7662 = vadd.f32 0.0, %v7661
    %v7663 = vpop.f32.mrb[0].mxu0
    %7664 = vmatprep.mubr.f32.mxu0 %v6671
    %7665 = vmatmul.mubr.f32.gmra.mrb[0].mxu0 %v6598
    %v7666 = vpop.f32.mrb[0].mxu0
    %v7667 = vadd.f32 0.0, %v7666
    %v7668 = vpop.f32.mrb[0].mxu0
    %7669 = vmatprep.mubr.f32.mxu0 %v6674
    %7670 = vmatmul.mubr.f32.gmra.mrb[0].mxu0 %v6600
    %v7671 = vpop.f32.mrb[0].mxu0
    %v7672 = vadd.f32 0.0, %v7671
    %v7673 = vpop.f32.mrb[0].mxu0
    %7674 = vdwg.mxu0
    %s7675 = scalar_lea.vmem [#allocation13], 576
    %v7676 = vld [vmem:[%s7675] sm:$0xff]
    %v7677 = vld [vmem:[%s7675 + $0x8] sm:$0xff]
    %v7678 = vld [vmem:[%s7675 + $0x10] sm:$0xff]
    %v7679 = vld [vmem:[%s7675 + $0x18] sm:$0xff]
    %v7680 = vld [vmem:[%s7675 + $0x20] sm:$0xff]
    %v7681 = vld [vmem:[%s7675 + $0x28] sm:$0xff]
    %v7682 = vld [vmem:[%s7675 + $0x30] sm:$0xff]
    %v7683 = vld [vmem:[%s7675 + $0x38] sm:$0xff]
    %v7684 = vld [vmem:[%s7675 + $0x40] sm:$0xff]
    %v7685 = vld [vmem:[%s7675 + $0x48] sm:$0xff]
    %v7686 = vld [vmem:[%s7675 + $0x50] sm:$0xff]
    %v7687 = vld [vmem:[%s7675 + $0x58] sm:$0xff]
    %v7688 = vld [vmem:[%s7675 + $0x60] sm:$0xff]
    %v7689 = vld [vmem:[%s7675 + $0x68] sm:$0xff]
    %v7690 = vld [vmem:[%s7675 + $0x70] sm:$0xff]
    %v7691 = vld [vmem:[%s7675 + $0x78] sm:$0xff]
    %v7692 = vld [vmem:[%s7675 + $0x80] sm:$0xff]
    %v7693 = vld [vmem:[%s7675 + $0x88] sm:$0xff]
    %v7694 = vld [vmem:[%s7675 + $0x90] sm:$0xff]
    %v7695 = vld [vmem:[%s7675 + $0x98] sm:$0xff]
    %v7696 = vld [vmem:[%s7675 + $0xa0] sm:$0xff]
    %v7697 = vld [vmem:[%s7675 + $0xa8] sm:$0xff]
    %v7698 = vld [vmem:[%s7675 + $0xb0] sm:$0xff]
    %v7699 = vld [vmem:[%s7675 + $0xb8] sm:$0xff]
    %v7700 = vld [vmem:[%s7675 + $0xc0] sm:$0xff]
    %v7701 = vld [vmem:[%s7675 + $0xc8] sm:$0xff]
    %v7702 = vld [vmem:[%s7675 + $0xd0] sm:$0xff]
    %v7703 = vld [vmem:[%s7675 + $0xd8] sm:$0xff]
    %v7704 = vld [vmem:[%s7675 + $0xe0] sm:$0xff]
    %v7705 = vld [vmem:[%s7675 + $0xe8] sm:$0xff]
    %v7706 = vld [vmem:[%s7675 + $0xf0] sm:$0xff]
    %v7707 = vld [vmem:[%s7675 + $0xf8] sm:$0xff]
    %v7708 = vld [vmem:[%s7675 + $0x100] sm:$0xff]
    %v7709 = vld [vmem:[%s7675 + $0x108] sm:$0xff]
    %v7710 = vld [vmem:[%s7675 + $0x110] sm:$0xff]
    %v7711 = vld [vmem:[%s7675 + $0x118] sm:$0xff]
    %v7713 = vsel %vm7080, %v7677, 0
    %v7716 = vsel %vm7080, %v7679, 0
    %v7719 = vsel %vm7080, %v7681, 0
    %v7722 = vsel %vm7080, %v7683, 0
    %v7725 = vsel %vm7080, %v7685, 0
    %v7728 = vsel %vm7080, %v7687, 0
    %v7731 = vsel %vm7080, %v7689, 0
    %v7734 = vsel %vm7080, %v7691, 0
    %v7737 = vsel %vm7080, %v7693, 0
    %v7740 = vsel %vm7080, %v7695, 0
    %v7743 = vsel %vm7080, %v7697, 0
    %v7746 = vsel %vm7080, %v7699, 0
    %v7749 = vsel %vm7080, %v7701, 0
    %v7752 = vsel %vm7080, %v7703, 0
    %v7755 = vsel %vm7080, %v7705, 0
    %v7758 = vsel %vm7080, %v7707, 0
    %v7761 = vsel %vm7080, %v7709, 0
    %v7764 = vsel %vm7080, %v7711, 0
    %7766 = vmatprep.subr.mxu0 0.0
    %7767 = vmatpush1.msra.mxu0 %v7587
    %7768 = vmatprep.subr.mxu0 0.0
    %7769 = vmatpush1.msra.mxu0 %v7592
    %7770 = vmatprep.subr.mxu0 0.0
    %7771 = vmatpush1.msra.mxu0 %v7597
    %7772 = vmatprep.subr.mxu0 0.0
    %7773 = vmatpush1.msra.mxu0 %v7602
    %7774 = vmatprep.subr.mxu0 0.0
    %7775 = vmatpush1.msra.mxu0 %v7607
    %7776 = vmatprep.subr.mxu0 0.0
    %7777 = vmatpush1.msra.mxu0 %v7612
    %7778 = vmatprep.subr.mxu0 0.0
    %7779 = vmatpush1.msra.mxu0 %v7617
    %7780 = vmatprep.subr.mxu0 0.0
    %7781 = vmatpush1.msra.mxu0 %v7622
    %7782 = vmatprep.subr.mxu0 0.0
    %7783 = vmatpush1.msra.mxu0 %v7627
    %7784 = vmatprep.subr.mxu0 0.0
    %7785 = vmatpush1.msra.mxu0 %v7632
    %7786 = vmatprep.subr.mxu0 0.0
    %7787 = vmatpush1.msra.mxu0 %v7637
    %7788 = vmatprep.subr.mxu0 0.0
    %7789 = vmatpush1.msra.mxu0 %v7642
    %7790 = vmatprep.subr.mxu0 0.0
    %7791 = vmatpush1.msra.mxu0 %v7647
    %7792 = vmatprep.subr.mxu0 0.0
    %7793 = vmatpush1.msra.mxu0 %v7652
    %7794 = vmatprep.subr.mxu0 0.0
    %7795 = vmatpush1.msra.mxu0 %v7657
    %7796 = vmatprep.subr.mxu0 0.0
    %7797 = vmatpush1.msra.mxu0 %v7662
    %7798 = vmatprep.subr.mxu0 0.0
    %7799 = vmatpush1.msra.mxu0 %v7667
    %7800 = vmatprep.subr.mxu0 0.0
    %7801 = vmatpush1.msra.mxu0 %v7672
    %7802 = vmatprep.subr.mxu0 0.0
    %7803 = vmatpush1.msra.mxu0 0.0
    %7804 = vmatprep.subr.mxu0 0.0
    %7805 = vmatpush1.msra.mxu0 0.0
    %7806 = vmatprep.subr.mxu0 0.0
    %7807 = vmatpush1.msra.mxu0 0.0
    %7808 = vmatprep.subr.mxu0 0.0
    %7809 = vmatpush1.msra.mxu0 0.0
    %7810 = vmatprep.subr.mxu0 0.0
    %7811 = vmatpush1.msra.mxu0 0.0
    %7812 = vmatprep.subr.mxu0 0.0
    %7813 = vmatpush1.msra.mxu0 0.0
    %7814 = vmatprep.subr.mxu0 0.0
    %7815 = vmatpush1.msra.mxu0 0.0
    %7816 = vmatprep.subr.mxu0 0.0
    %7817 = vmatpush1.msra.mxu0 0.0
    %7818 = vmatprep.subr.mxu0 0.0
    %7819 = vmatpush1.msra.mxu0 0.0
    %7820 = vmatprep.subr.mxu0 0.0
    %7821 = vmatpush1.msra.mxu0 0.0
    %7822 = vmatprep.subr.mxu0 0.0
    %7823 = vmatpush1.msra.mxu0 0.0
    %7824 = vmatprep.subr.mxu0 0.0
    %7825 = vmatpush1.msra.mxu0 0.0
    %7826 = vmatprep.subr.mxu0 0.0
    %7827 = vmatpush1.msra.mxu0 0.0
    %7828 = vmatprep.subr.mxu0 0.0
    %7829 = vmatpush1.msra.mxu0 0.0
    %7830 = vmatprep.mubr.f32.mxu0 %v7713
    %7831 = vmatmul.mubr.f32.gmra.mrb[0].mxu0 %v7676
    %v7832 = vpop.f32.mrb[0].mxu0
    %v7833 = vadd.f32 0.0, %v7832
    %v7834 = vpop.f32.mrb[0].mxu0
    %7835 = vmatprep.mubr.f32.mxu0 %v7716
    %7836 = vmatmul.mubr.f32.gmra.mrb[0].mxu0 %v7678
    %v7837 = vpop.f32.mrb[0].mxu0
    %v7838 = vadd.f32 0.0, %v7837
    %v7839 = vpop.f32.mrb[0].mxu0
    %7840 = vmatprep.mubr.f32.mxu0 %v7719
    %7841 = vmatmul.mubr.f32.gmra.mrb[0].mxu0 %v7680
    %v7842 = vpop.f32.mrb[0].mxu0
    %v7843 = vadd.f32 0.0, %v7842
    %v7844 = vpop.f32.mrb[0].mxu0
    %7845 = vmatprep.mubr.f32.mxu0 %v7722
    %7846 = vmatmul.mubr.f32.gmra.mrb[0].mxu0 %v7682
    %v7847 = vpop.f32.mrb[0].mxu0
    %v7848 = vadd.f32 0.0, %v7847
    %v7849 = vpop.f32.mrb[0].mxu0
    %7850 = vmatprep.mubr.f32.mxu0 %v7725
    %7851 = vmatmul.mubr.f32.gmra.mrb[0].mxu0 %v7684
    %v7852 = vpop.f32.mrb[0].mxu0
    %v7853 = vadd.f32 0.0, %v7852
    %v7854 = vpop.f32.mrb[0].mxu0
    %7855 = vmatprep.mubr.f32.mxu0 %v7728
    %7856 = vmatmul.mubr.f32.gmra.mrb[0].mxu0 %v7686
    %v7857 = vpop.f32.mrb[0].mxu0
    %v7858 = vadd.f32 0.0, %v7857
    %v7859 = vpop.f32.mrb[0].mxu0
    %7860 = vmatprep.mubr.f32.mxu0 %v7731
    %7861 = vmatmul.mubr.f32.gmra.mrb[0].mxu0 %v7688
    %v7862 = vpop.f32.mrb[0].mxu0
    %v7863 = vadd.f32 0.0, %v7862
    %v7864 = vpop.f32.mrb[0].mxu0
    %7865 = vmatprep.mubr.f32.mxu0 %v7734
    %7866 = vmatmul.mubr.f32.gmra.mrb[0].mxu0 %v7690
    %v7867 = vpop.f32.mrb[0].mxu0
    %v7868 = vadd.f32 0.0, %v7867
    %v7869 = vpop.f32.mrb[0].mxu0
    %7870 = vmatprep.mubr.f32.mxu0 %v7737
    %7871 = vmatmul.mubr.f32.gmra.mrb[0].mxu0 %v7692
    %v7872 = vpop.f32.mrb[0].mxu0
    %v7873 = vadd.f32 0.0, %v7872
    %v7874 = vpop.f32.mrb[0].mxu0
    %7875 = vmatprep.mubr.f32.mxu0 %v7740
    %7876 = vmatmul.mubr.f32.gmra.mrb[0].mxu0 %v7694
    %v7877 = vpop.f32.mrb[0].mxu0
    %v7878 = vadd.f32 0.0, %v7877
    %v7879 = vpop.f32.mrb[0].mxu0
    %7880 = vmatprep.mubr.f32.mxu0 %v7743
    %7881 = vmatmul.mubr.f32.gmra.mrb[0].mxu0 %v7696
    %v7882 = vpop.f32.mrb[0].mxu0
    %v7883 = vadd.f32 0.0, %v7882
    %v7884 = vpop.f32.mrb[0].mxu0
    %7885 = vmatprep.mubr.f32.mxu0 %v7746
    %7886 = vmatmul.mubr.f32.gmra.mrb[0].mxu0 %v7698
    %v7887 = vpop.f32.mrb[0].mxu0
    %v7888 = vadd.f32 0.0, %v7887
    %v7889 = vpop.f32.mrb[0].mxu0
    %7890 = vmatprep.mubr.f32.mxu0 %v7749
    %7891 = vmatmul.mubr.f32.gmra.mrb[0].mxu0 %v7700
    %v7892 = vpop.f32.mrb[0].mxu0
    %v7893 = vadd.f32 0.0, %v7892
    %v7894 = vpop.f32.mrb[0].mxu0
    %7895 = vmatprep.mubr.f32.mxu0 %v7752
    %7896 = vmatmul.mubr.f32.gmra.mrb[0].mxu0 %v7702
    %v7897 = vpop.f32.mrb[0].mxu0
    %v7898 = vadd.f32 0.0, %v7897
    %v7899 = vpop.f32.mrb[0].mxu0
    %7900 = vmatprep.mubr.f32.mxu0 %v7755
    %7901 = vmatmul.mubr.f32.gmra.mrb[0].mxu0 %v7704
    %v7902 = vpop.f32.mrb[0].mxu0
    %v7903 = vadd.f32 0.0, %v7902
    %v7904 = vpop.f32.mrb[0].mxu0
    %7905 = vmatprep.mubr.f32.mxu0 %v7758
    %7906 = vmatmul.mubr.f32.gmra.mrb[0].mxu0 %v7706
    %v7907 = vpop.f32.mrb[0].mxu0
    %v7908 = vadd.f32 0.0, %v7907
    %v7909 = vpop.f32.mrb[0].mxu0
    %7910 = vmatprep.mubr.f32.mxu0 %v7761
    %7911 = vmatmul.mubr.f32.gmra.mrb[0].mxu0 %v7708
    %v7912 = vpop.f32.mrb[0].mxu0
    %v7913 = vadd.f32 0.0, %v7912
    %v7914 = vpop.f32.mrb[0].mxu0
    %7915 = vmatprep.mubr.f32.mxu0 %v7764
    %7916 = vmatmul.mubr.f32.gmra.mrb[0].mxu0 %v7710
    %v7917 = vpop.f32.mrb[0].mxu0
    %v7918 = vadd.f32 0.0, %v7917
    %v7919 = vpop.f32.mrb[0].mxu0
    %7920 = vdwg.mxu0
    %v7921 = vadd.f32 %v7411, %v7833
    %v7922 = vadd.f32 %v7416, %v7838
    %v7923 = vadd.f32 %v7421, %v7843
    %v7924 = vadd.f32 %v7426, %v7848
    %v7925 = vadd.f32 %v7431, %v7853
    %v7926 = vadd.f32 %v7436, %v7858
    %v7927 = vadd.f32 %v7441, %v7863
    %v7928 = vadd.f32 %v7446, %v7868
    %v7929 = vadd.f32 %v7451, %v7873
    %v7930 = vadd.f32 %v7456, %v7878
    %v7931 = vadd.f32 %v7461, %v7883
    %v7932 = vadd.f32 %v7466, %v7888
    %v7933 = vadd.f32 %v7471, %v7893
    %v7934 = vadd.f32 %v7476, %v7898
    %v7935 = vadd.f32 %v7481, %v7903
    %v7936 = vadd.f32 %v7486, %v7908
    %v7937 = vadd.f32 %v7491, %v7913
    %v7938 = vadd.f32 %v7496, %v7918
    %v7939 = vld [vmem:[%s12 + $0x14] ss:$0 sm:$0xff]
    %v7940 = vadd.f32 %v7921, %v7939
    %v7941 = vadd.f32 %v7922, %v7939
    %v7942 = vadd.f32 %v7923, %v7939
    %v7943 = vadd.f32 %v7924, %v7939
    %v7944 = vadd.f32 %v7925, %v7939
    %v7945 = vadd.f32 %v7926, %v7939
    %v7946 = vadd.f32 %v7927, %v7939
    %v7947 = vadd.f32 %v7928, %v7939
    %v7948 = vadd.f32 %v7929, %v7939
    %v7949 = vadd.f32 %v7930, %v7939
    %v7950 = vadd.f32 %v7931, %v7939
    %v7951 = vadd.f32 %v7932, %v7939
    %v7952 = vadd.f32 %v7933, %v7939
    %v7953 = vadd.f32 %v7934, %v7939
    %v7954 = vadd.f32 %v7935, %v7939
    %v7955 = vadd.f32 %v7936, %v7939
    %v7956 = vadd.f32 %v7937, %v7939
    %v7957 = vadd.f32 %v7938, %v7939
    %7958 = vst.msk [vmem:[%s13] sm:$0xff] %vm189, %v7940
    %7959 = vst.msk [vmem:[%s13 + $0x8] sm:$0xff] %vm189, %v7941
    %7960 = vst.msk [vmem:[%s13 + $0x10] sm:$0xff] %vm189, %v7942
    %7961 = vst.msk [vmem:[%s13 + $0x18] sm:$0xff] %vm189, %v7943
    %7962 = vst.msk [vmem:[%s13 + $0x20] sm:$0xff] %vm189, %v7944
    %7963 = vst.msk [vmem:[%s13 + $0x28] sm:$0xff] %vm189, %v7945
    %7964 = vst.msk [vmem:[%s13 + $0x30] sm:$0xff] %vm189, %v7946
    %7965 = vst.msk [vmem:[%s13 + $0x38] sm:$0xff] %vm189, %v7947
    %7966 = vst.msk [vmem:[%s13 + $0x40] sm:$0xff] %vm189, %v7948
    %7967 = vst.msk [vmem:[%s13 + $0x48] sm:$0xff] %vm189, %v7949
    %7968 = vst.msk [vmem:[%s13 + $0x50] sm:$0xff] %vm189, %v7950
    %7969 = vst.msk [vmem:[%s13 + $0x58] sm:$0xff] %vm189, %v7951
    %7970 = vst.msk [vmem:[%s13 + $0x60] sm:$0xff] %vm189, %v7952
    %7971 = vst.msk [vmem:[%s13 + $0x68] sm:$0xff] %vm189, %v7953
    %7972 = vst.msk [vmem:[%s13 + $0x70] sm:$0xff] %vm189, %v7954
    %7973 = vst.msk [vmem:[%s13 + $0x78] sm:$0xff] %vm189, %v7955
    %7974 = vst.msk [vmem:[%s13 + $0x80] sm:$0xff] %vm189, %v7956
    %7975 = vst.msk [vmem:[%s13 + $0x88] sm:$0xff] %vm189, %v7957
    // Predicated region
    $region94: #{forward.1} parent=1 // pred_check
      _
    $region95: #{forward.1} parent=1 // pred_check_branch
      %7977 = sbr.rel (0) target = $region97
    $region96: #{forward.1} parent=1 // pred_region
      _
    $region97: #{forward.1} parent=1 // pred_fallthru
      _
    // Predicated region
    $region98: #{forward.1} parent=1 // pred_check
      _
    $region99: #{forward.1} parent=1 // pred_check_branch
      %7979 = sbr.rel (0) target = $region101
    $region100: #{forward.1} parent=1 // pred_region
      _
    $region101: #{forward.1} parent=1 // pred_fallthru
      _
    %7980 = vsyncpa [#allocation3], 1
    %7981 = vsyncpa [#allocation5], 1
    %7982 = vsyncpa [#allocation8], 1
    %7983 = vsyncpa [#allocation11], 1
    %7984 = vsyncpa [#allocation14], 1
    %7985 = vsyncpa [#allocation17], 1

</llo_original>
